<compile_context>
chip_gen: v7x
topology: tpu7x:2x2x1
jax: 0.10.0
libtpu: 0.0.40
codegen_flags: <defaults>
</compile_context>

<pallas_src>
import functools
import numpy as np
import jax
import jax.numpy as jnp
from jax import lax
from jax.experimental import pallas as pl
from jax.experimental.pallas import tpu as pltpu

LN_EPS = 1e-5


def _gelu_tanh(x):
    # TODO(synk): nn.GELU() default is exact-erf; tanh approximation used here.
    c = float(np.sqrt(2.0 / np.pi))
    return 0.5 * x * (1.0 + jnp.tanh(c * (x + 0.044715 * x * x * x)))


def _adaptive_pool_matrix(n_in, n_out):
    """(n_out, n_in) matrix implementing 1-D AdaptiveAvgPool."""
    P = np.zeros((n_out, n_in), np.float32)
    for i in range(n_out):
        s = (i * n_in) // n_out
        e = -((-(i + 1) * n_in) // n_out)       # ceil((i+1)*n_in/n_out)
        P[i, s:e] = 1.0 / (e - s)
    return P


def _bilinear_matrix(n_in, n_out):
    """(n_out, n_in) matrix for 1-D bilinear resize, align_corners=False."""
    A = np.zeros((n_out, n_in), np.float32)
    scale = n_in / n_out
    for i in range(n_out):
        src = max((i + 0.5) * scale - 0.5, 0.0)
        i0 = min(int(np.floor(src)), n_in - 1)
        i1 = min(i0 + 1, n_in - 1)
        w1 = src - i0
        A[i, i0] += 1.0 - w1
        A[i, i1] += w1
    return A


def _resample_matrices(H, W, va, ha):
    pool2d = np.kron(_adaptive_pool_matrix(H, va),
                     _adaptive_pool_matrix(W, ha))          # (va*ha, H*W)
    up2d = np.kron(_bilinear_matrix(va, H),
                   _bilinear_matrix(ha, W))                 # (H*W, va*ha)
    return pool2d.astype(np.float32), up2d.astype(np.float32)


def _padded_bytes(shape, dtype):
    """(8,128)-style padded VMEM footprint of one block."""
    itemsize = np.dtype(dtype).itemsize
    sub = {4: 8, 2: 16, 1: 32}[itemsize]
    s = list(shape) if len(shape) >= 2 else [1] + list(shape)
    s[-1] = -(-s[-1] // 128) * 128
    s[-2] = -(-s[-2] // sub) * sub
    return int(np.prod(s)) * itemsize


def _gpt_kernel(nh, tb,
                xin_ref, pos_ref, poolT_ref, upT_ref,
                wqkv_ref, bqkv_ref, wo_ref, w1_ref, b1_ref, w2_ref,
                cols_ref, lnf_ref,
                out_ref):
    f32, bf16 = jnp.float32, jnp.bfloat16
    D = pos_ref.shape[0]
    N = pos_ref.shape[1]            # TB * S
    S = N // tb
    dk = D // nh
    L = wqkv_ref.shape[0]

    def ln_feat(x, g, b):
        # LayerNorm over d_model (= axis 0 in feature-major layout).
        mu = jnp.mean(x, axis=0, keepdims=True)
        xc = x - mu
        var = jnp.mean(xc * xc, axis=0, keepdims=True)
        return xc * lax.rsqrt(var + LN_EPS) * g + b

    # -------- tokenize: AdaptiveAvgPool folded into a block-diag matmul ------
    toks = [jnp.dot(xin_ref[bb], poolT_ref[...], preferred_element_type=f32)
            for bb in range(tb)]                              # each (D, S)
    x = jnp.concatenate(toks, axis=1) if tb > 1 else toks[0]  # (D, N) f32
    x = x + pos_ref[...]
    # TODO(synk): nn.Dropout (embd/attn/resid) are identity (eval mode only).

    # -------- transformer layer stack (resident weights, in-kernel loop) -----
    def layer(li, x):
        cols = cols_ref[li]                                   # (D, 6) f32
        # ---- multi-head self-attention ----
        xln = ln_feat(x, cols[:, 0:1], cols[:, 1:2]).astype(bf16)
        qkv = jnp.dot(wqkv_ref[li], xln,
                      preferred_element_type=f32) + bqkv_ref[li]      # (3D, N)

        outs = []
        for bb in range(tb):
            qkv_b = qkv[:, bb * S:(bb + 1) * S]               # (3D, S)
            heads = []
            for hh in range(nh):
                qh = qkv_b[hh * dk:(hh + 1) * dk, :].astype(bf16)          # (dk,S)
                kh = qkv_b[D + hh * dk:D + (hh + 1) * dk, :].astype(bf16)
                vh = qkv_b[2 * D + hh * dk:2 * D + (hh + 1) * dk, :].astype(bf16)
                # Scores in (key, query) orientation so the softmax sums land
                # as a (1, S) lane vector (deferred normalization).  1/sqrt(dk)
                # is already folded into wq/bq.
                att = lax.dot_general(kh, qh, (((0,), (0,)), ((), ())),
                                      preferred_element_type=f32)     # (Sk,Sq)
                att = att - jnp.max(att, axis=0, keepdims=True)
                p = jnp.exp(att)                                       # f32
                inv = pl.reciprocal(jnp.sum(p, axis=0, keepdims=True),
                                    approx=True)                       # (1,Sq)
                hv = jnp.dot(vh, p.astype(bf16),
                             preferred_element_type=f32)               # (dk,Sq)
                heads.append(hv * inv)
            outs.append(jnp.concatenate(heads, axis=0))                # (D, S)
        o = (jnp.concatenate(outs, axis=1) if tb > 1 else outs[0]).astype(bf16)
        x = x + jnp.dot(wo_ref[li], o,
                        preferred_element_type=f32) + cols[:, 4:5]

        # ---- MLP ----
        xln2 = ln_feat(x, cols[:, 2:3], cols[:, 3:4]).astype(bf16)
        h1 = jnp.dot(w1_ref[li], xln2,
                     preferred_element_type=f32) + b1_ref[li]          # (4D, N)
        h1 = _gelu_tanh(h1).astype(bf16)
        x = x + jnp.dot(w2_ref[li], h1,
                        preferred_element_type=f32) + cols[:, 5:6]
        return x

    x = lax.fori_loop(0, L, layer, x, unroll=True)

    # -------- final LN + bilinear upsample (block-diag matmul) ---------------
    xf = ln_feat(x, lnf_ref[:, 0:1], lnf_ref[:, 1:2]).astype(bf16)     # (D, N)
    for bb in range(tb):
        out_ref[bb] = jnp.dot(xf[:, bb * S:(bb + 1) * S], upT_ref[...],
                              preferred_element_type=f32)              # (D,2HW)


def gpt_forward(rgb, ir, params, *, num_heads, pool2d, up2d, batch_tile=None):
    """rgb/ir: (B, d_model, H, W) f32 -> (rgb_out, ir_out) each (B, d_model, H, W)."""
    B, D, H, W = rgb.shape
    HW = H * W
    NA = pool2d.shape[0]
    S = 2 * NA
    L = params['wq'].shape[0]
    DF = params['w1'].shape[1]
    assert D % num_heads == 0
    dk = D // num_heads

    if batch_tile is None:
        batch_tile = 2 if B % 2 == 0 else 1   # N = 2*S = 256 fills the 256-wide MXU
    TB = batch_tile
    assert B % TB == 0
    N = TB * S

    f32, bf16 = jnp.float32, jnp.bfloat16

    # ---- constant resampling matrices, block-diag over [rgb | ir] ----------
    poolT = np.asarray(pool2d, np.float32).T                  # (HW, NA)
    upT = np.asarray(up2d, np.float32).T                      # (NA, HW)
    pool_blkT = np.zeros((2 * HW, S), np.float32)
    pool_blkT[:HW, :NA] = poolT
    pool_blkT[HW:, NA:] = poolT
    up_blkT = np.zeros((S, 2 * HW), np.float32)
    up_blkT[:NA, :HW] = upT
    up_blkT[NA:, HW:] = upT
    pool_blkT = jnp.asarray(pool_blkT, bf16)
    up_blkT = jnp.asarray(up_blkT, bf16)

    # ---- parameter packing: 1/sqrt(dk) folded into wq/bq, bf16 weights -----
    inv_sqrt_dk = 1.0 / float(np.sqrt(dk))
    wqkv = jnp.concatenate([params['wq'] * inv_sqrt_dk, params['wk'],
                            params['wv']], axis=1).astype(bf16)        # (L,3D,D)
    bqkv = jnp.concatenate([params['bq'] * inv_sqrt_dk, params['bk'],
                            params['bv']], axis=1)[..., None].astype(f32)
    wo = params['wo'].astype(bf16)                            # (L, D, D)
    w1 = params['w1'].astype(bf16)                            # (L, DF, D)
    b1 = params['b1'][..., None].astype(f32)                  # (L, DF, 1)
    w2 = params['w2'].astype(bf16)                            # (L, D, DF)
    cols = jnp.stack([params['ln1_g'], params['ln1_b'], params['ln2_g'],
                      params['ln2_b'], params['bo'], params['b2']],
                     axis=-1).astype(f32)                     # (L, D, 6)
    lnf = jnp.stack([params['lnf_g'], params['lnf_b']], axis=-1).astype(f32)
    posT = jnp.tile(params['pos_emb'][0].T, (1, TB)).astype(f32)        # (D, N)

    # fused [rgb | ir] input, feature-major flattened spatial, bf16 MXU feed
    xin = jnp.concatenate([rgb.reshape(B, D, HW), ir.reshape(B, D, HW)],
                          axis=2).astype(bf16)                # (B, D, 2*HW)

    per_b = lambda b: (b, 0, 0)
    rep3 = lambda b: (0, 0, 0)
    rep2 = lambda b: (0, 0)

    kernel = functools.partial(_gpt_kernel, num_heads, TB)

    blocks = [((TB, D, 2 * HW), bf16), ((D, N), f32),
              ((2 * HW, S), bf16), ((S, 2 * HW), bf16),
              ((L, 3 * D, D), bf16), ((L, 3 * D, 1), f32), ((L, D, D), bf16),
              ((L, DF, D), bf16), ((L, DF, 1), f32), ((L, D, DF), bf16),
              ((L, D, 6), f32), ((D, 2), f32), ((TB, D, 2 * HW), f32)]
    vmem_limit = min(2 * sum(_padded_bytes(s, d) for s, d in blocks) + (8 << 20),
                     64 << 20)

    out = pl.pallas_call(
        kernel,
        out_shape=jax.ShapeDtypeStruct((B, D, 2 * HW), f32),
        grid=(B // TB,),
        in_specs=[
            pl.BlockSpec((TB, D, 2 * HW), per_b),             # fused [rgb|ir] input
            pl.BlockSpec((D, N), rep2),                       # pos_emb^T tiled to TB
            pl.BlockSpec((2 * HW, S), rep2),                  # block-diag pool^T
            pl.BlockSpec((S, 2 * HW), rep2),                  # block-diag upsample^T
            pl.BlockSpec((L, 3 * D, D), rep3),                # fused Wq|Wk|Wv (resident)
            pl.BlockSpec((L, 3 * D, 1), rep3),                # fused bq|bk|bv
            pl.BlockSpec((L, D, D), rep3),                    # Wo
            pl.BlockSpec((L, DF, D), rep3),                   # MLP W1
            pl.BlockSpec((L, DF, 1), rep3),                   # MLP b1
            pl.BlockSpec((L, D, DF), rep3),                   # MLP W2
            pl.BlockSpec((L, D, 6), rep3),                    # [g1,b1,g2,b2,bo,b2]
            pl.BlockSpec((D, 2), rep2),                       # final LN gamma/beta
        ],
        out_specs=pl.BlockSpec((TB, D, 2 * HW), per_b),       # fused [rgb|ir] output
        compiler_params=pltpu.CompilerParams(
            dimension_semantics=("parallel",),
            vmem_limit_bytes=int(vmem_limit)),
    )(xin, posT, pool_blkT, up_blkT, wqkv, bqkv, wo, w1, b1, w2, cols, lnf)

    rgb_out = out[:, :, :HW].reshape(B, D, H, W)
    ir_out = out[:, :, HW:].reshape(B, D, H, W)
    return rgb_out, ir_out


def gpt_reference(rgb, ir, params, *, num_heads, pool2d, up2d):
    """Pure-JAX f32 reference of the same math (token-major layout)."""
    B, D, H, W = rgb.shape
    NA = pool2d.shape[0]
    S = 2 * NA
    L = params['wq'].shape[0]
    dk = D // num_heads

    def ln(x, g, b):
        mu = jnp.mean(x, axis=-1, keepdims=True)
        xc = x - mu
        var = jnp.mean(xc * xc, axis=-1, keepdims=True)
        return xc * lax.rsqrt(var + LN_EPS) * g + b

    rgb_tok = jnp.einsum('bdp,ap->bda', rgb.reshape(B, D, H * W), pool2d)
    ir_tok = jnp.einsum('bdp,ap->bda', ir.reshape(B, D, H * W), pool2d)
    x = jnp.transpose(jnp.concatenate([rgb_tok, ir_tok], axis=2), (0, 2, 1))
    x = x + params['pos_emb']                                 # (B, S, D)

    for li in range(L):
        h = ln(x, params['ln1_g'][li], params['ln1_b'][li])
        q = h @ params['wq'][li].T + params['bq'][li]
        k = h @ params['wk'][li].T + params['bk'][li]
        v = h @ params['wv'][li].T + params['bv'][li]
        q = q.reshape(B, S, num_heads, dk).transpose(0, 2, 1, 3)
        k = k.reshape(B, S, num_heads, dk).transpose(0, 2, 1, 3)
        v = v.reshape(B, S, num_heads, dk).transpose(0, 2, 1, 3)
        att = jnp.einsum('bhqd,bhkd->bhqk', q, k) / np.sqrt(dk)
        att = jax.nn.softmax(att, axis=-1)
        o = jnp.einsum('bhqk,bhkd->bhqd', att, v)
        o = o.transpose(0, 2, 1, 3).reshape(B, S, D)
        x = x + o @ params['wo'][li].T + params['bo'][li]
        h2 = ln(x, params['ln2_g'][li], params['ln2_b'][li])
        m = _gelu_tanh(h2 @ params['w1'][li].T + params['b1'][li])
        x = x + m @ params['w2'][li].T + params['b2'][li]

    x = ln(x, params['lnf_g'], params['lnf_b'])               # (B, S, D)
    x = x.reshape(B, 2, NA, D)
    rgb_o = jnp.einsum('bad,pa->bdp', x[:, 0], up2d).reshape(B, D, H, W)
    ir_o = jnp.einsum('bad,pa->bdp', x[:, 1], up2d).reshape(B, D, H, W)
    return rgb_o, ir_o


if __name__ == "__main__":
    B, D, H, W = 2, 32, 16, 16          # d_model=32
    NH, L, VA, HA = 4, 2, 8, 8          # heads=4, n_layer=2, 8x8 anchors
    DF = 4 * D                          # block_exp=4
    S = 2 * VA * HA                     # 128 tokens

    key = jax.random.PRNGKey(0)
    ks = jax.random.split(key, 24)
    r = lambda k, shp, s: jax.random.normal(k, shp, jnp.float32) * s

    params = {
        'pos_emb': r(ks[0], (1, S, D), 0.02),
        'ln1_g': 1.0 + r(ks[1], (L, D), 0.02),
        'ln1_b': r(ks[2], (L, D), 0.02),
        'ln2_g': 1.0 + r(ks[3], (L, D), 0.02),
        'ln2_b': r(ks[4], (L, D), 0.02),
        'lnf_g': 1.0 + r(ks[5], (D,), 0.02),
        'lnf_b': r(ks[6], (D,), 0.02),
        'wq': r(ks[7], (L, D, D), 0.05), 'bq': r(ks[8], (L, D), 0.02),
        'wk': r(ks[9], (L, D, D), 0.05), 'bk': r(ks[10], (L, D), 0.02),
        'wv': r(ks[11], (L, D, D), 0.05), 'bv': r(ks[12], (L, D), 0.02),
        'wo': r(ks[13], (L, D, D), 0.05), 'bo': r(ks[14], (L, D), 0.02),
        'w1': r(ks[15], (L, DF, D), 0.05), 'b1': r(ks[16], (L, DF), 0.02),
        'w2': r(ks[17], (L, D, DF), 0.05), 'b2': r(ks[18], (L, D), 0.02),
    }
    rgb = jax.random.normal(ks[19], (B, D, H, W), jnp.float32)
    ir = jax.random.normal(ks[20], (B, D, H, W), jnp.float32)

    pool2d, up2d = _resample_matrices(H, W, VA, HA)

    rgb_out, ir_out = gpt_forward(rgb, ir, params, num_heads=NH,
                                  pool2d=pool2d, up2d=up2d)
    jax.block_until_ready((rgb_out, ir_out))
    assert rgb_out.shape == (B, D, H, W) and ir_out.shape == (B, D, H, W)

    ref_rgb, ref_ir = gpt_reference(rgb, ir, params, num_heads=NH,
                                    pool2d=jnp.asarray(pool2d),
                                    up2d=jnp.asarray(up2d))
    jax.block_until_ready((ref_rgb, ref_ir))
    # bf16 weights / matmul activations (f32 accumulation) vs f32 reference.
    np.testing.assert_allclose(np.asarray(rgb_out), np.asarray(ref_rgb),
                               rtol=2e-2, atol=1.5e-2)
    np.testing.assert_allclose(np.asarray(ir_out), np.asarray(ref_ir),
                               rtol=2e-2, atol=1.5e-2)
    print("KERNEL_OK")
</pallas_src>

<mosaic_0001>
module attributes {stable_mosaic.version = 11 : i64} {
  func.func @_gpt_kernel(%arg0: i32, %arg1: memref<2x32x512xbf16, #tpu.memory_space<vmem>>, %arg2: memref<32x256xf32, #tpu.memory_space<vmem>>, %arg3: memref<512x128xbf16, #tpu.memory_space<vmem>>, %arg4: memref<128x512xbf16, #tpu.memory_space<vmem>>, %arg5: memref<2x96x32xbf16, #tpu.memory_space<vmem>>, %arg6: memref<2x96x1xf32, #tpu.memory_space<vmem>>, %arg7: memref<2x32x32xbf16, #tpu.memory_space<vmem>>, %arg8: memref<2x128x32xbf16, #tpu.memory_space<vmem>>, %arg9: memref<2x128x1xf32, #tpu.memory_space<vmem>>, %arg10: memref<2x32x128xbf16, #tpu.memory_space<vmem>>, %arg11: memref<2x32x6xf32, #tpu.memory_space<vmem>>, %arg12: memref<32x2xf32, #tpu.memory_space<vmem>>, %arg13: memref<2x32x512xf32, #tpu.memory_space<vmem>>) attributes {dimension_semantics = [#tpu.dimension_semantics<parallel>], iteration_bounds = array<i64: 1>, scalar_prefetch = 0 : i64, scratch_operands = 0 : i64, tpu.core_type = #tpu.core_type<tc>, window_params = [{transform_indices = @transform_0, window_bounds = array<i64: 2, 32, 512>}, {pipeline_mode = #tpu.pipeline_mode<synchronous>, transform_indices = @transform_1, window_bounds = array<i64: 32, 256>}, {pipeline_mode = #tpu.pipeline_mode<synchronous>, transform_indices = @transform_2, window_bounds = array<i64: 512, 128>}, {pipeline_mode = #tpu.pipeline_mode<synchronous>, transform_indices = @transform_3, window_bounds = array<i64: 128, 512>}, {pipeline_mode = #tpu.pipeline_mode<synchronous>, transform_indices = @transform_4, window_bounds = array<i64: 2, 96, 32>}, {pipeline_mode = #tpu.pipeline_mode<synchronous>, transform_indices = @transform_5, window_bounds = array<i64: 2, 96, 1>}, {pipeline_mode = #tpu.pipeline_mode<synchronous>, transform_indices = @transform_6, window_bounds = array<i64: 2, 32, 32>}, {pipeline_mode = #tpu.pipeline_mode<synchronous>, transform_indices = @transform_7, window_bounds = array<i64: 2, 128, 32>}, {pipeline_mode = #tpu.pipeline_mode<synchronous>, transform_indices = @transform_8, window_bounds = array<i64: 2, 128, 1>}, {pipeline_mode = #tpu.pipeline_mode<synchronous>, transform_indices = @transform_9, window_bounds = array<i64: 2, 32, 128>}, {pipeline_mode = #tpu.pipeline_mode<synchronous>, transform_indices = @transform_10, window_bounds = array<i64: 2, 32, 6>}, {pipeline_mode = #tpu.pipeline_mode<synchronous>, transform_indices = @transform_11, window_bounds = array<i64: 32, 2>}, {transform_indices = @transform_12, window_bounds = array<i64: 2, 32, 512>}]} {
    %c0 = arith.constant 0 : index
    %c0_0 = arith.constant 0 : index
    %c0_1 = arith.constant 0 : index
    %0 = vector.load %arg1[%c0, %c0_0, %c0_1] : memref<2x32x512xbf16, #tpu.memory_space<vmem>>, vector<1x32x512xbf16>
    %1 = vector.shape_cast %0 : vector<1x32x512xbf16> to vector<32x512xbf16>
    %c0_2 = arith.constant 0 : index
    %c0_3 = arith.constant 0 : index
    %2 = vector.load %arg3[%c0_2, %c0_3] : memref<512x128xbf16, #tpu.memory_space<vmem>>, vector<512x128xbf16>
    %cst = arith.constant dense<0.000000e+00> : vector<32x128xf32>
    %3 = tpu.matmul %1, %2, %cst {dimension_numbers = #tpu.dot_dimension_numbers<[1], [0], [0], [1], [0, 0, 1, 1], [], []>} : vector<32x512xbf16>, vector<512x128xbf16>, vector<32x128xf32> -> vector<32x128xf32>
    %c1 = arith.constant 1 : index
    %c0_4 = arith.constant 0 : index
    %c0_5 = arith.constant 0 : index
    %4 = vector.load %arg1[%c1, %c0_4, %c0_5] : memref<2x32x512xbf16, #tpu.memory_space<vmem>>, vector<1x32x512xbf16>
    %5 = vector.shape_cast %4 : vector<1x32x512xbf16> to vector<32x512xbf16>
    %c0_6 = arith.constant 0 : index
    %c0_7 = arith.constant 0 : index
    %6 = vector.load %arg3[%c0_6, %c0_7] : memref<512x128xbf16, #tpu.memory_space<vmem>>, vector<512x128xbf16>
    %cst_8 = arith.constant dense<0.000000e+00> : vector<32x128xf32>
    %7 = tpu.matmul %5, %6, %cst_8 {dimension_numbers = #tpu.dot_dimension_numbers<[1], [0], [0], [1], [0, 0, 1, 1], [], []>} : vector<32x512xbf16>, vector<512x128xbf16>, vector<32x128xf32> -> vector<32x128xf32>
    %8 = tpu.concatenate %3, %7 in 1 : vector<32x128xf32>, vector<32x128xf32> -> vector<32x256xf32>
    %c0_9 = arith.constant 0 : index
    %c0_10 = arith.constant 0 : index
    %9 = vector.load %arg2[%c0_9, %c0_10] : memref<32x256xf32, #tpu.memory_space<vmem>>, vector<32x256xf32>
    %10 = arith.addf %8, %9 : vector<32x256xf32>
    %c0_i32 = arith.constant 0 : i32
    %11 = arith.index_cast %c0_i32 : i32 to index
    %c0_11 = arith.constant 0 : index
    %c0_12 = arith.constant 0 : index
    %12 = vector.load %arg11[%11, %c0_11, %c0_12] : memref<2x32x6xf32, #tpu.memory_space<vmem>>, vector<1x32x6xf32>
    %13 = vector.shape_cast %12 : vector<1x32x6xf32> to vector<32x6xf32>
    %14 = vector.extract_strided_slice %13 {offsets = [0, 0], sizes = [32, 1], strides = [1, 1]} : vector<32x6xf32> to vector<32x1xf32>
    %15 = vector.extract_strided_slice %13 {offsets = [0, 1], sizes = [32, 1], strides = [1, 1]} : vector<32x6xf32> to vector<32x1xf32>
    %cst_13 = arith.constant dense<0.000000e+00> : vector<256xf32>
    %16 = vector.multi_reduction <add>, %10, %cst_13 [0] : vector<32x256xf32> to vector<256xf32>
    %17 = vector.shape_cast %16 : vector<256xf32> to vector<1x256xf32>
    %cst_14 = arith.constant 3.200000e+01 : f32
    %18 = vector.broadcast %cst_14 : f32 to vector<1x256xf32>
    %19 = arith.divf %17, %18 : vector<1x256xf32>
    %20 = vector.broadcast %19 : vector<1x256xf32> to vector<32x256xf32>
    %21 = arith.subf %10, %20 : vector<32x256xf32>
    %22 = arith.mulf %21, %21 : vector<32x256xf32>
    %cst_15 = arith.constant dense<0.000000e+00> : vector<256xf32>
    %23 = vector.multi_reduction <add>, %22, %cst_15 [0] : vector<32x256xf32> to vector<256xf32>
    %24 = vector.shape_cast %23 : vector<256xf32> to vector<1x256xf32>
    %cst_16 = arith.constant 3.200000e+01 : f32
    %25 = vector.broadcast %cst_16 : f32 to vector<1x256xf32>
    %26 = arith.divf %24, %25 : vector<1x256xf32>
    %cst_17 = arith.constant 9.99999974E-6 : f32
    %27 = vector.broadcast %cst_17 : f32 to vector<1x256xf32>
    %28 = arith.addf %26, %27 : vector<1x256xf32>
    %29 = math.rsqrt %28 : vector<1x256xf32>
    %30 = vector.broadcast %29 : vector<1x256xf32> to vector<32x256xf32>
    %31 = arith.mulf %21, %30 : vector<32x256xf32>
    %32 = vector.broadcast %14 : vector<32x1xf32> to vector<32x256xf32>
    %33 = arith.mulf %31, %32 : vector<32x256xf32>
    %34 = vector.broadcast %15 : vector<32x1xf32> to vector<32x256xf32>
    %35 = arith.addf %33, %34 : vector<32x256xf32>
    %36 = arith.truncf %35 : vector<32x256xf32> to vector<32x256xbf16>
    %37 = arith.index_cast %c0_i32 : i32 to index
    %c0_18 = arith.constant 0 : index
    %c0_19 = arith.constant 0 : index
    %38 = vector.load %arg5[%37, %c0_18, %c0_19] : memref<2x96x32xbf16, #tpu.memory_space<vmem>>, vector<1x96x32xbf16>
    %39 = vector.shape_cast %38 : vector<1x96x32xbf16> to vector<96x32xbf16>
    %cst_20 = arith.constant dense<0.000000e+00> : vector<96x256xf32>
    %40 = tpu.matmul %39, %36, %cst_20 {dimension_numbers = #tpu.dot_dimension_numbers<[1], [0], [0], [1], [0, 0, 1, 1], [], []>} : vector<96x32xbf16>, vector<32x256xbf16>, vector<96x256xf32> -> vector<96x256xf32>
    %41 = arith.index_cast %c0_i32 : i32 to index
    %c0_21 = arith.constant 0 : index
    %c0_22 = arith.constant 0 : index
    %42 = vector.load %arg6[%41, %c0_21, %c0_22] : memref<2x96x1xf32, #tpu.memory_space<vmem>>, vector<1x96x1xf32>
    %43 = vector.shape_cast %42 : vector<1x96x1xf32> to vector<96x1xf32>
    %44 = vector.broadcast %43 : vector<96x1xf32> to vector<96x256xf32>
    %45 = arith.addf %40, %44 : vector<96x256xf32>
    %46 = vector.extract_strided_slice %45 {offsets = [0, 0], sizes = [96, 128], strides = [1, 1]} : vector<96x256xf32> to vector<96x128xf32>
    %47 = vector.extract_strided_slice %46 {offsets = [0, 0], sizes = [8, 128], strides = [1, 1]} : vector<96x128xf32> to vector<8x128xf32>
    %48 = arith.truncf %47 : vector<8x128xf32> to vector<8x128xbf16>
    %49 = vector.extract_strided_slice %46 {offsets = [32, 0], sizes = [8, 128], strides = [1, 1]} : vector<96x128xf32> to vector<8x128xf32>
    %50 = arith.truncf %49 : vector<8x128xf32> to vector<8x128xbf16>
    %51 = vector.extract_strided_slice %46 {offsets = [64, 0], sizes = [8, 128], strides = [1, 1]} : vector<96x128xf32> to vector<8x128xf32>
    %52 = arith.truncf %51 : vector<8x128xf32> to vector<8x128xbf16>
    %cst_23 = arith.constant dense<0.000000e+00> : vector<128x128xf32>
    %53 = tpu.matmul %50, %48, %cst_23 {dimension_numbers = #tpu.dot_dimension_numbers<[0], [0], [1], [1], [0, 1, 1, 1], [], []>} : vector<8x128xbf16>, vector<8x128xbf16>, vector<128x128xf32> -> vector<128x128xf32>
    %cst_24 = arith.constant dense<0xFF800000> : vector<128xf32>
    %54 = vector.multi_reduction <maximumf>, %53, %cst_24 [0] : vector<128x128xf32> to vector<128xf32>
    %55 = vector.shape_cast %54 : vector<128xf32> to vector<1x128xf32>
    %56 = vector.broadcast %55 : vector<1x128xf32> to vector<128x128xf32>
    %57 = arith.subf %53, %56 : vector<128x128xf32>
    %58 = math.exp %57 : vector<128x128xf32>
    %cst_25 = arith.constant dense<0.000000e+00> : vector<128xf32>
    %59 = vector.multi_reduction <add>, %58, %cst_25 [0] : vector<128x128xf32> to vector<128xf32>
    %60 = vector.shape_cast %59 : vector<128xf32> to vector<1x128xf32>
    %61 = tpu.reciprocal %60 {approx = true} : vector<1x128xf32> -> vector<1x128xf32>
    %62 = arith.truncf %58 : vector<128x128xf32> to vector<128x128xbf16>
    %cst_26 = arith.constant dense<0.000000e+00> : vector<8x128xf32>
    %63 = tpu.matmul %52, %62, %cst_26 {dimension_numbers = #tpu.dot_dimension_numbers<[1], [0], [0], [1], [0, 0, 1, 1], [], []>} : vector<8x128xbf16>, vector<128x128xbf16>, vector<8x128xf32> -> vector<8x128xf32>
    %64 = vector.broadcast %61 : vector<1x128xf32> to vector<8x128xf32>
    %65 = arith.mulf %63, %64 : vector<8x128xf32>
    %66 = vector.extract_strided_slice %46 {offsets = [8, 0], sizes = [8, 128], strides = [1, 1]} : vector<96x128xf32> to vector<8x128xf32>
    %67 = arith.truncf %66 : vector<8x128xf32> to vector<8x128xbf16>
    %68 = vector.extract_strided_slice %46 {offsets = [40, 0], sizes = [8, 128], strides = [1, 1]} : vector<96x128xf32> to vector<8x128xf32>
    %69 = arith.truncf %68 : vector<8x128xf32> to vector<8x128xbf16>
    %70 = vector.extract_strided_slice %46 {offsets = [72, 0], sizes = [8, 128], strides = [1, 1]} : vector<96x128xf32> to vector<8x128xf32>
    %71 = arith.truncf %70 : vector<8x128xf32> to vector<8x128xbf16>
    %cst_27 = arith.constant dense<0.000000e+00> : vector<128x128xf32>
    %72 = tpu.matmul %69, %67, %cst_27 {dimension_numbers = #tpu.dot_dimension_numbers<[0], [0], [1], [1], [0, 1, 1, 1], [], []>} : vector<8x128xbf16>, vector<8x128xbf16>, vector<128x128xf32> -> vector<128x128xf32>
    %cst_28 = arith.constant dense<0xFF800000> : vector<128xf32>
    %73 = vector.multi_reduction <maximumf>, %72, %cst_28 [0] : vector<128x128xf32> to vector<128xf32>
    %74 = vector.shape_cast %73 : vector<128xf32> to vector<1x128xf32>
    %75 = vector.broadcast %74 : vector<1x128xf32> to vector<128x128xf32>
    %76 = arith.subf %72, %75 : vector<128x128xf32>
    %77 = math.exp %76 : vector<128x128xf32>
    %cst_29 = arith.constant dense<0.000000e+00> : vector<128xf32>
    %78 = vector.multi_reduction <add>, %77, %cst_29 [0] : vector<128x128xf32> to vector<128xf32>
    %79 = vector.shape_cast %78 : vector<128xf32> to vector<1x128xf32>
    %80 = tpu.reciprocal %79 {approx = true} : vector<1x128xf32> -> vector<1x128xf32>
    %81 = arith.truncf %77 : vector<128x128xf32> to vector<128x128xbf16>
    %cst_30 = arith.constant dense<0.000000e+00> : vector<8x128xf32>
    %82 = tpu.matmul %71, %81, %cst_30 {dimension_numbers = #tpu.dot_dimension_numbers<[1], [0], [0], [1], [0, 0, 1, 1], [], []>} : vector<8x128xbf16>, vector<128x128xbf16>, vector<8x128xf32> -> vector<8x128xf32>
    %83 = vector.broadcast %80 : vector<1x128xf32> to vector<8x128xf32>
    %84 = arith.mulf %82, %83 : vector<8x128xf32>
    %85 = vector.extract_strided_slice %46 {offsets = [16, 0], sizes = [8, 128], strides = [1, 1]} : vector<96x128xf32> to vector<8x128xf32>
    %86 = arith.truncf %85 : vector<8x128xf32> to vector<8x128xbf16>
    %87 = vector.extract_strided_slice %46 {offsets = [48, 0], sizes = [8, 128], strides = [1, 1]} : vector<96x128xf32> to vector<8x128xf32>
    %88 = arith.truncf %87 : vector<8x128xf32> to vector<8x128xbf16>
    %89 = vector.extract_strided_slice %46 {offsets = [80, 0], sizes = [8, 128], strides = [1, 1]} : vector<96x128xf32> to vector<8x128xf32>
    %90 = arith.truncf %89 : vector<8x128xf32> to vector<8x128xbf16>
    %cst_31 = arith.constant dense<0.000000e+00> : vector<128x128xf32>
    %91 = tpu.matmul %88, %86, %cst_31 {dimension_numbers = #tpu.dot_dimension_numbers<[0], [0], [1], [1], [0, 1, 1, 1], [], []>} : vector<8x128xbf16>, vector<8x128xbf16>, vector<128x128xf32> -> vector<128x128xf32>
    %cst_32 = arith.constant dense<0xFF800000> : vector<128xf32>
    %92 = vector.multi_reduction <maximumf>, %91, %cst_32 [0] : vector<128x128xf32> to vector<128xf32>
    %93 = vector.shape_cast %92 : vector<128xf32> to vector<1x128xf32>
    %94 = vector.broadcast %93 : vector<1x128xf32> to vector<128x128xf32>
    %95 = arith.subf %91, %94 : vector<128x128xf32>
    %96 = math.exp %95 : vector<128x128xf32>
    %cst_33 = arith.constant dense<0.000000e+00> : vector<128xf32>
    %97 = vector.multi_reduction <add>, %96, %cst_33 [0] : vector<128x128xf32> to vector<128xf32>
    %98 = vector.shape_cast %97 : vector<128xf32> to vector<1x128xf32>
    %99 = tpu.reciprocal %98 {approx = true} : vector<1x128xf32> -> vector<1x128xf32>
    %100 = arith.truncf %96 : vector<128x128xf32> to vector<128x128xbf16>
    %cst_34 = arith.constant dense<0.000000e+00> : vector<8x128xf32>
    %101 = tpu.matmul %90, %100, %cst_34 {dimension_numbers = #tpu.dot_dimension_numbers<[1], [0], [0], [1], [0, 0, 1, 1], [], []>} : vector<8x128xbf16>, vector<128x128xbf16>, vector<8x128xf32> -> vector<8x128xf32>
    %102 = vector.broadcast %99 : vector<1x128xf32> to vector<8x128xf32>
    %103 = arith.mulf %101, %102 : vector<8x128xf32>
    %104 = vector.extract_strided_slice %46 {offsets = [24, 0], sizes = [8, 128], strides = [1, 1]} : vector<96x128xf32> to vector<8x128xf32>
    %105 = arith.truncf %104 : vector<8x128xf32> to vector<8x128xbf16>
    %106 = vector.extract_strided_slice %46 {offsets = [56, 0], sizes = [8, 128], strides = [1, 1]} : vector<96x128xf32> to vector<8x128xf32>
    %107 = arith.truncf %106 : vector<8x128xf32> to vector<8x128xbf16>
    %108 = vector.extract_strided_slice %46 {offsets = [88, 0], sizes = [8, 128], strides = [1, 1]} : vector<96x128xf32> to vector<8x128xf32>
    %109 = arith.truncf %108 : vector<8x128xf32> to vector<8x128xbf16>
    %cst_35 = arith.constant dense<0.000000e+00> : vector<128x128xf32>
    %110 = tpu.matmul %107, %105, %cst_35 {dimension_numbers = #tpu.dot_dimension_numbers<[0], [0], [1], [1], [0, 1, 1, 1], [], []>} : vector<8x128xbf16>, vector<8x128xbf16>, vector<128x128xf32> -> vector<128x128xf32>
    %cst_36 = arith.constant dense<0xFF800000> : vector<128xf32>
    %111 = vector.multi_reduction <maximumf>, %110, %cst_36 [0] : vector<128x128xf32> to vector<128xf32>
    %112 = vector.shape_cast %111 : vector<128xf32> to vector<1x128xf32>
    %113 = vector.broadcast %112 : vector<1x128xf32> to vector<128x128xf32>
    %114 = arith.subf %110, %113 : vector<128x128xf32>
    %115 = math.exp %114 : vector<128x128xf32>
    %cst_37 = arith.constant dense<0.000000e+00> : vector<128xf32>
    %116 = vector.multi_reduction <add>, %115, %cst_37 [0] : vector<128x128xf32> to vector<128xf32>
    %117 = vector.shape_cast %116 : vector<128xf32> to vector<1x128xf32>
    %118 = tpu.reciprocal %117 {approx = true} : vector<1x128xf32> -> vector<1x128xf32>
    %119 = arith.truncf %115 : vector<128x128xf32> to vector<128x128xbf16>
    %cst_38 = arith.constant dense<0.000000e+00> : vector<8x128xf32>
    %120 = tpu.matmul %109, %119, %cst_38 {dimension_numbers = #tpu.dot_dimension_numbers<[1], [0], [0], [1], [0, 0, 1, 1], [], []>} : vector<8x128xbf16>, vector<128x128xbf16>, vector<8x128xf32> -> vector<8x128xf32>
    %121 = vector.broadcast %118 : vector<1x128xf32> to vector<8x128xf32>
    %122 = arith.mulf %120, %121 : vector<8x128xf32>
    %123 = tpu.concatenate %65, %84, %103, %122 in 0 : vector<8x128xf32>, vector<8x128xf32>, vector<8x128xf32>, vector<8x128xf32> -> vector<32x128xf32>
    %124 = vector.extract_strided_slice %45 {offsets = [0, 128], sizes = [96, 128], strides = [1, 1]} : vector<96x256xf32> to vector<96x128xf32>
    %125 = vector.extract_strided_slice %124 {offsets = [0, 0], sizes = [8, 128], strides = [1, 1]} : vector<96x128xf32> to vector<8x128xf32>
    %126 = arith.truncf %125 : vector<8x128xf32> to vector<8x128xbf16>
    %127 = vector.extract_strided_slice %124 {offsets = [32, 0], sizes = [8, 128], strides = [1, 1]} : vector<96x128xf32> to vector<8x128xf32>
    %128 = arith.truncf %127 : vector<8x128xf32> to vector<8x128xbf16>
    %129 = vector.extract_strided_slice %124 {offsets = [64, 0], sizes = [8, 128], strides = [1, 1]} : vector<96x128xf32> to vector<8x128xf32>
    %130 = arith.truncf %129 : vector<8x128xf32> to vector<8x128xbf16>
    %cst_39 = arith.constant dense<0.000000e+00> : vector<128x128xf32>
    %131 = tpu.matmul %128, %126, %cst_39 {dimension_numbers = #tpu.dot_dimension_numbers<[0], [0], [1], [1], [0, 1, 1, 1], [], []>} : vector<8x128xbf16>, vector<8x128xbf16>, vector<128x128xf32> -> vector<128x128xf32>
    %cst_40 = arith.constant dense<0xFF800000> : vector<128xf32>
    %132 = vector.multi_reduction <maximumf>, %131, %cst_40 [0] : vector<128x128xf32> to vector<128xf32>
    %133 = vector.shape_cast %132 : vector<128xf32> to vector<1x128xf32>
    %134 = vector.broadcast %133 : vector<1x128xf32> to vector<128x128xf32>
    %135 = arith.subf %131, %134 : vector<128x128xf32>
    %136 = math.exp %135 : vector<128x128xf32>
    %cst_41 = arith.constant dense<0.000000e+00> : vector<128xf32>
    %137 = vector.multi_reduction <add>, %136, %cst_41 [0] : vector<128x128xf32> to vector<128xf32>
    %138 = vector.shape_cast %137 : vector<128xf32> to vector<1x128xf32>
    %139 = tpu.reciprocal %138 {approx = true} : vector<1x128xf32> -> vector<1x128xf32>
    %140 = arith.truncf %136 : vector<128x128xf32> to vector<128x128xbf16>
    %cst_42 = arith.constant dense<0.000000e+00> : vector<8x128xf32>
    %141 = tpu.matmul %130, %140, %cst_42 {dimension_numbers = #tpu.dot_dimension_numbers<[1], [0], [0], [1], [0, 0, 1, 1], [], []>} : vector<8x128xbf16>, vector<128x128xbf16>, vector<8x128xf32> -> vector<8x128xf32>
    %142 = vector.broadcast %139 : vector<1x128xf32> to vector<8x128xf32>
    %143 = arith.mulf %141, %142 : vector<8x128xf32>
    %144 = vector.extract_strided_slice %124 {offsets = [8, 0], sizes = [8, 128], strides = [1, 1]} : vector<96x128xf32> to vector<8x128xf32>
    %145 = arith.truncf %144 : vector<8x128xf32> to vector<8x128xbf16>
    %146 = vector.extract_strided_slice %124 {offsets = [40, 0], sizes = [8, 128], strides = [1, 1]} : vector<96x128xf32> to vector<8x128xf32>
    %147 = arith.truncf %146 : vector<8x128xf32> to vector<8x128xbf16>
    %148 = vector.extract_strided_slice %124 {offsets = [72, 0], sizes = [8, 128], strides = [1, 1]} : vector<96x128xf32> to vector<8x128xf32>
    %149 = arith.truncf %148 : vector<8x128xf32> to vector<8x128xbf16>
    %cst_43 = arith.constant dense<0.000000e+00> : vector<128x128xf32>
    %150 = tpu.matmul %147, %145, %cst_43 {dimension_numbers = #tpu.dot_dimension_numbers<[0], [0], [1], [1], [0, 1, 1, 1], [], []>} : vector<8x128xbf16>, vector<8x128xbf16>, vector<128x128xf32> -> vector<128x128xf32>
    %cst_44 = arith.constant dense<0xFF800000> : vector<128xf32>
    %151 = vector.multi_reduction <maximumf>, %150, %cst_44 [0] : vector<128x128xf32> to vector<128xf32>
    %152 = vector.shape_cast %151 : vector<128xf32> to vector<1x128xf32>
    %153 = vector.broadcast %152 : vector<1x128xf32> to vector<128x128xf32>
    %154 = arith.subf %150, %153 : vector<128x128xf32>
    %155 = math.exp %154 : vector<128x128xf32>
    %cst_45 = arith.constant dense<0.000000e+00> : vector<128xf32>
    %156 = vector.multi_reduction <add>, %155, %cst_45 [0] : vector<128x128xf32> to vector<128xf32>
    %157 = vector.shape_cast %156 : vector<128xf32> to vector<1x128xf32>
    %158 = tpu.reciprocal %157 {approx = true} : vector<1x128xf32> -> vector<1x128xf32>
    %159 = arith.truncf %155 : vector<128x128xf32> to vector<128x128xbf16>
    %cst_46 = arith.constant dense<0.000000e+00> : vector<8x128xf32>
    %160 = tpu.matmul %149, %159, %cst_46 {dimension_numbers = #tpu.dot_dimension_numbers<[1], [0], [0], [1], [0, 0, 1, 1], [], []>} : vector<8x128xbf16>, vector<128x128xbf16>, vector<8x128xf32> -> vector<8x128xf32>
    %161 = vector.broadcast %158 : vector<1x128xf32> to vector<8x128xf32>
    %162 = arith.mulf %160, %161 : vector<8x128xf32>
    %163 = vector.extract_strided_slice %124 {offsets = [16, 0], sizes = [8, 128], strides = [1, 1]} : vector<96x128xf32> to vector<8x128xf32>
    %164 = arith.truncf %163 : vector<8x128xf32> to vector<8x128xbf16>
    %165 = vector.extract_strided_slice %124 {offsets = [48, 0], sizes = [8, 128], strides = [1, 1]} : vector<96x128xf32> to vector<8x128xf32>
    %166 = arith.truncf %165 : vector<8x128xf32> to vector<8x128xbf16>
    %167 = vector.extract_strided_slice %124 {offsets = [80, 0], sizes = [8, 128], strides = [1, 1]} : vector<96x128xf32> to vector<8x128xf32>
    %168 = arith.truncf %167 : vector<8x128xf32> to vector<8x128xbf16>
    %cst_47 = arith.constant dense<0.000000e+00> : vector<128x128xf32>
    %169 = tpu.matmul %166, %164, %cst_47 {dimension_numbers = #tpu.dot_dimension_numbers<[0], [0], [1], [1], [0, 1, 1, 1], [], []>} : vector<8x128xbf16>, vector<8x128xbf16>, vector<128x128xf32> -> vector<128x128xf32>
    %cst_48 = arith.constant dense<0xFF800000> : vector<128xf32>
    %170 = vector.multi_reduction <maximumf>, %169, %cst_48 [0] : vector<128x128xf32> to vector<128xf32>
    %171 = vector.shape_cast %170 : vector<128xf32> to vector<1x128xf32>
    %172 = vector.broadcast %171 : vector<1x128xf32> to vector<128x128xf32>
    %173 = arith.subf %169, %172 : vector<128x128xf32>
    %174 = math.exp %173 : vector<128x128xf32>
    %cst_49 = arith.constant dense<0.000000e+00> : vector<128xf32>
    %175 = vector.multi_reduction <add>, %174, %cst_49 [0] : vector<128x128xf32> to vector<128xf32>
    %176 = vector.shape_cast %175 : vector<128xf32> to vector<1x128xf32>
    %177 = tpu.reciprocal %176 {approx = true} : vector<1x128xf32> -> vector<1x128xf32>
    %178 = arith.truncf %174 : vector<128x128xf32> to vector<128x128xbf16>
    %cst_50 = arith.constant dense<0.000000e+00> : vector<8x128xf32>
    %179 = tpu.matmul %168, %178, %cst_50 {dimension_numbers = #tpu.dot_dimension_numbers<[1], [0], [0], [1], [0, 0, 1, 1], [], []>} : vector<8x128xbf16>, vector<128x128xbf16>, vector<8x128xf32> -> vector<8x128xf32>
    %180 = vector.broadcast %177 : vector<1x128xf32> to vector<8x128xf32>
    %181 = arith.mulf %179, %180 : vector<8x128xf32>
    %182 = vector.extract_strided_slice %124 {offsets = [24, 0], sizes = [8, 128], strides = [1, 1]} : vector<96x128xf32> to vector<8x128xf32>
    %183 = arith.truncf %182 : vector<8x128xf32> to vector<8x128xbf16>
    %184 = vector.extract_strided_slice %124 {offsets = [56, 0], sizes = [8, 128], strides = [1, 1]} : vector<96x128xf32> to vector<8x128xf32>
    %185 = arith.truncf %184 : vector<8x128xf32> to vector<8x128xbf16>
    %186 = vector.extract_strided_slice %124 {offsets = [88, 0], sizes = [8, 128], strides = [1, 1]} : vector<96x128xf32> to vector<8x128xf32>
    %187 = arith.truncf %186 : vector<8x128xf32> to vector<8x128xbf16>
    %cst_51 = arith.constant dense<0.000000e+00> : vector<128x128xf32>
    %188 = tpu.matmul %185, %183, %cst_51 {dimension_numbers = #tpu.dot_dimension_numbers<[0], [0], [1], [1], [0, 1, 1, 1], [], []>} : vector<8x128xbf16>, vector<8x128xbf16>, vector<128x128xf32> -> vector<128x128xf32>
    %cst_52 = arith.constant dense<0xFF800000> : vector<128xf32>
    %189 = vector.multi_reduction <maximumf>, %188, %cst_52 [0] : vector<128x128xf32> to vector<128xf32>
    %190 = vector.shape_cast %189 : vector<128xf32> to vector<1x128xf32>
    %191 = vector.broadcast %190 : vector<1x128xf32> to vector<128x128xf32>
    %192 = arith.subf %188, %191 : vector<128x128xf32>
    %193 = math.exp %192 : vector<128x128xf32>
    %cst_53 = arith.constant dense<0.000000e+00> : vector<128xf32>
    %194 = vector.multi_reduction <add>, %193, %cst_53 [0] : vector<128x128xf32> to vector<128xf32>
    %195 = vector.shape_cast %194 : vector<128xf32> to vector<1x128xf32>
    %196 = tpu.reciprocal %195 {approx = true} : vector<1x128xf32> -> vector<1x128xf32>
    %197 = arith.truncf %193 : vector<128x128xf32> to vector<128x128xbf16>
    %cst_54 = arith.constant dense<0.000000e+00> : vector<8x128xf32>
    %198 = tpu.matmul %187, %197, %cst_54 {dimension_numbers = #tpu.dot_dimension_numbers<[1], [0], [0], [1], [0, 0, 1, 1], [], []>} : vector<8x128xbf16>, vector<128x128xbf16>, vector<8x128xf32> -> vector<8x128xf32>
    %199 = vector.broadcast %196 : vector<1x128xf32> to vector<8x128xf32>
    %200 = arith.mulf %198, %199 : vector<8x128xf32>
    %201 = tpu.concatenate %143, %162, %181, %200 in 0 : vector<8x128xf32>, vector<8x128xf32>, vector<8x128xf32>, vector<8x128xf32> -> vector<32x128xf32>
    %202 = tpu.concatenate %123, %201 in 1 : vector<32x128xf32>, vector<32x128xf32> -> vector<32x256xf32>
    %203 = arith.truncf %202 : vector<32x256xf32> to vector<32x256xbf16>
    %204 = arith.index_cast %c0_i32 : i32 to index
    %c0_55 = arith.constant 0 : index
    %c0_56 = arith.constant 0 : index
    %205 = vector.load %arg7[%204, %c0_55, %c0_56] : memref<2x32x32xbf16, #tpu.memory_space<vmem>>, vector<1x32x32xbf16>
    %206 = vector.shape_cast %205 : vector<1x32x32xbf16> to vector<32x32xbf16>
    %cst_57 = arith.constant dense<0.000000e+00> : vector<32x256xf32>
    %207 = tpu.matmul %206, %203, %cst_57 {dimension_numbers = #tpu.dot_dimension_numbers<[1], [0], [0], [1], [0, 0, 1, 1], [], []>} : vector<32x32xbf16>, vector<32x256xbf16>, vector<32x256xf32> -> vector<32x256xf32>
    %208 = arith.addf %10, %207 : vector<32x256xf32>
    %209 = vector.extract_strided_slice %13 {offsets = [0, 4], sizes = [32, 1], strides = [1, 1]} : vector<32x6xf32> to vector<32x1xf32>
    %210 = vector.broadcast %209 : vector<32x1xf32> to vector<32x256xf32>
    %211 = arith.addf %208, %210 : vector<32x256xf32>
    %212 = vector.extract_strided_slice %13 {offsets = [0, 2], sizes = [32, 1], strides = [1, 1]} : vector<32x6xf32> to vector<32x1xf32>
    %213 = vector.extract_strided_slice %13 {offsets = [0, 3], sizes = [32, 1], strides = [1, 1]} : vector<32x6xf32> to vector<32x1xf32>
    %cst_58 = arith.constant dense<0.000000e+00> : vector<256xf32>
    %214 = vector.multi_reduction <add>, %211, %cst_58 [0] : vector<32x256xf32> to vector<256xf32>
    %215 = vector.shape_cast %214 : vector<256xf32> to vector<1x256xf32>
    %cst_59 = arith.constant 3.200000e+01 : f32
    %216 = vector.broadcast %cst_59 : f32 to vector<1x256xf32>
    %217 = arith.divf %215, %216 : vector<1x256xf32>
    %218 = vector.broadcast %217 : vector<1x256xf32> to vector<32x256xf32>
    %219 = arith.subf %211, %218 : vector<32x256xf32>
    %220 = arith.mulf %219, %219 : vector<32x256xf32>
    %cst_60 = arith.constant dense<0.000000e+00> : vector<256xf32>
    %221 = vector.multi_reduction <add>, %220, %cst_60 [0] : vector<32x256xf32> to vector<256xf32>
    %222 = vector.shape_cast %221 : vector<256xf32> to vector<1x256xf32>
    %cst_61 = arith.constant 3.200000e+01 : f32
    %223 = vector.broadcast %cst_61 : f32 to vector<1x256xf32>
    %224 = arith.divf %222, %223 : vector<1x256xf32>
    %cst_62 = arith.constant 9.99999974E-6 : f32
    %225 = vector.broadcast %cst_62 : f32 to vector<1x256xf32>
    %226 = arith.addf %224, %225 : vector<1x256xf32>
    %227 = math.rsqrt %226 : vector<1x256xf32>
    %228 = vector.broadcast %227 : vector<1x256xf32> to vector<32x256xf32>
    %229 = arith.mulf %219, %228 : vector<32x256xf32>
    %230 = vector.broadcast %212 : vector<32x1xf32> to vector<32x256xf32>
    %231 = arith.mulf %229, %230 : vector<32x256xf32>
    %232 = vector.broadcast %213 : vector<32x1xf32> to vector<32x256xf32>
    %233 = arith.addf %231, %232 : vector<32x256xf32>
    %234 = arith.truncf %233 : vector<32x256xf32> to vector<32x256xbf16>
    %235 = arith.index_cast %c0_i32 : i32 to index
    %c0_63 = arith.constant 0 : index
    %c0_64 = arith.constant 0 : index
    %236 = vector.load %arg8[%235, %c0_63, %c0_64] : memref<2x128x32xbf16, #tpu.memory_space<vmem>>, vector<1x128x32xbf16>
    %237 = vector.shape_cast %236 : vector<1x128x32xbf16> to vector<128x32xbf16>
    %cst_65 = arith.constant dense<0.000000e+00> : vector<128x256xf32>
    %238 = tpu.matmul %237, %234, %cst_65 {dimension_numbers = #tpu.dot_dimension_numbers<[1], [0], [0], [1], [0, 0, 1, 1], [], []>} : vector<128x32xbf16>, vector<32x256xbf16>, vector<128x256xf32> -> vector<128x256xf32>
    %239 = arith.index_cast %c0_i32 : i32 to index
    %c0_66 = arith.constant 0 : index
    %c0_67 = arith.constant 0 : index
    %240 = vector.load %arg9[%239, %c0_66, %c0_67] : memref<2x128x1xf32, #tpu.memory_space<vmem>>, vector<1x128x1xf32>
    %241 = vector.shape_cast %240 : vector<1x128x1xf32> to vector<128x1xf32>
    %242 = vector.broadcast %241 : vector<128x1xf32> to vector<128x256xf32>
    %243 = arith.addf %238, %242 : vector<128x256xf32>
    %cst_68 = arith.constant 5.000000e-01 : f32
    %244 = vector.broadcast %cst_68 : f32 to vector<128x256xf32>
    %245 = arith.mulf %244, %243 : vector<128x256xf32>
    %cst_69 = arith.constant 4.471500e-02 : f32
    %246 = vector.broadcast %cst_69 : f32 to vector<128x256xf32>
    %247 = arith.mulf %246, %243 : vector<128x256xf32>
    %248 = arith.mulf %247, %243 : vector<128x256xf32>
    %249 = arith.mulf %248, %243 : vector<128x256xf32>
    %250 = arith.addf %243, %249 : vector<128x256xf32>
    %cst_70 = arith.constant 0.797884583 : f32
    %251 = vector.broadcast %cst_70 : f32 to vector<128x256xf32>
    %252 = arith.mulf %251, %250 : vector<128x256xf32>
    %253 = math.tanh %252 : vector<128x256xf32>
    %cst_71 = arith.constant 1.000000e+00 : f32
    %254 = vector.broadcast %cst_71 : f32 to vector<128x256xf32>
    %255 = arith.addf %254, %253 : vector<128x256xf32>
    %256 = arith.mulf %245, %255 : vector<128x256xf32>
    %257 = arith.truncf %256 : vector<128x256xf32> to vector<128x256xbf16>
    %258 = arith.index_cast %c0_i32 : i32 to index
    %c0_72 = arith.constant 0 : index
    %c0_73 = arith.constant 0 : index
    %259 = vector.load %arg10[%258, %c0_72, %c0_73] : memref<2x32x128xbf16, #tpu.memory_space<vmem>>, vector<1x32x128xbf16>
    %260 = vector.shape_cast %259 : vector<1x32x128xbf16> to vector<32x128xbf16>
    %cst_74 = arith.constant dense<0.000000e+00> : vector<32x256xf32>
    %261 = tpu.matmul %260, %257, %cst_74 {dimension_numbers = #tpu.dot_dimension_numbers<[1], [0], [0], [1], [0, 0, 1, 1], [], []>} : vector<32x128xbf16>, vector<128x256xbf16>, vector<32x256xf32> -> vector<32x256xf32>
    %262 = arith.addf %211, %261 : vector<32x256xf32>
    %263 = vector.extract_strided_slice %13 {offsets = [0, 5], sizes = [32, 1], strides = [1, 1]} : vector<32x6xf32> to vector<32x1xf32>
    %264 = vector.broadcast %263 : vector<32x1xf32> to vector<32x256xf32>
    %265 = arith.addf %262, %264 : vector<32x256xf32>
    %c1_i32 = arith.constant 1 : i32
    %266 = arith.index_cast %c1_i32 : i32 to index
    %c0_75 = arith.constant 0 : index
    %c0_76 = arith.constant 0 : index
    %267 = vector.load %arg11[%266, %c0_75, %c0_76] : memref<2x32x6xf32, #tpu.memory_space<vmem>>, vector<1x32x6xf32>
    %268 = vector.shape_cast %267 : vector<1x32x6xf32> to vector<32x6xf32>
    %269 = vector.extract_strided_slice %268 {offsets = [0, 0], sizes = [32, 1], strides = [1, 1]} : vector<32x6xf32> to vector<32x1xf32>
    %270 = vector.extract_strided_slice %268 {offsets = [0, 1], sizes = [32, 1], strides = [1, 1]} : vector<32x6xf32> to vector<32x1xf32>
    %cst_77 = arith.constant dense<0.000000e+00> : vector<256xf32>
    %271 = vector.multi_reduction <add>, %265, %cst_77 [0] : vector<32x256xf32> to vector<256xf32>
    %272 = vector.shape_cast %271 : vector<256xf32> to vector<1x256xf32>
    %cst_78 = arith.constant 3.200000e+01 : f32
    %273 = vector.broadcast %cst_78 : f32 to vector<1x256xf32>
    %274 = arith.divf %272, %273 : vector<1x256xf32>
    %275 = vector.broadcast %274 : vector<1x256xf32> to vector<32x256xf32>
    %276 = arith.subf %265, %275 : vector<32x256xf32>
    %277 = arith.mulf %276, %276 : vector<32x256xf32>
    %cst_79 = arith.constant dense<0.000000e+00> : vector<256xf32>
    %278 = vector.multi_reduction <add>, %277, %cst_79 [0] : vector<32x256xf32> to vector<256xf32>
    %279 = vector.shape_cast %278 : vector<256xf32> to vector<1x256xf32>
    %cst_80 = arith.constant 3.200000e+01 : f32
    %280 = vector.broadcast %cst_80 : f32 to vector<1x256xf32>
    %281 = arith.divf %279, %280 : vector<1x256xf32>
    %cst_81 = arith.constant 9.99999974E-6 : f32
    %282 = vector.broadcast %cst_81 : f32 to vector<1x256xf32>
    %283 = arith.addf %281, %282 : vector<1x256xf32>
    %284 = math.rsqrt %283 : vector<1x256xf32>
    %285 = vector.broadcast %284 : vector<1x256xf32> to vector<32x256xf32>
    %286 = arith.mulf %276, %285 : vector<32x256xf32>
    %287 = vector.broadcast %269 : vector<32x1xf32> to vector<32x256xf32>
    %288 = arith.mulf %286, %287 : vector<32x256xf32>
    %289 = vector.broadcast %270 : vector<32x1xf32> to vector<32x256xf32>
    %290 = arith.addf %288, %289 : vector<32x256xf32>
    %291 = arith.truncf %290 : vector<32x256xf32> to vector<32x256xbf16>
    %292 = arith.index_cast %c1_i32 : i32 to index
    %c0_82 = arith.constant 0 : index
    %c0_83 = arith.constant 0 : index
    %293 = vector.load %arg5[%292, %c0_82, %c0_83] : memref<2x96x32xbf16, #tpu.memory_space<vmem>>, vector<1x96x32xbf16>
    %294 = vector.shape_cast %293 : vector<1x96x32xbf16> to vector<96x32xbf16>
    %cst_84 = arith.constant dense<0.000000e+00> : vector<96x256xf32>
    %295 = tpu.matmul %294, %291, %cst_84 {dimension_numbers = #tpu.dot_dimension_numbers<[1], [0], [0], [1], [0, 0, 1, 1], [], []>} : vector<96x32xbf16>, vector<32x256xbf16>, vector<96x256xf32> -> vector<96x256xf32>
    %296 = arith.index_cast %c1_i32 : i32 to index
    %c0_85 = arith.constant 0 : index
    %c0_86 = arith.constant 0 : index
    %297 = vector.load %arg6[%296, %c0_85, %c0_86] : memref<2x96x1xf32, #tpu.memory_space<vmem>>, vector<1x96x1xf32>
    %298 = vector.shape_cast %297 : vector<1x96x1xf32> to vector<96x1xf32>
    %299 = vector.broadcast %298 : vector<96x1xf32> to vector<96x256xf32>
    %300 = arith.addf %295, %299 : vector<96x256xf32>
    %301 = vector.extract_strided_slice %300 {offsets = [0, 0], sizes = [96, 128], strides = [1, 1]} : vector<96x256xf32> to vector<96x128xf32>
    %302 = vector.extract_strided_slice %301 {offsets = [0, 0], sizes = [8, 128], strides = [1, 1]} : vector<96x128xf32> to vector<8x128xf32>
    %303 = arith.truncf %302 : vector<8x128xf32> to vector<8x128xbf16>
    %304 = vector.extract_strided_slice %301 {offsets = [32, 0], sizes = [8, 128], strides = [1, 1]} : vector<96x128xf32> to vector<8x128xf32>
    %305 = arith.truncf %304 : vector<8x128xf32> to vector<8x128xbf16>
    %306 = vector.extract_strided_slice %301 {offsets = [64, 0], sizes = [8, 128], strides = [1, 1]} : vector<96x128xf32> to vector<8x128xf32>
    %307 = arith.truncf %306 : vector<8x128xf32> to vector<8x128xbf16>
    %cst_87 = arith.constant dense<0.000000e+00> : vector<128x128xf32>
    %308 = tpu.matmul %305, %303, %cst_87 {dimension_numbers = #tpu.dot_dimension_numbers<[0], [0], [1], [1], [0, 1, 1, 1], [], []>} : vector<8x128xbf16>, vector<8x128xbf16>, vector<128x128xf32> -> vector<128x128xf32>
    %cst_88 = arith.constant dense<0xFF800000> : vector<128xf32>
    %309 = vector.multi_reduction <maximumf>, %308, %cst_88 [0] : vector<128x128xf32> to vector<128xf32>
    %310 = vector.shape_cast %309 : vector<128xf32> to vector<1x128xf32>
    %311 = vector.broadcast %310 : vector<1x128xf32> to vector<128x128xf32>
    %312 = arith.subf %308, %311 : vector<128x128xf32>
    %313 = math.exp %312 : vector<128x128xf32>
    %cst_89 = arith.constant dense<0.000000e+00> : vector<128xf32>
    %314 = vector.multi_reduction <add>, %313, %cst_89 [0] : vector<128x128xf32> to vector<128xf32>
    %315 = vector.shape_cast %314 : vector<128xf32> to vector<1x128xf32>
    %316 = tpu.reciprocal %315 {approx = true} : vector<1x128xf32> -> vector<1x128xf32>
    %317 = arith.truncf %313 : vector<128x128xf32> to vector<128x128xbf16>
    %cst_90 = arith.constant dense<0.000000e+00> : vector<8x128xf32>
    %318 = tpu.matmul %307, %317, %cst_90 {dimension_numbers = #tpu.dot_dimension_numbers<[1], [0], [0], [1], [0, 0, 1, 1], [], []>} : vector<8x128xbf16>, vector<128x128xbf16>, vector<8x128xf32> -> vector<8x128xf32>
    %319 = vector.broadcast %316 : vector<1x128xf32> to vector<8x128xf32>
    %320 = arith.mulf %318, %319 : vector<8x128xf32>
    %321 = vector.extract_strided_slice %301 {offsets = [8, 0], sizes = [8, 128], strides = [1, 1]} : vector<96x128xf32> to vector<8x128xf32>
    %322 = arith.truncf %321 : vector<8x128xf32> to vector<8x128xbf16>
    %323 = vector.extract_strided_slice %301 {offsets = [40, 0], sizes = [8, 128], strides = [1, 1]} : vector<96x128xf32> to vector<8x128xf32>
    %324 = arith.truncf %323 : vector<8x128xf32> to vector<8x128xbf16>
    %325 = vector.extract_strided_slice %301 {offsets = [72, 0], sizes = [8, 128], strides = [1, 1]} : vector<96x128xf32> to vector<8x128xf32>
    %326 = arith.truncf %325 : vector<8x128xf32> to vector<8x128xbf16>
    %cst_91 = arith.constant dense<0.000000e+00> : vector<128x128xf32>
    %327 = tpu.matmul %324, %322, %cst_91 {dimension_numbers = #tpu.dot_dimension_numbers<[0], [0], [1], [1], [0, 1, 1, 1], [], []>} : vector<8x128xbf16>, vector<8x128xbf16>, vector<128x128xf32> -> vector<128x128xf32>
    %cst_92 = arith.constant dense<0xFF800000> : vector<128xf32>
    %328 = vector.multi_reduction <maximumf>, %327, %cst_92 [0] : vector<128x128xf32> to vector<128xf32>
    %329 = vector.shape_cast %328 : vector<128xf32> to vector<1x128xf32>
    %330 = vector.broadcast %329 : vector<1x128xf32> to vector<128x128xf32>
    %331 = arith.subf %327, %330 : vector<128x128xf32>
    %332 = math.exp %331 : vector<128x128xf32>
    %cst_93 = arith.constant dense<0.000000e+00> : vector<128xf32>
    %333 = vector.multi_reduction <add>, %332, %cst_93 [0] : vector<128x128xf32> to vector<128xf32>
    %334 = vector.shape_cast %333 : vector<128xf32> to vector<1x128xf32>
    %335 = tpu.reciprocal %334 {approx = true} : vector<1x128xf32> -> vector<1x128xf32>
    %336 = arith.truncf %332 : vector<128x128xf32> to vector<128x128xbf16>
    %cst_94 = arith.constant dense<0.000000e+00> : vector<8x128xf32>
    %337 = tpu.matmul %326, %336, %cst_94 {dimension_numbers = #tpu.dot_dimension_numbers<[1], [0], [0], [1], [0, 0, 1, 1], [], []>} : vector<8x128xbf16>, vector<128x128xbf16>, vector<8x128xf32> -> vector<8x128xf32>
    %338 = vector.broadcast %335 : vector<1x128xf32> to vector<8x128xf32>
    %339 = arith.mulf %337, %338 : vector<8x128xf32>
    %340 = vector.extract_strided_slice %301 {offsets = [16, 0], sizes = [8, 128], strides = [1, 1]} : vector<96x128xf32> to vector<8x128xf32>
    %341 = arith.truncf %340 : vector<8x128xf32> to vector<8x128xbf16>
    %342 = vector.extract_strided_slice %301 {offsets = [48, 0], sizes = [8, 128], strides = [1, 1]} : vector<96x128xf32> to vector<8x128xf32>
    %343 = arith.truncf %342 : vector<8x128xf32> to vector<8x128xbf16>
    %344 = vector.extract_strided_slice %301 {offsets = [80, 0], sizes = [8, 128], strides = [1, 1]} : vector<96x128xf32> to vector<8x128xf32>
    %345 = arith.truncf %344 : vector<8x128xf32> to vector<8x128xbf16>
    %cst_95 = arith.constant dense<0.000000e+00> : vector<128x128xf32>
    %346 = tpu.matmul %343, %341, %cst_95 {dimension_numbers = #tpu.dot_dimension_numbers<[0], [0], [1], [1], [0, 1, 1, 1], [], []>} : vector<8x128xbf16>, vector<8x128xbf16>, vector<128x128xf32> -> vector<128x128xf32>
    %cst_96 = arith.constant dense<0xFF800000> : vector<128xf32>
    %347 = vector.multi_reduction <maximumf>, %346, %cst_96 [0] : vector<128x128xf32> to vector<128xf32>
    %348 = vector.shape_cast %347 : vector<128xf32> to vector<1x128xf32>
    %349 = vector.broadcast %348 : vector<1x128xf32> to vector<128x128xf32>
    %350 = arith.subf %346, %349 : vector<128x128xf32>
    %351 = math.exp %350 : vector<128x128xf32>
    %cst_97 = arith.constant dense<0.000000e+00> : vector<128xf32>
    %352 = vector.multi_reduction <add>, %351, %cst_97 [0] : vector<128x128xf32> to vector<128xf32>
    %353 = vector.shape_cast %352 : vector<128xf32> to vector<1x128xf32>
    %354 = tpu.reciprocal %353 {approx = true} : vector<1x128xf32> -> vector<1x128xf32>
    %355 = arith.truncf %351 : vector<128x128xf32> to vector<128x128xbf16>
    %cst_98 = arith.constant dense<0.000000e+00> : vector<8x128xf32>
    %356 = tpu.matmul %345, %355, %cst_98 {dimension_numbers = #tpu.dot_dimension_numbers<[1], [0], [0], [1], [0, 0, 1, 1], [], []>} : vector<8x128xbf16>, vector<128x128xbf16>, vector<8x128xf32> -> vector<8x128xf32>
    %357 = vector.broadcast %354 : vector<1x128xf32> to vector<8x128xf32>
    %358 = arith.mulf %356, %357 : vector<8x128xf32>
    %359 = vector.extract_strided_slice %301 {offsets = [24, 0], sizes = [8, 128], strides = [1, 1]} : vector<96x128xf32> to vector<8x128xf32>
    %360 = arith.truncf %359 : vector<8x128xf32> to vector<8x128xbf16>
    %361 = vector.extract_strided_slice %301 {offsets = [56, 0], sizes = [8, 128], strides = [1, 1]} : vector<96x128xf32> to vector<8x128xf32>
    %362 = arith.truncf %361 : vector<8x128xf32> to vector<8x128xbf16>
    %363 = vector.extract_strided_slice %301 {offsets = [88, 0], sizes = [8, 128], strides = [1, 1]} : vector<96x128xf32> to vector<8x128xf32>
    %364 = arith.truncf %363 : vector<8x128xf32> to vector<8x128xbf16>
    %cst_99 = arith.constant dense<0.000000e+00> : vector<128x128xf32>
    %365 = tpu.matmul %362, %360, %cst_99 {dimension_numbers = #tpu.dot_dimension_numbers<[0], [0], [1], [1], [0, 1, 1, 1], [], []>} : vector<8x128xbf16>, vector<8x128xbf16>, vector<128x128xf32> -> vector<128x128xf32>
    %cst_100 = arith.constant dense<0xFF800000> : vector<128xf32>
    %366 = vector.multi_reduction <maximumf>, %365, %cst_100 [0] : vector<128x128xf32> to vector<128xf32>
    %367 = vector.shape_cast %366 : vector<128xf32> to vector<1x128xf32>
    %368 = vector.broadcast %367 : vector<1x128xf32> to vector<128x128xf32>
    %369 = arith.subf %365, %368 : vector<128x128xf32>
    %370 = math.exp %369 : vector<128x128xf32>
    %cst_101 = arith.constant dense<0.000000e+00> : vector<128xf32>
    %371 = vector.multi_reduction <add>, %370, %cst_101 [0] : vector<128x128xf32> to vector<128xf32>
    %372 = vector.shape_cast %371 : vector<128xf32> to vector<1x128xf32>
    %373 = tpu.reciprocal %372 {approx = true} : vector<1x128xf32> -> vector<1x128xf32>
    %374 = arith.truncf %370 : vector<128x128xf32> to vector<128x128xbf16>
    %cst_102 = arith.constant dense<0.000000e+00> : vector<8x128xf32>
    %375 = tpu.matmul %364, %374, %cst_102 {dimension_numbers = #tpu.dot_dimension_numbers<[1], [0], [0], [1], [0, 0, 1, 1], [], []>} : vector<8x128xbf16>, vector<128x128xbf16>, vector<8x128xf32> -> vector<8x128xf32>
    %376 = vector.broadcast %373 : vector<1x128xf32> to vector<8x128xf32>
    %377 = arith.mulf %375, %376 : vector<8x128xf32>
    %378 = tpu.concatenate %320, %339, %358, %377 in 0 : vector<8x128xf32>, vector<8x128xf32>, vector<8x128xf32>, vector<8x128xf32> -> vector<32x128xf32>
    %379 = vector.extract_strided_slice %300 {offsets = [0, 128], sizes = [96, 128], strides = [1, 1]} : vector<96x256xf32> to vector<96x128xf32>
    %380 = vector.extract_strided_slice %379 {offsets = [0, 0], sizes = [8, 128], strides = [1, 1]} : vector<96x128xf32> to vector<8x128xf32>
    %381 = arith.truncf %380 : vector<8x128xf32> to vector<8x128xbf16>
    %382 = vector.extract_strided_slice %379 {offsets = [32, 0], sizes = [8, 128], strides = [1, 1]} : vector<96x128xf32> to vector<8x128xf32>
    %383 = arith.truncf %382 : vector<8x128xf32> to vector<8x128xbf16>
    %384 = vector.extract_strided_slice %379 {offsets = [64, 0], sizes = [8, 128], strides = [1, 1]} : vector<96x128xf32> to vector<8x128xf32>
    %385 = arith.truncf %384 : vector<8x128xf32> to vector<8x128xbf16>
    %cst_103 = arith.constant dense<0.000000e+00> : vector<128x128xf32>
    %386 = tpu.matmul %383, %381, %cst_103 {dimension_numbers = #tpu.dot_dimension_numbers<[0], [0], [1], [1], [0, 1, 1, 1], [], []>} : vector<8x128xbf16>, vector<8x128xbf16>, vector<128x128xf32> -> vector<128x128xf32>
    %cst_104 = arith.constant dense<0xFF800000> : vector<128xf32>
    %387 = vector.multi_reduction <maximumf>, %386, %cst_104 [0] : vector<128x128xf32> to vector<128xf32>
    %388 = vector.shape_cast %387 : vector<128xf32> to vector<1x128xf32>
    %389 = vector.broadcast %388 : vector<1x128xf32> to vector<128x128xf32>
    %390 = arith.subf %386, %389 : vector<128x128xf32>
    %391 = math.exp %390 : vector<128x128xf32>
    %cst_105 = arith.constant dense<0.000000e+00> : vector<128xf32>
    %392 = vector.multi_reduction <add>, %391, %cst_105 [0] : vector<128x128xf32> to vector<128xf32>
    %393 = vector.shape_cast %392 : vector<128xf32> to vector<1x128xf32>
    %394 = tpu.reciprocal %393 {approx = true} : vector<1x128xf32> -> vector<1x128xf32>
    %395 = arith.truncf %391 : vector<128x128xf32> to vector<128x128xbf16>
    %cst_106 = arith.constant dense<0.000000e+00> : vector<8x128xf32>
    %396 = tpu.matmul %385, %395, %cst_106 {dimension_numbers = #tpu.dot_dimension_numbers<[1], [0], [0], [1], [0, 0, 1, 1], [], []>} : vector<8x128xbf16>, vector<128x128xbf16>, vector<8x128xf32> -> vector<8x128xf32>
    %397 = vector.broadcast %394 : vector<1x128xf32> to vector<8x128xf32>
    %398 = arith.mulf %396, %397 : vector<8x128xf32>
    %399 = vector.extract_strided_slice %379 {offsets = [8, 0], sizes = [8, 128], strides = [1, 1]} : vector<96x128xf32> to vector<8x128xf32>
    %400 = arith.truncf %399 : vector<8x128xf32> to vector<8x128xbf16>
    %401 = vector.extract_strided_slice %379 {offsets = [40, 0], sizes = [8, 128], strides = [1, 1]} : vector<96x128xf32> to vector<8x128xf32>
    %402 = arith.truncf %401 : vector<8x128xf32> to vector<8x128xbf16>
    %403 = vector.extract_strided_slice %379 {offsets = [72, 0], sizes = [8, 128], strides = [1, 1]} : vector<96x128xf32> to vector<8x128xf32>
    %404 = arith.truncf %403 : vector<8x128xf32> to vector<8x128xbf16>
    %cst_107 = arith.constant dense<0.000000e+00> : vector<128x128xf32>
    %405 = tpu.matmul %402, %400, %cst_107 {dimension_numbers = #tpu.dot_dimension_numbers<[0], [0], [1], [1], [0, 1, 1, 1], [], []>} : vector<8x128xbf16>, vector<8x128xbf16>, vector<128x128xf32> -> vector<128x128xf32>
    %cst_108 = arith.constant dense<0xFF800000> : vector<128xf32>
    %406 = vector.multi_reduction <maximumf>, %405, %cst_108 [0] : vector<128x128xf32> to vector<128xf32>
    %407 = vector.shape_cast %406 : vector<128xf32> to vector<1x128xf32>
    %408 = vector.broadcast %407 : vector<1x128xf32> to vector<128x128xf32>
    %409 = arith.subf %405, %408 : vector<128x128xf32>
    %410 = math.exp %409 : vector<128x128xf32>
    %cst_109 = arith.constant dense<0.000000e+00> : vector<128xf32>
    %411 = vector.multi_reduction <add>, %410, %cst_109 [0] : vector<128x128xf32> to vector<128xf32>
    %412 = vector.shape_cast %411 : vector<128xf32> to vector<1x128xf32>
    %413 = tpu.reciprocal %412 {approx = true} : vector<1x128xf32> -> vector<1x128xf32>
    %414 = arith.truncf %410 : vector<128x128xf32> to vector<128x128xbf16>
    %cst_110 = arith.constant dense<0.000000e+00> : vector<8x128xf32>
    %415 = tpu.matmul %404, %414, %cst_110 {dimension_numbers = #tpu.dot_dimension_numbers<[1], [0], [0], [1], [0, 0, 1, 1], [], []>} : vector<8x128xbf16>, vector<128x128xbf16>, vector<8x128xf32> -> vector<8x128xf32>
    %416 = vector.broadcast %413 : vector<1x128xf32> to vector<8x128xf32>
    %417 = arith.mulf %415, %416 : vector<8x128xf32>
    %418 = vector.extract_strided_slice %379 {offsets = [16, 0], sizes = [8, 128], strides = [1, 1]} : vector<96x128xf32> to vector<8x128xf32>
    %419 = arith.truncf %418 : vector<8x128xf32> to vector<8x128xbf16>
    %420 = vector.extract_strided_slice %379 {offsets = [48, 0], sizes = [8, 128], strides = [1, 1]} : vector<96x128xf32> to vector<8x128xf32>
    %421 = arith.truncf %420 : vector<8x128xf32> to vector<8x128xbf16>
    %422 = vector.extract_strided_slice %379 {offsets = [80, 0], sizes = [8, 128], strides = [1, 1]} : vector<96x128xf32> to vector<8x128xf32>
    %423 = arith.truncf %422 : vector<8x128xf32> to vector<8x128xbf16>
    %cst_111 = arith.constant dense<0.000000e+00> : vector<128x128xf32>
    %424 = tpu.matmul %421, %419, %cst_111 {dimension_numbers = #tpu.dot_dimension_numbers<[0], [0], [1], [1], [0, 1, 1, 1], [], []>} : vector<8x128xbf16>, vector<8x128xbf16>, vector<128x128xf32> -> vector<128x128xf32>
    %cst_112 = arith.constant dense<0xFF800000> : vector<128xf32>
    %425 = vector.multi_reduction <maximumf>, %424, %cst_112 [0] : vector<128x128xf32> to vector<128xf32>
    %426 = vector.shape_cast %425 : vector<128xf32> to vector<1x128xf32>
    %427 = vector.broadcast %426 : vector<1x128xf32> to vector<128x128xf32>
    %428 = arith.subf %424, %427 : vector<128x128xf32>
    %429 = math.exp %428 : vector<128x128xf32>
    %cst_113 = arith.constant dense<0.000000e+00> : vector<128xf32>
    %430 = vector.multi_reduction <add>, %429, %cst_113 [0] : vector<128x128xf32> to vector<128xf32>
    %431 = vector.shape_cast %430 : vector<128xf32> to vector<1x128xf32>
    %432 = tpu.reciprocal %431 {approx = true} : vector<1x128xf32> -> vector<1x128xf32>
    %433 = arith.truncf %429 : vector<128x128xf32> to vector<128x128xbf16>
    %cst_114 = arith.constant dense<0.000000e+00> : vector<8x128xf32>
    %434 = tpu.matmul %423, %433, %cst_114 {dimension_numbers = #tpu.dot_dimension_numbers<[1], [0], [0], [1], [0, 0, 1, 1], [], []>} : vector<8x128xbf16>, vector<128x128xbf16>, vector<8x128xf32> -> vector<8x128xf32>
    %435 = vector.broadcast %432 : vector<1x128xf32> to vector<8x128xf32>
    %436 = arith.mulf %434, %435 : vector<8x128xf32>
    %437 = vector.extract_strided_slice %379 {offsets = [24, 0], sizes = [8, 128], strides = [1, 1]} : vector<96x128xf32> to vector<8x128xf32>
    %438 = arith.truncf %437 : vector<8x128xf32> to vector<8x128xbf16>
    %439 = vector.extract_strided_slice %379 {offsets = [56, 0], sizes = [8, 128], strides = [1, 1]} : vector<96x128xf32> to vector<8x128xf32>
    %440 = arith.truncf %439 : vector<8x128xf32> to vector<8x128xbf16>
    %441 = vector.extract_strided_slice %379 {offsets = [88, 0], sizes = [8, 128], strides = [1, 1]} : vector<96x128xf32> to vector<8x128xf32>
    %442 = arith.truncf %441 : vector<8x128xf32> to vector<8x128xbf16>
    %cst_115 = arith.constant dense<0.000000e+00> : vector<128x128xf32>
    %443 = tpu.matmul %440, %438, %cst_115 {dimension_numbers = #tpu.dot_dimension_numbers<[0], [0], [1], [1], [0, 1, 1, 1], [], []>} : vector<8x128xbf16>, vector<8x128xbf16>, vector<128x128xf32> -> vector<128x128xf32>
    %cst_116 = arith.constant dense<0xFF800000> : vector<128xf32>
    %444 = vector.multi_reduction <maximumf>, %443, %cst_116 [0] : vector<128x128xf32> to vector<128xf32>
    %445 = vector.shape_cast %444 : vector<128xf32> to vector<1x128xf32>
    %446 = vector.broadcast %445 : vector<1x128xf32> to vector<128x128xf32>
    %447 = arith.subf %443, %446 : vector<128x128xf32>
    %448 = math.exp %447 : vector<128x128xf32>
    %cst_117 = arith.constant dense<0.000000e+00> : vector<128xf32>
    %449 = vector.multi_reduction <add>, %448, %cst_117 [0] : vector<128x128xf32> to vector<128xf32>
    %450 = vector.shape_cast %449 : vector<128xf32> to vector<1x128xf32>
    %451 = tpu.reciprocal %450 {approx = true} : vector<1x128xf32> -> vector<1x128xf32>
    %452 = arith.truncf %448 : vector<128x128xf32> to vector<128x128xbf16>
    %cst_118 = arith.constant dense<0.000000e+00> : vector<8x128xf32>
    %453 = tpu.matmul %442, %452, %cst_118 {dimension_numbers = #tpu.dot_dimension_numbers<[1], [0], [0], [1], [0, 0, 1, 1], [], []>} : vector<8x128xbf16>, vector<128x128xbf16>, vector<8x128xf32> -> vector<8x128xf32>
    %454 = vector.broadcast %451 : vector<1x128xf32> to vector<8x128xf32>
    %455 = arith.mulf %453, %454 : vector<8x128xf32>
    %456 = tpu.concatenate %398, %417, %436, %455 in 0 : vector<8x128xf32>, vector<8x128xf32>, vector<8x128xf32>, vector<8x128xf32> -> vector<32x128xf32>
    %457 = tpu.concatenate %378, %456 in 1 : vector<32x128xf32>, vector<32x128xf32> -> vector<32x256xf32>
    %458 = arith.truncf %457 : vector<32x256xf32> to vector<32x256xbf16>
    %459 = arith.index_cast %c1_i32 : i32 to index
    %c0_119 = arith.constant 0 : index
    %c0_120 = arith.constant 0 : index
    %460 = vector.load %arg7[%459, %c0_119, %c0_120] : memref<2x32x32xbf16, #tpu.memory_space<vmem>>, vector<1x32x32xbf16>
    %461 = vector.shape_cast %460 : vector<1x32x32xbf16> to vector<32x32xbf16>
    %cst_121 = arith.constant dense<0.000000e+00> : vector<32x256xf32>
    %462 = tpu.matmul %461, %458, %cst_121 {dimension_numbers = #tpu.dot_dimension_numbers<[1], [0], [0], [1], [0, 0, 1, 1], [], []>} : vector<32x32xbf16>, vector<32x256xbf16>, vector<32x256xf32> -> vector<32x256xf32>
    %463 = arith.addf %265, %462 : vector<32x256xf32>
    %464 = vector.extract_strided_slice %268 {offsets = [0, 4], sizes = [32, 1], strides = [1, 1]} : vector<32x6xf32> to vector<32x1xf32>
    %465 = vector.broadcast %464 : vector<32x1xf32> to vector<32x256xf32>
    %466 = arith.addf %463, %465 : vector<32x256xf32>
    %467 = vector.extract_strided_slice %268 {offsets = [0, 2], sizes = [32, 1], strides = [1, 1]} : vector<32x6xf32> to vector<32x1xf32>
    %468 = vector.extract_strided_slice %268 {offsets = [0, 3], sizes = [32, 1], strides = [1, 1]} : vector<32x6xf32> to vector<32x1xf32>
    %cst_122 = arith.constant dense<0.000000e+00> : vector<256xf32>
    %469 = vector.multi_reduction <add>, %466, %cst_122 [0] : vector<32x256xf32> to vector<256xf32>
    %470 = vector.shape_cast %469 : vector<256xf32> to vector<1x256xf32>
    %cst_123 = arith.constant 3.200000e+01 : f32
    %471 = vector.broadcast %cst_123 : f32 to vector<1x256xf32>
    %472 = arith.divf %470, %471 : vector<1x256xf32>
    %473 = vector.broadcast %472 : vector<1x256xf32> to vector<32x256xf32>
    %474 = arith.subf %466, %473 : vector<32x256xf32>
    %475 = arith.mulf %474, %474 : vector<32x256xf32>
    %cst_124 = arith.constant dense<0.000000e+00> : vector<256xf32>
    %476 = vector.multi_reduction <add>, %475, %cst_124 [0] : vector<32x256xf32> to vector<256xf32>
    %477 = vector.shape_cast %476 : vector<256xf32> to vector<1x256xf32>
    %cst_125 = arith.constant 3.200000e+01 : f32
    %478 = vector.broadcast %cst_125 : f32 to vector<1x256xf32>
    %479 = arith.divf %477, %478 : vector<1x256xf32>
    %cst_126 = arith.constant 9.99999974E-6 : f32
    %480 = vector.broadcast %cst_126 : f32 to vector<1x256xf32>
    %481 = arith.addf %479, %480 : vector<1x256xf32>
    %482 = math.rsqrt %481 : vector<1x256xf32>
    %483 = vector.broadcast %482 : vector<1x256xf32> to vector<32x256xf32>
    %484 = arith.mulf %474, %483 : vector<32x256xf32>
    %485 = vector.broadcast %467 : vector<32x1xf32> to vector<32x256xf32>
    %486 = arith.mulf %484, %485 : vector<32x256xf32>
    %487 = vector.broadcast %468 : vector<32x1xf32> to vector<32x256xf32>
    %488 = arith.addf %486, %487 : vector<32x256xf32>
    %489 = arith.truncf %488 : vector<32x256xf32> to vector<32x256xbf16>
    %490 = arith.index_cast %c1_i32 : i32 to index
    %c0_127 = arith.constant 0 : index
    %c0_128 = arith.constant 0 : index
    %491 = vector.load %arg8[%490, %c0_127, %c0_128] : memref<2x128x32xbf16, #tpu.memory_space<vmem>>, vector<1x128x32xbf16>
    %492 = vector.shape_cast %491 : vector<1x128x32xbf16> to vector<128x32xbf16>
    %cst_129 = arith.constant dense<0.000000e+00> : vector<128x256xf32>
    %493 = tpu.matmul %492, %489, %cst_129 {dimension_numbers = #tpu.dot_dimension_numbers<[1], [0], [0], [1], [0, 0, 1, 1], [], []>} : vector<128x32xbf16>, vector<32x256xbf16>, vector<128x256xf32> -> vector<128x256xf32>
    %494 = arith.index_cast %c1_i32 : i32 to index
    %c0_130 = arith.constant 0 : index
    %c0_131 = arith.constant 0 : index
    %495 = vector.load %arg9[%494, %c0_130, %c0_131] : memref<2x128x1xf32, #tpu.memory_space<vmem>>, vector<1x128x1xf32>
    %496 = vector.shape_cast %495 : vector<1x128x1xf32> to vector<128x1xf32>
    %497 = vector.broadcast %496 : vector<128x1xf32> to vector<128x256xf32>
    %498 = arith.addf %493, %497 : vector<128x256xf32>
    %cst_132 = arith.constant 5.000000e-01 : f32
    %499 = vector.broadcast %cst_132 : f32 to vector<128x256xf32>
    %500 = arith.mulf %499, %498 : vector<128x256xf32>
    %cst_133 = arith.constant 4.471500e-02 : f32
    %501 = vector.broadcast %cst_133 : f32 to vector<128x256xf32>
    %502 = arith.mulf %501, %498 : vector<128x256xf32>
    %503 = arith.mulf %502, %498 : vector<128x256xf32>
    %504 = arith.mulf %503, %498 : vector<128x256xf32>
    %505 = arith.addf %498, %504 : vector<128x256xf32>
    %cst_134 = arith.constant 0.797884583 : f32
    %506 = vector.broadcast %cst_134 : f32 to vector<128x256xf32>
    %507 = arith.mulf %506, %505 : vector<128x256xf32>
    %508 = math.tanh %507 : vector<128x256xf32>
    %cst_135 = arith.constant 1.000000e+00 : f32
    %509 = vector.broadcast %cst_135 : f32 to vector<128x256xf32>
    %510 = arith.addf %509, %508 : vector<128x256xf32>
    %511 = arith.mulf %500, %510 : vector<128x256xf32>
    %512 = arith.truncf %511 : vector<128x256xf32> to vector<128x256xbf16>
    %513 = arith.index_cast %c1_i32 : i32 to index
    %c0_136 = arith.constant 0 : index
    %c0_137 = arith.constant 0 : index
    %514 = vector.load %arg10[%513, %c0_136, %c0_137] : memref<2x32x128xbf16, #tpu.memory_space<vmem>>, vector<1x32x128xbf16>
    %515 = vector.shape_cast %514 : vector<1x32x128xbf16> to vector<32x128xbf16>
    %cst_138 = arith.constant dense<0.000000e+00> : vector<32x256xf32>
    %516 = tpu.matmul %515, %512, %cst_138 {dimension_numbers = #tpu.dot_dimension_numbers<[1], [0], [0], [1], [0, 0, 1, 1], [], []>} : vector<32x128xbf16>, vector<128x256xbf16>, vector<32x256xf32> -> vector<32x256xf32>
    %517 = arith.addf %466, %516 : vector<32x256xf32>
    %518 = vector.extract_strided_slice %268 {offsets = [0, 5], sizes = [32, 1], strides = [1, 1]} : vector<32x6xf32> to vector<32x1xf32>
    %519 = vector.broadcast %518 : vector<32x1xf32> to vector<32x256xf32>
    %520 = arith.addf %517, %519 : vector<32x256xf32>
    %c2_i32 = arith.constant 2 : i32
    %c0_139 = arith.constant 0 : index
    %c0_140 = arith.constant 0 : index
    %521 = vector.load %arg12[%c0_139, %c0_140] : memref<32x2xf32, #tpu.memory_space<vmem>>, vector<32x1xf32>
    %c0_141 = arith.constant 0 : index
    %c1_142 = arith.constant 1 : index
    %522 = vector.load %arg12[%c0_141, %c1_142] : memref<32x2xf32, #tpu.memory_space<vmem>>, vector<32x1xf32>
    %cst_143 = arith.constant dense<0.000000e+00> : vector<256xf32>
    %523 = vector.multi_reduction <add>, %520, %cst_143 [0] : vector<32x256xf32> to vector<256xf32>
    %524 = vector.shape_cast %523 : vector<256xf32> to vector<1x256xf32>
    %cst_144 = arith.constant 3.200000e+01 : f32
    %525 = vector.broadcast %cst_144 : f32 to vector<1x256xf32>
    %526 = arith.divf %524, %525 : vector<1x256xf32>
    %527 = vector.broadcast %526 : vector<1x256xf32> to vector<32x256xf32>
    %528 = arith.subf %520, %527 : vector<32x256xf32>
    %529 = arith.mulf %528, %528 : vector<32x256xf32>
    %cst_145 = arith.constant dense<0.000000e+00> : vector<256xf32>
    %530 = vector.multi_reduction <add>, %529, %cst_145 [0] : vector<32x256xf32> to vector<256xf32>
    %531 = vector.shape_cast %530 : vector<256xf32> to vector<1x256xf32>
    %cst_146 = arith.constant 3.200000e+01 : f32
    %532 = vector.broadcast %cst_146 : f32 to vector<1x256xf32>
    %533 = arith.divf %531, %532 : vector<1x256xf32>
    %cst_147 = arith.constant 9.99999974E-6 : f32
    %534 = vector.broadcast %cst_147 : f32 to vector<1x256xf32>
    %535 = arith.addf %533, %534 : vector<1x256xf32>
    %536 = math.rsqrt %535 : vector<1x256xf32>
    %537 = vector.broadcast %536 : vector<1x256xf32> to vector<32x256xf32>
    %538 = arith.mulf %528, %537 : vector<32x256xf32>
    %539 = vector.broadcast %521 : vector<32x1xf32> to vector<32x256xf32>
    %540 = arith.mulf %538, %539 : vector<32x256xf32>
    %541 = vector.broadcast %522 : vector<32x1xf32> to vector<32x256xf32>
    %542 = arith.addf %540, %541 : vector<32x256xf32>
    %543 = arith.truncf %542 : vector<32x256xf32> to vector<32x256xbf16>
    %544 = vector.extract_strided_slice %543 {offsets = [0, 0], sizes = [32, 128], strides = [1, 1]} : vector<32x256xbf16> to vector<32x128xbf16>
    %c0_148 = arith.constant 0 : index
    %c0_149 = arith.constant 0 : index
    %545 = vector.load %arg4[%c0_148, %c0_149] : memref<128x512xbf16, #tpu.memory_space<vmem>>, vector<128x512xbf16>
    %cst_150 = arith.constant dense<0.000000e+00> : vector<32x512xf32>
    %546 = tpu.matmul %544, %545, %cst_150 {dimension_numbers = #tpu.dot_dimension_numbers<[1], [0], [0], [1], [0, 0, 1, 1], [], []>} : vector<32x128xbf16>, vector<128x512xbf16>, vector<32x512xf32> -> vector<32x512xf32>
    %c0_151 = arith.constant 0 : index
    %c0_152 = arith.constant 0 : index
    %c0_153 = arith.constant 0 : index
    %547 = vector.load %arg13[%c0_151, %c0_152, %c0_153] : memref<2x32x512xf32, #tpu.memory_space<vmem>>, vector<1x32x512xf32>
    %548 = vector.shape_cast %547 : vector<1x32x512xf32> to vector<32x512xf32>
    %549 = vector.shape_cast %546 : vector<32x512xf32> to vector<1x32x512xf32>
    tpu.vector_store %arg13[%c0_151, %c0_152, %c0_153], %549 {strides = array<i32>} : memref<2x32x512xf32, #tpu.memory_space<vmem>>, vector<1x32x512xf32>,
    %550 = vector.extract_strided_slice %543 {offsets = [0, 128], sizes = [32, 128], strides = [1, 1]} : vector<32x256xbf16> to vector<32x128xbf16>
    %c0_154 = arith.constant 0 : index
    %c0_155 = arith.constant 0 : index
    %551 = vector.load %arg4[%c0_154, %c0_155] : memref<128x512xbf16, #tpu.memory_space<vmem>>, vector<128x512xbf16>
    %cst_156 = arith.constant dense<0.000000e+00> : vector<32x512xf32>
    %552 = tpu.matmul %550, %551, %cst_156 {dimension_numbers = #tpu.dot_dimension_numbers<[1], [0], [0], [1], [0, 0, 1, 1], [], []>} : vector<32x128xbf16>, vector<128x512xbf16>, vector<32x512xf32> -> vector<32x512xf32>
    %c1_157 = arith.constant 1 : index
    %c0_158 = arith.constant 0 : index
    %c0_159 = arith.constant 0 : index
    %553 = vector.load %arg13[%c1_157, %c0_158, %c0_159] : memref<2x32x512xf32, #tpu.memory_space<vmem>>, vector<1x32x512xf32>
    %554 = vector.shape_cast %553 : vector<1x32x512xf32> to vector<32x512xf32>
    %555 = vector.shape_cast %552 : vector<32x512xf32> to vector<1x32x512xf32>
    tpu.vector_store %arg13[%c1_157, %c0_158, %c0_159], %555 {strides = array<i32>} : memref<2x32x512xf32, #tpu.memory_space<vmem>>, vector<1x32x512xf32>,
    return
  }
  func.func @transform_0(%arg0: i32) -> (i32, i32, i32) {
    %c0_i32 = arith.constant 0 : i32
    %c0_i32_0 = arith.constant 0 : i32
    %c0_i32_1 = arith.constant 0 : i32
    return %arg0, %c0_i32, %c0_i32_0 : i32, i32, i32
  }
  func.func @transform_1(%arg0: i32) -> (i32, i32) {
    %c0_i32 = arith.constant 0 : i32
    %c0_i32_0 = arith.constant 0 : i32
    %c0_i32_1 = arith.constant 0 : i32
    return %c0_i32, %c0_i32_0 : i32, i32
  }
  func.func @transform_2(%arg0: i32) -> (i32, i32) {
    %c0_i32 = arith.constant 0 : i32
    %c0_i32_0 = arith.constant 0 : i32
    %c0_i32_1 = arith.constant 0 : i32
    return %c0_i32, %c0_i32_0 : i32, i32
  }
  func.func @transform_3(%arg0: i32) -> (i32, i32) {
    %c0_i32 = arith.constant 0 : i32
    %c0_i32_0 = arith.constant 0 : i32
    %c0_i32_1 = arith.constant 0 : i32
    return %c0_i32, %c0_i32_0 : i32, i32
  }
  func.func @transform_4(%arg0: i32) -> (i32, i32, i32) {
    %c0_i32 = arith.constant 0 : i32
    %c0_i32_0 = arith.constant 0 : i32
    %c0_i32_1 = arith.constant 0 : i32
    %c0_i32_2 = arith.constant 0 : i32
    return %c0_i32, %c0_i32_0, %c0_i32_1 : i32, i32, i32
  }
  func.func @transform_5(%arg0: i32) -> (i32, i32, i32) {
    %c0_i32 = arith.constant 0 : i32
    %c0_i32_0 = arith.constant 0 : i32
    %c0_i32_1 = arith.constant 0 : i32
    %c0_i32_2 = arith.constant 0 : i32
    return %c0_i32, %c0_i32_0, %c0_i32_1 : i32, i32, i32
  }
  func.func @transform_6(%arg0: i32) -> (i32, i32, i32) {
    %c0_i32 = arith.constant 0 : i32
    %c0_i32_0 = arith.constant 0 : i32
    %c0_i32_1 = arith.constant 0 : i32
    %c0_i32_2 = arith.constant 0 : i32
    return %c0_i32, %c0_i32_0, %c0_i32_1 : i32, i32, i32
  }
  func.func @transform_7(%arg0: i32) -> (i32, i32, i32) {
    %c0_i32 = arith.constant 0 : i32
    %c0_i32_0 = arith.constant 0 : i32
    %c0_i32_1 = arith.constant 0 : i32
    %c0_i32_2 = arith.constant 0 : i32
    return %c0_i32, %c0_i32_0, %c0_i32_1 : i32, i32, i32
  }
  func.func @transform_8(%arg0: i32) -> (i32, i32, i32) {
    %c0_i32 = arith.constant 0 : i32
    %c0_i32_0 = arith.constant 0 : i32
    %c0_i32_1 = arith.constant 0 : i32
    %c0_i32_2 = arith.constant 0 : i32
    return %c0_i32, %c0_i32_0, %c0_i32_1 : i32, i32, i32
  }
  func.func @transform_9(%arg0: i32) -> (i32, i32, i32) {
    %c0_i32 = arith.constant 0 : i32
    %c0_i32_0 = arith.constant 0 : i32
    %c0_i32_1 = arith.constant 0 : i32
    %c0_i32_2 = arith.constant 0 : i32
    return %c0_i32, %c0_i32_0, %c0_i32_1 : i32, i32, i32
  }
  func.func @transform_10(%arg0: i32) -> (i32, i32, i32) {
    %c0_i32 = arith.constant 0 : i32
    %c0_i32_0 = arith.constant 0 : i32
    %c0_i32_1 = arith.constant 0 : i32
    %c0_i32_2 = arith.constant 0 : i32
    return %c0_i32, %c0_i32_0, %c0_i32_1 : i32, i32, i32
  }
  func.func @transform_11(%arg0: i32) -> (i32, i32) {
    %c0_i32 = arith.constant 0 : i32
    %c0_i32_0 = arith.constant 0 : i32
    %c0_i32_1 = arith.constant 0 : i32
    return %c0_i32, %c0_i32_0 : i32, i32
  }
  func.func @transform_12(%arg0: i32) -> (i32, i32, i32) {
    %c0_i32 = arith.constant 0 : i32
    %c0_i32_0 = arith.constant 0 : i32
    %c0_i32_1 = arith.constant 0 : i32
    return %arg0, %c0_i32, %c0_i32_0 : i32, i32, i32
  }
}

</mosaic_0001>

<llo_original>
// kernel: tpu_custom_call.1
$region0: #{tpu_custom_call.1}
  #allocation0 [shape = 'u32[]', space=smem, size = 0x4, offset = 0x4, fixed_abs, tag = 'smem constant byte address 0x4 - core index']
  #allocation1 [shape = 'u32[144,128]{1,0:T(1,128)}', space=vmem, size = 0x12000, scoped, tag = 'internal scratch']
  %s0 = inlined_call_operand.vmem [shape: bf16[2,32,512], index: 0, kind: input, shape index: {}]
  %s1 = inlined_call_operand.vmem [shape: f32[32,256], index: 1, kind: input, shape index: {}]
  %s2 = inlined_call_operand.vmem [shape: bf16[512,128], index: 2, kind: input, shape index: {}]
  %s3 = inlined_call_operand.vmem [shape: bf16[128,512], index: 3, kind: input, shape index: {}]
  %s4 = inlined_call_operand.vmem [shape: bf16[2,96,32], index: 4, kind: input, shape index: {}]
  %s5 = inlined_call_operand.vmem [shape: f32[2,96,1], index: 5, kind: input, shape index: {}]
  %s6 = inlined_call_operand.vmem [shape: bf16[2,32,32], index: 6, kind: input, shape index: {}]
  %s7 = inlined_call_operand.vmem [shape: bf16[2,128,32], index: 7, kind: input, shape index: {}]
  %s8 = inlined_call_operand.vmem [shape: f32[2,128,1], index: 8, kind: input, shape index: {}]
  %s9 = inlined_call_operand.vmem [shape: bf16[2,32,128], index: 9, kind: input, shape index: {}]
  %s10 = inlined_call_operand.vmem [shape: f32[2,32,6], index: 10, kind: input, shape index: {}]
  %s11 = inlined_call_operand.vmem [shape: f32[32,2], index: 11, kind: input, shape index: {}]
  %s12 = inlined_call_operand.hbm [shape: f32[2,32,512], index: 12, kind: output, shape index: {}]
  %s13 = sld [smem:[#allocation0]]
  $region58: #{tpu_custom_call.1} parent=0
    _
  %s15 = ssub.s32 1, %s13
  %s16 = scalar_select 0, %s15, %s13
  $region1: #{tpu_custom_call.1} parent=0
    #allocation2 [shape = 'u8[131072]{0}', space=vmem, size = 0x20000, scoped, tag = 'output window, operand 0, single buffered']
    #allocation3 [shape = 's32[1]{0}', space=sflag, size = 0x4, scoped, tag = 'scoped memory for tpu_custom_call.1']
    %17 = vsyncpa [#allocation3], 0
    // Predicated region
    $region2: #{tpu_custom_call.1} parent=1 // pred_check
      _
    $region3: #{tpu_custom_call.1} parent=1 // pred_check_branch
      %19 = sbr.rel (0) target = $region5
    $region4: #{tpu_custom_call.1} parent=1 // pred_region
      _
    $region5: #{tpu_custom_call.1} parent=1 // pred_fallthru
      _
    // Predicated region
    $region6: #{tpu_custom_call.1} parent=1 // pred_check
      _
    $region7: #{tpu_custom_call.1} parent=1 // pred_check_branch
      %21 = sbr.rel (0) target = $region9
    $region8: #{tpu_custom_call.1} parent=1 // pred_region
      _
    $region9: #{tpu_custom_call.1} parent=1 // pred_fallthru
      _
    // Predicated region
    $region10: #{tpu_custom_call.1} parent=1 // pred_check
      _
    $region11: #{tpu_custom_call.1} parent=1 // pred_check_branch
      %23 = sbr.rel (0) target = $region13
    $region12: #{tpu_custom_call.1} parent=1 // pred_region
      _
    $region13: #{tpu_custom_call.1} parent=1 // pred_fallthru
      _
    // Predicated region
    $region14: #{tpu_custom_call.1} parent=1 // pred_check
      _
    $region15: #{tpu_custom_call.1} parent=1 // pred_check_branch
      %25 = sbr.rel (0) target = $region17
    $region16: #{tpu_custom_call.1} parent=1 // pred_region
      _
    $region17: #{tpu_custom_call.1} parent=1 // pred_fallthru
      _
    // Predicated region
    $region18: #{tpu_custom_call.1} parent=1 // pred_check
      _
    $region19: #{tpu_custom_call.1} parent=1 // pred_check_branch
      %27 = sbr.rel (0) target = $region21
    $region20: #{tpu_custom_call.1} parent=1 // pred_region
      _
    $region21: #{tpu_custom_call.1} parent=1 // pred_fallthru
      _
    // Predicated region
    $region22: #{tpu_custom_call.1} parent=1 // pred_check
      _
    $region23: #{tpu_custom_call.1} parent=1 // pred_check_branch
      %29 = sbr.rel (0) target = $region25
    $region24: #{tpu_custom_call.1} parent=1 // pred_region
      _
    $region25: #{tpu_custom_call.1} parent=1 // pred_fallthru
      _
    // Predicated region
    $region26: #{tpu_custom_call.1} parent=1 // pred_check
      _
    $region27: #{tpu_custom_call.1} parent=1 // pred_check_branch
      %31 = sbr.rel (0) target = $region29
    $region28: #{tpu_custom_call.1} parent=1 // pred_region
      _
    $region29: #{tpu_custom_call.1} parent=1 // pred_fallthru
      _
    // Predicated region
    $region30: #{tpu_custom_call.1} parent=1 // pred_check
      _
    $region31: #{tpu_custom_call.1} parent=1 // pred_check_branch
      %33 = sbr.rel (0) target = $region33
    $region32: #{tpu_custom_call.1} parent=1 // pred_region
      _
    $region33: #{tpu_custom_call.1} parent=1 // pred_fallthru
      _
    // Predicated region
    $region34: #{tpu_custom_call.1} parent=1 // pred_check
      _
    $region35: #{tpu_custom_call.1} parent=1 // pred_check_branch
      %35 = sbr.rel (0) target = $region37
    $region36: #{tpu_custom_call.1} parent=1 // pred_region
      _
    $region37: #{tpu_custom_call.1} parent=1 // pred_fallthru
      _
    // Predicated region
    $region38: #{tpu_custom_call.1} parent=1 // pred_check
      _
    $region39: #{tpu_custom_call.1} parent=1 // pred_check_branch
      %37 = sbr.rel (0) target = $region41
    $region40: #{tpu_custom_call.1} parent=1 // pred_region
      _
    $region41: #{tpu_custom_call.1} parent=1 // pred_fallthru
      _
    // Predicated region
    $region42: #{tpu_custom_call.1} parent=1 // pred_check
      _
    $region43: #{tpu_custom_call.1} parent=1 // pred_check_branch
      %39 = sbr.rel (0) target = $region45
    $region44: #{tpu_custom_call.1} parent=1 // pred_region
      _
    $region45: #{tpu_custom_call.1} parent=1 // pred_fallthru
      _
    // Predicated region
    $region46: #{tpu_custom_call.1} parent=1 // pred_check
      _
    $region47: #{tpu_custom_call.1} parent=1 // pred_check_branch
      %41 = sbr.rel (0) target = $region49
    $region48: #{tpu_custom_call.1} parent=1 // pred_region
      _
    $region49: #{tpu_custom_call.1} parent=1 // pred_fallthru
      _
    %v43 = vld [vmem:[%s0] sm:$0xff]
    %v44 = vld [vmem:[%s0 + $0x8] sm:$0xff]
    %v45 = vld [vmem:[%s0 + $0x10] sm:$0xff]
    %v46 = vld [vmem:[%s0 + $0x18] sm:$0xff]
    %v47 = vld [vmem:[%s0 + $0x20] sm:$0xff]
    %v48 = vld [vmem:[%s0 + $0x28] sm:$0xff]
    %v49 = vld [vmem:[%s0 + $0x30] sm:$0xff]
    %v50 = vld [vmem:[%s0 + $0x38] sm:$0xff]
    %v51 = vld [vmem:[%s2] sm:$0xf]
    %v52 = vld [vmem:[%s2 + $0x4] sm:$0xf]
    %v53 = vld [vmem:[%s2 + $0x8] sm:$0xf]
    %v54 = vld [vmem:[%s2 + $0xc] sm:$0xf]
    %v55 = vld [vmem:[%s2 + $0x10] sm:$0xf]
    %v56 = vld [vmem:[%s2 + $0x14] sm:$0xf]
    %v57 = vld [vmem:[%s2 + $0x18] sm:$0xf]
    %v58 = vld [vmem:[%s2 + $0x1c] sm:$0xf]
    %v59 = vld [vmem:[%s2 + $0x20] sm:$0xf]
    %v60 = vld [vmem:[%s2 + $0x24] sm:$0xf]
    %v61 = vld [vmem:[%s2 + $0x28] sm:$0xf]
    %v62 = vld [vmem:[%s2 + $0x2c] sm:$0xf]
    %v63 = vld [vmem:[%s2 + $0x30] sm:$0xf]
    %v64 = vld [vmem:[%s2 + $0x34] sm:$0xf]
    %v65 = vld [vmem:[%s2 + $0x38] sm:$0xf]
    %v66 = vld [vmem:[%s2 + $0x3c] sm:$0xf]
    %v67 = vld [vmem:[%s2 + $0x40] sm:$0xf]
    %v68 = vld [vmem:[%s2 + $0x44] sm:$0xf]
    %v69 = vld [vmem:[%s2 + $0x48] sm:$0xf]
    %v70 = vld [vmem:[%s2 + $0x4c] sm:$0xf]
    %v71 = vld [vmem:[%s2 + $0x50] sm:$0xf]
    %v72 = vld [vmem:[%s2 + $0x54] sm:$0xf]
    %v73 = vld [vmem:[%s2 + $0x58] sm:$0xf]
    %v74 = vld [vmem:[%s2 + $0x5c] sm:$0xf]
    %v75 = vld [vmem:[%s2 + $0x60] sm:$0xf]
    %v76 = vld [vmem:[%s2 + $0x64] sm:$0xf]
    %v77 = vld [vmem:[%s2 + $0x68] sm:$0xf]
    %v78 = vld [vmem:[%s2 + $0x6c] sm:$0xf]
    %v79 = vld [vmem:[%s2 + $0x70] sm:$0xf]
    %v80 = vld [vmem:[%s2 + $0x74] sm:$0xf]
    %v81 = vld [vmem:[%s2 + $0x78] sm:$0xf]
    %v82 = vld [vmem:[%s2 + $0x7c] sm:$0xf]
    %v83 = vld [vmem:[%s2 + $0x80] sm:$0xf]
    %v84 = vld [vmem:[%s2 + $0x84] sm:$0xf]
    %v85 = vld [vmem:[%s2 + $0x88] sm:$0xf]
    %v86 = vld [vmem:[%s2 + $0x8c] sm:$0xf]
    %v87 = vld [vmem:[%s2 + $0x90] sm:$0xf]
    %v88 = vld [vmem:[%s2 + $0x94] sm:$0xf]
    %v89 = vld [vmem:[%s2 + $0x98] sm:$0xf]
    %v90 = vld [vmem:[%s2 + $0x9c] sm:$0xf]
    %v91 = vld [vmem:[%s2 + $0xa0] sm:$0xf]
    %v92 = vld [vmem:[%s2 + $0xa4] sm:$0xf]
    %v93 = vld [vmem:[%s2 + $0xa8] sm:$0xf]
    %v94 = vld [vmem:[%s2 + $0xac] sm:$0xf]
    %v95 = vld [vmem:[%s2 + $0xb0] sm:$0xf]
    %v96 = vld [vmem:[%s2 + $0xb4] sm:$0xf]
    %v97 = vld [vmem:[%s2 + $0xb8] sm:$0xf]
    %v98 = vld [vmem:[%s2 + $0xbc] sm:$0xf]
    %v99 = vld [vmem:[%s2 + $0xc0] sm:$0xf]
    %v100 = vld [vmem:[%s2 + $0xc4] sm:$0xf]
    %v101 = vld [vmem:[%s2 + $0xc8] sm:$0xf]
    %v102 = vld [vmem:[%s2 + $0xcc] sm:$0xf]
    %v103 = vld [vmem:[%s2 + $0xd0] sm:$0xf]
    %v104 = vld [vmem:[%s2 + $0xd4] sm:$0xf]
    %v105 = vld [vmem:[%s2 + $0xd8] sm:$0xf]
    %v106 = vld [vmem:[%s2 + $0xdc] sm:$0xf]
    %v107 = vld [vmem:[%s2 + $0xe0] sm:$0xf]
    %v108 = vld [vmem:[%s2 + $0xe4] sm:$0xf]
    %v109 = vld [vmem:[%s2 + $0xe8] sm:$0xf]
    %v110 = vld [vmem:[%s2 + $0xec] sm:$0xf]
    %v111 = vld [vmem:[%s2 + $0xf0] sm:$0xf]
    %v112 = vld [vmem:[%s2 + $0xf4] sm:$0xf]
    %v113 = vld [vmem:[%s2 + $0xf8] sm:$0xf]
    %v114 = vld [vmem:[%s2 + $0xfc] sm:$0xf]
    %v123 = vunpack.c.l.b16 %v43
    %v124 = vunpack.c.h.b16 %v43
    %v125 = vunpack.c.l.b16 %v44
    %v126 = vunpack.c.h.b16 %v44
    %v127 = vunpack.c.l.b16 %v45
    %v128 = vunpack.c.h.b16 %v45
    %v129 = vunpack.c.l.b16 %v46
    %v130 = vunpack.c.h.b16 %v46
    %v131 = vunpack.c.l.b16 %v47
    %v132 = vunpack.c.h.b16 %v47
    %v133 = vunpack.c.l.b16 %v48
    %v134 = vunpack.c.h.b16 %v48
    %v135 = vunpack.c.l.b16 %v49
    %v136 = vunpack.c.h.b16 %v49
    %v137 = vunpack.c.l.b16 %v50
    %v138 = vunpack.c.h.b16 %v50
    %v139 = vpack.c.b16 %v127, %v123
    %v140 = vpack.c.b16 %v128, %v124
    %v141 = vpack.c.b16 %v129, %v125
    %v142 = vpack.c.b16 %v130, %v126
    %v143 = vpack.c.b16 %v135, %v131
    %v144 = vpack.c.b16 %v136, %v132
    %v145 = vpack.c.b16 %v137, %v133
    %v146 = vpack.c.b16 %v138, %v134
    %v219 = vunpack.c.l.b16 %v51
    %v220 = vunpack.c.l.b16 %v52
    %v221 = vunpack.c.l.b16 %v53
    %v222 = vunpack.c.l.b16 %v54
    %v223 = vunpack.c.l.b16 %v55
    %v224 = vunpack.c.l.b16 %v56
    %v225 = vunpack.c.l.b16 %v57
    %v226 = vunpack.c.l.b16 %v58
    %v227 = vunpack.c.l.b16 %v59
    %v228 = vunpack.c.l.b16 %v60
    %v229 = vunpack.c.l.b16 %v61
    %v230 = vunpack.c.l.b16 %v62
    %v231 = vunpack.c.l.b16 %v63
    %v232 = vunpack.c.l.b16 %v64
    %v233 = vunpack.c.l.b16 %v65
    %v234 = vunpack.c.l.b16 %v66
    %v235 = vunpack.c.l.b16 %v67
    %v236 = vunpack.c.l.b16 %v68
    %v237 = vunpack.c.l.b16 %v69
    %v238 = vunpack.c.l.b16 %v70
    %v239 = vunpack.c.l.b16 %v71
    %v240 = vunpack.c.l.b16 %v72
    %v241 = vunpack.c.l.b16 %v73
    %v242 = vunpack.c.l.b16 %v74
    %v243 = vunpack.c.l.b16 %v75
    %v244 = vunpack.c.l.b16 %v76
    %v245 = vunpack.c.l.b16 %v77
    %v246 = vunpack.c.l.b16 %v78
    %v247 = vunpack.c.l.b16 %v79
    %v248 = vunpack.c.l.b16 %v80
    %v249 = vunpack.c.l.b16 %v81
    %v250 = vunpack.c.l.b16 %v82
    %v251 = vunpack.c.l.b16 %v83
    %v252 = vunpack.c.l.b16 %v84
    %v253 = vunpack.c.l.b16 %v85
    %v254 = vunpack.c.l.b16 %v86
    %v255 = vunpack.c.l.b16 %v87
    %v256 = vunpack.c.l.b16 %v88
    %v257 = vunpack.c.l.b16 %v89
    %v258 = vunpack.c.l.b16 %v90
    %v259 = vunpack.c.l.b16 %v91
    %v260 = vunpack.c.l.b16 %v92
    %v261 = vunpack.c.l.b16 %v93
    %v262 = vunpack.c.l.b16 %v94
    %v263 = vunpack.c.l.b16 %v95
    %v264 = vunpack.c.l.b16 %v96
    %v265 = vunpack.c.l.b16 %v97
    %v266 = vunpack.c.l.b16 %v98
    %v267 = vunpack.c.l.b16 %v99
    %v268 = vunpack.c.l.b16 %v100
    %v269 = vunpack.c.l.b16 %v101
    %v270 = vunpack.c.l.b16 %v102
    %v271 = vunpack.c.l.b16 %v103
    %v272 = vunpack.c.l.b16 %v104
    %v273 = vunpack.c.l.b16 %v105
    %v274 = vunpack.c.l.b16 %v106
    %v275 = vunpack.c.l.b16 %v107
    %v276 = vunpack.c.l.b16 %v108
    %v277 = vunpack.c.l.b16 %v109
    %v278 = vunpack.c.l.b16 %v110
    %v279 = vunpack.c.l.b16 %v111
    %v280 = vunpack.c.l.b16 %v112
    %v281 = vunpack.c.l.b16 %v113
    %v282 = vunpack.c.l.b16 %v114
    %v283 = vpack.c.b16 %v220, %v219
    %v284 = vpack.c.b16 %v222, %v221
    %v285 = vpack.c.b16 %v224, %v223
    %v286 = vpack.c.b16 %v226, %v225
    %v287 = vpack.c.b16 %v228, %v227
    %v288 = vpack.c.b16 %v230, %v229
    %v289 = vpack.c.b16 %v232, %v231
    %v290 = vpack.c.b16 %v234, %v233
    %v291 = vpack.c.b16 %v236, %v235
    %v292 = vpack.c.b16 %v238, %v237
    %v293 = vpack.c.b16 %v240, %v239
    %v294 = vpack.c.b16 %v242, %v241
    %v295 = vpack.c.b16 %v244, %v243
    %v296 = vpack.c.b16 %v246, %v245
    %v297 = vpack.c.b16 %v248, %v247
    %v298 = vpack.c.b16 %v250, %v249
    %v299 = vpack.c.b16 %v252, %v251
    %v300 = vpack.c.b16 %v254, %v253
    %v301 = vpack.c.b16 %v256, %v255
    %v302 = vpack.c.b16 %v258, %v257
    %v303 = vpack.c.b16 %v260, %v259
    %v304 = vpack.c.b16 %v262, %v261
    %v305 = vpack.c.b16 %v264, %v263
    %v306 = vpack.c.b16 %v266, %v265
    %v307 = vpack.c.b16 %v268, %v267
    %v308 = vpack.c.b16 %v270, %v269
    %v309 = vpack.c.b16 %v272, %v271
    %v310 = vpack.c.b16 %v274, %v273
    %v311 = vpack.c.b16 %v276, %v275
    %v312 = vpack.c.b16 %v278, %v277
    %v313 = vpack.c.b16 %v280, %v279
    %v314 = vpack.c.b16 %v282, %v281
    %347 = vmatprep.subr.bf16.mxu0 0
    %348 = vmatpush1.bf16.msra.mxu0 %v283
    %349 = vmatprep.subr.bf16.mxu0 0
    %350 = vmatpush1.bf16.msra.mxu0 %v284
    %351 = vmatprep.subr.bf16.mxu0 0
    %352 = vmatpush1.bf16.msra.mxu0 %v285
    %353 = vmatprep.subr.bf16.mxu0 0
    %354 = vmatpush1.bf16.msra.mxu0 %v286
    %355 = vmatprep.subr.bf16.mxu0 0
    %356 = vmatpush1.bf16.msra.mxu0 %v287
    %357 = vmatprep.subr.bf16.mxu0 0
    %358 = vmatpush1.bf16.msra.mxu0 %v288
    %359 = vmatprep.subr.bf16.mxu0 0
    %360 = vmatpush1.bf16.msra.mxu0 %v289
    %361 = vmatprep.subr.bf16.mxu0 0
    %362 = vmatpush1.bf16.msra.mxu0 %v290
    %363 = vmatprep.subr.bf16.mxu0 0
    %364 = vmatpush1.bf16.msra.mxu0 %v291
    %365 = vmatprep.subr.bf16.mxu0 0
    %366 = vmatpush1.bf16.msra.mxu0 %v292
    %367 = vmatprep.subr.bf16.mxu0 0
    %368 = vmatpush1.bf16.msra.mxu0 %v293
    %369 = vmatprep.subr.bf16.mxu0 0
    %370 = vmatpush1.bf16.msra.mxu0 %v294
    %371 = vmatprep.subr.bf16.mxu0 0
    %372 = vmatpush1.bf16.msra.mxu0 %v295
    %373 = vmatprep.subr.bf16.mxu0 0
    %374 = vmatpush1.bf16.msra.mxu0 %v296
    %375 = vmatprep.subr.bf16.mxu0 0
    %376 = vmatpush1.bf16.msra.mxu0 %v297
    %377 = vmatprep.subr.bf16.mxu0 0
    %378 = vmatpush1.bf16.msra.mxu0 %v298
    %379 = vmatprep.mubr.bf16.mxu0 %v140
    %380 = vmatmul.mubr.bf16.gmra.mrb[0].mxu0 %v139
    %v381 = vpop.f32.mrb[0].mxu0
    %v382 = vadd.f32 0.0, %v381
    %v383 = vpop.f32.mrb[0].mxu0
    %v384 = vpop.f32.mrb[0].mxu0
    %v385 = vadd.f32 0.0, %v384
    %v386 = vpop.f32.mrb[0].mxu0
    %387 = vmatprep.mubr.bf16.mxu0 %v144
    %388 = vmatmul.mubr.bf16.gmra.mrb[0].mxu0 %v143
    %v389 = vpop.f32.mrb[0].mxu0
    %v390 = vadd.f32 0.0, %v389
    %v391 = vpop.f32.mrb[0].mxu0
    %v392 = vpop.f32.mrb[0].mxu0
    %v393 = vadd.f32 0.0, %v392
    %v394 = vpop.f32.mrb[0].mxu0
    %395 = vdwg.mxu0
    %396 = vmatprep.subr.bf16.mxu0 0
    %397 = vmatpush1.bf16.msra.mxu0 %v299
    %398 = vmatprep.subr.bf16.mxu0 0
    %399 = vmatpush1.bf16.msra.mxu0 %v300
    %400 = vmatprep.subr.bf16.mxu0 0
    %401 = vmatpush1.bf16.msra.mxu0 %v301
    %402 = vmatprep.subr.bf16.mxu0 0
    %403 = vmatpush1.bf16.msra.mxu0 %v302
    %404 = vmatprep.subr.bf16.mxu0 0
    %405 = vmatpush1.bf16.msra.mxu0 %v303
    %406 = vmatprep.subr.bf16.mxu0 0
    %407 = vmatpush1.bf16.msra.mxu0 %v304
    %408 = vmatprep.subr.bf16.mxu0 0
    %409 = vmatpush1.bf16.msra.mxu0 %v305
    %410 = vmatprep.subr.bf16.mxu0 0
    %411 = vmatpush1.bf16.msra.mxu0 %v306
    %412 = vmatprep.subr.bf16.mxu0 0
    %413 = vmatpush1.bf16.msra.mxu0 %v307
    %414 = vmatprep.subr.bf16.mxu0 0
    %415 = vmatpush1.bf16.msra.mxu0 %v308
    %416 = vmatprep.subr.bf16.mxu0 0
    %417 = vmatpush1.bf16.msra.mxu0 %v309
    %418 = vmatprep.subr.bf16.mxu0 0
    %419 = vmatpush1.bf16.msra.mxu0 %v310
    %420 = vmatprep.subr.bf16.mxu0 0
    %421 = vmatpush1.bf16.msra.mxu0 %v311
    %422 = vmatprep.subr.bf16.mxu0 0
    %423 = vmatpush1.bf16.msra.mxu0 %v312
    %424 = vmatprep.subr.bf16.mxu0 0
    %425 = vmatpush1.bf16.msra.mxu0 %v313
    %426 = vmatprep.subr.bf16.mxu0 0
    %427 = vmatpush1.bf16.msra.mxu0 %v314
    %428 = vmatprep.mubr.bf16.mxu0 %v142
    %429 = vmatmul.mubr.bf16.gmra.mrb[0].mxu0 %v141
    %v430 = vpop.f32.mrb[0].mxu0
    %v431 = vadd.f32 %v382, %v430
    %v432 = vpop.f32.mrb[0].mxu0
    %v433 = vpop.f32.mrb[0].mxu0
    %v434 = vadd.f32 %v385, %v433
    %v435 = vpop.f32.mrb[0].mxu0
    %436 = vmatprep.mubr.bf16.mxu0 %v146
    %437 = vmatmul.mubr.bf16.gmra.mrb[0].mxu0 %v145
    %v438 = vpop.f32.mrb[0].mxu0
    %v439 = vadd.f32 %v390, %v438
    %v440 = vpop.f32.mrb[0].mxu0
    %v441 = vpop.f32.mrb[0].mxu0
    %v442 = vadd.f32 %v393, %v441
    %v443 = vpop.f32.mrb[0].mxu0
    %444 = vdwg.mxu0
    %s445 = scalar_lea.vmem %s0, 64
    %v446 = vld [vmem:[%s445] sm:$0xff]
    %v447 = vld [vmem:[%s445 + $0x8] sm:$0xff]
    %v448 = vld [vmem:[%s445 + $0x10] sm:$0xff]
    %v449 = vld [vmem:[%s445 + $0x18] sm:$0xff]
    %v450 = vld [vmem:[%s445 + $0x20] sm:$0xff]
    %v451 = vld [vmem:[%s445 + $0x28] sm:$0xff]
    %v452 = vld [vmem:[%s445 + $0x30] sm:$0xff]
    %v453 = vld [vmem:[%s445 + $0x38] sm:$0xff]
    %v462 = vunpack.c.l.b16 %v446
    %v463 = vunpack.c.h.b16 %v446
    %v464 = vunpack.c.l.b16 %v447
    %v465 = vunpack.c.h.b16 %v447
    %v466 = vunpack.c.l.b16 %v448
    %v467 = vunpack.c.h.b16 %v448
    %v468 = vunpack.c.l.b16 %v449
    %v469 = vunpack.c.h.b16 %v449
    %v470 = vunpack.c.l.b16 %v450
    %v471 = vunpack.c.h.b16 %v450
    %v472 = vunpack.c.l.b16 %v451
    %v473 = vunpack.c.h.b16 %v451
    %v474 = vunpack.c.l.b16 %v452
    %v475 = vunpack.c.h.b16 %v452
    %v476 = vunpack.c.l.b16 %v453
    %v477 = vunpack.c.h.b16 %v453
    %v478 = vpack.c.b16 %v466, %v462
    %v479 = vpack.c.b16 %v467, %v463
    %v480 = vpack.c.b16 %v468, %v464
    %v481 = vpack.c.b16 %v469, %v465
    %v482 = vpack.c.b16 %v474, %v470
    %v483 = vpack.c.b16 %v475, %v471
    %v484 = vpack.c.b16 %v476, %v472
    %v485 = vpack.c.b16 %v477, %v473
    %494 = vmatprep.subr.bf16.mxu0 0
    %495 = vmatpush1.bf16.msra.mxu0 %v283
    %496 = vmatprep.subr.bf16.mxu0 0
    %497 = vmatpush1.bf16.msra.mxu0 %v284
    %498 = vmatprep.subr.bf16.mxu0 0
    %499 = vmatpush1.bf16.msra.mxu0 %v285
    %500 = vmatprep.subr.bf16.mxu0 0
    %501 = vmatpush1.bf16.msra.mxu0 %v286
    %502 = vmatprep.subr.bf16.mxu0 0
    %503 = vmatpush1.bf16.msra.mxu0 %v287
    %504 = vmatprep.subr.bf16.mxu0 0
    %505 = vmatpush1.bf16.msra.mxu0 %v288
    %506 = vmatprep.subr.bf16.mxu0 0
    %507 = vmatpush1.bf16.msra.mxu0 %v289
    %508 = vmatprep.subr.bf16.mxu0 0
    %509 = vmatpush1.bf16.msra.mxu0 %v290
    %510 = vmatprep.subr.bf16.mxu0 0
    %511 = vmatpush1.bf16.msra.mxu0 %v291
    %512 = vmatprep.subr.bf16.mxu0 0
    %513 = vmatpush1.bf16.msra.mxu0 %v292
    %514 = vmatprep.subr.bf16.mxu0 0
    %515 = vmatpush1.bf16.msra.mxu0 %v293
    %516 = vmatprep.subr.bf16.mxu0 0
    %517 = vmatpush1.bf16.msra.mxu0 %v294
    %518 = vmatprep.subr.bf16.mxu0 0
    %519 = vmatpush1.bf16.msra.mxu0 %v295
    %520 = vmatprep.subr.bf16.mxu0 0
    %521 = vmatpush1.bf16.msra.mxu0 %v296
    %522 = vmatprep.subr.bf16.mxu0 0
    %523 = vmatpush1.bf16.msra.mxu0 %v297
    %524 = vmatprep.subr.bf16.mxu0 0
    %525 = vmatpush1.bf16.msra.mxu0 %v298
    %526 = vmatprep.mubr.bf16.mxu0 %v479
    %527 = vmatmul.mubr.bf16.gmra.mrb[0].mxu0 %v478
    %v528 = vpop.f32.mrb[0].mxu0
    %v529 = vadd.f32 0.0, %v528
    %v530 = vpop.f32.mrb[0].mxu0
    %v531 = vpop.f32.mrb[0].mxu0
    %v532 = vadd.f32 0.0, %v531
    %v533 = vpop.f32.mrb[0].mxu0
    %534 = vmatprep.mubr.bf16.mxu0 %v483
    %535 = vmatmul.mubr.bf16.gmra.mrb[0].mxu0 %v482
    %v536 = vpop.f32.mrb[0].mxu0
    %v537 = vadd.f32 0.0, %v536
    %v538 = vpop.f32.mrb[0].mxu0
    %v539 = vpop.f32.mrb[0].mxu0
    %v540 = vadd.f32 0.0, %v539
    %v541 = vpop.f32.mrb[0].mxu0
    %542 = vdwg.mxu0
    %543 = vmatprep.subr.bf16.mxu0 0
    %544 = vmatpush1.bf16.msra.mxu0 %v299
    %545 = vmatprep.subr.bf16.mxu0 0
    %546 = vmatpush1.bf16.msra.mxu0 %v300
    %547 = vmatprep.subr.bf16.mxu0 0
    %548 = vmatpush1.bf16.msra.mxu0 %v301
    %549 = vmatprep.subr.bf16.mxu0 0
    %550 = vmatpush1.bf16.msra.mxu0 %v302
    %551 = vmatprep.subr.bf16.mxu0 0
    %552 = vmatpush1.bf16.msra.mxu0 %v303
    %553 = vmatprep.subr.bf16.mxu0 0
    %554 = vmatpush1.bf16.msra.mxu0 %v304
    %555 = vmatprep.subr.bf16.mxu0 0
    %556 = vmatpush1.bf16.msra.mxu0 %v305
    %557 = vmatprep.subr.bf16.mxu0 0
    %558 = vmatpush1.bf16.msra.mxu0 %v306
    %559 = vmatprep.subr.bf16.mxu0 0
    %560 = vmatpush1.bf16.msra.mxu0 %v307
    %561 = vmatprep.subr.bf16.mxu0 0
    %562 = vmatpush1.bf16.msra.mxu0 %v308
    %563 = vmatprep.subr.bf16.mxu0 0
    %564 = vmatpush1.bf16.msra.mxu0 %v309
    %565 = vmatprep.subr.bf16.mxu0 0
    %566 = vmatpush1.bf16.msra.mxu0 %v310
    %567 = vmatprep.subr.bf16.mxu0 0
    %568 = vmatpush1.bf16.msra.mxu0 %v311
    %569 = vmatprep.subr.bf16.mxu0 0
    %570 = vmatpush1.bf16.msra.mxu0 %v312
    %571 = vmatprep.subr.bf16.mxu0 0
    %572 = vmatpush1.bf16.msra.mxu0 %v313
    %573 = vmatprep.subr.bf16.mxu0 0
    %574 = vmatpush1.bf16.msra.mxu0 %v314
    %575 = vmatprep.mubr.bf16.mxu0 %v481
    %576 = vmatmul.mubr.bf16.gmra.mrb[0].mxu0 %v480
    %v577 = vpop.f32.mrb[0].mxu0
    %v578 = vadd.f32 %v529, %v577
    %v579 = vpop.f32.mrb[0].mxu0
    %v580 = vpop.f32.mrb[0].mxu0
    %v581 = vadd.f32 %v532, %v580
    %v582 = vpop.f32.mrb[0].mxu0
    %583 = vmatprep.mubr.bf16.mxu0 %v485
    %584 = vmatmul.mubr.bf16.gmra.mrb[0].mxu0 %v484
    %v585 = vpop.f32.mrb[0].mxu0
    %v586 = vadd.f32 %v537, %v585
    %v587 = vpop.f32.mrb[0].mxu0
    %v588 = vpop.f32.mrb[0].mxu0
    %v589 = vadd.f32 %v540, %v588
    %v590 = vpop.f32.mrb[0].mxu0
    %591 = vdwg.mxu0
    %v592 = vld [vmem:[%s1] sm:$0xff]
    %v593 = vld [vmem:[%s1 + $0x8] sm:$0xff]
    %v594 = vld [vmem:[%s1 + $0x10] sm:$0xff]
    %v595 = vld [vmem:[%s1 + $0x18] sm:$0xff]
    %v596 = vld [vmem:[%s1 + $0x20] sm:$0xff]
    %v597 = vld [vmem:[%s1 + $0x28] sm:$0xff]
    %v598 = vld [vmem:[%s1 + $0x30] sm:$0xff]
    %v599 = vld [vmem:[%s1 + $0x38] sm:$0xff]
    %v600 = vadd.f32 %v431, %v592
    %v601 = vadd.f32 %v578, %v593
    %v602 = vadd.f32 %v434, %v594
    %v603 = vadd.f32 %v581, %v595
    %v604 = vadd.f32 %v439, %v596
    %v605 = vadd.f32 %v586, %v597
    %v606 = vadd.f32 %v442, %v598
    %v607 = vadd.f32 %v589, %v599
    %v608 = vld [vmem:[%s10] sm:$0xff]
    %v609 = vld [vmem:[%s10 + $0x8] sm:$0xff]
    %v610 = vld [vmem:[%s10 + $0x10] sm:$0xff]
    %v611 = vld [vmem:[%s10 + $0x18] sm:$0xff]
    %v612 = vadd.f32 %v600, %v602
    %v613 = vadd.f32 %v612, %v604
    %v614 = vadd.f32 %v613, %v606
    %v615 = vrot.slane %v614, 4
    %v616 = vadd.f32 %v614, %v615
    %v617 = vrot.slane %v616, 2
    %v618 = vadd.f32 %v616, %v617
    %v619 = vrot.slane %v618, 1
    %v620 = vadd.f32 %v618, %v619
    %v621 = vadd.f32 %v601, %v603
    %v622 = vadd.f32 %v621, %v605
    %v623 = vadd.f32 %v622, %v607
    %v624 = vrot.slane %v623, 4
    %v625 = vadd.f32 %v623, %v624
    %v626 = vrot.slane %v625, 2
    %v627 = vadd.f32 %v625, %v626
    %v628 = vrot.slane %v627, 1
    %v629 = vadd.f32 %v627, %v628
    %v630 = vrcp.pop 32.0
    %v631 = vmul.f32 %v620, %v630
    %v632 = vmul.f32 %v629, %v630
    %v633 = vsub.f32 %v600, %v631
    %v634 = vsub.f32 %v601, %v632
    %v635 = vsub.f32 %v602, %v631
    %v636 = vsub.f32 %v603, %v632
    %v637 = vsub.f32 %v604, %v631
    %v638 = vsub.f32 %v605, %v632
    %v639 = vsub.f32 %v606, %v631
    %v640 = vsub.f32 %v607, %v632
    %v641 = vmul.f32 %v633, %v633
    %v642 = vmul.f32 %v634, %v634
    %v643 = vmul.f32 %v635, %v635
    %v644 = vmul.f32 %v636, %v636
    %v645 = vmul.f32 %v637, %v637
    %v646 = vmul.f32 %v638, %v638
    %v647 = vmul.f32 %v639, %v639
    %v648 = vmul.f32 %v640, %v640
    %v649 = vadd.f32 %v641, %v643
    %v650 = vadd.f32 %v649, %v645
    %v651 = vadd.f32 %v650, %v647
    %v652 = vrot.slane %v651, 4
    %v653 = vadd.f32 %v651, %v652
    %v654 = vrot.slane %v653, 2
    %v655 = vadd.f32 %v653, %v654
    %v656 = vrot.slane %v655, 1
    %v657 = vadd.f32 %v655, %v656
    %v658 = vadd.f32 %v642, %v644
    %v659 = vadd.f32 %v658, %v646
    %v660 = vadd.f32 %v659, %v648
    %v661 = vrot.slane %v660, 4
    %v662 = vadd.f32 %v660, %v661
    %v663 = vrot.slane %v662, 2
    %v664 = vadd.f32 %v662, %v663
    %v665 = vrot.slane %v664, 1
    %v666 = vadd.f32 %v664, %v665
    %v667 = vmul.f32 %v657, %v630
    %v668 = vmul.f32 %v666, %v630
    %v669 = vadd.f32 %v667, 1e-05
    %v670 = vadd.f32 %v668, 1e-05
    %v671 = vrsqrt.pop %v669
    %v672 = vrsqrt.pop %v670
    %v673 = vmul.f32 %v633, %v671
    %v674 = vmul.f32 %v634, %v672
    %v675 = vmul.f32 %v635, %v671
    %v676 = vmul.f32 %v636, %v672
    %v677 = vmul.f32 %v637, %v671
    %v678 = vmul.f32 %v638, %v672
    %v679 = vmul.f32 %v639, %v671
    %v680 = vmul.f32 %v640, %v672
    %682 = vset.pattern.permute.xlu0 0
    %683 = vperm.xlu0 %682, %v608
    %v684 = vpop.permute.xlu0 %683
    %687 = vset.pattern.permute.xlu0 0
    %688 = vperm.xlu0 %687, %v609
    %v689 = vpop.permute.xlu0 %688
    %692 = vset.pattern.permute.xlu0 0
    %693 = vperm.xlu0 %692, %v610
    %v694 = vpop.permute.xlu0 %693
    %697 = vset.pattern.permute.xlu0 0
    %698 = vperm.xlu0 %697, %v611
    %v699 = vpop.permute.xlu0 %698
    %v701 = vmul.f32 %v673, %v684
    %v702 = vmul.f32 %v674, %v684
    %v703 = vmul.f32 %v675, %v689
    %v704 = vmul.f32 %v676, %v689
    %v705 = vmul.f32 %v677, %v694
    %v706 = vmul.f32 %v678, %v694
    %v707 = vmul.f32 %v679, %v699
    %v708 = vmul.f32 %v680, %v699
    %709 = vset.pattern.permute.xlu0 1
    %710 = vperm.xlu0 %709, %v608
    %v711 = vpop.permute.xlu0 %710
    %713 = vset.pattern.permute.xlu0 1
    %714 = vperm.xlu0 %713, %v609
    %v715 = vpop.permute.xlu0 %714
    %717 = vset.pattern.permute.xlu0 1
    %718 = vperm.xlu0 %717, %v610
    %v719 = vpop.permute.xlu0 %718
    %721 = vset.pattern.permute.xlu0 1
    %722 = vperm.xlu0 %721, %v611
    %v723 = vpop.permute.xlu0 %722
    %v725 = vadd.f32 %v701, %v711
    %v726 = vadd.f32 %v702, %v711
    %v727 = vadd.f32 %v703, %v715
    %v728 = vadd.f32 %v704, %v715
    %v729 = vadd.f32 %v705, %v719
    %v730 = vadd.f32 %v706, %v719
    %v731 = vadd.f32 %v707, %v723
    %v732 = vadd.f32 %v708, %v723
    %v733 = vpack.c.bf16 %v727, %v725
    %v734 = vpack.c.bf16 %v728, %v726
    %v735 = vpack.c.bf16 %v731, %v729
    %v736 = vpack.c.bf16 %v732, %v730
    %v737 = vld [vmem:[%s4] sm:$0xf]
    %v738 = vld [vmem:[%s4 + $0x4] sm:$0xf]
    %v739 = vld [vmem:[%s4 + $0x8] sm:$0xf]
    %v740 = vld [vmem:[%s4 + $0xc] sm:$0xf]
    %v741 = vld [vmem:[%s4 + $0x10] sm:$0xf]
    %v742 = vld [vmem:[%s4 + $0x14] sm:$0xf]
    %v743 = vld [vmem:[%s4 + $0x18] sm:$0xf]
    %v744 = vld [vmem:[%s4 + $0x1c] sm:$0xf]
    %v745 = vld [vmem:[%s4 + $0x20] sm:$0xf]
    %v746 = vld [vmem:[%s4 + $0x24] sm:$0xf]
    %v747 = vld [vmem:[%s4 + $0x28] sm:$0xf]
    %v748 = vld [vmem:[%s4 + $0x2c] sm:$0xf]
    %v749 = vld [vmem:[%s5] sm:$0xff]
    %v750 = vld [vmem:[%s5 + $0x8] sm:$0xff]
    %v751 = vld [vmem:[%s5 + $0x10] sm:$0xff]
    %v752 = vld [vmem:[%s5 + $0x18] sm:$0xff]
    %v753 = vld [vmem:[%s5 + $0x20] sm:$0xff]
    %v754 = vld [vmem:[%s5 + $0x28] sm:$0xff]
    %v755 = vld [vmem:[%s5 + $0x30] sm:$0xff]
    %v756 = vld [vmem:[%s5 + $0x38] sm:$0xff]
    %v757 = vld [vmem:[%s5 + $0x40] sm:$0xff]
    %v758 = vld [vmem:[%s5 + $0x48] sm:$0xff]
    %v759 = vld [vmem:[%s5 + $0x50] sm:$0xff]
    %v760 = vld [vmem:[%s5 + $0x58] sm:$0xff]
    %762 = vset.pattern.permute.xlu0 0
    %763 = vperm.xlu0 %762, %v749
    %v764 = vpop.permute.xlu0 %763
    %767 = vset.pattern.permute.xlu0 0
    %768 = vperm.xlu0 %767, %v750
    %v769 = vpop.permute.xlu0 %768
    %772 = vset.pattern.permute.xlu0 0
    %773 = vperm.xlu0 %772, %v751
    %v774 = vpop.permute.xlu0 %773
    %777 = vset.pattern.permute.xlu0 0
    %778 = vperm.xlu0 %777, %v752
    %v779 = vpop.permute.xlu0 %778
    %782 = vset.pattern.permute.xlu0 0
    %783 = vperm.xlu0 %782, %v753
    %v784 = vpop.permute.xlu0 %783
    %787 = vset.pattern.permute.xlu0 0
    %788 = vperm.xlu0 %787, %v754
    %v789 = vpop.permute.xlu0 %788
    %792 = vset.pattern.permute.xlu0 0
    %793 = vperm.xlu0 %792, %v755
    %v794 = vpop.permute.xlu0 %793
    %797 = vset.pattern.permute.xlu0 0
    %798 = vperm.xlu0 %797, %v756
    %v799 = vpop.permute.xlu0 %798
    %802 = vset.pattern.permute.xlu0 0
    %803 = vperm.xlu0 %802, %v757
    %v804 = vpop.permute.xlu0 %803
    %807 = vset.pattern.permute.xlu0 0
    %808 = vperm.xlu0 %807, %v758
    %v809 = vpop.permute.xlu0 %808
    %812 = vset.pattern.permute.xlu0 0
    %813 = vperm.xlu0 %812, %v759
    %v814 = vpop.permute.xlu0 %813
    %817 = vset.pattern.permute.xlu0 0
    %818 = vperm.xlu0 %817, %v760
    %v819 = vpop.permute.xlu0 %818
    %v833 = vunpack.c.l.b16 %v737
    %v834 = vunpack.c.l.b16 %v738
    %v835 = vunpack.c.l.b16 %v739
    %v836 = vunpack.c.l.b16 %v740
    %v837 = vunpack.c.l.b16 %v741
    %v838 = vunpack.c.l.b16 %v742
    %v839 = vunpack.c.l.b16 %v743
    %v840 = vunpack.c.l.b16 %v744
    %v841 = vunpack.c.l.b16 %v745
    %v842 = vunpack.c.l.b16 %v746
    %v843 = vunpack.c.l.b16 %v747
    %v844 = vunpack.c.l.b16 %v748
    %v845 = vpack.c.b16 %v834, %v833
    %v846 = vpack.c.b16 %v836, %v835
    %v847 = vpack.c.b16 %v838, %v837
    %v848 = vpack.c.b16 %v840, %v839
    %v849 = vpack.c.b16 %v842, %v841
    %v850 = vpack.c.b16 %v844, %v843
    %vm851 = vcmask 261120
    %v853 = vsel %vm851, %v845, 0
    %v856 = vsel %vm851, %v846, 0
    %v859 = vsel %vm851, %v847, 0
    %v862 = vsel %vm851, %v848, 0
    %v865 = vsel %vm851, %v849, 0
    %v868 = vsel %vm851, %v850, 0
    %870 = vmatprep.subr.bf16.mxu0 %v734
    %871 = vmatpush1.bf16.msra.mxu0 %v733
    %872 = vmatprep.subr.bf16.mxu0 %v736
    %873 = vmatpush1.bf16.msra.mxu0 %v735
    %874 = vmatprep.subr.bf16.mxu0 0
    %875 = vmatpush1.bf16.msra.mxu0 0
    %876 = vmatprep.subr.bf16.mxu0 0
    %877 = vmatpush1.bf16.msra.mxu0 0
    %878 = vmatprep.subr.bf16.mxu0 0
    %879 = vmatpush1.bf16.msra.mxu0 0
    %880 = vmatprep.subr.bf16.mxu0 0
    %881 = vmatpush1.bf16.msra.mxu0 0
    %882 = vmatprep.subr.bf16.mxu0 0
    %883 = vmatpush1.bf16.msra.mxu0 0
    %884 = vmatprep.subr.bf16.mxu0 0
    %885 = vmatpush1.bf16.msra.mxu0 0
    %886 = vmatprep.subr.bf16.mxu0 0
    %887 = vmatpush1.bf16.msra.mxu0 0
    %888 = vmatprep.subr.bf16.mxu0 0
    %889 = vmatpush1.bf16.msra.mxu0 0
    %890 = vmatprep.subr.bf16.mxu0 0
    %891 = vmatpush1.bf16.msra.mxu0 0
    %892 = vmatprep.subr.bf16.mxu0 0
    %893 = vmatpush1.bf16.msra.mxu0 0
    %894 = vmatprep.subr.bf16.mxu0 0
    %895 = vmatpush1.bf16.msra.mxu0 0
    %896 = vmatprep.subr.bf16.mxu0 0
    %897 = vmatpush1.bf16.msra.mxu0 0
    %898 = vmatprep.subr.bf16.mxu0 0
    %899 = vmatpush1.bf16.msra.mxu0 0
    %900 = vmatprep.subr.bf16.mxu0 0
    %901 = vmatpush1.bf16.msra.mxu0 0
    %902 = vmatprep.mubr.bf16.mxu0 0
    %903 = vmatmul.mubr.bf16.gmra.mrb[0].mxu0 %v853
    %v904 = vpop.f32.mrb[0].mxu0
    %v905 = vadd.f32 %v764, %v904
    %v906 = vpop.f32.mrb[0].mxu0
    %v907 = vadd.f32 %v764, %v906
    %v908 = vpop.f32.mrb[0].mxu0
    %v909 = vadd.f32 %v769, %v908
    %v910 = vpop.f32.mrb[0].mxu0
    %v911 = vadd.f32 %v769, %v910
    %912 = vmatprep.mubr.bf16.mxu0 0
    %913 = vmatmul.mubr.bf16.gmra.mrb[0].mxu0 %v856
    %v914 = vpop.f32.mrb[0].mxu0
    %v915 = vadd.f32 %v774, %v914
    %v916 = vpop.f32.mrb[0].mxu0
    %v917 = vadd.f32 %v774, %v916
    %v918 = vpop.f32.mrb[0].mxu0
    %v919 = vadd.f32 %v779, %v918
    %v920 = vpop.f32.mrb[0].mxu0
    %v921 = vadd.f32 %v779, %v920
    %922 = vmatprep.mubr.bf16.mxu0 0
    %923 = vmatmul.mubr.bf16.gmra.mrb[0].mxu0 %v859
    %v924 = vpop.f32.mrb[0].mxu0
    %v925 = vadd.f32 %v784, %v924
    %v926 = vpop.f32.mrb[0].mxu0
    %v927 = vadd.f32 %v784, %v926
    %v928 = vpop.f32.mrb[0].mxu0
    %v929 = vadd.f32 %v789, %v928
    %v930 = vpop.f32.mrb[0].mxu0
    %v931 = vadd.f32 %v789, %v930
    %932 = vmatprep.mubr.bf16.mxu0 0
    %933 = vmatmul.mubr.bf16.gmra.mrb[0].mxu0 %v862
    %v934 = vpop.f32.mrb[0].mxu0
    %v935 = vadd.f32 %v794, %v934
    %v936 = vpop.f32.mrb[0].mxu0
    %v937 = vadd.f32 %v794, %v936
    %v938 = vpop.f32.mrb[0].mxu0
    %v939 = vadd.f32 %v799, %v938
    %v940 = vpop.f32.mrb[0].mxu0
    %v941 = vadd.f32 %v799, %v940
    %942 = vmatprep.mubr.bf16.mxu0 0
    %943 = vmatmul.mubr.bf16.gmra.mrb[0].mxu0 %v865
    %v944 = vpop.f32.mrb[0].mxu0
    %v945 = vadd.f32 %v804, %v944
    %v946 = vpop.f32.mrb[0].mxu0
    %v947 = vadd.f32 %v804, %v946
    %v948 = vpop.f32.mrb[0].mxu0
    %v949 = vadd.f32 %v809, %v948
    %v950 = vpop.f32.mrb[0].mxu0
    %v951 = vadd.f32 %v809, %v950
    %952 = vmatprep.mubr.bf16.mxu0 0
    %953 = vmatmul.mubr.bf16.gmra.mrb[0].mxu0 %v868
    %v954 = vpop.f32.mrb[0].mxu0
    %v955 = vadd.f32 %v814, %v954
    %v956 = vpop.f32.mrb[0].mxu0
    %v957 = vadd.f32 %v814, %v956
    %v958 = vpop.f32.mrb[0].mxu0
    %v959 = vadd.f32 %v819, %v958
    %v960 = vpop.f32.mrb[0].mxu0
    %v961 = vadd.f32 %v819, %v960
    %962 = vdwg.mxu0
    %v963 = vpack.c.bf16 %v905, %v905
    %v964 = vpack.c.bf16 %v925, %v925
    %v965 = vpack.c.bf16 %v945, %v945
    %966 = vxpose.xlu0.c.b16.start [1/8] %v964, 128
    %967 = vxpose.xlu0.c.b16.cont [2/8] 0, 128
    %968 = vxpose.xlu0.c.b16.cont [3/8] 0, 128
    %969 = vxpose.xlu0.c.b16.cont [4/8] 0, 128
    %970 = vxpose.xlu0.c.b16.cont [5/8] 0, 128
    %971 = vxpose.xlu0.c.b16.cont [6/8] 0, 128
    %972 = vxpose.xlu0.c.b16.cont [7/8] 0, 128
    %973 = vxpose.xlu0.c.b16.end [8/8] 0, 128
    %v974 = vpop.trf.xlu0
    %v975 = vpop.trf.xlu0
    %v976 = vpop.trf.xlu0
    %v977 = vpop.trf.xlu0
    %v978 = vpop.trf.xlu0
    %v979 = vpop.trf.xlu0
    %v980 = vpop.trf.xlu0
    %v981 = vpop.trf.xlu0
    %vm982 = vcmask 64512
    %v984 = vsel %vm982, %v974, 0
    %v987 = vsel %vm982, %v975, 0
    %v990 = vsel %vm982, %v976, 0
    %v993 = vsel %vm982, %v977, 0
    %v996 = vsel %vm982, %v978, 0
    %v999 = vsel %vm982, %v979, 0
    %v1002 = vsel %vm982, %v980, 0
    %v1005 = vsel %vm982, %v981, 0
    %vm1007 = vcmask 1043456
    %v1009 = vsel %vm1007, %v963, 0
    %1011 = vmatprep.subr.bf16.mxu0 0
    %1012 = vmatpush1.bf16.msra.mxu0 %v1009
    %1013 = vmatprep.subr.bf16.mxu0 0
    %1014 = vmatpush1.bf16.msra.mxu0 0
    %1015 = vmatprep.subr.bf16.mxu0 0
    %1016 = vmatpush1.bf16.msra.mxu0 0
    %1017 = vmatprep.subr.bf16.mxu0 0
    %1018 = vmatpush1.bf16.msra.mxu0 0
    %1019 = vmatprep.subr.bf16.mxu0 0
    %1020 = vmatpush1.bf16.msra.mxu0 0
    %1021 = vmatprep.subr.bf16.mxu0 0
    %1022 = vmatpush1.bf16.msra.mxu0 0
    %1023 = vmatprep.subr.bf16.mxu0 0
    %1024 = vmatpush1.bf16.msra.mxu0 0
    %1025 = vmatprep.subr.bf16.mxu0 0
    %1026 = vmatpush1.bf16.msra.mxu0 0
    %1027 = vmatprep.subr.bf16.mxu0 0
    %1028 = vmatpush1.bf16.msra.mxu0 0
    %1029 = vmatprep.subr.bf16.mxu0 0
    %1030 = vmatpush1.bf16.msra.mxu0 0
    %1031 = vmatprep.subr.bf16.mxu0 0
    %1032 = vmatpush1.bf16.msra.mxu0 0
    %1033 = vmatprep.subr.bf16.mxu0 0
    %1034 = vmatpush1.bf16.msra.mxu0 0
    %1035 = vmatprep.subr.bf16.mxu0 0
    %1036 = vmatpush1.bf16.msra.mxu0 0
    %1037 = vmatprep.subr.bf16.mxu0 0
    %1038 = vmatpush1.bf16.msra.mxu0 0
    %1039 = vmatprep.subr.bf16.mxu0 0
    %1040 = vmatpush1.bf16.msra.mxu0 0
    %1041 = vmatprep.subr.bf16.mxu0 0
    %1042 = vmatpush1.bf16.msra.mxu0 0
    %1043 = vmatprep.mubr.bf16.mxu0 0
    %1044 = vmatmul.mubr.bf16.gmra.mrb[0].mxu0 %v984
    %v1045 = vpop.f32.mrb[0].mxu0
    %v1046 = vadd.f32 0.0, %v1045
    %v1047 = vpop.f32.mrb[0].mxu0
    %v1048 = vpop.f32.mrb[0].mxu0
    %v1049 = vadd.f32 0.0, %v1048
    %v1050 = vpop.f32.mrb[0].mxu0
    %1051 = vmatprep.mubr.bf16.mxu0 0
    %1052 = vmatmul.mubr.bf16.gmra.mrb[0].mxu0 %v987
    %v1053 = vpop.f32.mrb[0].mxu0
    %v1054 = vadd.f32 0.0, %v1053
    %v1055 = vpop.f32.mrb[0].mxu0
    %v1056 = vpop.f32.mrb[0].mxu0
    %v1057 = vadd.f32 0.0, %v1056
    %v1058 = vpop.f32.mrb[0].mxu0
    %1059 = vmatprep.mubr.bf16.mxu0 0
    %1060 = vmatmul.mubr.bf16.gmra.mrb[0].mxu0 %v990
    %v1061 = vpop.f32.mrb[0].mxu0
    %v1062 = vadd.f32 0.0, %v1061
    %v1063 = vpop.f32.mrb[0].mxu0
    %v1064 = vpop.f32.mrb[0].mxu0
    %v1065 = vadd.f32 0.0, %v1064
    %v1066 = vpop.f32.mrb[0].mxu0
    %1067 = vmatprep.mubr.bf16.mxu0 0
    %1068 = vmatmul.mubr.bf16.gmra.mrb[0].mxu0 %v993
    %v1069 = vpop.f32.mrb[0].mxu0
    %v1070 = vadd.f32 0.0, %v1069
    %v1071 = vpop.f32.mrb[0].mxu0
    %v1072 = vpop.f32.mrb[0].mxu0
    %v1073 = vadd.f32 0.0, %v1072
    %v1074 = vpop.f32.mrb[0].mxu0
    %1075 = vmatprep.mubr.bf16.mxu0 0
    %1076 = vmatmul.mubr.bf16.gmra.mrb[0].mxu0 %v996
    %v1077 = vpop.f32.mrb[0].mxu0
    %v1078 = vadd.f32 0.0, %v1077
    %v1079 = vpop.f32.mrb[0].mxu0
    %v1080 = vpop.f32.mrb[0].mxu0
    %v1081 = vadd.f32 0.0, %v1080
    %v1082 = vpop.f32.mrb[0].mxu0
    %1083 = vmatprep.mubr.bf16.mxu0 0
    %1084 = vmatmul.mubr.bf16.gmra.mrb[0].mxu0 %v999
    %v1085 = vpop.f32.mrb[0].mxu0
    %v1086 = vadd.f32 0.0, %v1085
    %v1087 = vpop.f32.mrb[0].mxu0
    %v1088 = vpop.f32.mrb[0].mxu0
    %v1089 = vadd.f32 0.0, %v1088
    %v1090 = vpop.f32.mrb[0].mxu0
    %1091 = vmatprep.mubr.bf16.mxu0 0
    %1092 = vmatmul.mubr.bf16.gmra.mrb[0].mxu0 %v1002
    %v1093 = vpop.f32.mrb[0].mxu0
    %v1094 = vadd.f32 0.0, %v1093
    %v1095 = vpop.f32.mrb[0].mxu0
    %v1096 = vpop.f32.mrb[0].mxu0
    %v1097 = vadd.f32 0.0, %v1096
    %v1098 = vpop.f32.mrb[0].mxu0
    %1099 = vmatprep.mubr.bf16.mxu0 0
    %1100 = vmatmul.mubr.bf16.gmra.mrb[0].mxu0 %v1005
    %v1101 = vpop.f32.mrb[0].mxu0
    %v1102 = vadd.f32 0.0, %v1101
    %v1103 = vpop.f32.mrb[0].mxu0
    %v1104 = vpop.f32.mrb[0].mxu0
    %v1105 = vadd.f32 0.0, %v1104
    %v1106 = vpop.f32.mrb[0].mxu0
    %1107 = vdwg.mxu0
    %v1108 = vmax.f32 %v1046, %v1062
    %v1109 = vmax.f32 %v1049, %v1065
    %v1110 = vmax.f32 %v1054, %v1070
    %v1111 = vmax.f32 %v1057, %v1073
    %v1112 = vmax.f32 %v1108, %v1078
    %v1113 = vmax.f32 %v1109, %v1081
    %v1114 = vmax.f32 %v1110, %v1086
    %v1115 = vmax.f32 %v1111, %v1089
    %v1116 = vmax.f32 %v1112, %v1094
    %v1117 = vmax.f32 %v1113, %v1097
    %v1118 = vmax.f32 %v1114, %v1102
    %v1119 = vmax.f32 %v1115, %v1105
    %v1120 = vmax.f32 %v1116, %v1117
    %v1121 = vmax.f32 %v1118, %v1119
    %v1122 = vmax.f32 %v1120, %v1121
    %v1123 = vrot.slane %v1122, 4
    %v1124 = vmax.f32 %v1122, %v1123
    %v1125 = vrot.slane %v1124, 2
    %v1126 = vmax.f32 %v1124, %v1125
    %v1127 = vrot.slane %v1126, 1
    %v1128 = vmax.f32 %v1126, %v1127
    %v1129 = vsub.f32 %v1046, %v1128
    %v1130 = vsub.f32 %v1049, %v1128
    %v1131 = vsub.f32 %v1054, %v1128
    %v1132 = vsub.f32 %v1057, %v1128
    %v1133 = vsub.f32 %v1062, %v1128
    %v1134 = vsub.f32 %v1065, %v1128
    %v1135 = vsub.f32 %v1070, %v1128
    %v1136 = vsub.f32 %v1073, %v1128
    %v1137 = vsub.f32 %v1078, %v1128
    %v1138 = vsub.f32 %v1081, %v1128
    %v1139 = vsub.f32 %v1086, %v1128
    %v1140 = vsub.f32 %v1089, %v1128
    %v1141 = vsub.f32 %v1094, %v1128
    %v1142 = vsub.f32 %v1097, %v1128
    %v1143 = vsub.f32 %v1102, %v1128
    %v1144 = vsub.f32 %v1105, %v1128
    %v1145 = vmul.f32 %v1129, 1.442695
    %v1146 = vpow.pop %v1145
    %v1147 = vmul.f32 %v1130, 1.442695
    %v1148 = vpow.pop %v1147
    %v1149 = vmul.f32 %v1131, 1.442695
    %v1150 = vpow.pop %v1149
    %v1151 = vmul.f32 %v1132, 1.442695
    %v1152 = vpow.pop %v1151
    %v1153 = vmul.f32 %v1133, 1.442695
    %v1154 = vpow.pop %v1153
    %v1155 = vmul.f32 %v1134, 1.442695
    %v1156 = vpow.pop %v1155
    %v1157 = vmul.f32 %v1135, 1.442695
    %v1158 = vpow.pop %v1157
    %v1159 = vmul.f32 %v1136, 1.442695
    %v1160 = vpow.pop %v1159
    %v1161 = vmul.f32 %v1137, 1.442695
    %v1162 = vpow.pop %v1161
    %v1163 = vmul.f32 %v1138, 1.442695
    %v1164 = vpow.pop %v1163
    %v1165 = vmul.f32 %v1139, 1.442695
    %v1166 = vpow.pop %v1165
    %v1167 = vmul.f32 %v1140, 1.442695
    %v1168 = vpow.pop %v1167
    %v1169 = vmul.f32 %v1141, 1.442695
    %v1170 = vpow.pop %v1169
    %v1171 = vmul.f32 %v1142, 1.442695
    %v1172 = vpow.pop %v1171
    %v1173 = vmul.f32 %v1143, 1.442695
    %v1174 = vpow.pop %v1173
    %v1175 = vmul.f32 %v1144, 1.442695
    %v1176 = vpow.pop %v1175
    %v1177 = vadd.f32 %v1146, %v1148
    %v1178 = vadd.f32 %v1177, %v1150
    %v1179 = vadd.f32 %v1178, %v1152
    %v1180 = vadd.f32 %v1179, %v1154
    %v1181 = vadd.f32 %v1180, %v1156
    %v1182 = vadd.f32 %v1181, %v1158
    %v1183 = vadd.f32 %v1182, %v1160
    %v1184 = vadd.f32 %v1183, %v1162
    %v1185 = vadd.f32 %v1184, %v1164
    %v1186 = vadd.f32 %v1185, %v1166
    %v1187 = vadd.f32 %v1186, %v1168
    %v1188 = vadd.f32 %v1187, %v1170
    %v1189 = vadd.f32 %v1188, %v1172
    %v1190 = vadd.f32 %v1189, %v1174
    %v1191 = vadd.f32 %v1190, %v1176
    %v1192 = vrot.slane %v1191, 4
    %v1193 = vadd.f32 %v1191, %v1192
    %v1194 = vrot.slane %v1193, 2
    %v1195 = vadd.f32 %v1193, %v1194
    %v1196 = vrot.slane %v1195, 1
    %v1197 = vadd.f32 %v1195, %v1196
    %v1198 = vrcp.pop %v1197
    %v1199 = vpack.c.bf16 %v1148, %v1146
    %v1200 = vpack.c.bf16 %v1152, %v1150
    %v1201 = vpack.c.bf16 %v1156, %v1154
    %v1202 = vpack.c.bf16 %v1160, %v1158
    %v1203 = vpack.c.bf16 %v1164, %v1162
    %v1204 = vpack.c.bf16 %v1168, %v1166
    %v1205 = vpack.c.bf16 %v1172, %v1170
    %v1206 = vpack.c.bf16 %v1176, %v1174
    %1207 = vmatprep.subr.bf16.mxu0 0
    %1208 = vmatpush1.bf16.msra.mxu0 %v1199
    %1209 = vmatprep.subr.bf16.mxu0 0
    %1210 = vmatpush1.bf16.msra.mxu0 %v1200
    %1211 = vmatprep.subr.bf16.mxu0 0
    %1212 = vmatpush1.bf16.msra.mxu0 %v1201
    %1213 = vmatprep.subr.bf16.mxu0 0
    %1214 = vmatpush1.bf16.msra.mxu0 %v1202
    %1215 = vmatprep.subr.bf16.mxu0 0
    %1216 = vmatpush1.bf16.msra.mxu0 %v1203
    %1217 = vmatprep.subr.bf16.mxu0 0
    %1218 = vmatpush1.bf16.msra.mxu0 %v1204
    %1219 = vmatprep.subr.bf16.mxu0 0
    %1220 = vmatpush1.bf16.msra.mxu0 %v1205
    %1221 = vmatprep.subr.bf16.mxu0 0
    %1222 = vmatpush1.bf16.msra.mxu0 %v1206
    %1223 = vmatprep.subr.bf16.mxu0 0
    %1224 = vmatpush1.bf16.msra.mxu0 0
    %1225 = vmatprep.subr.bf16.mxu0 0
    %1226 = vmatpush1.bf16.msra.mxu0 0
    %1227 = vmatprep.subr.bf16.mxu0 0
    %1228 = vmatpush1.bf16.msra.mxu0 0
    %1229 = vmatprep.subr.bf16.mxu0 0
    %1230 = vmatpush1.bf16.msra.mxu0 0
    %1231 = vmatprep.subr.bf16.mxu0 0
    %1232 = vmatpush1.bf16.msra.mxu0 0
    %1233 = vmatprep.subr.bf16.mxu0 0
    %1234 = vmatpush1.bf16.msra.mxu0 0
    %1235 = vmatprep.subr.bf16.mxu0 0
    %1236 = vmatpush1.bf16.msra.mxu0 0
    %1237 = vmatprep.subr.bf16.mxu0 0
    %1238 = vmatpush1.bf16.msra.mxu0 0
    %1239 = vmatprep.mubr.bf16.mxu0 0
    %1240 = vmatmul.mubr.bf16.gmra.mrb[0].mxu0 %v965
    %v1241 = vpop.f32.mrb[0].mxu0
    %v1242 = vadd.f32 0.0, %v1241
    %v1243 = vpop.f32.mrb[0].mxu0
    %v1244 = vpop.f32.mrb[0].mxu0
    %v1245 = vpop.f32.mrb[0].mxu0
    %1246 = vdwg.mxu0
    %v1247 = vmul.f32 %v1242, %v1198
    %v1248 = vpack.c.bf16 %v909, %v909
    %v1249 = vpack.c.bf16 %v929, %v929
    %v1250 = vpack.c.bf16 %v949, %v949
    %1251 = vxpose.xlu0.c.b16.start [1/8] %v1249, 128
    %1252 = vxpose.xlu0.c.b16.cont [2/8] 0, 128
    %1253 = vxpose.xlu0.c.b16.cont [3/8] 0, 128
    %1254 = vxpose.xlu0.c.b16.cont [4/8] 0, 128
    %1255 = vxpose.xlu0.c.b16.cont [5/8] 0, 128
    %1256 = vxpose.xlu0.c.b16.cont [6/8] 0, 128
    %1257 = vxpose.xlu0.c.b16.cont [7/8] 0, 128
    %1258 = vxpose.xlu0.c.b16.end [8/8] 0, 128
    %v1259 = vpop.trf.xlu0
    %v1260 = vpop.trf.xlu0
    %v1261 = vpop.trf.xlu0
    %v1262 = vpop.trf.xlu0
    %v1263 = vpop.trf.xlu0
    %v1264 = vpop.trf.xlu0
    %v1265 = vpop.trf.xlu0
    %v1266 = vpop.trf.xlu0
    %v1268 = vsel %vm982, %v1259, 0
    %v1271 = vsel %vm982, %v1260, 0
    %v1274 = vsel %vm982, %v1261, 0
    %v1277 = vsel %vm982, %v1262, 0
    %v1280 = vsel %vm982, %v1263, 0
    %v1283 = vsel %vm982, %v1264, 0
    %v1286 = vsel %vm982, %v1265, 0
    %v1289 = vsel %vm982, %v1266, 0
    %v1292 = vsel %vm1007, %v1248, 0
    %1294 = vmatprep.subr.bf16.mxu0 0
    %1295 = vmatpush1.bf16.msra.mxu0 %v1292
    %1296 = vmatprep.subr.bf16.mxu0 0
    %1297 = vmatpush1.bf16.msra.mxu0 0
    %1298 = vmatprep.subr.bf16.mxu0 0
    %1299 = vmatpush1.bf16.msra.mxu0 0
    %1300 = vmatprep.subr.bf16.mxu0 0
    %1301 = vmatpush1.bf16.msra.mxu0 0
    %1302 = vmatprep.subr.bf16.mxu0 0
    %1303 = vmatpush1.bf16.msra.mxu0 0
    %1304 = vmatprep.subr.bf16.mxu0 0
    %1305 = vmatpush1.bf16.msra.mxu0 0
    %1306 = vmatprep.subr.bf16.mxu0 0
    %1307 = vmatpush1.bf16.msra.mxu0 0
    %1308 = vmatprep.subr.bf16.mxu0 0
    %1309 = vmatpush1.bf16.msra.mxu0 0
    %1310 = vmatprep.subr.bf16.mxu0 0
    %1311 = vmatpush1.bf16.msra.mxu0 0
    %1312 = vmatprep.subr.bf16.mxu0 0
    %1313 = vmatpush1.bf16.msra.mxu0 0
    %1314 = vmatprep.subr.bf16.mxu0 0
    %1315 = vmatpush1.bf16.msra.mxu0 0
    %1316 = vmatprep.subr.bf16.mxu0 0
    %1317 = vmatpush1.bf16.msra.mxu0 0
    %1318 = vmatprep.subr.bf16.mxu0 0
    %1319 = vmatpush1.bf16.msra.mxu0 0
    %1320 = vmatprep.subr.bf16.mxu0 0
    %1321 = vmatpush1.bf16.msra.mxu0 0
    %1322 = vmatprep.subr.bf16.mxu0 0
    %1323 = vmatpush1.bf16.msra.mxu0 0
    %1324 = vmatprep.subr.bf16.mxu0 0
    %1325 = vmatpush1.bf16.msra.mxu0 0
    %1326 = vmatprep.mubr.bf16.mxu0 0
    %1327 = vmatmul.mubr.bf16.gmra.mrb[0].mxu0 %v1268
    %v1328 = vpop.f32.mrb[0].mxu0
    %v1329 = vadd.f32 0.0, %v1328
    %v1330 = vpop.f32.mrb[0].mxu0
    %v1331 = vpop.f32.mrb[0].mxu0
    %v1332 = vadd.f32 0.0, %v1331
    %v1333 = vpop.f32.mrb[0].mxu0
    %1334 = vmatprep.mubr.bf16.mxu0 0
    %1335 = vmatmul.mubr.bf16.gmra.mrb[0].mxu0 %v1271
    %v1336 = vpop.f32.mrb[0].mxu0
    %v1337 = vadd.f32 0.0, %v1336
    %v1338 = vpop.f32.mrb[0].mxu0
    %v1339 = vpop.f32.mrb[0].mxu0
    %v1340 = vadd.f32 0.0, %v1339
    %v1341 = vpop.f32.mrb[0].mxu0
    %1342 = vmatprep.mubr.bf16.mxu0 0
    %1343 = vmatmul.mubr.bf16.gmra.mrb[0].mxu0 %v1274
    %v1344 = vpop.f32.mrb[0].mxu0
    %v1345 = vadd.f32 0.0, %v1344
    %v1346 = vpop.f32.mrb[0].mxu0
    %v1347 = vpop.f32.mrb[0].mxu0
    %v1348 = vadd.f32 0.0, %v1347
    %v1349 = vpop.f32.mrb[0].mxu0
    %1350 = vmatprep.mubr.bf16.mxu0 0
    %1351 = vmatmul.mubr.bf16.gmra.mrb[0].mxu0 %v1277
    %v1352 = vpop.f32.mrb[0].mxu0
    %v1353 = vadd.f32 0.0, %v1352
    %v1354 = vpop.f32.mrb[0].mxu0
    %v1355 = vpop.f32.mrb[0].mxu0
    %v1356 = vadd.f32 0.0, %v1355
    %v1357 = vpop.f32.mrb[0].mxu0
    %1358 = vmatprep.mubr.bf16.mxu0 0
    %1359 = vmatmul.mubr.bf16.gmra.mrb[0].mxu0 %v1280
    %v1360 = vpop.f32.mrb[0].mxu0
    %v1361 = vadd.f32 0.0, %v1360
    %v1362 = vpop.f32.mrb[0].mxu0
    %v1363 = vpop.f32.mrb[0].mxu0
    %v1364 = vadd.f32 0.0, %v1363
    %v1365 = vpop.f32.mrb[0].mxu0
    %1366 = vmatprep.mubr.bf16.mxu0 0
    %1367 = vmatmul.mubr.bf16.gmra.mrb[0].mxu0 %v1283
    %v1368 = vpop.f32.mrb[0].mxu0
    %v1369 = vadd.f32 0.0, %v1368
    %v1370 = vpop.f32.mrb[0].mxu0
    %v1371 = vpop.f32.mrb[0].mxu0
    %v1372 = vadd.f32 0.0, %v1371
    %v1373 = vpop.f32.mrb[0].mxu0
    %1374 = vmatprep.mubr.bf16.mxu0 0
    %1375 = vmatmul.mubr.bf16.gmra.mrb[0].mxu0 %v1286
    %v1376 = vpop.f32.mrb[0].mxu0
    %v1377 = vadd.f32 0.0, %v1376
    %v1378 = vpop.f32.mrb[0].mxu0
    %v1379 = vpop.f32.mrb[0].mxu0
    %v1380 = vadd.f32 0.0, %v1379
    %v1381 = vpop.f32.mrb[0].mxu0
    %1382 = vmatprep.mubr.bf16.mxu0 0
    %1383 = vmatmul.mubr.bf16.gmra.mrb[0].mxu0 %v1289
    %v1384 = vpop.f32.mrb[0].mxu0
    %v1385 = vadd.f32 0.0, %v1384
    %v1386 = vpop.f32.mrb[0].mxu0
    %v1387 = vpop.f32.mrb[0].mxu0
    %v1388 = vadd.f32 0.0, %v1387
    %v1389 = vpop.f32.mrb[0].mxu0
    %1390 = vdwg.mxu0
    %v1391 = vmax.f32 %v1329, %v1345
    %v1392 = vmax.f32 %v1332, %v1348
    %v1393 = vmax.f32 %v1337, %v1353
    %v1394 = vmax.f32 %v1340, %v1356
    %v1395 = vmax.f32 %v1391, %v1361
    %v1396 = vmax.f32 %v1392, %v1364
    %v1397 = vmax.f32 %v1393, %v1369
    %v1398 = vmax.f32 %v1394, %v1372
    %v1399 = vmax.f32 %v1395, %v1377
    %v1400 = vmax.f32 %v1396, %v1380
    %v1401 = vmax.f32 %v1397, %v1385
    %v1402 = vmax.f32 %v1398, %v1388
    %v1403 = vmax.f32 %v1399, %v1400
    %v1404 = vmax.f32 %v1401, %v1402
    %v1405 = vmax.f32 %v1403, %v1404
    %v1406 = vrot.slane %v1405, 4
    %v1407 = vmax.f32 %v1405, %v1406
    %v1408 = vrot.slane %v1407, 2
    %v1409 = vmax.f32 %v1407, %v1408
    %v1410 = vrot.slane %v1409, 1
    %v1411 = vmax.f32 %v1409, %v1410
    %v1412 = vsub.f32 %v1329, %v1411
    %v1413 = vsub.f32 %v1332, %v1411
    %v1414 = vsub.f32 %v1337, %v1411
    %v1415 = vsub.f32 %v1340, %v1411
    %v1416 = vsub.f32 %v1345, %v1411
    %v1417 = vsub.f32 %v1348, %v1411
    %v1418 = vsub.f32 %v1353, %v1411
    %v1419 = vsub.f32 %v1356, %v1411
    %v1420 = vsub.f32 %v1361, %v1411
    %v1421 = vsub.f32 %v1364, %v1411
    %v1422 = vsub.f32 %v1369, %v1411
    %v1423 = vsub.f32 %v1372, %v1411
    %v1424 = vsub.f32 %v1377, %v1411
    %v1425 = vsub.f32 %v1380, %v1411
    %v1426 = vsub.f32 %v1385, %v1411
    %v1427 = vsub.f32 %v1388, %v1411
    %v1428 = vmul.f32 %v1412, 1.442695
    %v1429 = vpow.pop %v1428
    %v1430 = vmul.f32 %v1413, 1.442695
    %v1431 = vpow.pop %v1430
    %v1432 = vmul.f32 %v1414, 1.442695
    %v1433 = vpow.pop %v1432
    %v1434 = vmul.f32 %v1415, 1.442695
    %v1435 = vpow.pop %v1434
    %v1436 = vmul.f32 %v1416, 1.442695
    %v1437 = vpow.pop %v1436
    %v1438 = vmul.f32 %v1417, 1.442695
    %v1439 = vpow.pop %v1438
    %v1440 = vmul.f32 %v1418, 1.442695
    %v1441 = vpow.pop %v1440
    %v1442 = vmul.f32 %v1419, 1.442695
    %v1443 = vpow.pop %v1442
    %v1444 = vmul.f32 %v1420, 1.442695
    %v1445 = vpow.pop %v1444
    %v1446 = vmul.f32 %v1421, 1.442695
    %v1447 = vpow.pop %v1446
    %v1448 = vmul.f32 %v1422, 1.442695
    %v1449 = vpow.pop %v1448
    %v1450 = vmul.f32 %v1423, 1.442695
    %v1451 = vpow.pop %v1450
    %v1452 = vmul.f32 %v1424, 1.442695
    %v1453 = vpow.pop %v1452
    %v1454 = vmul.f32 %v1425, 1.442695
    %v1455 = vpow.pop %v1454
    %v1456 = vmul.f32 %v1426, 1.442695
    %v1457 = vpow.pop %v1456
    %v1458 = vmul.f32 %v1427, 1.442695
    %v1459 = vpow.pop %v1458
    %v1460 = vadd.f32 %v1429, %v1431
    %v1461 = vadd.f32 %v1460, %v1433
    %v1462 = vadd.f32 %v1461, %v1435
    %v1463 = vadd.f32 %v1462, %v1437
    %v1464 = vadd.f32 %v1463, %v1439
    %v1465 = vadd.f32 %v1464, %v1441
    %v1466 = vadd.f32 %v1465, %v1443
    %v1467 = vadd.f32 %v1466, %v1445
    %v1468 = vadd.f32 %v1467, %v1447
    %v1469 = vadd.f32 %v1468, %v1449
    %v1470 = vadd.f32 %v1469, %v1451
    %v1471 = vadd.f32 %v1470, %v1453
    %v1472 = vadd.f32 %v1471, %v1455
    %v1473 = vadd.f32 %v1472, %v1457
    %v1474 = vadd.f32 %v1473, %v1459
    %v1475 = vrot.slane %v1474, 4
    %v1476 = vadd.f32 %v1474, %v1475
    %v1477 = vrot.slane %v1476, 2
    %v1478 = vadd.f32 %v1476, %v1477
    %v1479 = vrot.slane %v1478, 1
    %v1480 = vadd.f32 %v1478, %v1479
    %v1481 = vrcp.pop %v1480
    %v1482 = vpack.c.bf16 %v1431, %v1429
    %v1483 = vpack.c.bf16 %v1435, %v1433
    %v1484 = vpack.c.bf16 %v1439, %v1437
    %v1485 = vpack.c.bf16 %v1443, %v1441
    %v1486 = vpack.c.bf16 %v1447, %v1445
    %v1487 = vpack.c.bf16 %v1451, %v1449
    %v1488 = vpack.c.bf16 %v1455, %v1453
    %v1489 = vpack.c.bf16 %v1459, %v1457
    %1490 = vmatprep.subr.bf16.mxu0 0
    %1491 = vmatpush1.bf16.msra.mxu0 %v1482
    %1492 = vmatprep.subr.bf16.mxu0 0
    %1493 = vmatpush1.bf16.msra.mxu0 %v1483
    %1494 = vmatprep.subr.bf16.mxu0 0
    %1495 = vmatpush1.bf16.msra.mxu0 %v1484
    %1496 = vmatprep.subr.bf16.mxu0 0
    %1497 = vmatpush1.bf16.msra.mxu0 %v1485
    %1498 = vmatprep.subr.bf16.mxu0 0
    %1499 = vmatpush1.bf16.msra.mxu0 %v1486
    %1500 = vmatprep.subr.bf16.mxu0 0
    %1501 = vmatpush1.bf16.msra.mxu0 %v1487
    %1502 = vmatprep.subr.bf16.mxu0 0
    %1503 = vmatpush1.bf16.msra.mxu0 %v1488
    %1504 = vmatprep.subr.bf16.mxu0 0
    %1505 = vmatpush1.bf16.msra.mxu0 %v1489
    %1506 = vmatprep.subr.bf16.mxu0 0
    %1507 = vmatpush1.bf16.msra.mxu0 0
    %1508 = vmatprep.subr.bf16.mxu0 0
    %1509 = vmatpush1.bf16.msra.mxu0 0
    %1510 = vmatprep.subr.bf16.mxu0 0
    %1511 = vmatpush1.bf16.msra.mxu0 0
    %1512 = vmatprep.subr.bf16.mxu0 0
    %1513 = vmatpush1.bf16.msra.mxu0 0
    %1514 = vmatprep.subr.bf16.mxu0 0
    %1515 = vmatpush1.bf16.msra.mxu0 0
    %1516 = vmatprep.subr.bf16.mxu0 0
    %1517 = vmatpush1.bf16.msra.mxu0 0
    %1518 = vmatprep.subr.bf16.mxu0 0
    %1519 = vmatpush1.bf16.msra.mxu0 0
    %1520 = vmatprep.subr.bf16.mxu0 0
    %1521 = vmatpush1.bf16.msra.mxu0 0
    %1522 = vmatprep.mubr.bf16.mxu0 0
    %1523 = vmatmul.mubr.bf16.gmra.mrb[0].mxu0 %v1250
    %v1524 = vpop.f32.mrb[0].mxu0
    %v1525 = vadd.f32 0.0, %v1524
    %v1526 = vpop.f32.mrb[0].mxu0
    %v1527 = vpop.f32.mrb[0].mxu0
    %v1528 = vpop.f32.mrb[0].mxu0
    %1529 = vdwg.mxu0
    %v1530 = vmul.f32 %v1525, %v1481
    %v1531 = vpack.c.bf16 %v915, %v915
    %v1532 = vpack.c.bf16 %v935, %v935
    %v1533 = vpack.c.bf16 %v955, %v955
    %1534 = vxpose.xlu0.c.b16.start [1/8] %v1532, 128
    %1535 = vxpose.xlu0.c.b16.cont [2/8] 0, 128
    %1536 = vxpose.xlu0.c.b16.cont [3/8] 0, 128
    %1537 = vxpose.xlu0.c.b16.cont [4/8] 0, 128
    %1538 = vxpose.xlu0.c.b16.cont [5/8] 0, 128
    %1539 = vxpose.xlu0.c.b16.cont [6/8] 0, 128
    %1540 = vxpose.xlu0.c.b16.cont [7/8] 0, 128
    %1541 = vxpose.xlu0.c.b16.end [8/8] 0, 128
    %v1542 = vpop.trf.xlu0
    %v1543 = vpop.trf.xlu0
    %v1544 = vpop.trf.xlu0
    %v1545 = vpop.trf.xlu0
    %v1546 = vpop.trf.xlu0
    %v1547 = vpop.trf.xlu0
    %v1548 = vpop.trf.xlu0
    %v1549 = vpop.trf.xlu0
    %v1551 = vsel %vm982, %v1542, 0
    %v1554 = vsel %vm982, %v1543, 0
    %v1557 = vsel %vm982, %v1544, 0
    %v1560 = vsel %vm982, %v1545, 0
    %v1563 = vsel %vm982, %v1546, 0
    %v1566 = vsel %vm982, %v1547, 0
    %v1569 = vsel %vm982, %v1548, 0
    %v1572 = vsel %vm982, %v1549, 0
    %v1575 = vsel %vm1007, %v1531, 0
    %1577 = vmatprep.subr.bf16.mxu0 0
    %1578 = vmatpush1.bf16.msra.mxu0 %v1575
    %1579 = vmatprep.subr.bf16.mxu0 0
    %1580 = vmatpush1.bf16.msra.mxu0 0
    %1581 = vmatprep.subr.bf16.mxu0 0
    %1582 = vmatpush1.bf16.msra.mxu0 0
    %1583 = vmatprep.subr.bf16.mxu0 0
    %1584 = vmatpush1.bf16.msra.mxu0 0
    %1585 = vmatprep.subr.bf16.mxu0 0
    %1586 = vmatpush1.bf16.msra.mxu0 0
    %1587 = vmatprep.subr.bf16.mxu0 0
    %1588 = vmatpush1.bf16.msra.mxu0 0
    %1589 = vmatprep.subr.bf16.mxu0 0
    %1590 = vmatpush1.bf16.msra.mxu0 0
    %1591 = vmatprep.subr.bf16.mxu0 0
    %1592 = vmatpush1.bf16.msra.mxu0 0
    %1593 = vmatprep.subr.bf16.mxu0 0
    %1594 = vmatpush1.bf16.msra.mxu0 0
    %1595 = vmatprep.subr.bf16.mxu0 0
    %1596 = vmatpush1.bf16.msra.mxu0 0
    %1597 = vmatprep.subr.bf16.mxu0 0
    %1598 = vmatpush1.bf16.msra.mxu0 0
    %1599 = vmatprep.subr.bf16.mxu0 0
    %1600 = vmatpush1.bf16.msra.mxu0 0
    %1601 = vmatprep.subr.bf16.mxu0 0
    %1602 = vmatpush1.bf16.msra.mxu0 0
    %1603 = vmatprep.subr.bf16.mxu0 0
    %1604 = vmatpush1.bf16.msra.mxu0 0
    %1605 = vmatprep.subr.bf16.mxu0 0
    %1606 = vmatpush1.bf16.msra.mxu0 0
    %1607 = vmatprep.subr.bf16.mxu0 0
    %1608 = vmatpush1.bf16.msra.mxu0 0
    %1609 = vmatprep.mubr.bf16.mxu0 0
    %1610 = vmatmul.mubr.bf16.gmra.mrb[0].mxu0 %v1551
    %v1611 = vpop.f32.mrb[0].mxu0
    %v1612 = vadd.f32 0.0, %v1611
    %v1613 = vpop.f32.mrb[0].mxu0
    %v1614 = vpop.f32.mrb[0].mxu0
    %v1615 = vadd.f32 0.0, %v1614
    %v1616 = vpop.f32.mrb[0].mxu0
    %1617 = vmatprep.mubr.bf16.mxu0 0
    %1618 = vmatmul.mubr.bf16.gmra.mrb[0].mxu0 %v1554
    %v1619 = vpop.f32.mrb[0].mxu0
    %v1620 = vadd.f32 0.0, %v1619
    %v1621 = vpop.f32.mrb[0].mxu0
    %v1622 = vpop.f32.mrb[0].mxu0
    %v1623 = vadd.f32 0.0, %v1622
    %v1624 = vpop.f32.mrb[0].mxu0
    %1625 = vmatprep.mubr.bf16.mxu0 0
    %1626 = vmatmul.mubr.bf16.gmra.mrb[0].mxu0 %v1557
    %v1627 = vpop.f32.mrb[0].mxu0
    %v1628 = vadd.f32 0.0, %v1627
    %v1629 = vpop.f32.mrb[0].mxu0
    %v1630 = vpop.f32.mrb[0].mxu0
    %v1631 = vadd.f32 0.0, %v1630
    %v1632 = vpop.f32.mrb[0].mxu0
    %1633 = vmatprep.mubr.bf16.mxu0 0
    %1634 = vmatmul.mubr.bf16.gmra.mrb[0].mxu0 %v1560
    %v1635 = vpop.f32.mrb[0].mxu0
    %v1636 = vadd.f32 0.0, %v1635
    %v1637 = vpop.f32.mrb[0].mxu0
    %v1638 = vpop.f32.mrb[0].mxu0
    %v1639 = vadd.f32 0.0, %v1638
    %v1640 = vpop.f32.mrb[0].mxu0
    %1641 = vmatprep.mubr.bf16.mxu0 0
    %1642 = vmatmul.mubr.bf16.gmra.mrb[0].mxu0 %v1563
    %v1643 = vpop.f32.mrb[0].mxu0
    %v1644 = vadd.f32 0.0, %v1643
    %v1645 = vpop.f32.mrb[0].mxu0
    %v1646 = vpop.f32.mrb[0].mxu0
    %v1647 = vadd.f32 0.0, %v1646
    %v1648 = vpop.f32.mrb[0].mxu0
    %1649 = vmatprep.mubr.bf16.mxu0 0
    %1650 = vmatmul.mubr.bf16.gmra.mrb[0].mxu0 %v1566
    %v1651 = vpop.f32.mrb[0].mxu0
    %v1652 = vadd.f32 0.0, %v1651
    %v1653 = vpop.f32.mrb[0].mxu0
    %v1654 = vpop.f32.mrb[0].mxu0
    %v1655 = vadd.f32 0.0, %v1654
    %v1656 = vpop.f32.mrb[0].mxu0
    %1657 = vmatprep.mubr.bf16.mxu0 0
    %1658 = vmatmul.mubr.bf16.gmra.mrb[0].mxu0 %v1569
    %v1659 = vpop.f32.mrb[0].mxu0
    %v1660 = vadd.f32 0.0, %v1659
    %v1661 = vpop.f32.mrb[0].mxu0
    %v1662 = vpop.f32.mrb[0].mxu0
    %v1663 = vadd.f32 0.0, %v1662
    %v1664 = vpop.f32.mrb[0].mxu0
    %1665 = vmatprep.mubr.bf16.mxu0 0
    %1666 = vmatmul.mubr.bf16.gmra.mrb[0].mxu0 %v1572
    %v1667 = vpop.f32.mrb[0].mxu0
    %v1668 = vadd.f32 0.0, %v1667
    %v1669 = vpop.f32.mrb[0].mxu0
    %v1670 = vpop.f32.mrb[0].mxu0
    %v1671 = vadd.f32 0.0, %v1670
    %v1672 = vpop.f32.mrb[0].mxu0
    %1673 = vdwg.mxu0
    %v1674 = vmax.f32 %v1612, %v1628
    %v1675 = vmax.f32 %v1615, %v1631
    %v1676 = vmax.f32 %v1620, %v1636
    %v1677 = vmax.f32 %v1623, %v1639
    %v1678 = vmax.f32 %v1674, %v1644
    %v1679 = vmax.f32 %v1675, %v1647
    %v1680 = vmax.f32 %v1676, %v1652
    %v1681 = vmax.f32 %v1677, %v1655
    %v1682 = vmax.f32 %v1678, %v1660
    %v1683 = vmax.f32 %v1679, %v1663
    %v1684 = vmax.f32 %v1680, %v1668
    %v1685 = vmax.f32 %v1681, %v1671
    %v1686 = vmax.f32 %v1682, %v1683
    %v1687 = vmax.f32 %v1684, %v1685
    %v1688 = vmax.f32 %v1686, %v1687
    %v1689 = vrot.slane %v1688, 4
    %v1690 = vmax.f32 %v1688, %v1689
    %v1691 = vrot.slane %v1690, 2
    %v1692 = vmax.f32 %v1690, %v1691
    %v1693 = vrot.slane %v1692, 1
    %v1694 = vmax.f32 %v1692, %v1693
    %v1695 = vsub.f32 %v1612, %v1694
    %v1696 = vsub.f32 %v1615, %v1694
    %v1697 = vsub.f32 %v1620, %v1694
    %v1698 = vsub.f32 %v1623, %v1694
    %v1699 = vsub.f32 %v1628, %v1694
    %v1700 = vsub.f32 %v1631, %v1694
    %v1701 = vsub.f32 %v1636, %v1694
    %v1702 = vsub.f32 %v1639, %v1694
    %v1703 = vsub.f32 %v1644, %v1694
    %v1704 = vsub.f32 %v1647, %v1694
    %v1705 = vsub.f32 %v1652, %v1694
    %v1706 = vsub.f32 %v1655, %v1694
    %v1707 = vsub.f32 %v1660, %v1694
    %v1708 = vsub.f32 %v1663, %v1694
    %v1709 = vsub.f32 %v1668, %v1694
    %v1710 = vsub.f32 %v1671, %v1694
    %v1711 = vmul.f32 %v1695, 1.442695
    %v1712 = vpow.pop %v1711
    %v1713 = vmul.f32 %v1696, 1.442695
    %v1714 = vpow.pop %v1713
    %v1715 = vmul.f32 %v1697, 1.442695
    %v1716 = vpow.pop %v1715
    %v1717 = vmul.f32 %v1698, 1.442695
    %v1718 = vpow.pop %v1717
    %v1719 = vmul.f32 %v1699, 1.442695
    %v1720 = vpow.pop %v1719
    %v1721 = vmul.f32 %v1700, 1.442695
    %v1722 = vpow.pop %v1721
    %v1723 = vmul.f32 %v1701, 1.442695
    %v1724 = vpow.pop %v1723
    %v1725 = vmul.f32 %v1702, 1.442695
    %v1726 = vpow.pop %v1725
    %v1727 = vmul.f32 %v1703, 1.442695
    %v1728 = vpow.pop %v1727
    %v1729 = vmul.f32 %v1704, 1.442695
    %v1730 = vpow.pop %v1729
    %v1731 = vmul.f32 %v1705, 1.442695
    %v1732 = vpow.pop %v1731
    %v1733 = vmul.f32 %v1706, 1.442695
    %v1734 = vpow.pop %v1733
    %v1735 = vmul.f32 %v1707, 1.442695
    %v1736 = vpow.pop %v1735
    %v1737 = vmul.f32 %v1708, 1.442695
    %v1738 = vpow.pop %v1737
    %v1739 = vmul.f32 %v1709, 1.442695
    %v1740 = vpow.pop %v1739
    %v1741 = vmul.f32 %v1710, 1.442695
    %v1742 = vpow.pop %v1741
    %v1743 = vadd.f32 %v1712, %v1714
    %v1744 = vadd.f32 %v1743, %v1716
    %v1745 = vadd.f32 %v1744, %v1718
    %v1746 = vadd.f32 %v1745, %v1720
    %v1747 = vadd.f32 %v1746, %v1722
    %v1748 = vadd.f32 %v1747, %v1724
    %v1749 = vadd.f32 %v1748, %v1726
    %v1750 = vadd.f32 %v1749, %v1728
    %v1751 = vadd.f32 %v1750, %v1730
    %v1752 = vadd.f32 %v1751, %v1732
    %v1753 = vadd.f32 %v1752, %v1734
    %v1754 = vadd.f32 %v1753, %v1736
    %v1755 = vadd.f32 %v1754, %v1738
    %v1756 = vadd.f32 %v1755, %v1740
    %v1757 = vadd.f32 %v1756, %v1742
    %v1758 = vrot.slane %v1757, 4
    %v1759 = vadd.f32 %v1757, %v1758
    %v1760 = vrot.slane %v1759, 2
    %v1761 = vadd.f32 %v1759, %v1760
    %v1762 = vrot.slane %v1761, 1
    %v1763 = vadd.f32 %v1761, %v1762
    %v1764 = vrcp.pop %v1763
    %v1765 = vpack.c.bf16 %v1714, %v1712
    %v1766 = vpack.c.bf16 %v1718, %v1716
    %v1767 = vpack.c.bf16 %v1722, %v1720
    %v1768 = vpack.c.bf16 %v1726, %v1724
    %v1769 = vpack.c.bf16 %v1730, %v1728
    %v1770 = vpack.c.bf16 %v1734, %v1732
    %v1771 = vpack.c.bf16 %v1738, %v1736
    %v1772 = vpack.c.bf16 %v1742, %v1740
    %1773 = vmatprep.subr.bf16.mxu0 0
    %1774 = vmatpush1.bf16.msra.mxu0 %v1765
    %1775 = vmatprep.subr.bf16.mxu0 0
    %1776 = vmatpush1.bf16.msra.mxu0 %v1766
    %1777 = vmatprep.subr.bf16.mxu0 0
    %1778 = vmatpush1.bf16.msra.mxu0 %v1767
    %1779 = vmatprep.subr.bf16.mxu0 0
    %1780 = vmatpush1.bf16.msra.mxu0 %v1768
    %1781 = vmatprep.subr.bf16.mxu0 0
    %1782 = vmatpush1.bf16.msra.mxu0 %v1769
    %1783 = vmatprep.subr.bf16.mxu0 0
    %1784 = vmatpush1.bf16.msra.mxu0 %v1770
    %1785 = vmatprep.subr.bf16.mxu0 0
    %1786 = vmatpush1.bf16.msra.mxu0 %v1771
    %1787 = vmatprep.subr.bf16.mxu0 0
    %1788 = vmatpush1.bf16.msra.mxu0 %v1772
    %1789 = vmatprep.subr.bf16.mxu0 0
    %1790 = vmatpush1.bf16.msra.mxu0 0
    %1791 = vmatprep.subr.bf16.mxu0 0
    %1792 = vmatpush1.bf16.msra.mxu0 0
    %1793 = vmatprep.subr.bf16.mxu0 0
    %1794 = vmatpush1.bf16.msra.mxu0 0
    %1795 = vmatprep.subr.bf16.mxu0 0
    %1796 = vmatpush1.bf16.msra.mxu0 0
    %1797 = vmatprep.subr.bf16.mxu0 0
    %1798 = vmatpush1.bf16.msra.mxu0 0
    %1799 = vmatprep.subr.bf16.mxu0 0
    %1800 = vmatpush1.bf16.msra.mxu0 0
    %1801 = vmatprep.subr.bf16.mxu0 0
    %1802 = vmatpush1.bf16.msra.mxu0 0
    %1803 = vmatprep.subr.bf16.mxu0 0
    %1804 = vmatpush1.bf16.msra.mxu0 0
    %1805 = vmatprep.mubr.bf16.mxu0 0
    %1806 = vmatmul.mubr.bf16.gmra.mrb[0].mxu0 %v1533
    %v1807 = vpop.f32.mrb[0].mxu0
    %v1808 = vadd.f32 0.0, %v1807
    %v1809 = vpop.f32.mrb[0].mxu0
    %v1810 = vpop.f32.mrb[0].mxu0
    %v1811 = vpop.f32.mrb[0].mxu0
    %1812 = vdwg.mxu0
    %v1813 = vmul.f32 %v1808, %v1764
    %v1814 = vpack.c.bf16 %v919, %v919
    %v1815 = vpack.c.bf16 %v939, %v939
    %v1816 = vpack.c.bf16 %v959, %v959
    %1817 = vxpose.xlu0.c.b16.start [1/8] %v1815, 128
    %1818 = vxpose.xlu0.c.b16.cont [2/8] 0, 128
    %1819 = vxpose.xlu0.c.b16.cont [3/8] 0, 128
    %1820 = vxpose.xlu0.c.b16.cont [4/8] 0, 128
    %1821 = vxpose.xlu0.c.b16.cont [5/8] 0, 128
    %1822 = vxpose.xlu0.c.b16.cont [6/8] 0, 128
    %1823 = vxpose.xlu0.c.b16.cont [7/8] 0, 128
    %1824 = vxpose.xlu0.c.b16.end [8/8] 0, 128
    %v1825 = vpop.trf.xlu0
    %v1826 = vpop.trf.xlu0
    %v1827 = vpop.trf.xlu0
    %v1828 = vpop.trf.xlu0
    %v1829 = vpop.trf.xlu0
    %v1830 = vpop.trf.xlu0
    %v1831 = vpop.trf.xlu0
    %v1832 = vpop.trf.xlu0
    %v1834 = vsel %vm982, %v1825, 0
    %v1837 = vsel %vm982, %v1826, 0
    %v1840 = vsel %vm982, %v1827, 0
    %v1843 = vsel %vm982, %v1828, 0
    %v1846 = vsel %vm982, %v1829, 0
    %v1849 = vsel %vm982, %v1830, 0
    %v1852 = vsel %vm982, %v1831, 0
    %v1855 = vsel %vm982, %v1832, 0
    %v1858 = vsel %vm1007, %v1814, 0
    %1860 = vmatprep.subr.bf16.mxu0 0
    %1861 = vmatpush1.bf16.msra.mxu0 %v1858
    %1862 = vmatprep.subr.bf16.mxu0 0
    %1863 = vmatpush1.bf16.msra.mxu0 0
    %1864 = vmatprep.subr.bf16.mxu0 0
    %1865 = vmatpush1.bf16.msra.mxu0 0
    %1866 = vmatprep.subr.bf16.mxu0 0
    %1867 = vmatpush1.bf16.msra.mxu0 0
    %1868 = vmatprep.subr.bf16.mxu0 0
    %1869 = vmatpush1.bf16.msra.mxu0 0
    %1870 = vmatprep.subr.bf16.mxu0 0
    %1871 = vmatpush1.bf16.msra.mxu0 0
    %1872 = vmatprep.subr.bf16.mxu0 0
    %1873 = vmatpush1.bf16.msra.mxu0 0
    %1874 = vmatprep.subr.bf16.mxu0 0
    %1875 = vmatpush1.bf16.msra.mxu0 0
    %1876 = vmatprep.subr.bf16.mxu0 0
    %1877 = vmatpush1.bf16.msra.mxu0 0
    %1878 = vmatprep.subr.bf16.mxu0 0
    %1879 = vmatpush1.bf16.msra.mxu0 0
    %1880 = vmatprep.subr.bf16.mxu0 0
    %1881 = vmatpush1.bf16.msra.mxu0 0
    %1882 = vmatprep.subr.bf16.mxu0 0
    %1883 = vmatpush1.bf16.msra.mxu0 0
    %1884 = vmatprep.subr.bf16.mxu0 0
    %1885 = vmatpush1.bf16.msra.mxu0 0
    %1886 = vmatprep.subr.bf16.mxu0 0
    %1887 = vmatpush1.bf16.msra.mxu0 0
    %1888 = vmatprep.subr.bf16.mxu0 0
    %1889 = vmatpush1.bf16.msra.mxu0 0
    %1890 = vmatprep.subr.bf16.mxu0 0
    %1891 = vmatpush1.bf16.msra.mxu0 0
    %1892 = vmatprep.mubr.bf16.mxu0 0
    %1893 = vmatmul.mubr.bf16.gmra.mrb[0].mxu0 %v1834
    %v1894 = vpop.f32.mrb[0].mxu0
    %v1895 = vadd.f32 0.0, %v1894
    %v1896 = vpop.f32.mrb[0].mxu0
    %v1897 = vpop.f32.mrb[0].mxu0
    %v1898 = vadd.f32 0.0, %v1897
    %v1899 = vpop.f32.mrb[0].mxu0
    %1900 = vmatprep.mubr.bf16.mxu0 0
    %1901 = vmatmul.mubr.bf16.gmra.mrb[0].mxu0 %v1837
    %v1902 = vpop.f32.mrb[0].mxu0
    %v1903 = vadd.f32 0.0, %v1902
    %v1904 = vpop.f32.mrb[0].mxu0
    %v1905 = vpop.f32.mrb[0].mxu0
    %v1906 = vadd.f32 0.0, %v1905
    %v1907 = vpop.f32.mrb[0].mxu0
    %1908 = vmatprep.mubr.bf16.mxu0 0
    %1909 = vmatmul.mubr.bf16.gmra.mrb[0].mxu0 %v1840
    %v1910 = vpop.f32.mrb[0].mxu0
    %v1911 = vadd.f32 0.0, %v1910
    %v1912 = vpop.f32.mrb[0].mxu0
    %v1913 = vpop.f32.mrb[0].mxu0
    %v1914 = vadd.f32 0.0, %v1913
    %v1915 = vpop.f32.mrb[0].mxu0
    %1916 = vmatprep.mubr.bf16.mxu0 0
    %1917 = vmatmul.mubr.bf16.gmra.mrb[0].mxu0 %v1843
    %v1918 = vpop.f32.mrb[0].mxu0
    %v1919 = vadd.f32 0.0, %v1918
    %v1920 = vpop.f32.mrb[0].mxu0
    %v1921 = vpop.f32.mrb[0].mxu0
    %v1922 = vadd.f32 0.0, %v1921
    %v1923 = vpop.f32.mrb[0].mxu0
    %1924 = vmatprep.mubr.bf16.mxu0 0
    %1925 = vmatmul.mubr.bf16.gmra.mrb[0].mxu0 %v1846
    %v1926 = vpop.f32.mrb[0].mxu0
    %v1927 = vadd.f32 0.0, %v1926
    %v1928 = vpop.f32.mrb[0].mxu0
    %v1929 = vpop.f32.mrb[0].mxu0
    %v1930 = vadd.f32 0.0, %v1929
    %v1931 = vpop.f32.mrb[0].mxu0
    %1932 = vmatprep.mubr.bf16.mxu0 0
    %1933 = vmatmul.mubr.bf16.gmra.mrb[0].mxu0 %v1849
    %v1934 = vpop.f32.mrb[0].mxu0
    %v1935 = vadd.f32 0.0, %v1934
    %v1936 = vpop.f32.mrb[0].mxu0
    %v1937 = vpop.f32.mrb[0].mxu0
    %v1938 = vadd.f32 0.0, %v1937
    %v1939 = vpop.f32.mrb[0].mxu0
    %1940 = vmatprep.mubr.bf16.mxu0 0
    %1941 = vmatmul.mubr.bf16.gmra.mrb[0].mxu0 %v1852
    %v1942 = vpop.f32.mrb[0].mxu0
    %v1943 = vadd.f32 0.0, %v1942
    %v1944 = vpop.f32.mrb[0].mxu0
    %v1945 = vpop.f32.mrb[0].mxu0
    %v1946 = vadd.f32 0.0, %v1945
    %v1947 = vpop.f32.mrb[0].mxu0
    %1948 = vmatprep.mubr.bf16.mxu0 0
    %1949 = vmatmul.mubr.bf16.gmra.mrb[0].mxu0 %v1855
    %v1950 = vpop.f32.mrb[0].mxu0
    %v1951 = vadd.f32 0.0, %v1950
    %v1952 = vpop.f32.mrb[0].mxu0
    %v1953 = vpop.f32.mrb[0].mxu0
    %v1954 = vadd.f32 0.0, %v1953
    %v1955 = vpop.f32.mrb[0].mxu0
    %1956 = vdwg.mxu0
    %v1957 = vmax.f32 %v1895, %v1911
    %v1958 = vmax.f32 %v1898, %v1914
    %v1959 = vmax.f32 %v1903, %v1919
    %v1960 = vmax.f32 %v1906, %v1922
    %v1961 = vmax.f32 %v1957, %v1927
    %v1962 = vmax.f32 %v1958, %v1930
    %v1963 = vmax.f32 %v1959, %v1935
    %v1964 = vmax.f32 %v1960, %v1938
    %v1965 = vmax.f32 %v1961, %v1943
    %v1966 = vmax.f32 %v1962, %v1946
    %v1967 = vmax.f32 %v1963, %v1951
    %v1968 = vmax.f32 %v1964, %v1954
    %v1969 = vmax.f32 %v1965, %v1966
    %v1970 = vmax.f32 %v1967, %v1968
    %v1971 = vmax.f32 %v1969, %v1970
    %v1972 = vrot.slane %v1971, 4
    %v1973 = vmax.f32 %v1971, %v1972
    %v1974 = vrot.slane %v1973, 2
    %v1975 = vmax.f32 %v1973, %v1974
    %v1976 = vrot.slane %v1975, 1
    %v1977 = vmax.f32 %v1975, %v1976
    %v1978 = vsub.f32 %v1895, %v1977
    %v1979 = vsub.f32 %v1898, %v1977
    %v1980 = vsub.f32 %v1903, %v1977
    %v1981 = vsub.f32 %v1906, %v1977
    %v1982 = vsub.f32 %v1911, %v1977
    %v1983 = vsub.f32 %v1914, %v1977
    %v1984 = vsub.f32 %v1919, %v1977
    %v1985 = vsub.f32 %v1922, %v1977
    %v1986 = vsub.f32 %v1927, %v1977
    %v1987 = vsub.f32 %v1930, %v1977
    %v1988 = vsub.f32 %v1935, %v1977
    %v1989 = vsub.f32 %v1938, %v1977
    %v1990 = vsub.f32 %v1943, %v1977
    %v1991 = vsub.f32 %v1946, %v1977
    %v1992 = vsub.f32 %v1951, %v1977
    %v1993 = vsub.f32 %v1954, %v1977
    %v1994 = vmul.f32 %v1978, 1.442695
    %v1995 = vpow.pop %v1994
    %v1996 = vmul.f32 %v1979, 1.442695
    %v1997 = vpow.pop %v1996
    %v1998 = vmul.f32 %v1980, 1.442695
    %v1999 = vpow.pop %v1998
    %v2000 = vmul.f32 %v1981, 1.442695
    %v2001 = vpow.pop %v2000
    %v2002 = vmul.f32 %v1982, 1.442695
    %v2003 = vpow.pop %v2002
    %v2004 = vmul.f32 %v1983, 1.442695
    %v2005 = vpow.pop %v2004
    %v2006 = vmul.f32 %v1984, 1.442695
    %v2007 = vpow.pop %v2006
    %v2008 = vmul.f32 %v1985, 1.442695
    %v2009 = vpow.pop %v2008
    %v2010 = vmul.f32 %v1986, 1.442695
    %v2011 = vpow.pop %v2010
    %v2012 = vmul.f32 %v1987, 1.442695
    %v2013 = vpow.pop %v2012
    %v2014 = vmul.f32 %v1988, 1.442695
    %v2015 = vpow.pop %v2014
    %v2016 = vmul.f32 %v1989, 1.442695
    %v2017 = vpow.pop %v2016
    %v2018 = vmul.f32 %v1990, 1.442695
    %v2019 = vpow.pop %v2018
    %v2020 = vmul.f32 %v1991, 1.442695
    %v2021 = vpow.pop %v2020
    %v2022 = vmul.f32 %v1992, 1.442695
    %v2023 = vpow.pop %v2022
    %v2024 = vmul.f32 %v1993, 1.442695
    %v2025 = vpow.pop %v2024
    %v2026 = vadd.f32 %v1995, %v1997
    %v2027 = vadd.f32 %v2026, %v1999
    %v2028 = vadd.f32 %v2027, %v2001
    %v2029 = vadd.f32 %v2028, %v2003
    %v2030 = vadd.f32 %v2029, %v2005
    %v2031 = vadd.f32 %v2030, %v2007
    %v2032 = vadd.f32 %v2031, %v2009
    %v2033 = vadd.f32 %v2032, %v2011
    %v2034 = vadd.f32 %v2033, %v2013
    %v2035 = vadd.f32 %v2034, %v2015
    %v2036 = vadd.f32 %v2035, %v2017
    %v2037 = vadd.f32 %v2036, %v2019
    %v2038 = vadd.f32 %v2037, %v2021
    %v2039 = vadd.f32 %v2038, %v2023
    %v2040 = vadd.f32 %v2039, %v2025
    %v2041 = vrot.slane %v2040, 4
    %v2042 = vadd.f32 %v2040, %v2041
    %v2043 = vrot.slane %v2042, 2
    %v2044 = vadd.f32 %v2042, %v2043
    %v2045 = vrot.slane %v2044, 1
    %v2046 = vadd.f32 %v2044, %v2045
    %v2047 = vrcp.pop %v2046
    %v2048 = vpack.c.bf16 %v1997, %v1995
    %v2049 = vpack.c.bf16 %v2001, %v1999
    %v2050 = vpack.c.bf16 %v2005, %v2003
    %v2051 = vpack.c.bf16 %v2009, %v2007
    %v2052 = vpack.c.bf16 %v2013, %v2011
    %v2053 = vpack.c.bf16 %v2017, %v2015
    %v2054 = vpack.c.bf16 %v2021, %v2019
    %v2055 = vpack.c.bf16 %v2025, %v2023
    %2056 = vmatprep.subr.bf16.mxu0 0
    %2057 = vmatpush1.bf16.msra.mxu0 %v2048
    %2058 = vmatprep.subr.bf16.mxu0 0
    %2059 = vmatpush1.bf16.msra.mxu0 %v2049
    %2060 = vmatprep.subr.bf16.mxu0 0
    %2061 = vmatpush1.bf16.msra.mxu0 %v2050
    %2062 = vmatprep.subr.bf16.mxu0 0
    %2063 = vmatpush1.bf16.msra.mxu0 %v2051
    %2064 = vmatprep.subr.bf16.mxu0 0
    %2065 = vmatpush1.bf16.msra.mxu0 %v2052
    %2066 = vmatprep.subr.bf16.mxu0 0
    %2067 = vmatpush1.bf16.msra.mxu0 %v2053
    %2068 = vmatprep.subr.bf16.mxu0 0
    %2069 = vmatpush1.bf16.msra.mxu0 %v2054
    %2070 = vmatprep.subr.bf16.mxu0 0
    %2071 = vmatpush1.bf16.msra.mxu0 %v2055
    %2072 = vmatprep.subr.bf16.mxu0 0
    %2073 = vmatpush1.bf16.msra.mxu0 0
    %2074 = vmatprep.subr.bf16.mxu0 0
    %2075 = vmatpush1.bf16.msra.mxu0 0
    %2076 = vmatprep.subr.bf16.mxu0 0
    %2077 = vmatpush1.bf16.msra.mxu0 0
    %2078 = vmatprep.subr.bf16.mxu0 0
    %2079 = vmatpush1.bf16.msra.mxu0 0
    %2080 = vmatprep.subr.bf16.mxu0 0
    %2081 = vmatpush1.bf16.msra.mxu0 0
    %2082 = vmatprep.subr.bf16.mxu0 0
    %2083 = vmatpush1.bf16.msra.mxu0 0
    %2084 = vmatprep.subr.bf16.mxu0 0
    %2085 = vmatpush1.bf16.msra.mxu0 0
    %2086 = vmatprep.subr.bf16.mxu0 0
    %2087 = vmatpush1.bf16.msra.mxu0 0
    %2088 = vmatprep.mubr.bf16.mxu0 0
    %2089 = vmatmul.mubr.bf16.gmra.mrb[0].mxu0 %v1816
    %v2090 = vpop.f32.mrb[0].mxu0
    %v2091 = vadd.f32 0.0, %v2090
    %v2092 = vpop.f32.mrb[0].mxu0
    %v2093 = vpop.f32.mrb[0].mxu0
    %v2094 = vpop.f32.mrb[0].mxu0
    %2095 = vdwg.mxu0
    %v2096 = vmul.f32 %v2091, %v2047
    %v2097 = vpack.c.bf16 %v907, %v907
    %v2098 = vpack.c.bf16 %v927, %v927
    %v2099 = vpack.c.bf16 %v947, %v947
    %2100 = vxpose.xlu0.c.b16.start [1/8] %v2098, 128
    %2101 = vxpose.xlu0.c.b16.cont [2/8] 0, 128
    %2102 = vxpose.xlu0.c.b16.cont [3/8] 0, 128
    %2103 = vxpose.xlu0.c.b16.cont [4/8] 0, 128
    %2104 = vxpose.xlu0.c.b16.cont [5/8] 0, 128
    %2105 = vxpose.xlu0.c.b16.cont [6/8] 0, 128
    %2106 = vxpose.xlu0.c.b16.cont [7/8] 0, 128
    %2107 = vxpose.xlu0.c.b16.end [8/8] 0, 128
    %v2108 = vpop.trf.xlu0
    %v2109 = vpop.trf.xlu0
    %v2110 = vpop.trf.xlu0
    %v2111 = vpop.trf.xlu0
    %v2112 = vpop.trf.xlu0
    %v2113 = vpop.trf.xlu0
    %v2114 = vpop.trf.xlu0
    %v2115 = vpop.trf.xlu0
    %v2117 = vsel %vm982, %v2108, 0
    %v2120 = vsel %vm982, %v2109, 0
    %v2123 = vsel %vm982, %v2110, 0
    %v2126 = vsel %vm982, %v2111, 0
    %v2129 = vsel %vm982, %v2112, 0
    %v2132 = vsel %vm982, %v2113, 0
    %v2135 = vsel %vm982, %v2114, 0
    %v2138 = vsel %vm982, %v2115, 0
    %v2141 = vsel %vm1007, %v2097, 0
    %2143 = vmatprep.subr.bf16.mxu0 0
    %2144 = vmatpush1.bf16.msra.mxu0 %v2141
    %2145 = vmatprep.subr.bf16.mxu0 0
    %2146 = vmatpush1.bf16.msra.mxu0 0
    %2147 = vmatprep.subr.bf16.mxu0 0
    %2148 = vmatpush1.bf16.msra.mxu0 0
    %2149 = vmatprep.subr.bf16.mxu0 0
    %2150 = vmatpush1.bf16.msra.mxu0 0
    %2151 = vmatprep.subr.bf16.mxu0 0
    %2152 = vmatpush1.bf16.msra.mxu0 0
    %2153 = vmatprep.subr.bf16.mxu0 0
    %2154 = vmatpush1.bf16.msra.mxu0 0
    %2155 = vmatprep.subr.bf16.mxu0 0
    %2156 = vmatpush1.bf16.msra.mxu0 0
    %2157 = vmatprep.subr.bf16.mxu0 0
    %2158 = vmatpush1.bf16.msra.mxu0 0
    %2159 = vmatprep.subr.bf16.mxu0 0
    %2160 = vmatpush1.bf16.msra.mxu0 0
    %2161 = vmatprep.subr.bf16.mxu0 0
    %2162 = vmatpush1.bf16.msra.mxu0 0
    %2163 = vmatprep.subr.bf16.mxu0 0
    %2164 = vmatpush1.bf16.msra.mxu0 0
    %2165 = vmatprep.subr.bf16.mxu0 0
    %2166 = vmatpush1.bf16.msra.mxu0 0
    %2167 = vmatprep.subr.bf16.mxu0 0
    %2168 = vmatpush1.bf16.msra.mxu0 0
    %2169 = vmatprep.subr.bf16.mxu0 0
    %2170 = vmatpush1.bf16.msra.mxu0 0
    %2171 = vmatprep.subr.bf16.mxu0 0
    %2172 = vmatpush1.bf16.msra.mxu0 0
    %2173 = vmatprep.subr.bf16.mxu0 0
    %2174 = vmatpush1.bf16.msra.mxu0 0
    %2175 = vmatprep.mubr.bf16.mxu0 0
    %2176 = vmatmul.mubr.bf16.gmra.mrb[0].mxu0 %v2117
    %v2177 = vpop.f32.mrb[0].mxu0
    %v2178 = vadd.f32 0.0, %v2177
    %v2179 = vpop.f32.mrb[0].mxu0
    %v2180 = vpop.f32.mrb[0].mxu0
    %v2181 = vadd.f32 0.0, %v2180
    %v2182 = vpop.f32.mrb[0].mxu0
    %2183 = vmatprep.mubr.bf16.mxu0 0
    %2184 = vmatmul.mubr.bf16.gmra.mrb[0].mxu0 %v2120
    %v2185 = vpop.f32.mrb[0].mxu0
    %v2186 = vadd.f32 0.0, %v2185
    %v2187 = vpop.f32.mrb[0].mxu0
    %v2188 = vpop.f32.mrb[0].mxu0
    %v2189 = vadd.f32 0.0, %v2188
    %v2190 = vpop.f32.mrb[0].mxu0
    %2191 = vmatprep.mubr.bf16.mxu0 0
    %2192 = vmatmul.mubr.bf16.gmra.mrb[0].mxu0 %v2123
    %v2193 = vpop.f32.mrb[0].mxu0
    %v2194 = vadd.f32 0.0, %v2193
    %v2195 = vpop.f32.mrb[0].mxu0
    %v2196 = vpop.f32.mrb[0].mxu0
    %v2197 = vadd.f32 0.0, %v2196
    %v2198 = vpop.f32.mrb[0].mxu0
    %2199 = vmatprep.mubr.bf16.mxu0 0
    %2200 = vmatmul.mubr.bf16.gmra.mrb[0].mxu0 %v2126
    %v2201 = vpop.f32.mrb[0].mxu0
    %v2202 = vadd.f32 0.0, %v2201
    %v2203 = vpop.f32.mrb[0].mxu0
    %v2204 = vpop.f32.mrb[0].mxu0
    %v2205 = vadd.f32 0.0, %v2204
    %v2206 = vpop.f32.mrb[0].mxu0
    %2207 = vmatprep.mubr.bf16.mxu0 0
    %2208 = vmatmul.mubr.bf16.gmra.mrb[0].mxu0 %v2129
    %v2209 = vpop.f32.mrb[0].mxu0
    %v2210 = vadd.f32 0.0, %v2209
    %v2211 = vpop.f32.mrb[0].mxu0
    %v2212 = vpop.f32.mrb[0].mxu0
    %v2213 = vadd.f32 0.0, %v2212
    %v2214 = vpop.f32.mrb[0].mxu0
    %2215 = vmatprep.mubr.bf16.mxu0 0
    %2216 = vmatmul.mubr.bf16.gmra.mrb[0].mxu0 %v2132
    %v2217 = vpop.f32.mrb[0].mxu0
    %v2218 = vadd.f32 0.0, %v2217
    %v2219 = vpop.f32.mrb[0].mxu0
    %v2220 = vpop.f32.mrb[0].mxu0
    %v2221 = vadd.f32 0.0, %v2220
    %v2222 = vpop.f32.mrb[0].mxu0
    %2223 = vmatprep.mubr.bf16.mxu0 0
    %2224 = vmatmul.mubr.bf16.gmra.mrb[0].mxu0 %v2135
    %v2225 = vpop.f32.mrb[0].mxu0
    %v2226 = vadd.f32 0.0, %v2225
    %v2227 = vpop.f32.mrb[0].mxu0
    %v2228 = vpop.f32.mrb[0].mxu0
    %v2229 = vadd.f32 0.0, %v2228
    %v2230 = vpop.f32.mrb[0].mxu0
    %2231 = vmatprep.mubr.bf16.mxu0 0
    %2232 = vmatmul.mubr.bf16.gmra.mrb[0].mxu0 %v2138
    %v2233 = vpop.f32.mrb[0].mxu0
    %v2234 = vadd.f32 0.0, %v2233
    %v2235 = vpop.f32.mrb[0].mxu0
    %v2236 = vpop.f32.mrb[0].mxu0
    %v2237 = vadd.f32 0.0, %v2236
    %v2238 = vpop.f32.mrb[0].mxu0
    %2239 = vdwg.mxu0
    %v2240 = vmax.f32 %v2178, %v2194
    %v2241 = vmax.f32 %v2181, %v2197
    %v2242 = vmax.f32 %v2186, %v2202
    %v2243 = vmax.f32 %v2189, %v2205
    %v2244 = vmax.f32 %v2240, %v2210
    %v2245 = vmax.f32 %v2241, %v2213
    %v2246 = vmax.f32 %v2242, %v2218
    %v2247 = vmax.f32 %v2243, %v2221
    %v2248 = vmax.f32 %v2244, %v2226
    %v2249 = vmax.f32 %v2245, %v2229
    %v2250 = vmax.f32 %v2246, %v2234
    %v2251 = vmax.f32 %v2247, %v2237
    %v2252 = vmax.f32 %v2248, %v2249
    %v2253 = vmax.f32 %v2250, %v2251
    %v2254 = vmax.f32 %v2252, %v2253
    %v2255 = vrot.slane %v2254, 4
    %v2256 = vmax.f32 %v2254, %v2255
    %v2257 = vrot.slane %v2256, 2
    %v2258 = vmax.f32 %v2256, %v2257
    %v2259 = vrot.slane %v2258, 1
    %v2260 = vmax.f32 %v2258, %v2259
    %v2261 = vsub.f32 %v2178, %v2260
    %v2262 = vsub.f32 %v2181, %v2260
    %v2263 = vsub.f32 %v2186, %v2260
    %v2264 = vsub.f32 %v2189, %v2260
    %v2265 = vsub.f32 %v2194, %v2260
    %v2266 = vsub.f32 %v2197, %v2260
    %v2267 = vsub.f32 %v2202, %v2260
    %v2268 = vsub.f32 %v2205, %v2260
    %v2269 = vsub.f32 %v2210, %v2260
    %v2270 = vsub.f32 %v2213, %v2260
    %v2271 = vsub.f32 %v2218, %v2260
    %v2272 = vsub.f32 %v2221, %v2260
    %v2273 = vsub.f32 %v2226, %v2260
    %v2274 = vsub.f32 %v2229, %v2260
    %v2275 = vsub.f32 %v2234, %v2260
    %v2276 = vsub.f32 %v2237, %v2260
    %v2277 = vmul.f32 %v2261, 1.442695
    %v2278 = vpow.pop %v2277
    %v2279 = vmul.f32 %v2262, 1.442695
    %v2280 = vpow.pop %v2279
    %v2281 = vmul.f32 %v2263, 1.442695
    %v2282 = vpow.pop %v2281
    %v2283 = vmul.f32 %v2264, 1.442695
    %v2284 = vpow.pop %v2283
    %v2285 = vmul.f32 %v2265, 1.442695
    %v2286 = vpow.pop %v2285
    %v2287 = vmul.f32 %v2266, 1.442695
    %v2288 = vpow.pop %v2287
    %v2289 = vmul.f32 %v2267, 1.442695
    %v2290 = vpow.pop %v2289
    %v2291 = vmul.f32 %v2268, 1.442695
    %v2292 = vpow.pop %v2291
    %v2293 = vmul.f32 %v2269, 1.442695
    %v2294 = vpow.pop %v2293
    %v2295 = vmul.f32 %v2270, 1.442695
    %v2296 = vpow.pop %v2295
    %v2297 = vmul.f32 %v2271, 1.442695
    %v2298 = vpow.pop %v2297
    %v2299 = vmul.f32 %v2272, 1.442695
    %v2300 = vpow.pop %v2299
    %v2301 = vmul.f32 %v2273, 1.442695
    %v2302 = vpow.pop %v2301
    %v2303 = vmul.f32 %v2274, 1.442695
    %v2304 = vpow.pop %v2303
    %v2305 = vmul.f32 %v2275, 1.442695
    %v2306 = vpow.pop %v2305
    %v2307 = vmul.f32 %v2276, 1.442695
    %v2308 = vpow.pop %v2307
    %v2309 = vadd.f32 %v2278, %v2280
    %v2310 = vadd.f32 %v2309, %v2282
    %v2311 = vadd.f32 %v2310, %v2284
    %v2312 = vadd.f32 %v2311, %v2286
    %v2313 = vadd.f32 %v2312, %v2288
    %v2314 = vadd.f32 %v2313, %v2290
    %v2315 = vadd.f32 %v2314, %v2292
    %v2316 = vadd.f32 %v2315, %v2294
    %v2317 = vadd.f32 %v2316, %v2296
    %v2318 = vadd.f32 %v2317, %v2298
    %v2319 = vadd.f32 %v2318, %v2300
    %v2320 = vadd.f32 %v2319, %v2302
    %v2321 = vadd.f32 %v2320, %v2304
    %v2322 = vadd.f32 %v2321, %v2306
    %v2323 = vadd.f32 %v2322, %v2308
    %v2324 = vrot.slane %v2323, 4
    %v2325 = vadd.f32 %v2323, %v2324
    %v2326 = vrot.slane %v2325, 2
    %v2327 = vadd.f32 %v2325, %v2326
    %v2328 = vrot.slane %v2327, 1
    %v2329 = vadd.f32 %v2327, %v2328
    %v2330 = vrcp.pop %v2329
    %v2331 = vpack.c.bf16 %v2280, %v2278
    %v2332 = vpack.c.bf16 %v2284, %v2282
    %v2333 = vpack.c.bf16 %v2288, %v2286
    %v2334 = vpack.c.bf16 %v2292, %v2290
    %v2335 = vpack.c.bf16 %v2296, %v2294
    %v2336 = vpack.c.bf16 %v2300, %v2298
    %v2337 = vpack.c.bf16 %v2304, %v2302
    %v2338 = vpack.c.bf16 %v2308, %v2306
    %2339 = vmatprep.subr.bf16.mxu0 0
    %2340 = vmatpush1.bf16.msra.mxu0 %v2331
    %2341 = vmatprep.subr.bf16.mxu0 0
    %2342 = vmatpush1.bf16.msra.mxu0 %v2332
    %2343 = vmatprep.subr.bf16.mxu0 0
    %2344 = vmatpush1.bf16.msra.mxu0 %v2333
    %2345 = vmatprep.subr.bf16.mxu0 0
    %2346 = vmatpush1.bf16.msra.mxu0 %v2334
    %2347 = vmatprep.subr.bf16.mxu0 0
    %2348 = vmatpush1.bf16.msra.mxu0 %v2335
    %2349 = vmatprep.subr.bf16.mxu0 0
    %2350 = vmatpush1.bf16.msra.mxu0 %v2336
    %2351 = vmatprep.subr.bf16.mxu0 0
    %2352 = vmatpush1.bf16.msra.mxu0 %v2337
    %2353 = vmatprep.subr.bf16.mxu0 0
    %2354 = vmatpush1.bf16.msra.mxu0 %v2338
    %2355 = vmatprep.subr.bf16.mxu0 0
    %2356 = vmatpush1.bf16.msra.mxu0 0
    %2357 = vmatprep.subr.bf16.mxu0 0
    %2358 = vmatpush1.bf16.msra.mxu0 0
    %2359 = vmatprep.subr.bf16.mxu0 0
    %2360 = vmatpush1.bf16.msra.mxu0 0
    %2361 = vmatprep.subr.bf16.mxu0 0
    %2362 = vmatpush1.bf16.msra.mxu0 0
    %2363 = vmatprep.subr.bf16.mxu0 0
    %2364 = vmatpush1.bf16.msra.mxu0 0
    %2365 = vmatprep.subr.bf16.mxu0 0
    %2366 = vmatpush1.bf16.msra.mxu0 0
    %2367 = vmatprep.subr.bf16.mxu0 0
    %2368 = vmatpush1.bf16.msra.mxu0 0
    %2369 = vmatprep.subr.bf16.mxu0 0
    %2370 = vmatpush1.bf16.msra.mxu0 0
    %2371 = vmatprep.mubr.bf16.mxu0 0
    %2372 = vmatmul.mubr.bf16.gmra.mrb[0].mxu0 %v2099
    %v2373 = vpop.f32.mrb[0].mxu0
    %v2374 = vadd.f32 0.0, %v2373
    %v2375 = vpop.f32.mrb[0].mxu0
    %v2376 = vpop.f32.mrb[0].mxu0
    %v2377 = vpop.f32.mrb[0].mxu0
    %2378 = vdwg.mxu0
    %v2379 = vmul.f32 %v2374, %v2330
    %v2380 = vpack.c.bf16 %v911, %v911
    %v2381 = vpack.c.bf16 %v931, %v931
    %v2382 = vpack.c.bf16 %v951, %v951
    %2383 = vxpose.xlu0.c.b16.start [1/8] %v2381, 128
    %2384 = vxpose.xlu0.c.b16.cont [2/8] 0, 128
    %2385 = vxpose.xlu0.c.b16.cont [3/8] 0, 128
    %2386 = vxpose.xlu0.c.b16.cont [4/8] 0, 128
    %2387 = vxpose.xlu0.c.b16.cont [5/8] 0, 128
    %2388 = vxpose.xlu0.c.b16.cont [6/8] 0, 128
    %2389 = vxpose.xlu0.c.b16.cont [7/8] 0, 128
    %2390 = vxpose.xlu0.c.b16.end [8/8] 0, 128
    %v2391 = vpop.trf.xlu0
    %v2392 = vpop.trf.xlu0
    %v2393 = vpop.trf.xlu0
    %v2394 = vpop.trf.xlu0
    %v2395 = vpop.trf.xlu0
    %v2396 = vpop.trf.xlu0
    %v2397 = vpop.trf.xlu0
    %v2398 = vpop.trf.xlu0
    %v2400 = vsel %vm982, %v2391, 0
    %v2403 = vsel %vm982, %v2392, 0
    %v2406 = vsel %vm982, %v2393, 0
    %v2409 = vsel %vm982, %v2394, 0
    %v2412 = vsel %vm982, %v2395, 0
    %v2415 = vsel %vm982, %v2396, 0
    %v2418 = vsel %vm982, %v2397, 0
    %v2421 = vsel %vm982, %v2398, 0
    %v2424 = vsel %vm1007, %v2380, 0
    %2426 = vmatprep.subr.bf16.mxu0 0
    %2427 = vmatpush1.bf16.msra.mxu0 %v2424
    %2428 = vmatprep.subr.bf16.mxu0 0
    %2429 = vmatpush1.bf16.msra.mxu0 0
    %2430 = vmatprep.subr.bf16.mxu0 0
    %2431 = vmatpush1.bf16.msra.mxu0 0
    %2432 = vmatprep.subr.bf16.mxu0 0
    %2433 = vmatpush1.bf16.msra.mxu0 0
    %2434 = vmatprep.subr.bf16.mxu0 0
    %2435 = vmatpush1.bf16.msra.mxu0 0
    %2436 = vmatprep.subr.bf16.mxu0 0
    %2437 = vmatpush1.bf16.msra.mxu0 0
    %2438 = vmatprep.subr.bf16.mxu0 0
    %2439 = vmatpush1.bf16.msra.mxu0 0
    %2440 = vmatprep.subr.bf16.mxu0 0
    %2441 = vmatpush1.bf16.msra.mxu0 0
    %2442 = vmatprep.subr.bf16.mxu0 0
    %2443 = vmatpush1.bf16.msra.mxu0 0
    %2444 = vmatprep.subr.bf16.mxu0 0
    %2445 = vmatpush1.bf16.msra.mxu0 0
    %2446 = vmatprep.subr.bf16.mxu0 0
    %2447 = vmatpush1.bf16.msra.mxu0 0
    %2448 = vmatprep.subr.bf16.mxu0 0
    %2449 = vmatpush1.bf16.msra.mxu0 0
    %2450 = vmatprep.subr.bf16.mxu0 0
    %2451 = vmatpush1.bf16.msra.mxu0 0
    %2452 = vmatprep.subr.bf16.mxu0 0
    %2453 = vmatpush1.bf16.msra.mxu0 0
    %2454 = vmatprep.subr.bf16.mxu0 0
    %2455 = vmatpush1.bf16.msra.mxu0 0
    %2456 = vmatprep.subr.bf16.mxu0 0
    %2457 = vmatpush1.bf16.msra.mxu0 0
    %2458 = vmatprep.mubr.bf16.mxu0 0
    %2459 = vmatmul.mubr.bf16.gmra.mrb[0].mxu0 %v2400
    %v2460 = vpop.f32.mrb[0].mxu0
    %v2461 = vadd.f32 0.0, %v2460
    %v2462 = vpop.f32.mrb[0].mxu0
    %v2463 = vpop.f32.mrb[0].mxu0
    %v2464 = vadd.f32 0.0, %v2463
    %v2465 = vpop.f32.mrb[0].mxu0
    %2466 = vmatprep.mubr.bf16.mxu0 0
    %2467 = vmatmul.mubr.bf16.gmra.mrb[0].mxu0 %v2403
    %v2468 = vpop.f32.mrb[0].mxu0
    %v2469 = vadd.f32 0.0, %v2468
    %v2470 = vpop.f32.mrb[0].mxu0
    %v2471 = vpop.f32.mrb[0].mxu0
    %v2472 = vadd.f32 0.0, %v2471
    %v2473 = vpop.f32.mrb[0].mxu0
    %2474 = vmatprep.mubr.bf16.mxu0 0
    %2475 = vmatmul.mubr.bf16.gmra.mrb[0].mxu0 %v2406
    %v2476 = vpop.f32.mrb[0].mxu0
    %v2477 = vadd.f32 0.0, %v2476
    %v2478 = vpop.f32.mrb[0].mxu0
    %v2479 = vpop.f32.mrb[0].mxu0
    %v2480 = vadd.f32 0.0, %v2479
    %v2481 = vpop.f32.mrb[0].mxu0
    %2482 = vmatprep.mubr.bf16.mxu0 0
    %2483 = vmatmul.mubr.bf16.gmra.mrb[0].mxu0 %v2409
    %v2484 = vpop.f32.mrb[0].mxu0
    %v2485 = vadd.f32 0.0, %v2484
    %v2486 = vpop.f32.mrb[0].mxu0
    %v2487 = vpop.f32.mrb[0].mxu0
    %v2488 = vadd.f32 0.0, %v2487
    %v2489 = vpop.f32.mrb[0].mxu0
    %2490 = vmatprep.mubr.bf16.mxu0 0
    %2491 = vmatmul.mubr.bf16.gmra.mrb[0].mxu0 %v2412
    %v2492 = vpop.f32.mrb[0].mxu0
    %v2493 = vadd.f32 0.0, %v2492
    %v2494 = vpop.f32.mrb[0].mxu0
    %v2495 = vpop.f32.mrb[0].mxu0
    %v2496 = vadd.f32 0.0, %v2495
    %v2497 = vpop.f32.mrb[0].mxu0
    %2498 = vmatprep.mubr.bf16.mxu0 0
    %2499 = vmatmul.mubr.bf16.gmra.mrb[0].mxu0 %v2415
    %v2500 = vpop.f32.mrb[0].mxu0
    %v2501 = vadd.f32 0.0, %v2500
    %v2502 = vpop.f32.mrb[0].mxu0
    %v2503 = vpop.f32.mrb[0].mxu0
    %v2504 = vadd.f32 0.0, %v2503
    %v2505 = vpop.f32.mrb[0].mxu0
    %2506 = vmatprep.mubr.bf16.mxu0 0
    %2507 = vmatmul.mubr.bf16.gmra.mrb[0].mxu0 %v2418
    %v2508 = vpop.f32.mrb[0].mxu0
    %v2509 = vadd.f32 0.0, %v2508
    %v2510 = vpop.f32.mrb[0].mxu0
    %v2511 = vpop.f32.mrb[0].mxu0
    %v2512 = vadd.f32 0.0, %v2511
    %v2513 = vpop.f32.mrb[0].mxu0
    %2514 = vmatprep.mubr.bf16.mxu0 0
    %2515 = vmatmul.mubr.bf16.gmra.mrb[0].mxu0 %v2421
    %v2516 = vpop.f32.mrb[0].mxu0
    %v2517 = vadd.f32 0.0, %v2516
    %v2518 = vpop.f32.mrb[0].mxu0
    %v2519 = vpop.f32.mrb[0].mxu0
    %v2520 = vadd.f32 0.0, %v2519
    %v2521 = vpop.f32.mrb[0].mxu0
    %2522 = vdwg.mxu0
    %v2523 = vmax.f32 %v2461, %v2477
    %v2524 = vmax.f32 %v2464, %v2480
    %v2525 = vmax.f32 %v2469, %v2485
    %v2526 = vmax.f32 %v2472, %v2488
    %v2527 = vmax.f32 %v2523, %v2493
    %v2528 = vmax.f32 %v2524, %v2496
    %v2529 = vmax.f32 %v2525, %v2501
    %v2530 = vmax.f32 %v2526, %v2504
    %v2531 = vmax.f32 %v2527, %v2509
    %v2532 = vmax.f32 %v2528, %v2512
    %v2533 = vmax.f32 %v2529, %v2517
    %v2534 = vmax.f32 %v2530, %v2520
    %v2535 = vmax.f32 %v2531, %v2532
    %v2536 = vmax.f32 %v2533, %v2534
    %v2537 = vmax.f32 %v2535, %v2536
    %v2538 = vrot.slane %v2537, 4
    %v2539 = vmax.f32 %v2537, %v2538
    %v2540 = vrot.slane %v2539, 2
    %v2541 = vmax.f32 %v2539, %v2540
    %v2542 = vrot.slane %v2541, 1
    %v2543 = vmax.f32 %v2541, %v2542
    %v2544 = vsub.f32 %v2461, %v2543
    %v2545 = vsub.f32 %v2464, %v2543
    %v2546 = vsub.f32 %v2469, %v2543
    %v2547 = vsub.f32 %v2472, %v2543
    %v2548 = vsub.f32 %v2477, %v2543
    %v2549 = vsub.f32 %v2480, %v2543
    %v2550 = vsub.f32 %v2485, %v2543
    %v2551 = vsub.f32 %v2488, %v2543
    %v2552 = vsub.f32 %v2493, %v2543
    %v2553 = vsub.f32 %v2496, %v2543
    %v2554 = vsub.f32 %v2501, %v2543
    %v2555 = vsub.f32 %v2504, %v2543
    %v2556 = vsub.f32 %v2509, %v2543
    %v2557 = vsub.f32 %v2512, %v2543
    %v2558 = vsub.f32 %v2517, %v2543
    %v2559 = vsub.f32 %v2520, %v2543
    %v2560 = vmul.f32 %v2544, 1.442695
    %v2561 = vpow.pop %v2560
    %v2562 = vmul.f32 %v2545, 1.442695
    %v2563 = vpow.pop %v2562
    %v2564 = vmul.f32 %v2546, 1.442695
    %v2565 = vpow.pop %v2564
    %v2566 = vmul.f32 %v2547, 1.442695
    %v2567 = vpow.pop %v2566
    %v2568 = vmul.f32 %v2548, 1.442695
    %v2569 = vpow.pop %v2568
    %v2570 = vmul.f32 %v2549, 1.442695
    %v2571 = vpow.pop %v2570
    %v2572 = vmul.f32 %v2550, 1.442695
    %v2573 = vpow.pop %v2572
    %v2574 = vmul.f32 %v2551, 1.442695
    %v2575 = vpow.pop %v2574
    %v2576 = vmul.f32 %v2552, 1.442695
    %v2577 = vpow.pop %v2576
    %v2578 = vmul.f32 %v2553, 1.442695
    %v2579 = vpow.pop %v2578
    %v2580 = vmul.f32 %v2554, 1.442695
    %v2581 = vpow.pop %v2580
    %v2582 = vmul.f32 %v2555, 1.442695
    %v2583 = vpow.pop %v2582
    %v2584 = vmul.f32 %v2556, 1.442695
    %v2585 = vpow.pop %v2584
    %v2586 = vmul.f32 %v2557, 1.442695
    %v2587 = vpow.pop %v2586
    %v2588 = vmul.f32 %v2558, 1.442695
    %v2589 = vpow.pop %v2588
    %v2590 = vmul.f32 %v2559, 1.442695
    %v2591 = vpow.pop %v2590
    %v2592 = vadd.f32 %v2561, %v2563
    %v2593 = vadd.f32 %v2592, %v2565
    %v2594 = vadd.f32 %v2593, %v2567
    %v2595 = vadd.f32 %v2594, %v2569
    %v2596 = vadd.f32 %v2595, %v2571
    %v2597 = vadd.f32 %v2596, %v2573
    %v2598 = vadd.f32 %v2597, %v2575
    %v2599 = vadd.f32 %v2598, %v2577
    %v2600 = vadd.f32 %v2599, %v2579
    %v2601 = vadd.f32 %v2600, %v2581
    %v2602 = vadd.f32 %v2601, %v2583
    %v2603 = vadd.f32 %v2602, %v2585
    %v2604 = vadd.f32 %v2603, %v2587
    %v2605 = vadd.f32 %v2604, %v2589
    %v2606 = vadd.f32 %v2605, %v2591
    %v2607 = vrot.slane %v2606, 4
    %v2608 = vadd.f32 %v2606, %v2607
    %v2609 = vrot.slane %v2608, 2
    %v2610 = vadd.f32 %v2608, %v2609
    %v2611 = vrot.slane %v2610, 1
    %v2612 = vadd.f32 %v2610, %v2611
    %v2613 = vrcp.pop %v2612
    %v2614 = vpack.c.bf16 %v2563, %v2561
    %v2615 = vpack.c.bf16 %v2567, %v2565
    %v2616 = vpack.c.bf16 %v2571, %v2569
    %v2617 = vpack.c.bf16 %v2575, %v2573
    %v2618 = vpack.c.bf16 %v2579, %v2577
    %v2619 = vpack.c.bf16 %v2583, %v2581
    %v2620 = vpack.c.bf16 %v2587, %v2585
    %v2621 = vpack.c.bf16 %v2591, %v2589
    %2622 = vmatprep.subr.bf16.mxu0 0
    %2623 = vmatpush1.bf16.msra.mxu0 %v2614
    %2624 = vmatprep.subr.bf16.mxu0 0
    %2625 = vmatpush1.bf16.msra.mxu0 %v2615
    %2626 = vmatprep.subr.bf16.mxu0 0
    %2627 = vmatpush1.bf16.msra.mxu0 %v2616
    %2628 = vmatprep.subr.bf16.mxu0 0
    %2629 = vmatpush1.bf16.msra.mxu0 %v2617
    %2630 = vmatprep.subr.bf16.mxu0 0
    %2631 = vmatpush1.bf16.msra.mxu0 %v2618
    %2632 = vmatprep.subr.bf16.mxu0 0
    %2633 = vmatpush1.bf16.msra.mxu0 %v2619
    %2634 = vmatprep.subr.bf16.mxu0 0
    %2635 = vmatpush1.bf16.msra.mxu0 %v2620
    %2636 = vmatprep.subr.bf16.mxu0 0
    %2637 = vmatpush1.bf16.msra.mxu0 %v2621
    %2638 = vmatprep.subr.bf16.mxu0 0
    %2639 = vmatpush1.bf16.msra.mxu0 0
    %2640 = vmatprep.subr.bf16.mxu0 0
    %2641 = vmatpush1.bf16.msra.mxu0 0
    %2642 = vmatprep.subr.bf16.mxu0 0
    %2643 = vmatpush1.bf16.msra.mxu0 0
    %2644 = vmatprep.subr.bf16.mxu0 0
    %2645 = vmatpush1.bf16.msra.mxu0 0
    %2646 = vmatprep.subr.bf16.mxu0 0
    %2647 = vmatpush1.bf16.msra.mxu0 0
    %2648 = vmatprep.subr.bf16.mxu0 0
    %2649 = vmatpush1.bf16.msra.mxu0 0
    %2650 = vmatprep.subr.bf16.mxu0 0
    %2651 = vmatpush1.bf16.msra.mxu0 0
    %2652 = vmatprep.subr.bf16.mxu0 0
    %2653 = vmatpush1.bf16.msra.mxu0 0
    %2654 = vmatprep.mubr.bf16.mxu0 0
    %2655 = vmatmul.mubr.bf16.gmra.mrb[0].mxu0 %v2382
    %v2656 = vpop.f32.mrb[0].mxu0
    %v2657 = vadd.f32 0.0, %v2656
    %v2658 = vpop.f32.mrb[0].mxu0
    %v2659 = vpop.f32.mrb[0].mxu0
    %v2660 = vpop.f32.mrb[0].mxu0
    %2661 = vdwg.mxu0
    %v2662 = vmul.f32 %v2657, %v2613
    %v2663 = vpack.c.bf16 %v917, %v917
    %v2664 = vpack.c.bf16 %v937, %v937
    %v2665 = vpack.c.bf16 %v957, %v957
    %2666 = vxpose.xlu0.c.b16.start [1/8] %v2664, 128
    %2667 = vxpose.xlu0.c.b16.cont [2/8] 0, 128
    %2668 = vxpose.xlu0.c.b16.cont [3/8] 0, 128
    %2669 = vxpose.xlu0.c.b16.cont [4/8] 0, 128
    %2670 = vxpose.xlu0.c.b16.cont [5/8] 0, 128
    %2671 = vxpose.xlu0.c.b16.cont [6/8] 0, 128
    %2672 = vxpose.xlu0.c.b16.cont [7/8] 0, 128
    %2673 = vxpose.xlu0.c.b16.end [8/8] 0, 128
    %v2674 = vpop.trf.xlu0
    %v2675 = vpop.trf.xlu0
    %v2676 = vpop.trf.xlu0
    %v2677 = vpop.trf.xlu0
    %v2678 = vpop.trf.xlu0
    %v2679 = vpop.trf.xlu0
    %v2680 = vpop.trf.xlu0
    %v2681 = vpop.trf.xlu0
    %v2683 = vsel %vm982, %v2674, 0
    %v2686 = vsel %vm982, %v2675, 0
    %v2689 = vsel %vm982, %v2676, 0
    %v2692 = vsel %vm982, %v2677, 0
    %v2695 = vsel %vm982, %v2678, 0
    %v2698 = vsel %vm982, %v2679, 0
    %v2701 = vsel %vm982, %v2680, 0
    %v2704 = vsel %vm982, %v2681, 0
    %v2707 = vsel %vm1007, %v2663, 0
    %2709 = vmatprep.subr.bf16.mxu0 0
    %2710 = vmatpush1.bf16.msra.mxu0 %v2707
    %2711 = vmatprep.subr.bf16.mxu0 0
    %2712 = vmatpush1.bf16.msra.mxu0 0
    %2713 = vmatprep.subr.bf16.mxu0 0
    %2714 = vmatpush1.bf16.msra.mxu0 0
    %2715 = vmatprep.subr.bf16.mxu0 0
    %2716 = vmatpush1.bf16.msra.mxu0 0
    %2717 = vmatprep.subr.bf16.mxu0 0
    %2718 = vmatpush1.bf16.msra.mxu0 0
    %2719 = vmatprep.subr.bf16.mxu0 0
    %2720 = vmatpush1.bf16.msra.mxu0 0
    %2721 = vmatprep.subr.bf16.mxu0 0
    %2722 = vmatpush1.bf16.msra.mxu0 0
    %2723 = vmatprep.subr.bf16.mxu0 0
    %2724 = vmatpush1.bf16.msra.mxu0 0
    %2725 = vmatprep.subr.bf16.mxu0 0
    %2726 = vmatpush1.bf16.msra.mxu0 0
    %2727 = vmatprep.subr.bf16.mxu0 0
    %2728 = vmatpush1.bf16.msra.mxu0 0
    %2729 = vmatprep.subr.bf16.mxu0 0
    %2730 = vmatpush1.bf16.msra.mxu0 0
    %2731 = vmatprep.subr.bf16.mxu0 0
    %2732 = vmatpush1.bf16.msra.mxu0 0
    %2733 = vmatprep.subr.bf16.mxu0 0
    %2734 = vmatpush1.bf16.msra.mxu0 0
    %2735 = vmatprep.subr.bf16.mxu0 0
    %2736 = vmatpush1.bf16.msra.mxu0 0
    %2737 = vmatprep.subr.bf16.mxu0 0
    %2738 = vmatpush1.bf16.msra.mxu0 0
    %2739 = vmatprep.subr.bf16.mxu0 0
    %2740 = vmatpush1.bf16.msra.mxu0 0
    %2741 = vmatprep.mubr.bf16.mxu0 0
    %2742 = vmatmul.mubr.bf16.gmra.mrb[0].mxu0 %v2683
    %v2743 = vpop.f32.mrb[0].mxu0
    %v2744 = vadd.f32 0.0, %v2743
    %v2745 = vpop.f32.mrb[0].mxu0
    %v2746 = vpop.f32.mrb[0].mxu0
    %v2747 = vadd.f32 0.0, %v2746
    %v2748 = vpop.f32.mrb[0].mxu0
    %2749 = vmatprep.mubr.bf16.mxu0 0
    %2750 = vmatmul.mubr.bf16.gmra.mrb[0].mxu0 %v2686
    %v2751 = vpop.f32.mrb[0].mxu0
    %v2752 = vadd.f32 0.0, %v2751
    %v2753 = vpop.f32.mrb[0].mxu0
    %v2754 = vpop.f32.mrb[0].mxu0
    %v2755 = vadd.f32 0.0, %v2754
    %v2756 = vpop.f32.mrb[0].mxu0
    %2757 = vmatprep.mubr.bf16.mxu0 0
    %2758 = vmatmul.mubr.bf16.gmra.mrb[0].mxu0 %v2689
    %v2759 = vpop.f32.mrb[0].mxu0
    %v2760 = vadd.f32 0.0, %v2759
    %v2761 = vpop.f32.mrb[0].mxu0
    %v2762 = vpop.f32.mrb[0].mxu0
    %v2763 = vadd.f32 0.0, %v2762
    %v2764 = vpop.f32.mrb[0].mxu0
    %2765 = vmatprep.mubr.bf16.mxu0 0
    %2766 = vmatmul.mubr.bf16.gmra.mrb[0].mxu0 %v2692
    %v2767 = vpop.f32.mrb[0].mxu0
    %v2768 = vadd.f32 0.0, %v2767
    %v2769 = vpop.f32.mrb[0].mxu0
    %v2770 = vpop.f32.mrb[0].mxu0
    %v2771 = vadd.f32 0.0, %v2770
    %v2772 = vpop.f32.mrb[0].mxu0
    %2773 = vmatprep.mubr.bf16.mxu0 0
    %2774 = vmatmul.mubr.bf16.gmra.mrb[0].mxu0 %v2695
    %v2775 = vpop.f32.mrb[0].mxu0
    %v2776 = vadd.f32 0.0, %v2775
    %v2777 = vpop.f32.mrb[0].mxu0
    %v2778 = vpop.f32.mrb[0].mxu0
    %v2779 = vadd.f32 0.0, %v2778
    %v2780 = vpop.f32.mrb[0].mxu0
    %2781 = vmatprep.mubr.bf16.mxu0 0
    %2782 = vmatmul.mubr.bf16.gmra.mrb[0].mxu0 %v2698
    %v2783 = vpop.f32.mrb[0].mxu0
    %v2784 = vadd.f32 0.0, %v2783
    %v2785 = vpop.f32.mrb[0].mxu0
    %v2786 = vpop.f32.mrb[0].mxu0
    %v2787 = vadd.f32 0.0, %v2786
    %v2788 = vpop.f32.mrb[0].mxu0
    %2789 = vmatprep.mubr.bf16.mxu0 0
    %2790 = vmatmul.mubr.bf16.gmra.mrb[0].mxu0 %v2701
    %v2791 = vpop.f32.mrb[0].mxu0
    %v2792 = vadd.f32 0.0, %v2791
    %v2793 = vpop.f32.mrb[0].mxu0
    %v2794 = vpop.f32.mrb[0].mxu0
    %v2795 = vadd.f32 0.0, %v2794
    %v2796 = vpop.f32.mrb[0].mxu0
    %2797 = vmatprep.mubr.bf16.mxu0 0
    %2798 = vmatmul.mubr.bf16.gmra.mrb[0].mxu0 %v2704
    %v2799 = vpop.f32.mrb[0].mxu0
    %v2800 = vadd.f32 0.0, %v2799
    %v2801 = vpop.f32.mrb[0].mxu0
    %v2802 = vpop.f32.mrb[0].mxu0
    %v2803 = vadd.f32 0.0, %v2802
    %v2804 = vpop.f32.mrb[0].mxu0
    %2805 = vdwg.mxu0
    %v2806 = vmax.f32 %v2744, %v2760
    %v2807 = vmax.f32 %v2747, %v2763
    %v2808 = vmax.f32 %v2752, %v2768
    %v2809 = vmax.f32 %v2755, %v2771
    %v2810 = vmax.f32 %v2806, %v2776
    %v2811 = vmax.f32 %v2807, %v2779
    %v2812 = vmax.f32 %v2808, %v2784
    %v2813 = vmax.f32 %v2809, %v2787
    %v2814 = vmax.f32 %v2810, %v2792
    %v2815 = vmax.f32 %v2811, %v2795
    %v2816 = vmax.f32 %v2812, %v2800
    %v2817 = vmax.f32 %v2813, %v2803
    %v2818 = vmax.f32 %v2814, %v2815
    %v2819 = vmax.f32 %v2816, %v2817
    %v2820 = vmax.f32 %v2818, %v2819
    %v2821 = vrot.slane %v2820, 4
    %v2822 = vmax.f32 %v2820, %v2821
    %v2823 = vrot.slane %v2822, 2
    %v2824 = vmax.f32 %v2822, %v2823
    %v2825 = vrot.slane %v2824, 1
    %v2826 = vmax.f32 %v2824, %v2825
    %v2827 = vsub.f32 %v2744, %v2826
    %v2828 = vsub.f32 %v2747, %v2826
    %v2829 = vsub.f32 %v2752, %v2826
    %v2830 = vsub.f32 %v2755, %v2826
    %v2831 = vsub.f32 %v2760, %v2826
    %v2832 = vsub.f32 %v2763, %v2826
    %v2833 = vsub.f32 %v2768, %v2826
    %v2834 = vsub.f32 %v2771, %v2826
    %v2835 = vsub.f32 %v2776, %v2826
    %v2836 = vsub.f32 %v2779, %v2826
    %v2837 = vsub.f32 %v2784, %v2826
    %v2838 = vsub.f32 %v2787, %v2826
    %v2839 = vsub.f32 %v2792, %v2826
    %v2840 = vsub.f32 %v2795, %v2826
    %v2841 = vsub.f32 %v2800, %v2826
    %v2842 = vsub.f32 %v2803, %v2826
    %v2843 = vmul.f32 %v2827, 1.442695
    %v2844 = vpow.pop %v2843
    %v2845 = vmul.f32 %v2828, 1.442695
    %v2846 = vpow.pop %v2845
    %v2847 = vmul.f32 %v2829, 1.442695
    %v2848 = vpow.pop %v2847
    %v2849 = vmul.f32 %v2830, 1.442695
    %v2850 = vpow.pop %v2849
    %v2851 = vmul.f32 %v2831, 1.442695
    %v2852 = vpow.pop %v2851
    %v2853 = vmul.f32 %v2832, 1.442695
    %v2854 = vpow.pop %v2853
    %v2855 = vmul.f32 %v2833, 1.442695
    %v2856 = vpow.pop %v2855
    %v2857 = vmul.f32 %v2834, 1.442695
    %v2858 = vpow.pop %v2857
    %v2859 = vmul.f32 %v2835, 1.442695
    %v2860 = vpow.pop %v2859
    %v2861 = vmul.f32 %v2836, 1.442695
    %v2862 = vpow.pop %v2861
    %v2863 = vmul.f32 %v2837, 1.442695
    %v2864 = vpow.pop %v2863
    %v2865 = vmul.f32 %v2838, 1.442695
    %v2866 = vpow.pop %v2865
    %v2867 = vmul.f32 %v2839, 1.442695
    %v2868 = vpow.pop %v2867
    %v2869 = vmul.f32 %v2840, 1.442695
    %v2870 = vpow.pop %v2869
    %v2871 = vmul.f32 %v2841, 1.442695
    %v2872 = vpow.pop %v2871
    %v2873 = vmul.f32 %v2842, 1.442695
    %v2874 = vpow.pop %v2873
    %v2875 = vadd.f32 %v2844, %v2846
    %v2876 = vadd.f32 %v2875, %v2848
    %v2877 = vadd.f32 %v2876, %v2850
    %v2878 = vadd.f32 %v2877, %v2852
    %v2879 = vadd.f32 %v2878, %v2854
    %v2880 = vadd.f32 %v2879, %v2856
    %v2881 = vadd.f32 %v2880, %v2858
    %v2882 = vadd.f32 %v2881, %v2860
    %v2883 = vadd.f32 %v2882, %v2862
    %v2884 = vadd.f32 %v2883, %v2864
    %v2885 = vadd.f32 %v2884, %v2866
    %v2886 = vadd.f32 %v2885, %v2868
    %v2887 = vadd.f32 %v2886, %v2870
    %v2888 = vadd.f32 %v2887, %v2872
    %v2889 = vadd.f32 %v2888, %v2874
    %v2890 = vrot.slane %v2889, 4
    %v2891 = vadd.f32 %v2889, %v2890
    %v2892 = vrot.slane %v2891, 2
    %v2893 = vadd.f32 %v2891, %v2892
    %v2894 = vrot.slane %v2893, 1
    %v2895 = vadd.f32 %v2893, %v2894
    %v2896 = vrcp.pop %v2895
    %v2897 = vpack.c.bf16 %v2846, %v2844
    %v2898 = vpack.c.bf16 %v2850, %v2848
    %v2899 = vpack.c.bf16 %v2854, %v2852
    %v2900 = vpack.c.bf16 %v2858, %v2856
    %v2901 = vpack.c.bf16 %v2862, %v2860
    %v2902 = vpack.c.bf16 %v2866, %v2864
    %v2903 = vpack.c.bf16 %v2870, %v2868
    %v2904 = vpack.c.bf16 %v2874, %v2872
    %2905 = vmatprep.subr.bf16.mxu0 0
    %2906 = vmatpush1.bf16.msra.mxu0 %v2897
    %2907 = vmatprep.subr.bf16.mxu0 0
    %2908 = vmatpush1.bf16.msra.mxu0 %v2898
    %2909 = vmatprep.subr.bf16.mxu0 0
    %2910 = vmatpush1.bf16.msra.mxu0 %v2899
    %2911 = vmatprep.subr.bf16.mxu0 0
    %2912 = vmatpush1.bf16.msra.mxu0 %v2900
    %2913 = vmatprep.subr.bf16.mxu0 0
    %2914 = vmatpush1.bf16.msra.mxu0 %v2901
    %2915 = vmatprep.subr.bf16.mxu0 0
    %2916 = vmatpush1.bf16.msra.mxu0 %v2902
    %2917 = vmatprep.subr.bf16.mxu0 0
    %2918 = vmatpush1.bf16.msra.mxu0 %v2903
    %2919 = vmatprep.subr.bf16.mxu0 0
    %2920 = vmatpush1.bf16.msra.mxu0 %v2904
    %2921 = vmatprep.subr.bf16.mxu0 0
    %2922 = vmatpush1.bf16.msra.mxu0 0
    %2923 = vmatprep.subr.bf16.mxu0 0
    %2924 = vmatpush1.bf16.msra.mxu0 0
    %2925 = vmatprep.subr.bf16.mxu0 0
    %2926 = vmatpush1.bf16.msra.mxu0 0
    %2927 = vmatprep.subr.bf16.mxu0 0
    %2928 = vmatpush1.bf16.msra.mxu0 0
    %2929 = vmatprep.subr.bf16.mxu0 0
    %2930 = vmatpush1.bf16.msra.mxu0 0
    %2931 = vmatprep.subr.bf16.mxu0 0
    %2932 = vmatpush1.bf16.msra.mxu0 0
    %2933 = vmatprep.subr.bf16.mxu0 0
    %2934 = vmatpush1.bf16.msra.mxu0 0
    %2935 = vmatprep.subr.bf16.mxu0 0
    %2936 = vmatpush1.bf16.msra.mxu0 0
    %2937 = vmatprep.mubr.bf16.mxu0 0
    %2938 = vmatmul.mubr.bf16.gmra.mrb[0].mxu0 %v2665
    %v2939 = vpop.f32.mrb[0].mxu0
    %v2940 = vadd.f32 0.0, %v2939
    %v2941 = vpop.f32.mrb[0].mxu0
    %v2942 = vpop.f32.mrb[0].mxu0
    %v2943 = vpop.f32.mrb[0].mxu0
    %2944 = vdwg.mxu0
    %v2945 = vmul.f32 %v2940, %v2896
    %v2946 = vpack.c.bf16 %v921, %v921
    %v2947 = vpack.c.bf16 %v941, %v941
    %v2948 = vpack.c.bf16 %v961, %v961
    %2949 = vxpose.xlu0.c.b16.start [1/8] %v2947, 128
    %2950 = vxpose.xlu0.c.b16.cont [2/8] 0, 128
    %2951 = vxpose.xlu0.c.b16.cont [3/8] 0, 128
    %2952 = vxpose.xlu0.c.b16.cont [4/8] 0, 128
    %2953 = vxpose.xlu0.c.b16.cont [5/8] 0, 128
    %2954 = vxpose.xlu0.c.b16.cont [6/8] 0, 128
    %2955 = vxpose.xlu0.c.b16.cont [7/8] 0, 128
    %2956 = vxpose.xlu0.c.b16.end [8/8] 0, 128
    %v2957 = vpop.trf.xlu0
    %v2958 = vpop.trf.xlu0
    %v2959 = vpop.trf.xlu0
    %v2960 = vpop.trf.xlu0
    %v2961 = vpop.trf.xlu0
    %v2962 = vpop.trf.xlu0
    %v2963 = vpop.trf.xlu0
    %v2964 = vpop.trf.xlu0
    %v2966 = vsel %vm982, %v2957, 0
    %v2969 = vsel %vm982, %v2958, 0
    %v2972 = vsel %vm982, %v2959, 0
    %v2975 = vsel %vm982, %v2960, 0
    %v2978 = vsel %vm982, %v2961, 0
    %v2981 = vsel %vm982, %v2962, 0
    %v2984 = vsel %vm982, %v2963, 0
    %v2987 = vsel %vm982, %v2964, 0
    %v2990 = vsel %vm1007, %v2946, 0
    %2992 = vmatprep.subr.bf16.mxu0 0
    %2993 = vmatpush1.bf16.msra.mxu0 %v2990
    %2994 = vmatprep.subr.bf16.mxu0 0
    %2995 = vmatpush1.bf16.msra.mxu0 0
    %2996 = vmatprep.subr.bf16.mxu0 0
    %2997 = vmatpush1.bf16.msra.mxu0 0
    %2998 = vmatprep.subr.bf16.mxu0 0
    %2999 = vmatpush1.bf16.msra.mxu0 0
    %3000 = vmatprep.subr.bf16.mxu0 0
    %3001 = vmatpush1.bf16.msra.mxu0 0
    %3002 = vmatprep.subr.bf16.mxu0 0
    %3003 = vmatpush1.bf16.msra.mxu0 0
    %3004 = vmatprep.subr.bf16.mxu0 0
    %3005 = vmatpush1.bf16.msra.mxu0 0
    %3006 = vmatprep.subr.bf16.mxu0 0
    %3007 = vmatpush1.bf16.msra.mxu0 0
    %3008 = vmatprep.subr.bf16.mxu0 0
    %3009 = vmatpush1.bf16.msra.mxu0 0
    %3010 = vmatprep.subr.bf16.mxu0 0
    %3011 = vmatpush1.bf16.msra.mxu0 0
    %3012 = vmatprep.subr.bf16.mxu0 0
    %3013 = vmatpush1.bf16.msra.mxu0 0
    %3014 = vmatprep.subr.bf16.mxu0 0
    %3015 = vmatpush1.bf16.msra.mxu0 0
    %3016 = vmatprep.subr.bf16.mxu0 0
    %3017 = vmatpush1.bf16.msra.mxu0 0
    %3018 = vmatprep.subr.bf16.mxu0 0
    %3019 = vmatpush1.bf16.msra.mxu0 0
    %3020 = vmatprep.subr.bf16.mxu0 0
    %3021 = vmatpush1.bf16.msra.mxu0 0
    %3022 = vmatprep.subr.bf16.mxu0 0
    %3023 = vmatpush1.bf16.msra.mxu0 0
    %3024 = vmatprep.mubr.bf16.mxu0 0
    %3025 = vmatmul.mubr.bf16.gmra.mrb[0].mxu0 %v2966
    %v3026 = vpop.f32.mrb[0].mxu0
    %v3027 = vadd.f32 0.0, %v3026
    %v3028 = vpop.f32.mrb[0].mxu0
    %v3029 = vpop.f32.mrb[0].mxu0
    %v3030 = vadd.f32 0.0, %v3029
    %v3031 = vpop.f32.mrb[0].mxu0
    %3032 = vmatprep.mubr.bf16.mxu0 0
    %3033 = vmatmul.mubr.bf16.gmra.mrb[0].mxu0 %v2969
    %v3034 = vpop.f32.mrb[0].mxu0
    %v3035 = vadd.f32 0.0, %v3034
    %v3036 = vpop.f32.mrb[0].mxu0
    %v3037 = vpop.f32.mrb[0].mxu0
    %v3038 = vadd.f32 0.0, %v3037
    %v3039 = vpop.f32.mrb[0].mxu0
    %3040 = vmatprep.mubr.bf16.mxu0 0
    %3041 = vmatmul.mubr.bf16.gmra.mrb[0].mxu0 %v2972
    %v3042 = vpop.f32.mrb[0].mxu0
    %v3043 = vadd.f32 0.0, %v3042
    %v3044 = vpop.f32.mrb[0].mxu0
    %v3045 = vpop.f32.mrb[0].mxu0
    %v3046 = vadd.f32 0.0, %v3045
    %v3047 = vpop.f32.mrb[0].mxu0
    %3048 = vmatprep.mubr.bf16.mxu0 0
    %3049 = vmatmul.mubr.bf16.gmra.mrb[0].mxu0 %v2975
    %v3050 = vpop.f32.mrb[0].mxu0
    %v3051 = vadd.f32 0.0, %v3050
    %v3052 = vpop.f32.mrb[0].mxu0
    %v3053 = vpop.f32.mrb[0].mxu0
    %v3054 = vadd.f32 0.0, %v3053
    %v3055 = vpop.f32.mrb[0].mxu0
    %3056 = vmatprep.mubr.bf16.mxu0 0
    %3057 = vmatmul.mubr.bf16.gmra.mrb[0].mxu0 %v2978
    %v3058 = vpop.f32.mrb[0].mxu0
    %v3059 = vadd.f32 0.0, %v3058
    %v3060 = vpop.f32.mrb[0].mxu0
    %v3061 = vpop.f32.mrb[0].mxu0
    %v3062 = vadd.f32 0.0, %v3061
    %v3063 = vpop.f32.mrb[0].mxu0
    %3064 = vmatprep.mubr.bf16.mxu0 0
    %3065 = vmatmul.mubr.bf16.gmra.mrb[0].mxu0 %v2981
    %v3066 = vpop.f32.mrb[0].mxu0
    %v3067 = vadd.f32 0.0, %v3066
    %v3068 = vpop.f32.mrb[0].mxu0
    %v3069 = vpop.f32.mrb[0].mxu0
    %v3070 = vadd.f32 0.0, %v3069
    %v3071 = vpop.f32.mrb[0].mxu0
    %3072 = vmatprep.mubr.bf16.mxu0 0
    %3073 = vmatmul.mubr.bf16.gmra.mrb[0].mxu0 %v2984
    %v3074 = vpop.f32.mrb[0].mxu0
    %v3075 = vadd.f32 0.0, %v3074
    %v3076 = vpop.f32.mrb[0].mxu0
    %v3077 = vpop.f32.mrb[0].mxu0
    %v3078 = vadd.f32 0.0, %v3077
    %v3079 = vpop.f32.mrb[0].mxu0
    %3080 = vmatprep.mubr.bf16.mxu0 0
    %3081 = vmatmul.mubr.bf16.gmra.mrb[0].mxu0 %v2987
    %v3082 = vpop.f32.mrb[0].mxu0
    %v3083 = vadd.f32 0.0, %v3082
    %v3084 = vpop.f32.mrb[0].mxu0
    %v3085 = vpop.f32.mrb[0].mxu0
    %v3086 = vadd.f32 0.0, %v3085
    %v3087 = vpop.f32.mrb[0].mxu0
    %3088 = vdwg.mxu0
    %v3089 = vmax.f32 %v3027, %v3043
    %v3090 = vmax.f32 %v3030, %v3046
    %v3091 = vmax.f32 %v3035, %v3051
    %v3092 = vmax.f32 %v3038, %v3054
    %v3093 = vmax.f32 %v3089, %v3059
    %v3094 = vmax.f32 %v3090, %v3062
    %v3095 = vmax.f32 %v3091, %v3067
    %v3096 = vmax.f32 %v3092, %v3070
    %v3097 = vmax.f32 %v3093, %v3075
    %v3098 = vmax.f32 %v3094, %v3078
    %v3099 = vmax.f32 %v3095, %v3083
    %v3100 = vmax.f32 %v3096, %v3086
    %v3101 = vmax.f32 %v3097, %v3098
    %v3102 = vmax.f32 %v3099, %v3100
    %v3103 = vmax.f32 %v3101, %v3102
    %v3104 = vrot.slane %v3103, 4
    %v3105 = vmax.f32 %v3103, %v3104
    %v3106 = vrot.slane %v3105, 2
    %v3107 = vmax.f32 %v3105, %v3106
    %v3108 = vrot.slane %v3107, 1
    %v3109 = vmax.f32 %v3107, %v3108
    %v3110 = vsub.f32 %v3027, %v3109
    %v3111 = vsub.f32 %v3030, %v3109
    %v3112 = vsub.f32 %v3035, %v3109
    %v3113 = vsub.f32 %v3038, %v3109
    %v3114 = vsub.f32 %v3043, %v3109
    %v3115 = vsub.f32 %v3046, %v3109
    %v3116 = vsub.f32 %v3051, %v3109
    %v3117 = vsub.f32 %v3054, %v3109
    %v3118 = vsub.f32 %v3059, %v3109
    %v3119 = vsub.f32 %v3062, %v3109
    %v3120 = vsub.f32 %v3067, %v3109
    %v3121 = vsub.f32 %v3070, %v3109
    %v3122 = vsub.f32 %v3075, %v3109
    %v3123 = vsub.f32 %v3078, %v3109
    %v3124 = vsub.f32 %v3083, %v3109
    %v3125 = vsub.f32 %v3086, %v3109
    %v3126 = vmul.f32 %v3110, 1.442695
    %v3127 = vpow.pop %v3126
    %v3128 = vmul.f32 %v3111, 1.442695
    %v3129 = vpow.pop %v3128
    %v3130 = vmul.f32 %v3112, 1.442695
    %v3131 = vpow.pop %v3130
    %v3132 = vmul.f32 %v3113, 1.442695
    %v3133 = vpow.pop %v3132
    %v3134 = vmul.f32 %v3114, 1.442695
    %v3135 = vpow.pop %v3134
    %v3136 = vmul.f32 %v3115, 1.442695
    %v3137 = vpow.pop %v3136
    %v3138 = vmul.f32 %v3116, 1.442695
    %v3139 = vpow.pop %v3138
    %v3140 = vmul.f32 %v3117, 1.442695
    %v3141 = vpow.pop %v3140
    %v3142 = vmul.f32 %v3118, 1.442695
    %v3143 = vpow.pop %v3142
    %v3144 = vmul.f32 %v3119, 1.442695
    %v3145 = vpow.pop %v3144
    %v3146 = vmul.f32 %v3120, 1.442695
    %v3147 = vpow.pop %v3146
    %v3148 = vmul.f32 %v3121, 1.442695
    %v3149 = vpow.pop %v3148
    %v3150 = vmul.f32 %v3122, 1.442695
    %v3151 = vpow.pop %v3150
    %v3152 = vmul.f32 %v3123, 1.442695
    %v3153 = vpow.pop %v3152
    %v3154 = vmul.f32 %v3124, 1.442695
    %v3155 = vpow.pop %v3154
    %v3156 = vmul.f32 %v3125, 1.442695
    %v3157 = vpow.pop %v3156
    %v3158 = vadd.f32 %v3127, %v3129
    %v3159 = vadd.f32 %v3158, %v3131
    %v3160 = vadd.f32 %v3159, %v3133
    %v3161 = vadd.f32 %v3160, %v3135
    %v3162 = vadd.f32 %v3161, %v3137
    %v3163 = vadd.f32 %v3162, %v3139
    %v3164 = vadd.f32 %v3163, %v3141
    %v3165 = vadd.f32 %v3164, %v3143
    %v3166 = vadd.f32 %v3165, %v3145
    %v3167 = vadd.f32 %v3166, %v3147
    %v3168 = vadd.f32 %v3167, %v3149
    %v3169 = vadd.f32 %v3168, %v3151
    %v3170 = vadd.f32 %v3169, %v3153
    %v3171 = vadd.f32 %v3170, %v3155
    %v3172 = vadd.f32 %v3171, %v3157
    %v3173 = vrot.slane %v3172, 4
    %v3174 = vadd.f32 %v3172, %v3173
    %v3175 = vrot.slane %v3174, 2
    %v3176 = vadd.f32 %v3174, %v3175
    %v3177 = vrot.slane %v3176, 1
    %v3178 = vadd.f32 %v3176, %v3177
    %v3179 = vrcp.pop %v3178
    %v3180 = vpack.c.bf16 %v3129, %v3127
    %v3181 = vpack.c.bf16 %v3133, %v3131
    %v3182 = vpack.c.bf16 %v3137, %v3135
    %v3183 = vpack.c.bf16 %v3141, %v3139
    %v3184 = vpack.c.bf16 %v3145, %v3143
    %v3185 = vpack.c.bf16 %v3149, %v3147
    %v3186 = vpack.c.bf16 %v3153, %v3151
    %v3187 = vpack.c.bf16 %v3157, %v3155
    %3188 = vmatprep.subr.bf16.mxu0 0
    %3189 = vmatpush1.bf16.msra.mxu0 %v3180
    %3190 = vmatprep.subr.bf16.mxu0 0
    %3191 = vmatpush1.bf16.msra.mxu0 %v3181
    %3192 = vmatprep.subr.bf16.mxu0 0
    %3193 = vmatpush1.bf16.msra.mxu0 %v3182
    %3194 = vmatprep.subr.bf16.mxu0 0
    %3195 = vmatpush1.bf16.msra.mxu0 %v3183
    %3196 = vmatprep.subr.bf16.mxu0 0
    %3197 = vmatpush1.bf16.msra.mxu0 %v3184
    %3198 = vmatprep.subr.bf16.mxu0 0
    %3199 = vmatpush1.bf16.msra.mxu0 %v3185
    %3200 = vmatprep.subr.bf16.mxu0 0
    %3201 = vmatpush1.bf16.msra.mxu0 %v3186
    %3202 = vmatprep.subr.bf16.mxu0 0
    %3203 = vmatpush1.bf16.msra.mxu0 %v3187
    %3204 = vmatprep.subr.bf16.mxu0 0
    %3205 = vmatpush1.bf16.msra.mxu0 0
    %3206 = vmatprep.subr.bf16.mxu0 0
    %3207 = vmatpush1.bf16.msra.mxu0 0
    %3208 = vmatprep.subr.bf16.mxu0 0
    %3209 = vmatpush1.bf16.msra.mxu0 0
    %3210 = vmatprep.subr.bf16.mxu0 0
    %3211 = vmatpush1.bf16.msra.mxu0 0
    %3212 = vmatprep.subr.bf16.mxu0 0
    %3213 = vmatpush1.bf16.msra.mxu0 0
    %3214 = vmatprep.subr.bf16.mxu0 0
    %3215 = vmatpush1.bf16.msra.mxu0 0
    %3216 = vmatprep.subr.bf16.mxu0 0
    %3217 = vmatpush1.bf16.msra.mxu0 0
    %3218 = vmatprep.subr.bf16.mxu0 0
    %3219 = vmatpush1.bf16.msra.mxu0 0
    %3220 = vmatprep.mubr.bf16.mxu0 0
    %3221 = vmatmul.mubr.bf16.gmra.mrb[0].mxu0 %v2948
    %v3222 = vpop.f32.mrb[0].mxu0
    %v3223 = vadd.f32 0.0, %v3222
    %v3224 = vpop.f32.mrb[0].mxu0
    %v3225 = vpop.f32.mrb[0].mxu0
    %v3226 = vpop.f32.mrb[0].mxu0
    %3227 = vdwg.mxu0
    %v3228 = vmul.f32 %v3223, %v3179
    %v3229 = vpack.c.bf16 %v1530, %v1247
    %v3230 = vpack.c.bf16 %v2662, %v2379
    %v3231 = vpack.c.bf16 %v2096, %v1813
    %v3232 = vpack.c.bf16 %v3228, %v2945
    %v3233 = vld [vmem:[%s6] sm:$0xf]
    %v3234 = vld [vmem:[%s6 + $0x4] sm:$0xf]
    %v3235 = vld [vmem:[%s6 + $0x8] sm:$0xf]
    %v3236 = vld [vmem:[%s6 + $0xc] sm:$0xf]
    %v3241 = vunpack.c.l.b16 %v3233
    %v3242 = vunpack.c.l.b16 %v3234
    %v3243 = vunpack.c.l.b16 %v3235
    %v3244 = vunpack.c.l.b16 %v3236
    %v3245 = vpack.c.b16 %v3242, %v3241
    %v3246 = vpack.c.b16 %v3244, %v3243
    %v3248 = vsel %vm851, %v3245, 0
    %v3251 = vsel %vm851, %v3246, 0
    %3253 = vmatprep.subr.bf16.mxu0 %v3230
    %3254 = vmatpush1.bf16.msra.mxu0 %v3229
    %3255 = vmatprep.subr.bf16.mxu0 %v3232
    %3256 = vmatpush1.bf16.msra.mxu0 %v3231
    %3257 = vmatprep.subr.bf16.mxu0 0
    %3258 = vmatpush1.bf16.msra.mxu0 0
    %3259 = vmatprep.subr.bf16.mxu0 0
    %3260 = vmatpush1.bf16.msra.mxu0 0
    %3261 = vmatprep.subr.bf16.mxu0 0
    %3262 = vmatpush1.bf16.msra.mxu0 0
    %3263 = vmatprep.subr.bf16.mxu0 0
    %3264 = vmatpush1.bf16.msra.mxu0 0
    %3265 = vmatprep.subr.bf16.mxu0 0
    %3266 = vmatpush1.bf16.msra.mxu0 0
    %3267 = vmatprep.subr.bf16.mxu0 0
    %3268 = vmatpush1.bf16.msra.mxu0 0
    %3269 = vmatprep.subr.bf16.mxu0 0
    %3270 = vmatpush1.bf16.msra.mxu0 0
    %3271 = vmatprep.subr.bf16.mxu0 0
    %3272 = vmatpush1.bf16.msra.mxu0 0
    %3273 = vmatprep.subr.bf16.mxu0 0
    %3274 = vmatpush1.bf16.msra.mxu0 0
    %3275 = vmatprep.subr.bf16.mxu0 0
    %3276 = vmatpush1.bf16.msra.mxu0 0
    %3277 = vmatprep.subr.bf16.mxu0 0
    %3278 = vmatpush1.bf16.msra.mxu0 0
    %3279 = vmatprep.subr.bf16.mxu0 0
    %3280 = vmatpush1.bf16.msra.mxu0 0
    %3281 = vmatprep.subr.bf16.mxu0 0
    %3282 = vmatpush1.bf16.msra.mxu0 0
    %3283 = vmatprep.subr.bf16.mxu0 0
    %3284 = vmatpush1.bf16.msra.mxu0 0
    %3285 = vmatprep.mubr.bf16.mxu0 0
    %3286 = vmatmul.mubr.bf16.gmra.mrb[0].mxu0 %v3248
    %v3287 = vpop.f32.mrb[0].mxu0
    %v3288 = vadd.f32 0.0, %v3287
    %v3289 = vpop.f32.mrb[0].mxu0
    %v3290 = vadd.f32 0.0, %v3289
    %v3291 = vpop.f32.mrb[0].mxu0
    %v3292 = vadd.f32 0.0, %v3291
    %v3293 = vpop.f32.mrb[0].mxu0
    %v3294 = vadd.f32 0.0, %v3293
    %3295 = vmatprep.mubr.bf16.mxu0 0
    %3296 = vmatmul.mubr.bf16.gmra.mrb[0].mxu0 %v3251
    %v3297 = vpop.f32.mrb[0].mxu0
    %v3298 = vadd.f32 0.0, %v3297
    %v3299 = vpop.f32.mrb[0].mxu0
    %v3300 = vadd.f32 0.0, %v3299
    %v3301 = vpop.f32.mrb[0].mxu0
    %v3302 = vadd.f32 0.0, %v3301
    %v3303 = vpop.f32.mrb[0].mxu0
    %v3304 = vadd.f32 0.0, %v3303
    %3305 = vdwg.mxu0
    %v3306 = vadd.f32 %v600, %v3288
    %v3307 = vadd.f32 %v601, %v3290
    %v3308 = vadd.f32 %v602, %v3292
    %v3309 = vadd.f32 %v603, %v3294
    %v3310 = vadd.f32 %v604, %v3298
    %v3311 = vadd.f32 %v605, %v3300
    %v3312 = vadd.f32 %v606, %v3302
    %v3313 = vadd.f32 %v607, %v3304
    %3314 = vset.pattern.permute.xlu0 4
    %3315 = vperm.xlu0 %3314, %v608
    %v3316 = vpop.permute.xlu0 %3315
    %3318 = vset.pattern.permute.xlu0 4
    %3319 = vperm.xlu0 %3318, %v609
    %v3320 = vpop.permute.xlu0 %3319
    %3322 = vset.pattern.permute.xlu0 4
    %3323 = vperm.xlu0 %3322, %v610
    %v3324 = vpop.permute.xlu0 %3323
    %3326 = vset.pattern.permute.xlu0 4
    %3327 = vperm.xlu0 %3326, %v611
    %v3328 = vpop.permute.xlu0 %3327
    %v3330 = vadd.f32 %v3306, %v3316
    %v3331 = vadd.f32 %v3307, %v3316
    %v3332 = vadd.f32 %v3308, %v3320
    %v3333 = vadd.f32 %v3309, %v3320
    %v3334 = vadd.f32 %v3310, %v3324
    %v3335 = vadd.f32 %v3311, %v3324
    %v3336 = vadd.f32 %v3312, %v3328
    %v3337 = vadd.f32 %v3313, %v3328
    %v3338 = vadd.f32 %v3330, %v3332
    %v3339 = vadd.f32 %v3338, %v3334
    %v3340 = vadd.f32 %v3339, %v3336
    %v3341 = vrot.slane %v3340, 4
    %v3342 = vadd.f32 %v3340, %v3341
    %v3343 = vrot.slane %v3342, 2
    %v3344 = vadd.f32 %v3342, %v3343
    %v3345 = vrot.slane %v3344, 1
    %v3346 = vadd.f32 %v3344, %v3345
    %v3347 = vadd.f32 %v3331, %v3333
    %v3348 = vadd.f32 %v3347, %v3335
    %v3349 = vadd.f32 %v3348, %v3337
    %v3350 = vrot.slane %v3349, 4
    %v3351 = vadd.f32 %v3349, %v3350
    %v3352 = vrot.slane %v3351, 2
    %v3353 = vadd.f32 %v3351, %v3352
    %v3354 = vrot.slane %v3353, 1
    %v3355 = vadd.f32 %v3353, %v3354
    %v3356 = vmul.f32 %v3346, %v630
    %v3357 = vmul.f32 %v3355, %v630
    %v3358 = vsub.f32 %v3330, %v3356
    %v3359 = vsub.f32 %v3331, %v3357
    %v3360 = vsub.f32 %v3332, %v3356
    %v3361 = vsub.f32 %v3333, %v3357
    %v3362 = vsub.f32 %v3334, %v3356
    %v3363 = vsub.f32 %v3335, %v3357
    %v3364 = vsub.f32 %v3336, %v3356
    %v3365 = vsub.f32 %v3337, %v3357
    %v3366 = vmul.f32 %v3358, %v3358
    %v3367 = vmul.f32 %v3359, %v3359
    %v3368 = vmul.f32 %v3360, %v3360
    %v3369 = vmul.f32 %v3361, %v3361
    %v3370 = vmul.f32 %v3362, %v3362
    %v3371 = vmul.f32 %v3363, %v3363
    %v3372 = vmul.f32 %v3364, %v3364
    %v3373 = vmul.f32 %v3365, %v3365
    %v3374 = vadd.f32 %v3366, %v3368
    %v3375 = vadd.f32 %v3374, %v3370
    %v3376 = vadd.f32 %v3375, %v3372
    %v3377 = vrot.slane %v3376, 4
    %v3378 = vadd.f32 %v3376, %v3377
    %v3379 = vrot.slane %v3378, 2
    %v3380 = vadd.f32 %v3378, %v3379
    %v3381 = vrot.slane %v3380, 1
    %v3382 = vadd.f32 %v3380, %v3381
    %v3383 = vadd.f32 %v3367, %v3369
    %v3384 = vadd.f32 %v3383, %v3371
    %v3385 = vadd.f32 %v3384, %v3373
    %v3386 = vrot.slane %v3385, 4
    %v3387 = vadd.f32 %v3385, %v3386
    %v3388 = vrot.slane %v3387, 2
    %v3389 = vadd.f32 %v3387, %v3388
    %v3390 = vrot.slane %v3389, 1
    %v3391 = vadd.f32 %v3389, %v3390
    %v3392 = vmul.f32 %v3382, %v630
    %v3393 = vmul.f32 %v3391, %v630
    %v3394 = vadd.f32 %v3392, 1e-05
    %v3395 = vadd.f32 %v3393, 1e-05
    %v3396 = vrsqrt.pop %v3394
    %v3397 = vrsqrt.pop %v3395
    %v3398 = vmul.f32 %v3358, %v3396
    %v3399 = vmul.f32 %v3359, %v3397
    %v3400 = vmul.f32 %v3360, %v3396
    %v3401 = vmul.f32 %v3361, %v3397
    %v3402 = vmul.f32 %v3362, %v3396
    %v3403 = vmul.f32 %v3363, %v3397
    %v3404 = vmul.f32 %v3364, %v3396
    %v3405 = vmul.f32 %v3365, %v3397
    %3406 = vset.pattern.permute.xlu0 2
    %3407 = vperm.xlu0 %3406, %v608
    %v3408 = vpop.permute.xlu0 %3407
    %3410 = vset.pattern.permute.xlu0 2
    %3411 = vperm.xlu0 %3410, %v609
    %v3412 = vpop.permute.xlu0 %3411
    %3414 = vset.pattern.permute.xlu0 2
    %3415 = vperm.xlu0 %3414, %v610
    %v3416 = vpop.permute.xlu0 %3415
    %3418 = vset.pattern.permute.xlu0 2
    %3419 = vperm.xlu0 %3418, %v611
    %v3420 = vpop.permute.xlu0 %3419
    %v3422 = vmul.f32 %v3398, %v3408
    %v3423 = vmul.f32 %v3399, %v3408
    %v3424 = vmul.f32 %v3400, %v3412
    %v3425 = vmul.f32 %v3401, %v3412
    %v3426 = vmul.f32 %v3402, %v3416
    %v3427 = vmul.f32 %v3403, %v3416
    %v3428 = vmul.f32 %v3404, %v3420
    %v3429 = vmul.f32 %v3405, %v3420
    %3430 = vset.pattern.permute.xlu0 3
    %3431 = vperm.xlu0 %3430, %v608
    %v3432 = vpop.permute.xlu0 %3431
    %3434 = vset.pattern.permute.xlu0 3
    %3435 = vperm.xlu0 %3434, %v609
    %v3436 = vpop.permute.xlu0 %3435
    %3438 = vset.pattern.permute.xlu0 3
    %3439 = vperm.xlu0 %3438, %v610
    %v3440 = vpop.permute.xlu0 %3439
    %3442 = vset.pattern.permute.xlu0 3
    %3443 = vperm.xlu0 %3442, %v611
    %v3444 = vpop.permute.xlu0 %3443
    %v3446 = vadd.f32 %v3422, %v3432
    %v3447 = vadd.f32 %v3423, %v3432
    %v3448 = vadd.f32 %v3424, %v3436
    %v3449 = vadd.f32 %v3425, %v3436
    %v3450 = vadd.f32 %v3426, %v3440
    %v3451 = vadd.f32 %v3427, %v3440
    %v3452 = vadd.f32 %v3428, %v3444
    %v3453 = vadd.f32 %v3429, %v3444
    %v3454 = vpack.c.bf16 %v3448, %v3446
    %v3455 = vpack.c.bf16 %v3449, %v3447
    %v3456 = vpack.c.bf16 %v3452, %v3450
    %v3457 = vpack.c.bf16 %v3453, %v3451
    %v3458 = vld [vmem:[%s7] sm:$0xf]
    %v3459 = vld [vmem:[%s7 + $0x4] sm:$0xf]
    %v3460 = vld [vmem:[%s7 + $0x8] sm:$0xf]
    %v3461 = vld [vmem:[%s7 + $0xc] sm:$0xf]
    %v3462 = vld [vmem:[%s7 + $0x10] sm:$0xf]
    %v3463 = vld [vmem:[%s7 + $0x14] sm:$0xf]
    %v3464 = vld [vmem:[%s7 + $0x18] sm:$0xf]
    %v3465 = vld [vmem:[%s7 + $0x1c] sm:$0xf]
    %v3466 = vld [vmem:[%s7 + $0x20] sm:$0xf]
    %v3467 = vld [vmem:[%s7 + $0x24] sm:$0xf]
    %v3468 = vld [vmem:[%s7 + $0x28] sm:$0xf]
    %v3469 = vld [vmem:[%s7 + $0x2c] sm:$0xf]
    %v3470 = vld [vmem:[%s7 + $0x30] sm:$0xf]
    %v3471 = vld [vmem:[%s7 + $0x34] sm:$0xf]
    %v3472 = vld [vmem:[%s7 + $0x38] sm:$0xf]
    %v3473 = vld [vmem:[%s7 + $0x3c] sm:$0xf]
    %v3474 = vld [vmem:[%s8] sm:$0xff]
    %v3475 = vld [vmem:[%s8 + $0x8] sm:$0xff]
    %v3476 = vld [vmem:[%s8 + $0x10] sm:$0xff]
    %v3477 = vld [vmem:[%s8 + $0x18] sm:$0xff]
    %v3478 = vld [vmem:[%s8 + $0x20] sm:$0xff]
    %v3479 = vld [vmem:[%s8 + $0x28] sm:$0xff]
    %v3480 = vld [vmem:[%s8 + $0x30] sm:$0xff]
    %v3481 = vld [vmem:[%s8 + $0x38] sm:$0xff]
    %v3482 = vld [vmem:[%s8 + $0x40] sm:$0xff]
    %v3483 = vld [vmem:[%s8 + $0x48] sm:$0xff]
    %v3484 = vld [vmem:[%s8 + $0x50] sm:$0xff]
    %v3485 = vld [vmem:[%s8 + $0x58] sm:$0xff]
    %v3486 = vld [vmem:[%s8 + $0x60] sm:$0xff]
    %v3487 = vld [vmem:[%s8 + $0x68] sm:$0xff]
    %v3488 = vld [vmem:[%s8 + $0x70] sm:$0xff]
    %v3489 = vld [vmem:[%s8 + $0x78] sm:$0xff]
    %3491 = vset.pattern.permute.xlu0 0
    %3492 = vperm.xlu0 %3491, %v3474
    %v3493 = vpop.permute.xlu0 %3492
    %3496 = vset.pattern.permute.xlu0 0
    %3497 = vperm.xlu0 %3496, %v3475
    %v3498 = vpop.permute.xlu0 %3497
    %3501 = vset.pattern.permute.xlu0 0
    %3502 = vperm.xlu0 %3501, %v3476
    %v3503 = vpop.permute.xlu0 %3502
    %3506 = vset.pattern.permute.xlu0 0
    %3507 = vperm.xlu0 %3506, %v3477
    %v3508 = vpop.permute.xlu0 %3507
    %3511 = vset.pattern.permute.xlu0 0
    %3512 = vperm.xlu0 %3511, %v3478
    %v3513 = vpop.permute.xlu0 %3512
    %3516 = vset.pattern.permute.xlu0 0
    %3517 = vperm.xlu0 %3516, %v3479
    %v3518 = vpop.permute.xlu0 %3517
    %3521 = vset.pattern.permute.xlu0 0
    %3522 = vperm.xlu0 %3521, %v3480
    %v3523 = vpop.permute.xlu0 %3522
    %3526 = vset.pattern.permute.xlu0 0
    %3527 = vperm.xlu0 %3526, %v3481
    %v3528 = vpop.permute.xlu0 %3527
    %3531 = vset.pattern.permute.xlu0 0
    %3532 = vperm.xlu0 %3531, %v3482
    %v3533 = vpop.permute.xlu0 %3532
    %3536 = vset.pattern.permute.xlu0 0
    %3537 = vperm.xlu0 %3536, %v3483
    %v3538 = vpop.permute.xlu0 %3537
    %3541 = vset.pattern.permute.xlu0 0
    %3542 = vperm.xlu0 %3541, %v3484
    %v3543 = vpop.permute.xlu0 %3542
    %3546 = vset.pattern.permute.xlu0 0
    %3547 = vperm.xlu0 %3546, %v3485
    %v3548 = vpop.permute.xlu0 %3547
    %3551 = vset.pattern.permute.xlu0 0
    %3552 = vperm.xlu0 %3551, %v3486
    %v3553 = vpop.permute.xlu0 %3552
    %3556 = vset.pattern.permute.xlu0 0
    %3557 = vperm.xlu0 %3556, %v3487
    %v3558 = vpop.permute.xlu0 %3557
    %3561 = vset.pattern.permute.xlu0 0
    %3562 = vperm.xlu0 %3561, %v3488
    %v3563 = vpop.permute.xlu0 %3562
    %3566 = vset.pattern.permute.xlu0 0
    %3567 = vperm.xlu0 %3566, %v3489
    %v3568 = vpop.permute.xlu0 %3567
    %v3586 = vunpack.c.l.b16 %v3458
    %v3587 = vunpack.c.l.b16 %v3459
    %v3588 = vunpack.c.l.b16 %v3460
    %v3589 = vunpack.c.l.b16 %v3461
    %v3590 = vunpack.c.l.b16 %v3462
    %v3591 = vunpack.c.l.b16 %v3463
    %v3592 = vunpack.c.l.b16 %v3464
    %v3593 = vunpack.c.l.b16 %v3465
    %v3594 = vunpack.c.l.b16 %v3466
    %v3595 = vunpack.c.l.b16 %v3467
    %v3596 = vunpack.c.l.b16 %v3468
    %v3597 = vunpack.c.l.b16 %v3469
    %v3598 = vunpack.c.l.b16 %v3470
    %v3599 = vunpack.c.l.b16 %v3471
    %v3600 = vunpack.c.l.b16 %v3472
    %v3601 = vunpack.c.l.b16 %v3473
    %v3602 = vpack.c.b16 %v3587, %v3586
    %v3603 = vpack.c.b16 %v3589, %v3588
    %v3604 = vpack.c.b16 %v3591, %v3590
    %v3605 = vpack.c.b16 %v3593, %v3592
    %v3606 = vpack.c.b16 %v3595, %v3594
    %v3607 = vpack.c.b16 %v3597, %v3596
    %v3608 = vpack.c.b16 %v3599, %v3598
    %v3609 = vpack.c.b16 %v3601, %v3600
    %v3611 = vsel %vm851, %v3602, 0
    %v3614 = vsel %vm851, %v3603, 0
    %v3617 = vsel %vm851, %v3604, 0
    %v3620 = vsel %vm851, %v3605, 0
    %v3623 = vsel %vm851, %v3606, 0
    %v3626 = vsel %vm851, %v3607, 0
    %v3629 = vsel %vm851, %v3608, 0
    %v3632 = vsel %vm851, %v3609, 0
    %3634 = vmatprep.subr.bf16.mxu0 %v3455
    %3635 = vmatpush1.bf16.msra.mxu0 %v3454
    %3636 = vmatprep.subr.bf16.mxu0 %v3457
    %3637 = vmatpush1.bf16.msra.mxu0 %v3456
    %3638 = vmatprep.subr.bf16.mxu0 0
    %3639 = vmatpush1.bf16.msra.mxu0 0
    %3640 = vmatprep.subr.bf16.mxu0 0
    %3641 = vmatpush1.bf16.msra.mxu0 0
    %3642 = vmatprep.subr.bf16.mxu0 0
    %3643 = vmatpush1.bf16.msra.mxu0 0
    %3644 = vmatprep.subr.bf16.mxu0 0
    %3645 = vmatpush1.bf16.msra.mxu0 0
    %3646 = vmatprep.subr.bf16.mxu0 0
    %3647 = vmatpush1.bf16.msra.mxu0 0
    %3648 = vmatprep.subr.bf16.mxu0 0
    %3649 = vmatpush1.bf16.msra.mxu0 0
    %3650 = vmatprep.subr.bf16.mxu0 0
    %3651 = vmatpush1.bf16.msra.mxu0 0
    %3652 = vmatprep.subr.bf16.mxu0 0
    %3653 = vmatpush1.bf16.msra.mxu0 0
    %3654 = vmatprep.subr.bf16.mxu0 0
    %3655 = vmatpush1.bf16.msra.mxu0 0
    %3656 = vmatprep.subr.bf16.mxu0 0
    %3657 = vmatpush1.bf16.msra.mxu0 0
    %3658 = vmatprep.subr.bf16.mxu0 0
    %3659 = vmatpush1.bf16.msra.mxu0 0
    %3660 = vmatprep.subr.bf16.mxu0 0
    %3661 = vmatpush1.bf16.msra.mxu0 0
    %3662 = vmatprep.subr.bf16.mxu0 0
    %3663 = vmatpush1.bf16.msra.mxu0 0
    %3664 = vmatprep.subr.bf16.mxu0 0
    %3665 = vmatpush1.bf16.msra.mxu0 0
    %3666 = vmatprep.mubr.bf16.mxu0 0
    %3667 = vmatmul.mubr.bf16.gmra.mrb[0].mxu0 %v3611
    %v3668 = vpop.f32.mrb[0].mxu0
    %v3669 = vadd.f32 %v3493, %v3668
    %v3670 = vpop.f32.mrb[0].mxu0
    %v3671 = vadd.f32 %v3493, %v3670
    %v3672 = vpop.f32.mrb[0].mxu0
    %v3673 = vadd.f32 %v3498, %v3672
    %v3674 = vpop.f32.mrb[0].mxu0
    %v3675 = vadd.f32 %v3498, %v3674
    %3676 = vmatprep.mubr.bf16.mxu0 0
    %3677 = vmatmul.mubr.bf16.gmra.mrb[0].mxu0 %v3614
    %v3678 = vpop.f32.mrb[0].mxu0
    %v3679 = vadd.f32 %v3503, %v3678
    %v3680 = vpop.f32.mrb[0].mxu0
    %v3681 = vadd.f32 %v3503, %v3680
    %v3682 = vpop.f32.mrb[0].mxu0
    %v3683 = vadd.f32 %v3508, %v3682
    %v3684 = vpop.f32.mrb[0].mxu0
    %v3685 = vadd.f32 %v3508, %v3684
    %3686 = vmatprep.mubr.bf16.mxu0 0
    %3687 = vmatmul.mubr.bf16.gmra.mrb[0].mxu0 %v3617
    %v3688 = vpop.f32.mrb[0].mxu0
    %v3689 = vadd.f32 %v3513, %v3688
    %v3690 = vpop.f32.mrb[0].mxu0
    %v3691 = vadd.f32 %v3513, %v3690
    %v3692 = vpop.f32.mrb[0].mxu0
    %v3693 = vadd.f32 %v3518, %v3692
    %v3694 = vpop.f32.mrb[0].mxu0
    %v3695 = vadd.f32 %v3518, %v3694
    %3696 = vmatprep.mubr.bf16.mxu0 0
    %3697 = vmatmul.mubr.bf16.gmra.mrb[0].mxu0 %v3620
    %v3698 = vpop.f32.mrb[0].mxu0
    %v3699 = vadd.f32 %v3523, %v3698
    %v3700 = vpop.f32.mrb[0].mxu0
    %v3701 = vadd.f32 %v3523, %v3700
    %v3702 = vpop.f32.mrb[0].mxu0
    %v3703 = vadd.f32 %v3528, %v3702
    %v3704 = vpop.f32.mrb[0].mxu0
    %v3705 = vadd.f32 %v3528, %v3704
    %3706 = vmatprep.mubr.bf16.mxu0 0
    %3707 = vmatmul.mubr.bf16.gmra.mrb[0].mxu0 %v3623
    %v3708 = vpop.f32.mrb[0].mxu0
    %v3709 = vadd.f32 %v3533, %v3708
    %v3710 = vpop.f32.mrb[0].mxu0
    %v3711 = vadd.f32 %v3533, %v3710
    %v3712 = vpop.f32.mrb[0].mxu0
    %v3713 = vadd.f32 %v3538, %v3712
    %v3714 = vpop.f32.mrb[0].mxu0
    %v3715 = vadd.f32 %v3538, %v3714
    %3716 = vmatprep.mubr.bf16.mxu0 0
    %3717 = vmatmul.mubr.bf16.gmra.mrb[0].mxu0 %v3626
    %v3718 = vpop.f32.mrb[0].mxu0
    %v3719 = vadd.f32 %v3543, %v3718
    %v3720 = vpop.f32.mrb[0].mxu0
    %v3721 = vadd.f32 %v3543, %v3720
    %v3722 = vpop.f32.mrb[0].mxu0
    %v3723 = vadd.f32 %v3548, %v3722
    %v3724 = vpop.f32.mrb[0].mxu0
    %v3725 = vadd.f32 %v3548, %v3724
    %3726 = vmatprep.mubr.bf16.mxu0 0
    %3727 = vmatmul.mubr.bf16.gmra.mrb[0].mxu0 %v3629
    %v3728 = vpop.f32.mrb[0].mxu0
    %v3729 = vadd.f32 %v3553, %v3728
    %v3730 = vpop.f32.mrb[0].mxu0
    %v3731 = vadd.f32 %v3553, %v3730
    %v3732 = vpop.f32.mrb[0].mxu0
    %v3733 = vadd.f32 %v3558, %v3732
    %v3734 = vpop.f32.mrb[0].mxu0
    %v3735 = vadd.f32 %v3558, %v3734
    %3736 = vmatprep.mubr.bf16.mxu0 0
    %3737 = vmatmul.mubr.bf16.gmra.mrb[0].mxu0 %v3632
    %v3738 = vpop.f32.mrb[0].mxu0
    %v3739 = vadd.f32 %v3563, %v3738
    %v3740 = vpop.f32.mrb[0].mxu0
    %v3741 = vadd.f32 %v3563, %v3740
    %v3742 = vpop.f32.mrb[0].mxu0
    %v3743 = vadd.f32 %v3568, %v3742
    %v3744 = vpop.f32.mrb[0].mxu0
    %v3745 = vadd.f32 %v3568, %v3744
    %3746 = vdwg.mxu0
    %v3747 = vmul.f32 %v3669, 0.5
    %v3748 = vmul.f32 %v3671, 0.5
    %v3749 = vmul.f32 %v3673, 0.5
    %v3750 = vmul.f32 %v3675, 0.5
    %v3751 = vmul.f32 %v3679, 0.5
    %v3752 = vmul.f32 %v3681, 0.5
    %v3753 = vmul.f32 %v3683, 0.5
    %v3754 = vmul.f32 %v3685, 0.5
    %v3755 = vmul.f32 %v3689, 0.5
    %v3756 = vmul.f32 %v3691, 0.5
    %v3757 = vmul.f32 %v3693, 0.5
    %v3758 = vmul.f32 %v3695, 0.5
    %v3759 = vmul.f32 %v3699, 0.5
    %v3760 = vmul.f32 %v3701, 0.5
    %v3761 = vmul.f32 %v3703, 0.5
    %v3762 = vmul.f32 %v3705, 0.5
    %v3763 = vmul.f32 %v3709, 0.5
    %v3764 = vmul.f32 %v3711, 0.5
    %v3765 = vmul.f32 %v3713, 0.5
    %v3766 = vmul.f32 %v3715, 0.5
    %v3767 = vmul.f32 %v3719, 0.5
    %v3768 = vmul.f32 %v3721, 0.5
    %v3769 = vmul.f32 %v3723, 0.5
    %v3770 = vmul.f32 %v3725, 0.5
    %v3771 = vmul.f32 %v3729, 0.5
    %v3772 = vmul.f32 %v3731, 0.5
    %v3773 = vmul.f32 %v3733, 0.5
    %v3774 = vmul.f32 %v3735, 0.5
    %v3775 = vmul.f32 %v3739, 0.5
    %v3776 = vmul.f32 %v3741, 0.5
    %v3777 = vmul.f32 %v3743, 0.5
    %v3778 = vmul.f32 %v3745, 0.5
    %v3779 = vmul.f32 %v3669, 0.044715
    %v3780 = vmul.f32 %v3671, 0.044715
    %v3781 = vmul.f32 %v3673, 0.044715
    %v3782 = vmul.f32 %v3675, 0.044715
    %v3783 = vmul.f32 %v3679, 0.044715
    %v3784 = vmul.f32 %v3681, 0.044715
    %v3785 = vmul.f32 %v3683, 0.044715
    %v3786 = vmul.f32 %v3685, 0.044715
    %v3787 = vmul.f32 %v3689, 0.044715
    %v3788 = vmul.f32 %v3691, 0.044715
    %v3789 = vmul.f32 %v3693, 0.044715
    %v3790 = vmul.f32 %v3695, 0.044715
    %v3791 = vmul.f32 %v3699, 0.044715
    %v3792 = vmul.f32 %v3701, 0.044715
    %v3793 = vmul.f32 %v3703, 0.044715
    %v3794 = vmul.f32 %v3705, 0.044715
    %v3795 = vmul.f32 %v3709, 0.044715
    %v3796 = vmul.f32 %v3711, 0.044715
    %v3797 = vmul.f32 %v3713, 0.044715
    %v3798 = vmul.f32 %v3715, 0.044715
    %v3799 = vmul.f32 %v3719, 0.044715
    %v3800 = vmul.f32 %v3721, 0.044715
    %v3801 = vmul.f32 %v3723, 0.044715
    %v3802 = vmul.f32 %v3725, 0.044715
    %v3803 = vmul.f32 %v3729, 0.044715
    %v3804 = vmul.f32 %v3731, 0.044715
    %v3805 = vmul.f32 %v3733, 0.044715
    %v3806 = vmul.f32 %v3735, 0.044715
    %v3807 = vmul.f32 %v3739, 0.044715
    %v3808 = vmul.f32 %v3741, 0.044715
    %v3809 = vmul.f32 %v3743, 0.044715
    %v3810 = vmul.f32 %v3745, 0.044715
    %v3811 = vmul.f32 %v3779, %v3669
    %v3812 = vmul.f32 %v3780, %v3671
    %v3813 = vmul.f32 %v3781, %v3673
    %v3814 = vmul.f32 %v3782, %v3675
    %v3815 = vmul.f32 %v3783, %v3679
    %v3816 = vmul.f32 %v3784, %v3681
    %v3817 = vmul.f32 %v3785, %v3683
    %v3818 = vmul.f32 %v3786, %v3685
    %v3819 = vmul.f32 %v3787, %v3689
    %v3820 = vmul.f32 %v3788, %v3691
    %v3821 = vmul.f32 %v3789, %v3693
    %v3822 = vmul.f32 %v3790, %v3695
    %v3823 = vmul.f32 %v3791, %v3699
    %v3824 = vmul.f32 %v3792, %v3701
    %v3825 = vmul.f32 %v3793, %v3703
    %v3826 = vmul.f32 %v3794, %v3705
    %v3827 = vmul.f32 %v3795, %v3709
    %v3828 = vmul.f32 %v3796, %v3711
    %v3829 = vmul.f32 %v3797, %v3713
    %v3830 = vmul.f32 %v3798, %v3715
    %v3831 = vmul.f32 %v3799, %v3719
    %v3832 = vmul.f32 %v3800, %v3721
    %v3833 = vmul.f32 %v3801, %v3723
    %v3834 = vmul.f32 %v3802, %v3725
    %v3835 = vmul.f32 %v3803, %v3729
    %v3836 = vmul.f32 %v3804, %v3731
    %v3837 = vmul.f32 %v3805, %v3733
    %v3838 = vmul.f32 %v3806, %v3735
    %v3839 = vmul.f32 %v3807, %v3739
    %v3840 = vmul.f32 %v3808, %v3741
    %v3841 = vmul.f32 %v3809, %v3743
    %v3842 = vmul.f32 %v3810, %v3745
    %v3843 = vmul.f32 %v3811, %v3669
    %v3844 = vmul.f32 %v3812, %v3671
    %v3845 = vmul.f32 %v3813, %v3673
    %v3846 = vmul.f32 %v3814, %v3675
    %v3847 = vmul.f32 %v3815, %v3679
    %v3848 = vmul.f32 %v3816, %v3681
    %v3849 = vmul.f32 %v3817, %v3683
    %v3850 = vmul.f32 %v3818, %v3685
    %v3851 = vmul.f32 %v3819, %v3689
    %v3852 = vmul.f32 %v3820, %v3691
    %v3853 = vmul.f32 %v3821, %v3693
    %v3854 = vmul.f32 %v3822, %v3695
    %v3855 = vmul.f32 %v3823, %v3699
    %v3856 = vmul.f32 %v3824, %v3701
    %v3857 = vmul.f32 %v3825, %v3703
    %v3858 = vmul.f32 %v3826, %v3705
    %v3859 = vmul.f32 %v3827, %v3709
    %v3860 = vmul.f32 %v3828, %v3711
    %v3861 = vmul.f32 %v3829, %v3713
    %v3862 = vmul.f32 %v3830, %v3715
    %v3863 = vmul.f32 %v3831, %v3719
    %v3864 = vmul.f32 %v3832, %v3721
    %v3865 = vmul.f32 %v3833, %v3723
    %v3866 = vmul.f32 %v3834, %v3725
    %v3867 = vmul.f32 %v3835, %v3729
    %v3868 = vmul.f32 %v3836, %v3731
    %v3869 = vmul.f32 %v3837, %v3733
    %v3870 = vmul.f32 %v3838, %v3735
    %v3871 = vmul.f32 %v3839, %v3739
    %v3872 = vmul.f32 %v3840, %v3741
    %v3873 = vmul.f32 %v3841, %v3743
    %v3874 = vmul.f32 %v3842, %v3745
    %v3875 = vadd.f32 %v3669, %v3843
    %v3876 = vadd.f32 %v3671, %v3844
    %v3877 = vadd.f32 %v3673, %v3845
    %v3878 = vadd.f32 %v3675, %v3846
    %v3879 = vadd.f32 %v3679, %v3847
    %v3880 = vadd.f32 %v3681, %v3848
    %v3881 = vadd.f32 %v3683, %v3849
    %v3882 = vadd.f32 %v3685, %v3850
    %v3883 = vadd.f32 %v3689, %v3851
    %v3884 = vadd.f32 %v3691, %v3852
    %v3885 = vadd.f32 %v3693, %v3853
    %v3886 = vadd.f32 %v3695, %v3854
    %v3887 = vadd.f32 %v3699, %v3855
    %v3888 = vadd.f32 %v3701, %v3856
    %v3889 = vadd.f32 %v3703, %v3857
    %v3890 = vadd.f32 %v3705, %v3858
    %v3891 = vadd.f32 %v3709, %v3859
    %v3892 = vadd.f32 %v3711, %v3860
    %v3893 = vadd.f32 %v3713, %v3861
    %v3894 = vadd.f32 %v3715, %v3862
    %v3895 = vadd.f32 %v3719, %v3863
    %v3896 = vadd.f32 %v3721, %v3864
    %v3897 = vadd.f32 %v3723, %v3865
    %v3898 = vadd.f32 %v3725, %v3866
    %v3899 = vadd.f32 %v3729, %v3867
    %v3900 = vadd.f32 %v3731, %v3868
    %v3901 = vadd.f32 %v3733, %v3869
    %v3902 = vadd.f32 %v3735, %v3870
    %v3903 = vadd.f32 %v3739, %v3871
    %v3904 = vadd.f32 %v3741, %v3872
    %v3905 = vadd.f32 %v3743, %v3873
    %v3906 = vadd.f32 %v3745, %v3874
    %v3907 = vmul.f32 %v3875, 0.7978846
    %v3908 = vmul.f32 %v3876, 0.7978846
    %v3909 = vmul.f32 %v3877, 0.7978846
    %v3910 = vmul.f32 %v3878, 0.7978846
    %v3911 = vmul.f32 %v3879, 0.7978846
    %v3912 = vmul.f32 %v3880, 0.7978846
    %v3913 = vmul.f32 %v3881, 0.7978846
    %v3914 = vmul.f32 %v3882, 0.7978846
    %v3915 = vmul.f32 %v3883, 0.7978846
    %v3916 = vmul.f32 %v3884, 0.7978846
    %v3917 = vmul.f32 %v3885, 0.7978846
    %v3918 = vmul.f32 %v3886, 0.7978846
    %v3919 = vmul.f32 %v3887, 0.7978846
    %v3920 = vmul.f32 %v3888, 0.7978846
    %v3921 = vmul.f32 %v3889, 0.7978846
    %v3922 = vmul.f32 %v3890, 0.7978846
    %v3923 = vmul.f32 %v3891, 0.7978846
    %v3924 = vmul.f32 %v3892, 0.7978846
    %v3925 = vmul.f32 %v3893, 0.7978846
    %v3926 = vmul.f32 %v3894, 0.7978846
    %v3927 = vmul.f32 %v3895, 0.7978846
    %v3928 = vmul.f32 %v3896, 0.7978846
    %v3929 = vmul.f32 %v3897, 0.7978846
    %v3930 = vmul.f32 %v3898, 0.7978846
    %v3931 = vmul.f32 %v3899, 0.7978846
    %v3932 = vmul.f32 %v3900, 0.7978846
    %v3933 = vmul.f32 %v3901, 0.7978846
    %v3934 = vmul.f32 %v3902, 0.7978846
    %v3935 = vmul.f32 %v3903, 0.7978846
    %v3936 = vmul.f32 %v3904, 0.7978846
    %v3937 = vmul.f32 %v3905, 0.7978846
    %v3938 = vmul.f32 %v3906, 0.7978846
    %v3939 = vtanh.pop %v3907
    %v3940 = vtanh.pop %v3908
    %v3941 = vtanh.pop %v3909
    %v3942 = vtanh.pop %v3910
    %v3943 = vtanh.pop %v3911
    %v3944 = vtanh.pop %v3912
    %v3945 = vtanh.pop %v3913
    %v3946 = vtanh.pop %v3914
    %v3947 = vtanh.pop %v3915
    %v3948 = vtanh.pop %v3916
    %v3949 = vtanh.pop %v3917
    %v3950 = vtanh.pop %v3918
    %v3951 = vtanh.pop %v3919
    %v3952 = vtanh.pop %v3920
    %v3953 = vtanh.pop %v3921
    %v3954 = vtanh.pop %v3922
    %v3955 = vtanh.pop %v3923
    %v3956 = vtanh.pop %v3924
    %v3957 = vtanh.pop %v3925
    %v3958 = vtanh.pop %v3926
    %v3959 = vtanh.pop %v3927
    %v3960 = vtanh.pop %v3928
    %v3961 = vtanh.pop %v3929
    %v3962 = vtanh.pop %v3930
    %v3963 = vtanh.pop %v3931
    %v3964 = vtanh.pop %v3932
    %v3965 = vtanh.pop %v3933
    %v3966 = vtanh.pop %v3934
    %v3967 = vtanh.pop %v3935
    %v3968 = vtanh.pop %v3936
    %v3969 = vtanh.pop %v3937
    %v3970 = vtanh.pop %v3938
    %v3971 = vadd.f32 %v3939, 1.0
    %v3972 = vadd.f32 %v3940, 1.0
    %v3973 = vadd.f32 %v3941, 1.0
    %v3974 = vadd.f32 %v3942, 1.0
    %v3975 = vadd.f32 %v3943, 1.0
    %v3976 = vadd.f32 %v3944, 1.0
    %v3977 = vadd.f32 %v3945, 1.0
    %v3978 = vadd.f32 %v3946, 1.0
    %v3979 = vadd.f32 %v3947, 1.0
    %v3980 = vadd.f32 %v3948, 1.0
    %v3981 = vadd.f32 %v3949, 1.0
    %v3982 = vadd.f32 %v3950, 1.0
    %v3983 = vadd.f32 %v3951, 1.0
    %v3984 = vadd.f32 %v3952, 1.0
    %v3985 = vadd.f32 %v3953, 1.0
    %v3986 = vadd.f32 %v3954, 1.0
    %v3987 = vadd.f32 %v3955, 1.0
    %v3988 = vadd.f32 %v3956, 1.0
    %v3989 = vadd.f32 %v3957, 1.0
    %v3990 = vadd.f32 %v3958, 1.0
    %v3991 = vadd.f32 %v3959, 1.0
    %v3992 = vadd.f32 %v3960, 1.0
    %v3993 = vadd.f32 %v3961, 1.0
    %v3994 = vadd.f32 %v3962, 1.0
    %v3995 = vadd.f32 %v3963, 1.0
    %v3996 = vadd.f32 %v3964, 1.0
    %v3997 = vadd.f32 %v3965, 1.0
    %v3998 = vadd.f32 %v3966, 1.0
    %v3999 = vadd.f32 %v3967, 1.0
    %v4000 = vadd.f32 %v3968, 1.0
    %v4001 = vadd.f32 %v3969, 1.0
    %v4002 = vadd.f32 %v3970, 1.0
    %v4003 = vmul.f32 %v3747, %v3971
    %v4004 = vmul.f32 %v3748, %v3972
    %v4005 = vmul.f32 %v3749, %v3973
    %v4006 = vmul.f32 %v3750, %v3974
    %v4007 = vmul.f32 %v3751, %v3975
    %v4008 = vmul.f32 %v3752, %v3976
    %v4009 = vmul.f32 %v3753, %v3977
    %v4010 = vmul.f32 %v3754, %v3978
    %v4011 = vmul.f32 %v3755, %v3979
    %v4012 = vmul.f32 %v3756, %v3980
    %v4013 = vmul.f32 %v3757, %v3981
    %v4014 = vmul.f32 %v3758, %v3982
    %v4015 = vmul.f32 %v3759, %v3983
    %v4016 = vmul.f32 %v3760, %v3984
    %v4017 = vmul.f32 %v3761, %v3985
    %v4018 = vmul.f32 %v3762, %v3986
    %v4019 = vmul.f32 %v3763, %v3987
    %v4020 = vmul.f32 %v3764, %v3988
    %v4021 = vmul.f32 %v3765, %v3989
    %v4022 = vmul.f32 %v3766, %v3990
    %v4023 = vmul.f32 %v3767, %v3991
    %v4024 = vmul.f32 %v3768, %v3992
    %v4025 = vmul.f32 %v3769, %v3993
    %v4026 = vmul.f32 %v3770, %v3994
    %v4027 = vmul.f32 %v3771, %v3995
    %v4028 = vmul.f32 %v3772, %v3996
    %v4029 = vmul.f32 %v3773, %v3997
    %v4030 = vmul.f32 %v3774, %v3998
    %v4031 = vmul.f32 %v3775, %v3999
    %v4032 = vmul.f32 %v3776, %v4000
    %v4033 = vmul.f32 %v3777, %v4001
    %v4034 = vmul.f32 %v3778, %v4002
    %v4035 = vpack.c.bf16 %v4005, %v4003
    %v4036 = vpack.c.bf16 %v4006, %v4004
    %v4037 = vpack.c.bf16 %v4009, %v4007
    %v4038 = vpack.c.bf16 %v4010, %v4008
    %v4039 = vpack.c.bf16 %v4013, %v4011
    %v4040 = vpack.c.bf16 %v4014, %v4012
    %v4041 = vpack.c.bf16 %v4017, %v4015
    %v4042 = vpack.c.bf16 %v4018, %v4016
    %v4043 = vpack.c.bf16 %v4021, %v4019
    %v4044 = vpack.c.bf16 %v4022, %v4020
    %v4045 = vpack.c.bf16 %v4025, %v4023
    %v4046 = vpack.c.bf16 %v4026, %v4024
    %v4047 = vpack.c.bf16 %v4029, %v4027
    %v4048 = vpack.c.bf16 %v4030, %v4028
    %v4049 = vpack.c.bf16 %v4033, %v4031
    %v4050 = vpack.c.bf16 %v4034, %v4032
    %v4051 = vld [vmem:[%s9] sm:$0xf]
    %v4052 = vld [vmem:[%s9 + $0x4] sm:$0xf]
    %v4053 = vld [vmem:[%s9 + $0x8] sm:$0xf]
    %v4054 = vld [vmem:[%s9 + $0xc] sm:$0xf]
    %v4059 = vunpack.c.l.b16 %v4051
    %v4060 = vunpack.c.l.b16 %v4052
    %v4061 = vunpack.c.l.b16 %v4053
    %v4062 = vunpack.c.l.b16 %v4054
    %v4063 = vpack.c.b16 %v4060, %v4059
    %v4064 = vpack.c.b16 %v4062, %v4061
    %4067 = vmatprep.subr.bf16.mxu0 %v4036
    %4068 = vmatpush1.bf16.msra.mxu0 %v4035
    %4069 = vmatprep.subr.bf16.mxu0 %v4038
    %4070 = vmatpush1.bf16.msra.mxu0 %v4037
    %4071 = vmatprep.subr.bf16.mxu0 %v4040
    %4072 = vmatpush1.bf16.msra.mxu0 %v4039
    %4073 = vmatprep.subr.bf16.mxu0 %v4042
    %4074 = vmatpush1.bf16.msra.mxu0 %v4041
    %4075 = vmatprep.subr.bf16.mxu0 %v4044
    %4076 = vmatpush1.bf16.msra.mxu0 %v4043
    %4077 = vmatprep.subr.bf16.mxu0 %v4046
    %4078 = vmatpush1.bf16.msra.mxu0 %v4045
    %4079 = vmatprep.subr.bf16.mxu0 %v4048
    %4080 = vmatpush1.bf16.msra.mxu0 %v4047
    %4081 = vmatprep.subr.bf16.mxu0 %v4050
    %4082 = vmatpush1.bf16.msra.mxu0 %v4049
    %4083 = vmatprep.subr.bf16.mxu0 0
    %4084 = vmatpush1.bf16.msra.mxu0 0
    %4085 = vmatprep.subr.bf16.mxu0 0
    %4086 = vmatpush1.bf16.msra.mxu0 0
    %4087 = vmatprep.subr.bf16.mxu0 0
    %4088 = vmatpush1.bf16.msra.mxu0 0
    %4089 = vmatprep.subr.bf16.mxu0 0
    %4090 = vmatpush1.bf16.msra.mxu0 0
    %4091 = vmatprep.subr.bf16.mxu0 0
    %4092 = vmatpush1.bf16.msra.mxu0 0
    %4093 = vmatprep.subr.bf16.mxu0 0
    %4094 = vmatpush1.bf16.msra.mxu0 0
    %4095 = vmatprep.subr.bf16.mxu0 0
    %4096 = vmatpush1.bf16.msra.mxu0 0
    %4097 = vmatprep.subr.bf16.mxu0 0
    %4098 = vmatpush1.bf16.msra.mxu0 0
    %4099 = vmatprep.mubr.bf16.mxu0 0
    %4100 = vmatmul.mubr.bf16.gmra.mrb[0].mxu0 %v4063
    %v4101 = vpop.f32.mrb[0].mxu0
    %v4102 = vadd.f32 0.0, %v4101
    %v4103 = vpop.f32.mrb[0].mxu0
    %v4104 = vadd.f32 0.0, %v4103
    %v4105 = vpop.f32.mrb[0].mxu0
    %v4106 = vadd.f32 0.0, %v4105
    %v4107 = vpop.f32.mrb[0].mxu0
    %v4108 = vadd.f32 0.0, %v4107
    %4109 = vmatprep.mubr.bf16.mxu0 0
    %4110 = vmatmul.mubr.bf16.gmra.mrb[0].mxu0 %v4064
    %v4111 = vpop.f32.mrb[0].mxu0
    %v4112 = vadd.f32 0.0, %v4111
    %v4113 = vpop.f32.mrb[0].mxu0
    %v4114 = vadd.f32 0.0, %v4113
    %v4115 = vpop.f32.mrb[0].mxu0
    %v4116 = vadd.f32 0.0, %v4115
    %v4117 = vpop.f32.mrb[0].mxu0
    %v4118 = vadd.f32 0.0, %v4117
    %4119 = vdwg.mxu0
    %v4120 = vadd.f32 %v3330, %v4102
    %v4121 = vadd.f32 %v3331, %v4104
    %v4122 = vadd.f32 %v3332, %v4106
    %v4123 = vadd.f32 %v3333, %v4108
    %v4124 = vadd.f32 %v3334, %v4112
    %v4125 = vadd.f32 %v3335, %v4114
    %v4126 = vadd.f32 %v3336, %v4116
    %v4127 = vadd.f32 %v3337, %v4118
    %4128 = vset.pattern.permute.xlu0 5
    %4129 = vperm.xlu0 %4128, %v608
    %v4130 = vpop.permute.xlu0 %4129
    %4132 = vset.pattern.permute.xlu0 5
    %4133 = vperm.xlu0 %4132, %v609
    %v4134 = vpop.permute.xlu0 %4133
    %4136 = vset.pattern.permute.xlu0 5
    %4137 = vperm.xlu0 %4136, %v610
    %v4138 = vpop.permute.xlu0 %4137
    %4140 = vset.pattern.permute.xlu0 5
    %4141 = vperm.xlu0 %4140, %v611
    %v4142 = vpop.permute.xlu0 %4141
    %v4144 = vadd.f32 %v4120, %v4130
    %v4145 = vadd.f32 %v4121, %v4130
    %v4146 = vadd.f32 %v4122, %v4134
    %v4147 = vadd.f32 %v4123, %v4134
    %v4148 = vadd.f32 %v4124, %v4138
    %v4149 = vadd.f32 %v4125, %v4138
    %v4150 = vadd.f32 %v4126, %v4142
    %v4151 = vadd.f32 %v4127, %v4142
    %s4152 = scalar_lea.vmem %s10, 32
    %v4153 = vld [vmem:[%s4152] sm:$0xff]
    %v4154 = vld [vmem:[%s4152 + $0x8] sm:$0xff]
    %v4155 = vld [vmem:[%s4152 + $0x10] sm:$0xff]
    %v4156 = vld [vmem:[%s4152 + $0x18] sm:$0xff]
    %v4157 = vadd.f32 %v4144, %v4146
    %v4158 = vadd.f32 %v4157, %v4148
    %v4159 = vadd.f32 %v4158, %v4150
    %v4160 = vrot.slane %v4159, 4
    %v4161 = vadd.f32 %v4159, %v4160
    %v4162 = vrot.slane %v4161, 2
    %v4163 = vadd.f32 %v4161, %v4162
    %v4164 = vrot.slane %v4163, 1
    %v4165 = vadd.f32 %v4163, %v4164
    %v4166 = vadd.f32 %v4145, %v4147
    %v4167 = vadd.f32 %v4166, %v4149
    %v4168 = vadd.f32 %v4167, %v4151
    %v4169 = vrot.slane %v4168, 4
    %v4170 = vadd.f32 %v4168, %v4169
    %v4171 = vrot.slane %v4170, 2
    %v4172 = vadd.f32 %v4170, %v4171
    %v4173 = vrot.slane %v4172, 1
    %v4174 = vadd.f32 %v4172, %v4173
    %v4175 = vmul.f32 %v4165, %v630
    %v4176 = vmul.f32 %v4174, %v630
    %v4177 = vsub.f32 %v4144, %v4175
    %v4178 = vsub.f32 %v4145, %v4176
    %v4179 = vsub.f32 %v4146, %v4175
    %v4180 = vsub.f32 %v4147, %v4176
    %v4181 = vsub.f32 %v4148, %v4175
    %v4182 = vsub.f32 %v4149, %v4176
    %v4183 = vsub.f32 %v4150, %v4175
    %v4184 = vsub.f32 %v4151, %v4176
    %v4185 = vmul.f32 %v4177, %v4177
    %v4186 = vmul.f32 %v4178, %v4178
    %v4187 = vmul.f32 %v4179, %v4179
    %v4188 = vmul.f32 %v4180, %v4180
    %v4189 = vmul.f32 %v4181, %v4181
    %v4190 = vmul.f32 %v4182, %v4182
    %v4191 = vmul.f32 %v4183, %v4183
    %v4192 = vmul.f32 %v4184, %v4184
    %v4193 = vadd.f32 %v4185, %v4187
    %v4194 = vadd.f32 %v4193, %v4189
    %v4195 = vadd.f32 %v4194, %v4191
    %v4196 = vrot.slane %v4195, 4
    %v4197 = vadd.f32 %v4195, %v4196
    %v4198 = vrot.slane %v4197, 2
    %v4199 = vadd.f32 %v4197, %v4198
    %v4200 = vrot.slane %v4199, 1
    %v4201 = vadd.f32 %v4199, %v4200
    %v4202 = vadd.f32 %v4186, %v4188
    %v4203 = vadd.f32 %v4202, %v4190
    %v4204 = vadd.f32 %v4203, %v4192
    %v4205 = vrot.slane %v4204, 4
    %v4206 = vadd.f32 %v4204, %v4205
    %v4207 = vrot.slane %v4206, 2
    %v4208 = vadd.f32 %v4206, %v4207
    %v4209 = vrot.slane %v4208, 1
    %v4210 = vadd.f32 %v4208, %v4209
    %v4211 = vmul.f32 %v4201, %v630
    %v4212 = vmul.f32 %v4210, %v630
    %v4213 = vadd.f32 %v4211, 1e-05
    %v4214 = vadd.f32 %v4212, 1e-05
    %v4215 = vrsqrt.pop %v4213
    %v4216 = vrsqrt.pop %v4214
    %v4217 = vmul.f32 %v4177, %v4215
    %v4218 = vmul.f32 %v4178, %v4216
    %v4219 = vmul.f32 %v4179, %v4215
    %v4220 = vmul.f32 %v4180, %v4216
    %v4221 = vmul.f32 %v4181, %v4215
    %v4222 = vmul.f32 %v4182, %v4216
    %v4223 = vmul.f32 %v4183, %v4215
    %v4224 = vmul.f32 %v4184, %v4216
    %4226 = vset.pattern.permute.xlu0 0
    %4227 = vperm.xlu0 %4226, %v4153
    %v4228 = vpop.permute.xlu0 %4227
    %4231 = vset.pattern.permute.xlu0 0
    %4232 = vperm.xlu0 %4231, %v4154
    %v4233 = vpop.permute.xlu0 %4232
    %4236 = vset.pattern.permute.xlu0 0
    %4237 = vperm.xlu0 %4236, %v4155
    %v4238 = vpop.permute.xlu0 %4237
    %4241 = vset.pattern.permute.xlu0 0
    %4242 = vperm.xlu0 %4241, %v4156
    %v4243 = vpop.permute.xlu0 %4242
    %v4245 = vmul.f32 %v4217, %v4228
    %v4246 = vmul.f32 %v4218, %v4228
    %v4247 = vmul.f32 %v4219, %v4233
    %v4248 = vmul.f32 %v4220, %v4233
    %v4249 = vmul.f32 %v4221, %v4238
    %v4250 = vmul.f32 %v4222, %v4238
    %v4251 = vmul.f32 %v4223, %v4243
    %v4252 = vmul.f32 %v4224, %v4243
    %4253 = vset.pattern.permute.xlu0 1
    %4254 = vperm.xlu0 %4253, %v4153
    %v4255 = vpop.permute.xlu0 %4254
    %4257 = vset.pattern.permute.xlu0 1
    %4258 = vperm.xlu0 %4257, %v4154
    %v4259 = vpop.permute.xlu0 %4258
    %4261 = vset.pattern.permute.xlu0 1
    %4262 = vperm.xlu0 %4261, %v4155
    %v4263 = vpop.permute.xlu0 %4262
    %4265 = vset.pattern.permute.xlu0 1
    %4266 = vperm.xlu0 %4265, %v4156
    %v4267 = vpop.permute.xlu0 %4266
    %v4269 = vadd.f32 %v4245, %v4255
    %v4270 = vadd.f32 %v4246, %v4255
    %v4271 = vadd.f32 %v4247, %v4259
    %v4272 = vadd.f32 %v4248, %v4259
    %v4273 = vadd.f32 %v4249, %v4263
    %v4274 = vadd.f32 %v4250, %v4263
    %v4275 = vadd.f32 %v4251, %v4267
    %v4276 = vadd.f32 %v4252, %v4267
    %v4277 = vpack.c.bf16 %v4271, %v4269
    %v4278 = vpack.c.bf16 %v4272, %v4270
    %v4279 = vpack.c.bf16 %v4275, %v4273
    %v4280 = vpack.c.bf16 %v4276, %v4274
    %s4281 = scalar_lea.vmem %s4, 48
    %v4282 = vld [vmem:[%s4281] sm:$0xf]
    %v4283 = vld [vmem:[%s4281 + $0x4] sm:$0xf]
    %v4284 = vld [vmem:[%s4281 + $0x8] sm:$0xf]
    %v4285 = vld [vmem:[%s4281 + $0xc] sm:$0xf]
    %v4286 = vld [vmem:[%s4281 + $0x10] sm:$0xf]
    %v4287 = vld [vmem:[%s4281 + $0x14] sm:$0xf]
    %v4288 = vld [vmem:[%s4281 + $0x18] sm:$0xf]
    %v4289 = vld [vmem:[%s4281 + $0x1c] sm:$0xf]
    %v4290 = vld [vmem:[%s4281 + $0x20] sm:$0xf]
    %v4291 = vld [vmem:[%s4281 + $0x24] sm:$0xf]
    %v4292 = vld [vmem:[%s4281 + $0x28] sm:$0xf]
    %v4293 = vld [vmem:[%s4281 + $0x2c] sm:$0xf]
    %s4294 = scalar_lea.vmem %s5, 96
    %v4295 = vld [vmem:[%s4294] sm:$0xff]
    %v4296 = vld [vmem:[%s4294 + $0x8] sm:$0xff]
    %v4297 = vld [vmem:[%s4294 + $0x10] sm:$0xff]
    %v4298 = vld [vmem:[%s4294 + $0x18] sm:$0xff]
    %v4299 = vld [vmem:[%s4294 + $0x20] sm:$0xff]
    %v4300 = vld [vmem:[%s4294 + $0x28] sm:$0xff]
    %v4301 = vld [vmem:[%s4294 + $0x30] sm:$0xff]
    %v4302 = vld [vmem:[%s4294 + $0x38] sm:$0xff]
    %v4303 = vld [vmem:[%s4294 + $0x40] sm:$0xff]
    %v4304 = vld [vmem:[%s4294 + $0x48] sm:$0xff]
    %v4305 = vld [vmem:[%s4294 + $0x50] sm:$0xff]
    %v4306 = vld [vmem:[%s4294 + $0x58] sm:$0xff]
    %4308 = vset.pattern.permute.xlu0 0
    %4309 = vperm.xlu0 %4308, %v4295
    %v4310 = vpop.permute.xlu0 %4309
    %4313 = vset.pattern.permute.xlu0 0
    %4314 = vperm.xlu0 %4313, %v4296
    %v4315 = vpop.permute.xlu0 %4314
    %4318 = vset.pattern.permute.xlu0 0
    %4319 = vperm.xlu0 %4318, %v4297
    %v4320 = vpop.permute.xlu0 %4319
    %4323 = vset.pattern.permute.xlu0 0
    %4324 = vperm.xlu0 %4323, %v4298
    %v4325 = vpop.permute.xlu0 %4324
    %4328 = vset.pattern.permute.xlu0 0
    %4329 = vperm.xlu0 %4328, %v4299
    %v4330 = vpop.permute.xlu0 %4329
    %4333 = vset.pattern.permute.xlu0 0
    %4334 = vperm.xlu0 %4333, %v4300
    %v4335 = vpop.permute.xlu0 %4334
    %4338 = vset.pattern.permute.xlu0 0
    %4339 = vperm.xlu0 %4338, %v4301
    %v4340 = vpop.permute.xlu0 %4339
    %4343 = vset.pattern.permute.xlu0 0
    %4344 = vperm.xlu0 %4343, %v4302
    %v4345 = vpop.permute.xlu0 %4344
    %4348 = vset.pattern.permute.xlu0 0
    %4349 = vperm.xlu0 %4348, %v4303
    %v4350 = vpop.permute.xlu0 %4349
    %4353 = vset.pattern.permute.xlu0 0
    %4354 = vperm.xlu0 %4353, %v4304
    %v4355 = vpop.permute.xlu0 %4354
    %4358 = vset.pattern.permute.xlu0 0
    %4359 = vperm.xlu0 %4358, %v4305
    %v4360 = vpop.permute.xlu0 %4359
    %4363 = vset.pattern.permute.xlu0 0
    %4364 = vperm.xlu0 %4363, %v4306
    %v4365 = vpop.permute.xlu0 %4364
    %v4379 = vunpack.c.l.b16 %v4282
    %v4380 = vunpack.c.l.b16 %v4283
    %v4381 = vunpack.c.l.b16 %v4284
    %v4382 = vunpack.c.l.b16 %v4285
    %v4383 = vunpack.c.l.b16 %v4286
    %v4384 = vunpack.c.l.b16 %v4287
    %v4385 = vunpack.c.l.b16 %v4288
    %v4386 = vunpack.c.l.b16 %v4289
    %v4387 = vunpack.c.l.b16 %v4290
    %v4388 = vunpack.c.l.b16 %v4291
    %v4389 = vunpack.c.l.b16 %v4292
    %v4390 = vunpack.c.l.b16 %v4293
    %v4391 = vpack.c.b16 %v4380, %v4379
    %v4392 = vpack.c.b16 %v4382, %v4381
    %v4393 = vpack.c.b16 %v4384, %v4383
    %v4394 = vpack.c.b16 %v4386, %v4385
    %v4395 = vpack.c.b16 %v4388, %v4387
    %v4396 = vpack.c.b16 %v4390, %v4389
    %v4398 = vsel %vm851, %v4391, 0
    %v4401 = vsel %vm851, %v4392, 0
    %v4404 = vsel %vm851, %v4393, 0
    %v4407 = vsel %vm851, %v4394, 0
    %v4410 = vsel %vm851, %v4395, 0
    %v4413 = vsel %vm851, %v4396, 0
    %4415 = vmatprep.subr.bf16.mxu0 %v4278
    %4416 = vmatpush1.bf16.msra.mxu0 %v4277
    %4417 = vmatprep.subr.bf16.mxu0 %v4280
    %4418 = vmatpush1.bf16.msra.mxu0 %v4279
    %4419 = vmatprep.subr.bf16.mxu0 0
    %4420 = vmatpush1.bf16.msra.mxu0 0
    %4421 = vmatprep.subr.bf16.mxu0 0
    %4422 = vmatpush1.bf16.msra.mxu0 0
    %4423 = vmatprep.subr.bf16.mxu0 0
    %4424 = vmatpush1.bf16.msra.mxu0 0
    %4425 = vmatprep.subr.bf16.mxu0 0
    %4426 = vmatpush1.bf16.msra.mxu0 0
    %4427 = vmatprep.subr.bf16.mxu0 0
    %4428 = vmatpush1.bf16.msra.mxu0 0
    %4429 = vmatprep.subr.bf16.mxu0 0
    %4430 = vmatpush1.bf16.msra.mxu0 0
    %4431 = vmatprep.subr.bf16.mxu0 0
    %4432 = vmatpush1.bf16.msra.mxu0 0
    %4433 = vmatprep.subr.bf16.mxu0 0
    %4434 = vmatpush1.bf16.msra.mxu0 0
    %4435 = vmatprep.subr.bf16.mxu0 0
    %4436 = vmatpush1.bf16.msra.mxu0 0
    %4437 = vmatprep.subr.bf16.mxu0 0
    %4438 = vmatpush1.bf16.msra.mxu0 0
    %4439 = vmatprep.subr.bf16.mxu0 0
    %4440 = vmatpush1.bf16.msra.mxu0 0
    %4441 = vmatprep.subr.bf16.mxu0 0
    %4442 = vmatpush1.bf16.msra.mxu0 0
    %4443 = vmatprep.subr.bf16.mxu0 0
    %4444 = vmatpush1.bf16.msra.mxu0 0
    %4445 = vmatprep.subr.bf16.mxu0 0
    %4446 = vmatpush1.bf16.msra.mxu0 0
    %4447 = vmatprep.mubr.bf16.mxu0 0
    %4448 = vmatmul.mubr.bf16.gmra.mrb[0].mxu0 %v4398
    %v4449 = vpop.f32.mrb[0].mxu0
    %v4450 = vadd.f32 %v4310, %v4449
    %v4451 = vpop.f32.mrb[0].mxu0
    %v4452 = vadd.f32 %v4310, %v4451
    %v4453 = vpop.f32.mrb[0].mxu0
    %v4454 = vadd.f32 %v4315, %v4453
    %v4455 = vpop.f32.mrb[0].mxu0
    %v4456 = vadd.f32 %v4315, %v4455
    %4457 = vmatprep.mubr.bf16.mxu0 0
    %4458 = vmatmul.mubr.bf16.gmra.mrb[0].mxu0 %v4401
    %v4459 = vpop.f32.mrb[0].mxu0
    %v4460 = vadd.f32 %v4320, %v4459
    %v4461 = vpop.f32.mrb[0].mxu0
    %v4462 = vadd.f32 %v4320, %v4461
    %v4463 = vpop.f32.mrb[0].mxu0
    %v4464 = vadd.f32 %v4325, %v4463
    %v4465 = vpop.f32.mrb[0].mxu0
    %v4466 = vadd.f32 %v4325, %v4465
    %4467 = vmatprep.mubr.bf16.mxu0 0
    %4468 = vmatmul.mubr.bf16.gmra.mrb[0].mxu0 %v4404
    %v4469 = vpop.f32.mrb[0].mxu0
    %v4470 = vadd.f32 %v4330, %v4469
    %v4471 = vpop.f32.mrb[0].mxu0
    %v4472 = vadd.f32 %v4330, %v4471
    %v4473 = vpop.f32.mrb[0].mxu0
    %v4474 = vadd.f32 %v4335, %v4473
    %v4475 = vpop.f32.mrb[0].mxu0
    %v4476 = vadd.f32 %v4335, %v4475
    %4477 = vmatprep.mubr.bf16.mxu0 0
    %4478 = vmatmul.mubr.bf16.gmra.mrb[0].mxu0 %v4407
    %v4479 = vpop.f32.mrb[0].mxu0
    %v4480 = vadd.f32 %v4340, %v4479
    %v4481 = vpop.f32.mrb[0].mxu0
    %v4482 = vadd.f32 %v4340, %v4481
    %v4483 = vpop.f32.mrb[0].mxu0
    %v4484 = vadd.f32 %v4345, %v4483
    %v4485 = vpop.f32.mrb[0].mxu0
    %v4486 = vadd.f32 %v4345, %v4485
    %4487 = vmatprep.mubr.bf16.mxu0 0
    %4488 = vmatmul.mubr.bf16.gmra.mrb[0].mxu0 %v4410
    %v4489 = vpop.f32.mrb[0].mxu0
    %v4490 = vadd.f32 %v4350, %v4489
    %v4491 = vpop.f32.mrb[0].mxu0
    %v4492 = vadd.f32 %v4350, %v4491
    %v4493 = vpop.f32.mrb[0].mxu0
    %v4494 = vadd.f32 %v4355, %v4493
    %v4495 = vpop.f32.mrb[0].mxu0
    %v4496 = vadd.f32 %v4355, %v4495
    %4497 = vmatprep.mubr.bf16.mxu0 0
    %4498 = vmatmul.mubr.bf16.gmra.mrb[0].mxu0 %v4413
    %v4499 = vpop.f32.mrb[0].mxu0
    %v4500 = vadd.f32 %v4360, %v4499
    %v4501 = vpop.f32.mrb[0].mxu0
    %v4502 = vadd.f32 %v4360, %v4501
    %v4503 = vpop.f32.mrb[0].mxu0
    %v4504 = vadd.f32 %v4365, %v4503
    %v4505 = vpop.f32.mrb[0].mxu0
    %v4506 = vadd.f32 %v4365, %v4505
    %4507 = vdwg.mxu0
    %v4508 = vpack.c.bf16 %v4450, %v4450
    %v4509 = vpack.c.bf16 %v4470, %v4470
    %v4510 = vpack.c.bf16 %v4490, %v4490
    %4511 = vxpose.xlu0.c.b16.start [1/8] %v4509, 128
    %4512 = vxpose.xlu0.c.b16.cont [2/8] 0, 128
    %4513 = vxpose.xlu0.c.b16.cont [3/8] 0, 128
    %4514 = vxpose.xlu0.c.b16.cont [4/8] 0, 128
    %4515 = vxpose.xlu0.c.b16.cont [5/8] 0, 128
    %4516 = vxpose.xlu0.c.b16.cont [6/8] 0, 128
    %4517 = vxpose.xlu0.c.b16.cont [7/8] 0, 128
    %4518 = vxpose.xlu0.c.b16.end [8/8] 0, 128
    %v4519 = vpop.trf.xlu0
    %v4520 = vpop.trf.xlu0
    %v4521 = vpop.trf.xlu0
    %v4522 = vpop.trf.xlu0
    %v4523 = vpop.trf.xlu0
    %v4524 = vpop.trf.xlu0
    %v4525 = vpop.trf.xlu0
    %v4526 = vpop.trf.xlu0
    %v4528 = vsel %vm982, %v4519, 0
    %v4531 = vsel %vm982, %v4520, 0
    %v4534 = vsel %vm982, %v4521, 0
    %v4537 = vsel %vm982, %v4522, 0
    %v4540 = vsel %vm982, %v4523, 0
    %v4543 = vsel %vm982, %v4524, 0
    %v4546 = vsel %vm982, %v4525, 0
    %v4549 = vsel %vm982, %v4526, 0
    %v4552 = vsel %vm1007, %v4508, 0
    %4554 = vmatprep.subr.bf16.mxu0 0
    %4555 = vmatpush1.bf16.msra.mxu0 %v4552
    %4556 = vmatprep.subr.bf16.mxu0 0
    %4557 = vmatpush1.bf16.msra.mxu0 0
    %4558 = vmatprep.subr.bf16.mxu0 0
    %4559 = vmatpush1.bf16.msra.mxu0 0
    %4560 = vmatprep.subr.bf16.mxu0 0
    %4561 = vmatpush1.bf16.msra.mxu0 0
    %4562 = vmatprep.subr.bf16.mxu0 0
    %4563 = vmatpush1.bf16.msra.mxu0 0
    %4564 = vmatprep.subr.bf16.mxu0 0
    %4565 = vmatpush1.bf16.msra.mxu0 0
    %4566 = vmatprep.subr.bf16.mxu0 0
    %4567 = vmatpush1.bf16.msra.mxu0 0
    %4568 = vmatprep.subr.bf16.mxu0 0
    %4569 = vmatpush1.bf16.msra.mxu0 0
    %4570 = vmatprep.subr.bf16.mxu0 0
    %4571 = vmatpush1.bf16.msra.mxu0 0
    %4572 = vmatprep.subr.bf16.mxu0 0
    %4573 = vmatpush1.bf16.msra.mxu0 0
    %4574 = vmatprep.subr.bf16.mxu0 0
    %4575 = vmatpush1.bf16.msra.mxu0 0
    %4576 = vmatprep.subr.bf16.mxu0 0
    %4577 = vmatpush1.bf16.msra.mxu0 0
    %4578 = vmatprep.subr.bf16.mxu0 0
    %4579 = vmatpush1.bf16.msra.mxu0 0
    %4580 = vmatprep.subr.bf16.mxu0 0
    %4581 = vmatpush1.bf16.msra.mxu0 0
    %4582 = vmatprep.subr.bf16.mxu0 0
    %4583 = vmatpush1.bf16.msra.mxu0 0
    %4584 = vmatprep.subr.bf16.mxu0 0
    %4585 = vmatpush1.bf16.msra.mxu0 0
    %4586 = vmatprep.mubr.bf16.mxu0 0
    %4587 = vmatmul.mubr.bf16.gmra.mrb[0].mxu0 %v4528
    %v4588 = vpop.f32.mrb[0].mxu0
    %v4589 = vadd.f32 0.0, %v4588
    %v4590 = vpop.f32.mrb[0].mxu0
    %v4591 = vpop.f32.mrb[0].mxu0
    %v4592 = vadd.f32 0.0, %v4591
    %v4593 = vpop.f32.mrb[0].mxu0
    %4594 = vmatprep.mubr.bf16.mxu0 0
    %4595 = vmatmul.mubr.bf16.gmra.mrb[0].mxu0 %v4531
    %v4596 = vpop.f32.mrb[0].mxu0
    %v4597 = vadd.f32 0.0, %v4596
    %v4598 = vpop.f32.mrb[0].mxu0
    %v4599 = vpop.f32.mrb[0].mxu0
    %v4600 = vadd.f32 0.0, %v4599
    %v4601 = vpop.f32.mrb[0].mxu0
    %4602 = vmatprep.mubr.bf16.mxu0 0
    %4603 = vmatmul.mubr.bf16.gmra.mrb[0].mxu0 %v4534
    %v4604 = vpop.f32.mrb[0].mxu0
    %v4605 = vadd.f32 0.0, %v4604
    %v4606 = vpop.f32.mrb[0].mxu0
    %v4607 = vpop.f32.mrb[0].mxu0
    %v4608 = vadd.f32 0.0, %v4607
    %v4609 = vpop.f32.mrb[0].mxu0
    %4610 = vmatprep.mubr.bf16.mxu0 0
    %4611 = vmatmul.mubr.bf16.gmra.mrb[0].mxu0 %v4537
    %v4612 = vpop.f32.mrb[0].mxu0
    %v4613 = vadd.f32 0.0, %v4612
    %v4614 = vpop.f32.mrb[0].mxu0
    %v4615 = vpop.f32.mrb[0].mxu0
    %v4616 = vadd.f32 0.0, %v4615
    %v4617 = vpop.f32.mrb[0].mxu0
    %4618 = vmatprep.mubr.bf16.mxu0 0
    %4619 = vmatmul.mubr.bf16.gmra.mrb[0].mxu0 %v4540
    %v4620 = vpop.f32.mrb[0].mxu0
    %v4621 = vadd.f32 0.0, %v4620
    %v4622 = vpop.f32.mrb[0].mxu0
    %v4623 = vpop.f32.mrb[0].mxu0
    %v4624 = vadd.f32 0.0, %v4623
    %v4625 = vpop.f32.mrb[0].mxu0
    %4626 = vmatprep.mubr.bf16.mxu0 0
    %4627 = vmatmul.mubr.bf16.gmra.mrb[0].mxu0 %v4543
    %v4628 = vpop.f32.mrb[0].mxu0
    %v4629 = vadd.f32 0.0, %v4628
    %v4630 = vpop.f32.mrb[0].mxu0
    %v4631 = vpop.f32.mrb[0].mxu0
    %v4632 = vadd.f32 0.0, %v4631
    %v4633 = vpop.f32.mrb[0].mxu0
    %4634 = vmatprep.mubr.bf16.mxu0 0
    %4635 = vmatmul.mubr.bf16.gmra.mrb[0].mxu0 %v4546
    %v4636 = vpop.f32.mrb[0].mxu0
    %v4637 = vadd.f32 0.0, %v4636
    %v4638 = vpop.f32.mrb[0].mxu0
    %v4639 = vpop.f32.mrb[0].mxu0
    %v4640 = vadd.f32 0.0, %v4639
    %v4641 = vpop.f32.mrb[0].mxu0
    %4642 = vmatprep.mubr.bf16.mxu0 0
    %4643 = vmatmul.mubr.bf16.gmra.mrb[0].mxu0 %v4549
    %v4644 = vpop.f32.mrb[0].mxu0
    %v4645 = vadd.f32 0.0, %v4644
    %v4646 = vpop.f32.mrb[0].mxu0
    %v4647 = vpop.f32.mrb[0].mxu0
    %v4648 = vadd.f32 0.0, %v4647
    %v4649 = vpop.f32.mrb[0].mxu0
    %4650 = vdwg.mxu0
    %v4651 = vmax.f32 %v4589, %v4605
    %v4652 = vmax.f32 %v4592, %v4608
    %v4653 = vmax.f32 %v4597, %v4613
    %v4654 = vmax.f32 %v4600, %v4616
    %v4655 = vmax.f32 %v4651, %v4621
    %v4656 = vmax.f32 %v4652, %v4624
    %v4657 = vmax.f32 %v4653, %v4629
    %v4658 = vmax.f32 %v4654, %v4632
    %v4659 = vmax.f32 %v4655, %v4637
    %v4660 = vmax.f32 %v4656, %v4640
    %v4661 = vmax.f32 %v4657, %v4645
    %v4662 = vmax.f32 %v4658, %v4648
    %v4663 = vmax.f32 %v4659, %v4660
    %v4664 = vmax.f32 %v4661, %v4662
    %v4665 = vmax.f32 %v4663, %v4664
    %v4666 = vrot.slane %v4665, 4
    %v4667 = vmax.f32 %v4665, %v4666
    %v4668 = vrot.slane %v4667, 2
    %v4669 = vmax.f32 %v4667, %v4668
    %v4670 = vrot.slane %v4669, 1
    %v4671 = vmax.f32 %v4669, %v4670
    %v4672 = vsub.f32 %v4589, %v4671
    %v4673 = vsub.f32 %v4592, %v4671
    %v4674 = vsub.f32 %v4597, %v4671
    %v4675 = vsub.f32 %v4600, %v4671
    %v4676 = vsub.f32 %v4605, %v4671
    %v4677 = vsub.f32 %v4608, %v4671
    %v4678 = vsub.f32 %v4613, %v4671
    %v4679 = vsub.f32 %v4616, %v4671
    %v4680 = vsub.f32 %v4621, %v4671
    %v4681 = vsub.f32 %v4624, %v4671
    %v4682 = vsub.f32 %v4629, %v4671
    %v4683 = vsub.f32 %v4632, %v4671
    %v4684 = vsub.f32 %v4637, %v4671
    %v4685 = vsub.f32 %v4640, %v4671
    %v4686 = vsub.f32 %v4645, %v4671
    %v4687 = vsub.f32 %v4648, %v4671
    %v4688 = vmul.f32 %v4672, 1.442695
    %v4689 = vpow.pop %v4688
    %v4690 = vmul.f32 %v4673, 1.442695
    %v4691 = vpow.pop %v4690
    %v4692 = vmul.f32 %v4674, 1.442695
    %v4693 = vpow.pop %v4692
    %v4694 = vmul.f32 %v4675, 1.442695
    %v4695 = vpow.pop %v4694
    %v4696 = vmul.f32 %v4676, 1.442695
    %v4697 = vpow.pop %v4696
    %v4698 = vmul.f32 %v4677, 1.442695
    %v4699 = vpow.pop %v4698
    %v4700 = vmul.f32 %v4678, 1.442695
    %v4701 = vpow.pop %v4700
    %v4702 = vmul.f32 %v4679, 1.442695
    %v4703 = vpow.pop %v4702
    %v4704 = vmul.f32 %v4680, 1.442695
    %v4705 = vpow.pop %v4704
    %v4706 = vmul.f32 %v4681, 1.442695
    %v4707 = vpow.pop %v4706
    %v4708 = vmul.f32 %v4682, 1.442695
    %v4709 = vpow.pop %v4708
    %v4710 = vmul.f32 %v4683, 1.442695
    %v4711 = vpow.pop %v4710
    %v4712 = vmul.f32 %v4684, 1.442695
    %v4713 = vpow.pop %v4712
    %v4714 = vmul.f32 %v4685, 1.442695
    %v4715 = vpow.pop %v4714
    %v4716 = vmul.f32 %v4686, 1.442695
    %v4717 = vpow.pop %v4716
    %v4718 = vmul.f32 %v4687, 1.442695
    %v4719 = vpow.pop %v4718
    %v4720 = vadd.f32 %v4689, %v4691
    %v4721 = vadd.f32 %v4720, %v4693
    %v4722 = vadd.f32 %v4721, %v4695
    %v4723 = vadd.f32 %v4722, %v4697
    %v4724 = vadd.f32 %v4723, %v4699
    %v4725 = vadd.f32 %v4724, %v4701
    %v4726 = vadd.f32 %v4725, %v4703
    %v4727 = vadd.f32 %v4726, %v4705
    %v4728 = vadd.f32 %v4727, %v4707
    %v4729 = vadd.f32 %v4728, %v4709
    %v4730 = vadd.f32 %v4729, %v4711
    %v4731 = vadd.f32 %v4730, %v4713
    %v4732 = vadd.f32 %v4731, %v4715
    %v4733 = vadd.f32 %v4732, %v4717
    %v4734 = vadd.f32 %v4733, %v4719
    %v4735 = vrot.slane %v4734, 4
    %v4736 = vadd.f32 %v4734, %v4735
    %v4737 = vrot.slane %v4736, 2
    %v4738 = vadd.f32 %v4736, %v4737
    %v4739 = vrot.slane %v4738, 1
    %v4740 = vadd.f32 %v4738, %v4739
    %v4741 = vrcp.pop %v4740
    %v4742 = vpack.c.bf16 %v4691, %v4689
    %v4743 = vpack.c.bf16 %v4695, %v4693
    %v4744 = vpack.c.bf16 %v4699, %v4697
    %v4745 = vpack.c.bf16 %v4703, %v4701
    %v4746 = vpack.c.bf16 %v4707, %v4705
    %v4747 = vpack.c.bf16 %v4711, %v4709
    %v4748 = vpack.c.bf16 %v4715, %v4713
    %v4749 = vpack.c.bf16 %v4719, %v4717
    %4750 = vmatprep.subr.bf16.mxu0 0
    %4751 = vmatpush1.bf16.msra.mxu0 %v4742
    %4752 = vmatprep.subr.bf16.mxu0 0
    %4753 = vmatpush1.bf16.msra.mxu0 %v4743
    %4754 = vmatprep.subr.bf16.mxu0 0
    %4755 = vmatpush1.bf16.msra.mxu0 %v4744
    %4756 = vmatprep.subr.bf16.mxu0 0
    %4757 = vmatpush1.bf16.msra.mxu0 %v4745
    %4758 = vmatprep.subr.bf16.mxu0 0
    %4759 = vmatpush1.bf16.msra.mxu0 %v4746
    %4760 = vmatprep.subr.bf16.mxu0 0
    %4761 = vmatpush1.bf16.msra.mxu0 %v4747
    %4762 = vmatprep.subr.bf16.mxu0 0
    %4763 = vmatpush1.bf16.msra.mxu0 %v4748
    %4764 = vmatprep.subr.bf16.mxu0 0
    %4765 = vmatpush1.bf16.msra.mxu0 %v4749
    %4766 = vmatprep.subr.bf16.mxu0 0
    %4767 = vmatpush1.bf16.msra.mxu0 0
    %4768 = vmatprep.subr.bf16.mxu0 0
    %4769 = vmatpush1.bf16.msra.mxu0 0
    %4770 = vmatprep.subr.bf16.mxu0 0
    %4771 = vmatpush1.bf16.msra.mxu0 0
    %4772 = vmatprep.subr.bf16.mxu0 0
    %4773 = vmatpush1.bf16.msra.mxu0 0
    %4774 = vmatprep.subr.bf16.mxu0 0
    %4775 = vmatpush1.bf16.msra.mxu0 0
    %4776 = vmatprep.subr.bf16.mxu0 0
    %4777 = vmatpush1.bf16.msra.mxu0 0
    %4778 = vmatprep.subr.bf16.mxu0 0
    %4779 = vmatpush1.bf16.msra.mxu0 0
    %4780 = vmatprep.subr.bf16.mxu0 0
    %4781 = vmatpush1.bf16.msra.mxu0 0
    %4782 = vmatprep.mubr.bf16.mxu0 0
    %4783 = vmatmul.mubr.bf16.gmra.mrb[0].mxu0 %v4510
    %v4784 = vpop.f32.mrb[0].mxu0
    %v4785 = vadd.f32 0.0, %v4784
    %v4786 = vpop.f32.mrb[0].mxu0
    %v4787 = vpop.f32.mrb[0].mxu0
    %v4788 = vpop.f32.mrb[0].mxu0
    %4789 = vdwg.mxu0
    %v4790 = vmul.f32 %v4785, %v4741
    %v4791 = vpack.c.bf16 %v4454, %v4454
    %v4792 = vpack.c.bf16 %v4474, %v4474
    %v4793 = vpack.c.bf16 %v4494, %v4494
    %4794 = vxpose.xlu0.c.b16.start [1/8] %v4792, 128
    %4795 = vxpose.xlu0.c.b16.cont [2/8] 0, 128
    %4796 = vxpose.xlu0.c.b16.cont [3/8] 0, 128
    %4797 = vxpose.xlu0.c.b16.cont [4/8] 0, 128
    %4798 = vxpose.xlu0.c.b16.cont [5/8] 0, 128
    %4799 = vxpose.xlu0.c.b16.cont [6/8] 0, 128
    %4800 = vxpose.xlu0.c.b16.cont [7/8] 0, 128
    %4801 = vxpose.xlu0.c.b16.end [8/8] 0, 128
    %v4802 = vpop.trf.xlu0
    %v4803 = vpop.trf.xlu0
    %v4804 = vpop.trf.xlu0
    %v4805 = vpop.trf.xlu0
    %v4806 = vpop.trf.xlu0
    %v4807 = vpop.trf.xlu0
    %v4808 = vpop.trf.xlu0
    %v4809 = vpop.trf.xlu0
    %v4811 = vsel %vm982, %v4802, 0
    %v4814 = vsel %vm982, %v4803, 0
    %v4817 = vsel %vm982, %v4804, 0
    %v4820 = vsel %vm982, %v4805, 0
    %v4823 = vsel %vm982, %v4806, 0
    %v4826 = vsel %vm982, %v4807, 0
    %v4829 = vsel %vm982, %v4808, 0
    %v4832 = vsel %vm982, %v4809, 0
    %v4835 = vsel %vm1007, %v4791, 0
    %4837 = vmatprep.subr.bf16.mxu0 0
    %4838 = vmatpush1.bf16.msra.mxu0 %v4835
    %4839 = vmatprep.subr.bf16.mxu0 0
    %4840 = vmatpush1.bf16.msra.mxu0 0
    %4841 = vmatprep.subr.bf16.mxu0 0
    %4842 = vmatpush1.bf16.msra.mxu0 0
    %4843 = vmatprep.subr.bf16.mxu0 0
    %4844 = vmatpush1.bf16.msra.mxu0 0
    %4845 = vmatprep.subr.bf16.mxu0 0
    %4846 = vmatpush1.bf16.msra.mxu0 0
    %4847 = vmatprep.subr.bf16.mxu0 0
    %4848 = vmatpush1.bf16.msra.mxu0 0
    %4849 = vmatprep.subr.bf16.mxu0 0
    %4850 = vmatpush1.bf16.msra.mxu0 0
    %4851 = vmatprep.subr.bf16.mxu0 0
    %4852 = vmatpush1.bf16.msra.mxu0 0
    %4853 = vmatprep.subr.bf16.mxu0 0
    %4854 = vmatpush1.bf16.msra.mxu0 0
    %4855 = vmatprep.subr.bf16.mxu0 0
    %4856 = vmatpush1.bf16.msra.mxu0 0
    %4857 = vmatprep.subr.bf16.mxu0 0
    %4858 = vmatpush1.bf16.msra.mxu0 0
    %4859 = vmatprep.subr.bf16.mxu0 0
    %4860 = vmatpush1.bf16.msra.mxu0 0
    %4861 = vmatprep.subr.bf16.mxu0 0
    %4862 = vmatpush1.bf16.msra.mxu0 0
    %4863 = vmatprep.subr.bf16.mxu0 0
    %4864 = vmatpush1.bf16.msra.mxu0 0
    %4865 = vmatprep.subr.bf16.mxu0 0
    %4866 = vmatpush1.bf16.msra.mxu0 0
    %4867 = vmatprep.subr.bf16.mxu0 0
    %4868 = vmatpush1.bf16.msra.mxu0 0
    %4869 = vmatprep.mubr.bf16.mxu0 0
    %4870 = vmatmul.mubr.bf16.gmra.mrb[0].mxu0 %v4811
    %v4871 = vpop.f32.mrb[0].mxu0
    %v4872 = vadd.f32 0.0, %v4871
    %v4873 = vpop.f32.mrb[0].mxu0
    %v4874 = vpop.f32.mrb[0].mxu0
    %v4875 = vadd.f32 0.0, %v4874
    %v4876 = vpop.f32.mrb[0].mxu0
    %4877 = vmatprep.mubr.bf16.mxu0 0
    %4878 = vmatmul.mubr.bf16.gmra.mrb[0].mxu0 %v4814
    %v4879 = vpop.f32.mrb[0].mxu0
    %v4880 = vadd.f32 0.0, %v4879
    %v4881 = vpop.f32.mrb[0].mxu0
    %v4882 = vpop.f32.mrb[0].mxu0
    %v4883 = vadd.f32 0.0, %v4882
    %v4884 = vpop.f32.mrb[0].mxu0
    %4885 = vmatprep.mubr.bf16.mxu0 0
    %4886 = vmatmul.mubr.bf16.gmra.mrb[0].mxu0 %v4817
    %v4887 = vpop.f32.mrb[0].mxu0
    %v4888 = vadd.f32 0.0, %v4887
    %v4889 = vpop.f32.mrb[0].mxu0
    %v4890 = vpop.f32.mrb[0].mxu0
    %v4891 = vadd.f32 0.0, %v4890
    %v4892 = vpop.f32.mrb[0].mxu0
    %4893 = vmatprep.mubr.bf16.mxu0 0
    %4894 = vmatmul.mubr.bf16.gmra.mrb[0].mxu0 %v4820
    %v4895 = vpop.f32.mrb[0].mxu0
    %v4896 = vadd.f32 0.0, %v4895
    %v4897 = vpop.f32.mrb[0].mxu0
    %v4898 = vpop.f32.mrb[0].mxu0
    %v4899 = vadd.f32 0.0, %v4898
    %v4900 = vpop.f32.mrb[0].mxu0
    %4901 = vmatprep.mubr.bf16.mxu0 0
    %4902 = vmatmul.mubr.bf16.gmra.mrb[0].mxu0 %v4823
    %v4903 = vpop.f32.mrb[0].mxu0
    %v4904 = vadd.f32 0.0, %v4903
    %v4905 = vpop.f32.mrb[0].mxu0
    %v4906 = vpop.f32.mrb[0].mxu0
    %v4907 = vadd.f32 0.0, %v4906
    %v4908 = vpop.f32.mrb[0].mxu0
    %4909 = vmatprep.mubr.bf16.mxu0 0
    %4910 = vmatmul.mubr.bf16.gmra.mrb[0].mxu0 %v4826
    %v4911 = vpop.f32.mrb[0].mxu0
    %v4912 = vadd.f32 0.0, %v4911
    %v4913 = vpop.f32.mrb[0].mxu0
    %v4914 = vpop.f32.mrb[0].mxu0
    %v4915 = vadd.f32 0.0, %v4914
    %v4916 = vpop.f32.mrb[0].mxu0
    %4917 = vmatprep.mubr.bf16.mxu0 0
    %4918 = vmatmul.mubr.bf16.gmra.mrb[0].mxu0 %v4829
    %v4919 = vpop.f32.mrb[0].mxu0
    %v4920 = vadd.f32 0.0, %v4919
    %v4921 = vpop.f32.mrb[0].mxu0
    %v4922 = vpop.f32.mrb[0].mxu0
    %v4923 = vadd.f32 0.0, %v4922
    %v4924 = vpop.f32.mrb[0].mxu0
    %4925 = vmatprep.mubr.bf16.mxu0 0
    %4926 = vmatmul.mubr.bf16.gmra.mrb[0].mxu0 %v4832
    %v4927 = vpop.f32.mrb[0].mxu0
    %v4928 = vadd.f32 0.0, %v4927
    %v4929 = vpop.f32.mrb[0].mxu0
    %v4930 = vpop.f32.mrb[0].mxu0
    %v4931 = vadd.f32 0.0, %v4930
    %v4932 = vpop.f32.mrb[0].mxu0
    %4933 = vdwg.mxu0
    %v4934 = vmax.f32 %v4872, %v4888
    %v4935 = vmax.f32 %v4875, %v4891
    %v4936 = vmax.f32 %v4880, %v4896
    %v4937 = vmax.f32 %v4883, %v4899
    %v4938 = vmax.f32 %v4934, %v4904
    %v4939 = vmax.f32 %v4935, %v4907
    %v4940 = vmax.f32 %v4936, %v4912
    %v4941 = vmax.f32 %v4937, %v4915
    %v4942 = vmax.f32 %v4938, %v4920
    %v4943 = vmax.f32 %v4939, %v4923
    %v4944 = vmax.f32 %v4940, %v4928
    %v4945 = vmax.f32 %v4941, %v4931
    %v4946 = vmax.f32 %v4942, %v4943
    %v4947 = vmax.f32 %v4944, %v4945
    %v4948 = vmax.f32 %v4946, %v4947
    %v4949 = vrot.slane %v4948, 4
    %v4950 = vmax.f32 %v4948, %v4949
    %v4951 = vrot.slane %v4950, 2
    %v4952 = vmax.f32 %v4950, %v4951
    %v4953 = vrot.slane %v4952, 1
    %v4954 = vmax.f32 %v4952, %v4953
    %v4955 = vsub.f32 %v4872, %v4954
    %v4956 = vsub.f32 %v4875, %v4954
    %v4957 = vsub.f32 %v4880, %v4954
    %v4958 = vsub.f32 %v4883, %v4954
    %v4959 = vsub.f32 %v4888, %v4954
    %v4960 = vsub.f32 %v4891, %v4954
    %v4961 = vsub.f32 %v4896, %v4954
    %v4962 = vsub.f32 %v4899, %v4954
    %v4963 = vsub.f32 %v4904, %v4954
    %v4964 = vsub.f32 %v4907, %v4954
    %v4965 = vsub.f32 %v4912, %v4954
    %v4966 = vsub.f32 %v4915, %v4954
    %v4967 = vsub.f32 %v4920, %v4954
    %v4968 = vsub.f32 %v4923, %v4954
    %v4969 = vsub.f32 %v4928, %v4954
    %v4970 = vsub.f32 %v4931, %v4954
    %v4971 = vmul.f32 %v4955, 1.442695
    %v4972 = vpow.pop %v4971
    %v4973 = vmul.f32 %v4956, 1.442695
    %v4974 = vpow.pop %v4973
    %v4975 = vmul.f32 %v4957, 1.442695
    %v4976 = vpow.pop %v4975
    %v4977 = vmul.f32 %v4958, 1.442695
    %v4978 = vpow.pop %v4977
    %v4979 = vmul.f32 %v4959, 1.442695
    %v4980 = vpow.pop %v4979
    %v4981 = vmul.f32 %v4960, 1.442695
    %v4982 = vpow.pop %v4981
    %v4983 = vmul.f32 %v4961, 1.442695
    %v4984 = vpow.pop %v4983
    %v4985 = vmul.f32 %v4962, 1.442695
    %v4986 = vpow.pop %v4985
    %v4987 = vmul.f32 %v4963, 1.442695
    %v4988 = vpow.pop %v4987
    %v4989 = vmul.f32 %v4964, 1.442695
    %v4990 = vpow.pop %v4989
    %v4991 = vmul.f32 %v4965, 1.442695
    %v4992 = vpow.pop %v4991
    %v4993 = vmul.f32 %v4966, 1.442695
    %v4994 = vpow.pop %v4993
    %v4995 = vmul.f32 %v4967, 1.442695
    %v4996 = vpow.pop %v4995
    %v4997 = vmul.f32 %v4968, 1.442695
    %v4998 = vpow.pop %v4997
    %v4999 = vmul.f32 %v4969, 1.442695
    %v5000 = vpow.pop %v4999
    %v5001 = vmul.f32 %v4970, 1.442695
    %v5002 = vpow.pop %v5001
    %v5003 = vadd.f32 %v4972, %v4974
    %v5004 = vadd.f32 %v5003, %v4976
    %v5005 = vadd.f32 %v5004, %v4978
    %v5006 = vadd.f32 %v5005, %v4980
    %v5007 = vadd.f32 %v5006, %v4982
    %v5008 = vadd.f32 %v5007, %v4984
    %v5009 = vadd.f32 %v5008, %v4986
    %v5010 = vadd.f32 %v5009, %v4988
    %v5011 = vadd.f32 %v5010, %v4990
    %v5012 = vadd.f32 %v5011, %v4992
    %v5013 = vadd.f32 %v5012, %v4994
    %v5014 = vadd.f32 %v5013, %v4996
    %v5015 = vadd.f32 %v5014, %v4998
    %v5016 = vadd.f32 %v5015, %v5000
    %v5017 = vadd.f32 %v5016, %v5002
    %v5018 = vrot.slane %v5017, 4
    %v5019 = vadd.f32 %v5017, %v5018
    %v5020 = vrot.slane %v5019, 2
    %v5021 = vadd.f32 %v5019, %v5020
    %v5022 = vrot.slane %v5021, 1
    %v5023 = vadd.f32 %v5021, %v5022
    %v5024 = vrcp.pop %v5023
    %v5025 = vpack.c.bf16 %v4974, %v4972
    %v5026 = vpack.c.bf16 %v4978, %v4976
    %v5027 = vpack.c.bf16 %v4982, %v4980
    %v5028 = vpack.c.bf16 %v4986, %v4984
    %v5029 = vpack.c.bf16 %v4990, %v4988
    %v5030 = vpack.c.bf16 %v4994, %v4992
    %v5031 = vpack.c.bf16 %v4998, %v4996
    %v5032 = vpack.c.bf16 %v5002, %v5000
    %5033 = vmatprep.subr.bf16.mxu0 0
    %5034 = vmatpush1.bf16.msra.mxu0 %v5025
    %5035 = vmatprep.subr.bf16.mxu0 0
    %5036 = vmatpush1.bf16.msra.mxu0 %v5026
    %5037 = vmatprep.subr.bf16.mxu0 0
    %5038 = vmatpush1.bf16.msra.mxu0 %v5027
    %5039 = vmatprep.subr.bf16.mxu0 0
    %5040 = vmatpush1.bf16.msra.mxu0 %v5028
    %5041 = vmatprep.subr.bf16.mxu0 0
    %5042 = vmatpush1.bf16.msra.mxu0 %v5029
    %5043 = vmatprep.subr.bf16.mxu0 0
    %5044 = vmatpush1.bf16.msra.mxu0 %v5030
    %5045 = vmatprep.subr.bf16.mxu0 0
    %5046 = vmatpush1.bf16.msra.mxu0 %v5031
    %5047 = vmatprep.subr.bf16.mxu0 0
    %5048 = vmatpush1.bf16.msra.mxu0 %v5032
    %5049 = vmatprep.subr.bf16.mxu0 0
    %5050 = vmatpush1.bf16.msra.mxu0 0
    %5051 = vmatprep.subr.bf16.mxu0 0
    %5052 = vmatpush1.bf16.msra.mxu0 0
    %5053 = vmatprep.subr.bf16.mxu0 0
    %5054 = vmatpush1.bf16.msra.mxu0 0
    %5055 = vmatprep.subr.bf16.mxu0 0
    %5056 = vmatpush1.bf16.msra.mxu0 0
    %5057 = vmatprep.subr.bf16.mxu0 0
    %5058 = vmatpush1.bf16.msra.mxu0 0
    %5059 = vmatprep.subr.bf16.mxu0 0
    %5060 = vmatpush1.bf16.msra.mxu0 0
    %5061 = vmatprep.subr.bf16.mxu0 0
    %5062 = vmatpush1.bf16.msra.mxu0 0
    %5063 = vmatprep.subr.bf16.mxu0 0
    %5064 = vmatpush1.bf16.msra.mxu0 0
    %5065 = vmatprep.mubr.bf16.mxu0 0
    %5066 = vmatmul.mubr.bf16.gmra.mrb[0].mxu0 %v4793
    %v5067 = vpop.f32.mrb[0].mxu0
    %v5068 = vadd.f32 0.0, %v5067
    %v5069 = vpop.f32.mrb[0].mxu0
    %v5070 = vpop.f32.mrb[0].mxu0
    %v5071 = vpop.f32.mrb[0].mxu0
    %5072 = vdwg.mxu0
    %v5073 = vmul.f32 %v5068, %v5024
    %v5074 = vpack.c.bf16 %v4460, %v4460
    %v5075 = vpack.c.bf16 %v4480, %v4480
    %v5076 = vpack.c.bf16 %v4500, %v4500
    %5077 = vxpose.xlu0.c.b16.start [1/8] %v5075, 128
    %5078 = vxpose.xlu0.c.b16.cont [2/8] 0, 128
    %5079 = vxpose.xlu0.c.b16.cont [3/8] 0, 128
    %5080 = vxpose.xlu0.c.b16.cont [4/8] 0, 128
    %5081 = vxpose.xlu0.c.b16.cont [5/8] 0, 128
    %5082 = vxpose.xlu0.c.b16.cont [6/8] 0, 128
    %5083 = vxpose.xlu0.c.b16.cont [7/8] 0, 128
    %5084 = vxpose.xlu0.c.b16.end [8/8] 0, 128
    %v5085 = vpop.trf.xlu0
    %v5086 = vpop.trf.xlu0
    %v5087 = vpop.trf.xlu0
    %v5088 = vpop.trf.xlu0
    %v5089 = vpop.trf.xlu0
    %v5090 = vpop.trf.xlu0
    %v5091 = vpop.trf.xlu0
    %v5092 = vpop.trf.xlu0
    %v5094 = vsel %vm982, %v5085, 0
    %v5097 = vsel %vm982, %v5086, 0
    %v5100 = vsel %vm982, %v5087, 0
    %v5103 = vsel %vm982, %v5088, 0
    %v5106 = vsel %vm982, %v5089, 0
    %v5109 = vsel %vm982, %v5090, 0
    %v5112 = vsel %vm982, %v5091, 0
    %v5115 = vsel %vm982, %v5092, 0
    %v5118 = vsel %vm1007, %v5074, 0
    %5120 = vmatprep.subr.bf16.mxu0 0
    %5121 = vmatpush1.bf16.msra.mxu0 %v5118
    %5122 = vmatprep.subr.bf16.mxu0 0
    %5123 = vmatpush1.bf16.msra.mxu0 0
    %5124 = vmatprep.subr.bf16.mxu0 0
    %5125 = vmatpush1.bf16.msra.mxu0 0
    %5126 = vmatprep.subr.bf16.mxu0 0
    %5127 = vmatpush1.bf16.msra.mxu0 0
    %5128 = vmatprep.subr.bf16.mxu0 0
    %5129 = vmatpush1.bf16.msra.mxu0 0
    %5130 = vmatprep.subr.bf16.mxu0 0
    %5131 = vmatpush1.bf16.msra.mxu0 0
    %5132 = vmatprep.subr.bf16.mxu0 0
    %5133 = vmatpush1.bf16.msra.mxu0 0
    %5134 = vmatprep.subr.bf16.mxu0 0
    %5135 = vmatpush1.bf16.msra.mxu0 0
    %5136 = vmatprep.subr.bf16.mxu0 0
    %5137 = vmatpush1.bf16.msra.mxu0 0
    %5138 = vmatprep.subr.bf16.mxu0 0
    %5139 = vmatpush1.bf16.msra.mxu0 0
    %5140 = vmatprep.subr.bf16.mxu0 0
    %5141 = vmatpush1.bf16.msra.mxu0 0
    %5142 = vmatprep.subr.bf16.mxu0 0
    %5143 = vmatpush1.bf16.msra.mxu0 0
    %5144 = vmatprep.subr.bf16.mxu0 0
    %5145 = vmatpush1.bf16.msra.mxu0 0
    %5146 = vmatprep.subr.bf16.mxu0 0
    %5147 = vmatpush1.bf16.msra.mxu0 0
    %5148 = vmatprep.subr.bf16.mxu0 0
    %5149 = vmatpush1.bf16.msra.mxu0 0
    %5150 = vmatprep.subr.bf16.mxu0 0
    %5151 = vmatpush1.bf16.msra.mxu0 0
    %5152 = vmatprep.mubr.bf16.mxu0 0
    %5153 = vmatmul.mubr.bf16.gmra.mrb[0].mxu0 %v5094
    %v5154 = vpop.f32.mrb[0].mxu0
    %v5155 = vadd.f32 0.0, %v5154
    %v5156 = vpop.f32.mrb[0].mxu0
    %v5157 = vpop.f32.mrb[0].mxu0
    %v5158 = vadd.f32 0.0, %v5157
    %v5159 = vpop.f32.mrb[0].mxu0
    %5160 = vmatprep.mubr.bf16.mxu0 0
    %5161 = vmatmul.mubr.bf16.gmra.mrb[0].mxu0 %v5097
    %v5162 = vpop.f32.mrb[0].mxu0
    %v5163 = vadd.f32 0.0, %v5162
    %v5164 = vpop.f32.mrb[0].mxu0
    %v5165 = vpop.f32.mrb[0].mxu0
    %v5166 = vadd.f32 0.0, %v5165
    %v5167 = vpop.f32.mrb[0].mxu0
    %5168 = vmatprep.mubr.bf16.mxu0 0
    %5169 = vmatmul.mubr.bf16.gmra.mrb[0].mxu0 %v5100
    %v5170 = vpop.f32.mrb[0].mxu0
    %v5171 = vadd.f32 0.0, %v5170
    %v5172 = vpop.f32.mrb[0].mxu0
    %v5173 = vpop.f32.mrb[0].mxu0
    %v5174 = vadd.f32 0.0, %v5173
    %v5175 = vpop.f32.mrb[0].mxu0
    %5176 = vmatprep.mubr.bf16.mxu0 0
    %5177 = vmatmul.mubr.bf16.gmra.mrb[0].mxu0 %v5103
    %v5178 = vpop.f32.mrb[0].mxu0
    %v5179 = vadd.f32 0.0, %v5178
    %v5180 = vpop.f32.mrb[0].mxu0
    %v5181 = vpop.f32.mrb[0].mxu0
    %v5182 = vadd.f32 0.0, %v5181
    %v5183 = vpop.f32.mrb[0].mxu0
    %5184 = vmatprep.mubr.bf16.mxu0 0
    %5185 = vmatmul.mubr.bf16.gmra.mrb[0].mxu0 %v5106
    %v5186 = vpop.f32.mrb[0].mxu0
    %v5187 = vadd.f32 0.0, %v5186
    %v5188 = vpop.f32.mrb[0].mxu0
    %v5189 = vpop.f32.mrb[0].mxu0
    %v5190 = vadd.f32 0.0, %v5189
    %v5191 = vpop.f32.mrb[0].mxu0
    %5192 = vmatprep.mubr.bf16.mxu0 0
    %5193 = vmatmul.mubr.bf16.gmra.mrb[0].mxu0 %v5109
    %v5194 = vpop.f32.mrb[0].mxu0
    %v5195 = vadd.f32 0.0, %v5194
    %v5196 = vpop.f32.mrb[0].mxu0
    %v5197 = vpop.f32.mrb[0].mxu0
    %v5198 = vadd.f32 0.0, %v5197
    %v5199 = vpop.f32.mrb[0].mxu0
    %5200 = vmatprep.mubr.bf16.mxu0 0
    %5201 = vmatmul.mubr.bf16.gmra.mrb[0].mxu0 %v5112
    %v5202 = vpop.f32.mrb[0].mxu0
    %v5203 = vadd.f32 0.0, %v5202
    %v5204 = vpop.f32.mrb[0].mxu0
    %v5205 = vpop.f32.mrb[0].mxu0
    %v5206 = vadd.f32 0.0, %v5205
    %v5207 = vpop.f32.mrb[0].mxu0
    %5208 = vmatprep.mubr.bf16.mxu0 0
    %5209 = vmatmul.mubr.bf16.gmra.mrb[0].mxu0 %v5115
    %v5210 = vpop.f32.mrb[0].mxu0
    %v5211 = vadd.f32 0.0, %v5210
    %v5212 = vpop.f32.mrb[0].mxu0
    %v5213 = vpop.f32.mrb[0].mxu0
    %v5214 = vadd.f32 0.0, %v5213
    %v5215 = vpop.f32.mrb[0].mxu0
    %5216 = vdwg.mxu0
    %v5217 = vmax.f32 %v5155, %v5171
    %v5218 = vmax.f32 %v5158, %v5174
    %v5219 = vmax.f32 %v5163, %v5179
    %v5220 = vmax.f32 %v5166, %v5182
    %v5221 = vmax.f32 %v5217, %v5187
    %v5222 = vmax.f32 %v5218, %v5190
    %v5223 = vmax.f32 %v5219, %v5195
    %v5224 = vmax.f32 %v5220, %v5198
    %v5225 = vmax.f32 %v5221, %v5203
    %v5226 = vmax.f32 %v5222, %v5206
    %v5227 = vmax.f32 %v5223, %v5211
    %v5228 = vmax.f32 %v5224, %v5214
    %v5229 = vmax.f32 %v5225, %v5226
    %v5230 = vmax.f32 %v5227, %v5228
    %v5231 = vmax.f32 %v5229, %v5230
    %v5232 = vrot.slane %v5231, 4
    %v5233 = vmax.f32 %v5231, %v5232
    %v5234 = vrot.slane %v5233, 2
    %v5235 = vmax.f32 %v5233, %v5234
    %v5236 = vrot.slane %v5235, 1
    %v5237 = vmax.f32 %v5235, %v5236
    %v5238 = vsub.f32 %v5155, %v5237
    %v5239 = vsub.f32 %v5158, %v5237
    %v5240 = vsub.f32 %v5163, %v5237
    %v5241 = vsub.f32 %v5166, %v5237
    %v5242 = vsub.f32 %v5171, %v5237
    %v5243 = vsub.f32 %v5174, %v5237
    %v5244 = vsub.f32 %v5179, %v5237
    %v5245 = vsub.f32 %v5182, %v5237
    %v5246 = vsub.f32 %v5187, %v5237
    %v5247 = vsub.f32 %v5190, %v5237
    %v5248 = vsub.f32 %v5195, %v5237
    %v5249 = vsub.f32 %v5198, %v5237
    %v5250 = vsub.f32 %v5203, %v5237
    %v5251 = vsub.f32 %v5206, %v5237
    %v5252 = vsub.f32 %v5211, %v5237
    %v5253 = vsub.f32 %v5214, %v5237
    %v5254 = vmul.f32 %v5238, 1.442695
    %v5255 = vpow.pop %v5254
    %v5256 = vmul.f32 %v5239, 1.442695
    %v5257 = vpow.pop %v5256
    %v5258 = vmul.f32 %v5240, 1.442695
    %v5259 = vpow.pop %v5258
    %v5260 = vmul.f32 %v5241, 1.442695
    %v5261 = vpow.pop %v5260
    %v5262 = vmul.f32 %v5242, 1.442695
    %v5263 = vpow.pop %v5262
    %v5264 = vmul.f32 %v5243, 1.442695
    %v5265 = vpow.pop %v5264
    %v5266 = vmul.f32 %v5244, 1.442695
    %v5267 = vpow.pop %v5266
    %v5268 = vmul.f32 %v5245, 1.442695
    %v5269 = vpow.pop %v5268
    %v5270 = vmul.f32 %v5246, 1.442695
    %v5271 = vpow.pop %v5270
    %v5272 = vmul.f32 %v5247, 1.442695
    %v5273 = vpow.pop %v5272
    %v5274 = vmul.f32 %v5248, 1.442695
    %v5275 = vpow.pop %v5274
    %v5276 = vmul.f32 %v5249, 1.442695
    %v5277 = vpow.pop %v5276
    %v5278 = vmul.f32 %v5250, 1.442695
    %v5279 = vpow.pop %v5278
    %v5280 = vmul.f32 %v5251, 1.442695
    %v5281 = vpow.pop %v5280
    %v5282 = vmul.f32 %v5252, 1.442695
    %v5283 = vpow.pop %v5282
    %v5284 = vmul.f32 %v5253, 1.442695
    %v5285 = vpow.pop %v5284
    %v5286 = vadd.f32 %v5255, %v5257
    %v5287 = vadd.f32 %v5286, %v5259
    %v5288 = vadd.f32 %v5287, %v5261
    %v5289 = vadd.f32 %v5288, %v5263
    %v5290 = vadd.f32 %v5289, %v5265
    %v5291 = vadd.f32 %v5290, %v5267
    %v5292 = vadd.f32 %v5291, %v5269
    %v5293 = vadd.f32 %v5292, %v5271
    %v5294 = vadd.f32 %v5293, %v5273
    %v5295 = vadd.f32 %v5294, %v5275
    %v5296 = vadd.f32 %v5295, %v5277
    %v5297 = vadd.f32 %v5296, %v5279
    %v5298 = vadd.f32 %v5297, %v5281
    %v5299 = vadd.f32 %v5298, %v5283
    %v5300 = vadd.f32 %v5299, %v5285
    %v5301 = vrot.slane %v5300, 4
    %v5302 = vadd.f32 %v5300, %v5301
    %v5303 = vrot.slane %v5302, 2
    %v5304 = vadd.f32 %v5302, %v5303
    %v5305 = vrot.slane %v5304, 1
    %v5306 = vadd.f32 %v5304, %v5305
    %v5307 = vrcp.pop %v5306
    %v5308 = vpack.c.bf16 %v5257, %v5255
    %v5309 = vpack.c.bf16 %v5261, %v5259
    %v5310 = vpack.c.bf16 %v5265, %v5263
    %v5311 = vpack.c.bf16 %v5269, %v5267
    %v5312 = vpack.c.bf16 %v5273, %v5271
    %v5313 = vpack.c.bf16 %v5277, %v5275
    %v5314 = vpack.c.bf16 %v5281, %v5279
    %v5315 = vpack.c.bf16 %v5285, %v5283
    %5316 = vmatprep.subr.bf16.mxu0 0
    %5317 = vmatpush1.bf16.msra.mxu0 %v5308
    %5318 = vmatprep.subr.bf16.mxu0 0
    %5319 = vmatpush1.bf16.msra.mxu0 %v5309
    %5320 = vmatprep.subr.bf16.mxu0 0
    %5321 = vmatpush1.bf16.msra.mxu0 %v5310
    %5322 = vmatprep.subr.bf16.mxu0 0
    %5323 = vmatpush1.bf16.msra.mxu0 %v5311
    %5324 = vmatprep.subr.bf16.mxu0 0
    %5325 = vmatpush1.bf16.msra.mxu0 %v5312
    %5326 = vmatprep.subr.bf16.mxu0 0
    %5327 = vmatpush1.bf16.msra.mxu0 %v5313
    %5328 = vmatprep.subr.bf16.mxu0 0
    %5329 = vmatpush1.bf16.msra.mxu0 %v5314
    %5330 = vmatprep.subr.bf16.mxu0 0
    %5331 = vmatpush1.bf16.msra.mxu0 %v5315
    %5332 = vmatprep.subr.bf16.mxu0 0
    %5333 = vmatpush1.bf16.msra.mxu0 0
    %5334 = vmatprep.subr.bf16.mxu0 0
    %5335 = vmatpush1.bf16.msra.mxu0 0
    %5336 = vmatprep.subr.bf16.mxu0 0
    %5337 = vmatpush1.bf16.msra.mxu0 0
    %5338 = vmatprep.subr.bf16.mxu0 0
    %5339 = vmatpush1.bf16.msra.mxu0 0
    %5340 = vmatprep.subr.bf16.mxu0 0
    %5341 = vmatpush1.bf16.msra.mxu0 0
    %5342 = vmatprep.subr.bf16.mxu0 0
    %5343 = vmatpush1.bf16.msra.mxu0 0
    %5344 = vmatprep.subr.bf16.mxu0 0
    %5345 = vmatpush1.bf16.msra.mxu0 0
    %5346 = vmatprep.subr.bf16.mxu0 0
    %5347 = vmatpush1.bf16.msra.mxu0 0
    %5348 = vmatprep.mubr.bf16.mxu0 0
    %5349 = vmatmul.mubr.bf16.gmra.mrb[0].mxu0 %v5076
    %v5350 = vpop.f32.mrb[0].mxu0
    %v5351 = vadd.f32 0.0, %v5350
    %v5352 = vpop.f32.mrb[0].mxu0
    %v5353 = vpop.f32.mrb[0].mxu0
    %v5354 = vpop.f32.mrb[0].mxu0
    %5355 = vdwg.mxu0
    %v5356 = vmul.f32 %v5351, %v5307
    %v5357 = vpack.c.bf16 %v4464, %v4464
    %v5358 = vpack.c.bf16 %v4484, %v4484
    %v5359 = vpack.c.bf16 %v4504, %v4504
    %5360 = vxpose.xlu0.c.b16.start [1/8] %v5358, 128
    %5361 = vxpose.xlu0.c.b16.cont [2/8] 0, 128
    %5362 = vxpose.xlu0.c.b16.cont [3/8] 0, 128
    %5363 = vxpose.xlu0.c.b16.cont [4/8] 0, 128
    %5364 = vxpose.xlu0.c.b16.cont [5/8] 0, 128
    %5365 = vxpose.xlu0.c.b16.cont [6/8] 0, 128
    %5366 = vxpose.xlu0.c.b16.cont [7/8] 0, 128
    %5367 = vxpose.xlu0.c.b16.end [8/8] 0, 128
    %v5368 = vpop.trf.xlu0
    %v5369 = vpop.trf.xlu0
    %v5370 = vpop.trf.xlu0
    %v5371 = vpop.trf.xlu0
    %v5372 = vpop.trf.xlu0
    %v5373 = vpop.trf.xlu0
    %v5374 = vpop.trf.xlu0
    %v5375 = vpop.trf.xlu0
    %v5377 = vsel %vm982, %v5368, 0
    %v5380 = vsel %vm982, %v5369, 0
    %v5383 = vsel %vm982, %v5370, 0
    %v5386 = vsel %vm982, %v5371, 0
    %v5389 = vsel %vm982, %v5372, 0
    %v5392 = vsel %vm982, %v5373, 0
    %v5395 = vsel %vm982, %v5374, 0
    %v5398 = vsel %vm982, %v5375, 0
    %v5401 = vsel %vm1007, %v5357, 0
    %5403 = vmatprep.subr.bf16.mxu0 0
    %5404 = vmatpush1.bf16.msra.mxu0 %v5401
    %5405 = vmatprep.subr.bf16.mxu0 0
    %5406 = vmatpush1.bf16.msra.mxu0 0
    %5407 = vmatprep.subr.bf16.mxu0 0
    %5408 = vmatpush1.bf16.msra.mxu0 0
    %5409 = vmatprep.subr.bf16.mxu0 0
    %5410 = vmatpush1.bf16.msra.mxu0 0
    %5411 = vmatprep.subr.bf16.mxu0 0
    %5412 = vmatpush1.bf16.msra.mxu0 0
    %5413 = vmatprep.subr.bf16.mxu0 0
    %5414 = vmatpush1.bf16.msra.mxu0 0
    %5415 = vmatprep.subr.bf16.mxu0 0
    %5416 = vmatpush1.bf16.msra.mxu0 0
    %5417 = vmatprep.subr.bf16.mxu0 0
    %5418 = vmatpush1.bf16.msra.mxu0 0
    %5419 = vmatprep.subr.bf16.mxu0 0
    %5420 = vmatpush1.bf16.msra.mxu0 0
    %5421 = vmatprep.subr.bf16.mxu0 0
    %5422 = vmatpush1.bf16.msra.mxu0 0
    %5423 = vmatprep.subr.bf16.mxu0 0
    %5424 = vmatpush1.bf16.msra.mxu0 0
    %5425 = vmatprep.subr.bf16.mxu0 0
    %5426 = vmatpush1.bf16.msra.mxu0 0
    %5427 = vmatprep.subr.bf16.mxu0 0
    %5428 = vmatpush1.bf16.msra.mxu0 0
    %5429 = vmatprep.subr.bf16.mxu0 0
    %5430 = vmatpush1.bf16.msra.mxu0 0
    %5431 = vmatprep.subr.bf16.mxu0 0
    %5432 = vmatpush1.bf16.msra.mxu0 0
    %5433 = vmatprep.subr.bf16.mxu0 0
    %5434 = vmatpush1.bf16.msra.mxu0 0
    %5435 = vmatprep.mubr.bf16.mxu0 0
    %5436 = vmatmul.mubr.bf16.gmra.mrb[0].mxu0 %v5377
    %v5437 = vpop.f32.mrb[0].mxu0
    %v5438 = vadd.f32 0.0, %v5437
    %v5439 = vpop.f32.mrb[0].mxu0
    %v5440 = vpop.f32.mrb[0].mxu0
    %v5441 = vadd.f32 0.0, %v5440
    %v5442 = vpop.f32.mrb[0].mxu0
    %5443 = vmatprep.mubr.bf16.mxu0 0
    %5444 = vmatmul.mubr.bf16.gmra.mrb[0].mxu0 %v5380
    %v5445 = vpop.f32.mrb[0].mxu0
    %v5446 = vadd.f32 0.0, %v5445
    %v5447 = vpop.f32.mrb[0].mxu0
    %v5448 = vpop.f32.mrb[0].mxu0
    %v5449 = vadd.f32 0.0, %v5448
    %v5450 = vpop.f32.mrb[0].mxu0
    %5451 = vmatprep.mubr.bf16.mxu0 0
    %5452 = vmatmul.mubr.bf16.gmra.mrb[0].mxu0 %v5383
    %v5453 = vpop.f32.mrb[0].mxu0
    %v5454 = vadd.f32 0.0, %v5453
    %v5455 = vpop.f32.mrb[0].mxu0
    %v5456 = vpop.f32.mrb[0].mxu0
    %v5457 = vadd.f32 0.0, %v5456
    %v5458 = vpop.f32.mrb[0].mxu0
    %5459 = vmatprep.mubr.bf16.mxu0 0
    %5460 = vmatmul.mubr.bf16.gmra.mrb[0].mxu0 %v5386
    %v5461 = vpop.f32.mrb[0].mxu0
    %v5462 = vadd.f32 0.0, %v5461
    %v5463 = vpop.f32.mrb[0].mxu0
    %v5464 = vpop.f32.mrb[0].mxu0
    %v5465 = vadd.f32 0.0, %v5464
    %v5466 = vpop.f32.mrb[0].mxu0
    %5467 = vmatprep.mubr.bf16.mxu0 0
    %5468 = vmatmul.mubr.bf16.gmra.mrb[0].mxu0 %v5389
    %v5469 = vpop.f32.mrb[0].mxu0
    %v5470 = vadd.f32 0.0, %v5469
    %v5471 = vpop.f32.mrb[0].mxu0
    %v5472 = vpop.f32.mrb[0].mxu0
    %v5473 = vadd.f32 0.0, %v5472
    %v5474 = vpop.f32.mrb[0].mxu0
    %5475 = vmatprep.mubr.bf16.mxu0 0
    %5476 = vmatmul.mubr.bf16.gmra.mrb[0].mxu0 %v5392
    %v5477 = vpop.f32.mrb[0].mxu0
    %v5478 = vadd.f32 0.0, %v5477
    %v5479 = vpop.f32.mrb[0].mxu0
    %v5480 = vpop.f32.mrb[0].mxu0
    %v5481 = vadd.f32 0.0, %v5480
    %v5482 = vpop.f32.mrb[0].mxu0
    %5483 = vmatprep.mubr.bf16.mxu0 0
    %5484 = vmatmul.mubr.bf16.gmra.mrb[0].mxu0 %v5395
    %v5485 = vpop.f32.mrb[0].mxu0
    %v5486 = vadd.f32 0.0, %v5485
    %v5487 = vpop.f32.mrb[0].mxu0
    %v5488 = vpop.f32.mrb[0].mxu0
    %v5489 = vadd.f32 0.0, %v5488
    %v5490 = vpop.f32.mrb[0].mxu0
    %5491 = vmatprep.mubr.bf16.mxu0 0
    %5492 = vmatmul.mubr.bf16.gmra.mrb[0].mxu0 %v5398
    %v5493 = vpop.f32.mrb[0].mxu0
    %v5494 = vadd.f32 0.0, %v5493
    %v5495 = vpop.f32.mrb[0].mxu0
    %v5496 = vpop.f32.mrb[0].mxu0
    %v5497 = vadd.f32 0.0, %v5496
    %v5498 = vpop.f32.mrb[0].mxu0
    %5499 = vdwg.mxu0
    %v5500 = vmax.f32 %v5438, %v5454
    %v5501 = vmax.f32 %v5441, %v5457
    %v5502 = vmax.f32 %v5446, %v5462
    %v5503 = vmax.f32 %v5449, %v5465
    %v5504 = vmax.f32 %v5500, %v5470
    %v5505 = vmax.f32 %v5501, %v5473
    %v5506 = vmax.f32 %v5502, %v5478
    %v5507 = vmax.f32 %v5503, %v5481
    %v5508 = vmax.f32 %v5504, %v5486
    %v5509 = vmax.f32 %v5505, %v5489
    %v5510 = vmax.f32 %v5506, %v5494
    %v5511 = vmax.f32 %v5507, %v5497
    %v5512 = vmax.f32 %v5508, %v5509
    %v5513 = vmax.f32 %v5510, %v5511
    %v5514 = vmax.f32 %v5512, %v5513
    %v5515 = vrot.slane %v5514, 4
    %v5516 = vmax.f32 %v5514, %v5515
    %v5517 = vrot.slane %v5516, 2
    %v5518 = vmax.f32 %v5516, %v5517
    %v5519 = vrot.slane %v5518, 1
    %v5520 = vmax.f32 %v5518, %v5519
    %v5521 = vsub.f32 %v5438, %v5520
    %v5522 = vsub.f32 %v5441, %v5520
    %v5523 = vsub.f32 %v5446, %v5520
    %v5524 = vsub.f32 %v5449, %v5520
    %v5525 = vsub.f32 %v5454, %v5520
    %v5526 = vsub.f32 %v5457, %v5520
    %v5527 = vsub.f32 %v5462, %v5520
    %v5528 = vsub.f32 %v5465, %v5520
    %v5529 = vsub.f32 %v5470, %v5520
    %v5530 = vsub.f32 %v5473, %v5520
    %v5531 = vsub.f32 %v5478, %v5520
    %v5532 = vsub.f32 %v5481, %v5520
    %v5533 = vsub.f32 %v5486, %v5520
    %v5534 = vsub.f32 %v5489, %v5520
    %v5535 = vsub.f32 %v5494, %v5520
    %v5536 = vsub.f32 %v5497, %v5520
    %v5537 = vmul.f32 %v5521, 1.442695
    %v5538 = vpow.pop %v5537
    %v5539 = vmul.f32 %v5522, 1.442695
    %v5540 = vpow.pop %v5539
    %v5541 = vmul.f32 %v5523, 1.442695
    %v5542 = vpow.pop %v5541
    %v5543 = vmul.f32 %v5524, 1.442695
    %v5544 = vpow.pop %v5543
    %v5545 = vmul.f32 %v5525, 1.442695
    %v5546 = vpow.pop %v5545
    %v5547 = vmul.f32 %v5526, 1.442695
    %v5548 = vpow.pop %v5547
    %v5549 = vmul.f32 %v5527, 1.442695
    %v5550 = vpow.pop %v5549
    %v5551 = vmul.f32 %v5528, 1.442695
    %v5552 = vpow.pop %v5551
    %v5553 = vmul.f32 %v5529, 1.442695
    %v5554 = vpow.pop %v5553
    %v5555 = vmul.f32 %v5530, 1.442695
    %v5556 = vpow.pop %v5555
    %v5557 = vmul.f32 %v5531, 1.442695
    %v5558 = vpow.pop %v5557
    %v5559 = vmul.f32 %v5532, 1.442695
    %v5560 = vpow.pop %v5559
    %v5561 = vmul.f32 %v5533, 1.442695
    %v5562 = vpow.pop %v5561
    %v5563 = vmul.f32 %v5534, 1.442695
    %v5564 = vpow.pop %v5563
    %v5565 = vmul.f32 %v5535, 1.442695
    %v5566 = vpow.pop %v5565
    %v5567 = vmul.f32 %v5536, 1.442695
    %v5568 = vpow.pop %v5567
    %v5569 = vadd.f32 %v5538, %v5540
    %v5570 = vadd.f32 %v5569, %v5542
    %v5571 = vadd.f32 %v5570, %v5544
    %v5572 = vadd.f32 %v5571, %v5546
    %v5573 = vadd.f32 %v5572, %v5548
    %v5574 = vadd.f32 %v5573, %v5550
    %v5575 = vadd.f32 %v5574, %v5552
    %v5576 = vadd.f32 %v5575, %v5554
    %v5577 = vadd.f32 %v5576, %v5556
    %v5578 = vadd.f32 %v5577, %v5558
    %v5579 = vadd.f32 %v5578, %v5560
    %v5580 = vadd.f32 %v5579, %v5562
    %v5581 = vadd.f32 %v5580, %v5564
    %v5582 = vadd.f32 %v5581, %v5566
    %v5583 = vadd.f32 %v5582, %v5568
    %v5584 = vrot.slane %v5583, 4
    %v5585 = vadd.f32 %v5583, %v5584
    %v5586 = vrot.slane %v5585, 2
    %v5587 = vadd.f32 %v5585, %v5586
    %v5588 = vrot.slane %v5587, 1
    %v5589 = vadd.f32 %v5587, %v5588
    %v5590 = vrcp.pop %v5589
    %v5591 = vpack.c.bf16 %v5540, %v5538
    %v5592 = vpack.c.bf16 %v5544, %v5542
    %v5593 = vpack.c.bf16 %v5548, %v5546
    %v5594 = vpack.c.bf16 %v5552, %v5550
    %v5595 = vpack.c.bf16 %v5556, %v5554
    %v5596 = vpack.c.bf16 %v5560, %v5558
    %v5597 = vpack.c.bf16 %v5564, %v5562
    %v5598 = vpack.c.bf16 %v5568, %v5566
    %5599 = vmatprep.subr.bf16.mxu0 0
    %5600 = vmatpush1.bf16.msra.mxu0 %v5591
    %5601 = vmatprep.subr.bf16.mxu0 0
    %5602 = vmatpush1.bf16.msra.mxu0 %v5592
    %5603 = vmatprep.subr.bf16.mxu0 0
    %5604 = vmatpush1.bf16.msra.mxu0 %v5593
    %5605 = vmatprep.subr.bf16.mxu0 0
    %5606 = vmatpush1.bf16.msra.mxu0 %v5594
    %5607 = vmatprep.subr.bf16.mxu0 0
    %5608 = vmatpush1.bf16.msra.mxu0 %v5595
    %5609 = vmatprep.subr.bf16.mxu0 0
    %5610 = vmatpush1.bf16.msra.mxu0 %v5596
    %5611 = vmatprep.subr.bf16.mxu0 0
    %5612 = vmatpush1.bf16.msra.mxu0 %v5597
    %5613 = vmatprep.subr.bf16.mxu0 0
    %5614 = vmatpush1.bf16.msra.mxu0 %v5598
    %5615 = vmatprep.subr.bf16.mxu0 0
    %5616 = vmatpush1.bf16.msra.mxu0 0
    %5617 = vmatprep.subr.bf16.mxu0 0
    %5618 = vmatpush1.bf16.msra.mxu0 0
    %5619 = vmatprep.subr.bf16.mxu0 0
    %5620 = vmatpush1.bf16.msra.mxu0 0
    %5621 = vmatprep.subr.bf16.mxu0 0
    %5622 = vmatpush1.bf16.msra.mxu0 0
    %5623 = vmatprep.subr.bf16.mxu0 0
    %5624 = vmatpush1.bf16.msra.mxu0 0
    %5625 = vmatprep.subr.bf16.mxu0 0
    %5626 = vmatpush1.bf16.msra.mxu0 0
    %5627 = vmatprep.subr.bf16.mxu0 0
    %5628 = vmatpush1.bf16.msra.mxu0 0
    %5629 = vmatprep.subr.bf16.mxu0 0
    %5630 = vmatpush1.bf16.msra.mxu0 0
    %5631 = vmatprep.mubr.bf16.mxu0 0
    %5632 = vmatmul.mubr.bf16.gmra.mrb[0].mxu0 %v5359
    %v5633 = vpop.f32.mrb[0].mxu0
    %v5634 = vadd.f32 0.0, %v5633
    %v5635 = vpop.f32.mrb[0].mxu0
    %v5636 = vpop.f32.mrb[0].mxu0
    %v5637 = vpop.f32.mrb[0].mxu0
    %5638 = vdwg.mxu0
    %v5639 = vmul.f32 %v5634, %v5590
    %v5640 = vpack.c.bf16 %v4452, %v4452
    %v5641 = vpack.c.bf16 %v4472, %v4472
    %v5642 = vpack.c.bf16 %v4492, %v4492
    %5643 = vxpose.xlu0.c.b16.start [1/8] %v5641, 128
    %5644 = vxpose.xlu0.c.b16.cont [2/8] 0, 128
    %5645 = vxpose.xlu0.c.b16.cont [3/8] 0, 128
    %5646 = vxpose.xlu0.c.b16.cont [4/8] 0, 128
    %5647 = vxpose.xlu0.c.b16.cont [5/8] 0, 128
    %5648 = vxpose.xlu0.c.b16.cont [6/8] 0, 128
    %5649 = vxpose.xlu0.c.b16.cont [7/8] 0, 128
    %5650 = vxpose.xlu0.c.b16.end [8/8] 0, 128
    %v5651 = vpop.trf.xlu0
    %v5652 = vpop.trf.xlu0
    %v5653 = vpop.trf.xlu0
    %v5654 = vpop.trf.xlu0
    %v5655 = vpop.trf.xlu0
    %v5656 = vpop.trf.xlu0
    %v5657 = vpop.trf.xlu0
    %v5658 = vpop.trf.xlu0
    %v5660 = vsel %vm982, %v5651, 0
    %v5663 = vsel %vm982, %v5652, 0
    %v5666 = vsel %vm982, %v5653, 0
    %v5669 = vsel %vm982, %v5654, 0
    %v5672 = vsel %vm982, %v5655, 0
    %v5675 = vsel %vm982, %v5656, 0
    %v5678 = vsel %vm982, %v5657, 0
    %v5681 = vsel %vm982, %v5658, 0
    %v5684 = vsel %vm1007, %v5640, 0
    %5686 = vmatprep.subr.bf16.mxu0 0
    %5687 = vmatpush1.bf16.msra.mxu0 %v5684
    %5688 = vmatprep.subr.bf16.mxu0 0
    %5689 = vmatpush1.bf16.msra.mxu0 0
    %5690 = vmatprep.subr.bf16.mxu0 0
    %5691 = vmatpush1.bf16.msra.mxu0 0
    %5692 = vmatprep.subr.bf16.mxu0 0
    %5693 = vmatpush1.bf16.msra.mxu0 0
    %5694 = vmatprep.subr.bf16.mxu0 0
    %5695 = vmatpush1.bf16.msra.mxu0 0
    %5696 = vmatprep.subr.bf16.mxu0 0
    %5697 = vmatpush1.bf16.msra.mxu0 0
    %5698 = vmatprep.subr.bf16.mxu0 0
    %5699 = vmatpush1.bf16.msra.mxu0 0
    %5700 = vmatprep.subr.bf16.mxu0 0
    %5701 = vmatpush1.bf16.msra.mxu0 0
    %5702 = vmatprep.subr.bf16.mxu0 0
    %5703 = vmatpush1.bf16.msra.mxu0 0
    %5704 = vmatprep.subr.bf16.mxu0 0
    %5705 = vmatpush1.bf16.msra.mxu0 0
    %5706 = vmatprep.subr.bf16.mxu0 0
    %5707 = vmatpush1.bf16.msra.mxu0 0
    %5708 = vmatprep.subr.bf16.mxu0 0
    %5709 = vmatpush1.bf16.msra.mxu0 0
    %5710 = vmatprep.subr.bf16.mxu0 0
    %5711 = vmatpush1.bf16.msra.mxu0 0
    %5712 = vmatprep.subr.bf16.mxu0 0
    %5713 = vmatpush1.bf16.msra.mxu0 0
    %5714 = vmatprep.subr.bf16.mxu0 0
    %5715 = vmatpush1.bf16.msra.mxu0 0
    %5716 = vmatprep.subr.bf16.mxu0 0
    %5717 = vmatpush1.bf16.msra.mxu0 0
    %5718 = vmatprep.mubr.bf16.mxu0 0
    %5719 = vmatmul.mubr.bf16.gmra.mrb[0].mxu0 %v5660
    %v5720 = vpop.f32.mrb[0].mxu0
    %v5721 = vadd.f32 0.0, %v5720
    %v5722 = vpop.f32.mrb[0].mxu0
    %v5723 = vpop.f32.mrb[0].mxu0
    %v5724 = vadd.f32 0.0, %v5723
    %v5725 = vpop.f32.mrb[0].mxu0
    %5726 = vmatprep.mubr.bf16.mxu0 0
    %5727 = vmatmul.mubr.bf16.gmra.mrb[0].mxu0 %v5663
    %v5728 = vpop.f32.mrb[0].mxu0
    %v5729 = vadd.f32 0.0, %v5728
    %v5730 = vpop.f32.mrb[0].mxu0
    %v5731 = vpop.f32.mrb[0].mxu0
    %v5732 = vadd.f32 0.0, %v5731
    %v5733 = vpop.f32.mrb[0].mxu0
    %5734 = vmatprep.mubr.bf16.mxu0 0
    %5735 = vmatmul.mubr.bf16.gmra.mrb[0].mxu0 %v5666
    %v5736 = vpop.f32.mrb[0].mxu0
    %v5737 = vadd.f32 0.0, %v5736
    %v5738 = vpop.f32.mrb[0].mxu0
    %v5739 = vpop.f32.mrb[0].mxu0
    %v5740 = vadd.f32 0.0, %v5739
    %v5741 = vpop.f32.mrb[0].mxu0
    %5742 = vmatprep.mubr.bf16.mxu0 0
    %5743 = vmatmul.mubr.bf16.gmra.mrb[0].mxu0 %v5669
    %v5744 = vpop.f32.mrb[0].mxu0
    %v5745 = vadd.f32 0.0, %v5744
    %v5746 = vpop.f32.mrb[0].mxu0
    %v5747 = vpop.f32.mrb[0].mxu0
    %v5748 = vadd.f32 0.0, %v5747
    %v5749 = vpop.f32.mrb[0].mxu0
    %5750 = vmatprep.mubr.bf16.mxu0 0
    %5751 = vmatmul.mubr.bf16.gmra.mrb[0].mxu0 %v5672
    %v5752 = vpop.f32.mrb[0].mxu0
    %v5753 = vadd.f32 0.0, %v5752
    %v5754 = vpop.f32.mrb[0].mxu0
    %v5755 = vpop.f32.mrb[0].mxu0
    %v5756 = vadd.f32 0.0, %v5755
    %v5757 = vpop.f32.mrb[0].mxu0
    %5758 = vmatprep.mubr.bf16.mxu0 0
    %5759 = vmatmul.mubr.bf16.gmra.mrb[0].mxu0 %v5675
    %v5760 = vpop.f32.mrb[0].mxu0
    %v5761 = vadd.f32 0.0, %v5760
    %v5762 = vpop.f32.mrb[0].mxu0
    %v5763 = vpop.f32.mrb[0].mxu0
    %v5764 = vadd.f32 0.0, %v5763
    %v5765 = vpop.f32.mrb[0].mxu0
    %5766 = vmatprep.mubr.bf16.mxu0 0
    %5767 = vmatmul.mubr.bf16.gmra.mrb[0].mxu0 %v5678
    %v5768 = vpop.f32.mrb[0].mxu0
    %v5769 = vadd.f32 0.0, %v5768
    %v5770 = vpop.f32.mrb[0].mxu0
    %v5771 = vpop.f32.mrb[0].mxu0
    %v5772 = vadd.f32 0.0, %v5771
    %v5773 = vpop.f32.mrb[0].mxu0
    %5774 = vmatprep.mubr.bf16.mxu0 0
    %5775 = vmatmul.mubr.bf16.gmra.mrb[0].mxu0 %v5681
    %v5776 = vpop.f32.mrb[0].mxu0
    %v5777 = vadd.f32 0.0, %v5776
    %v5778 = vpop.f32.mrb[0].mxu0
    %v5779 = vpop.f32.mrb[0].mxu0
    %v5780 = vadd.f32 0.0, %v5779
    %v5781 = vpop.f32.mrb[0].mxu0
    %5782 = vdwg.mxu0
    %v5783 = vmax.f32 %v5721, %v5737
    %v5784 = vmax.f32 %v5724, %v5740
    %v5785 = vmax.f32 %v5729, %v5745
    %v5786 = vmax.f32 %v5732, %v5748
    %v5787 = vmax.f32 %v5783, %v5753
    %v5788 = vmax.f32 %v5784, %v5756
    %v5789 = vmax.f32 %v5785, %v5761
    %v5790 = vmax.f32 %v5786, %v5764
    %v5791 = vmax.f32 %v5787, %v5769
    %v5792 = vmax.f32 %v5788, %v5772
    %v5793 = vmax.f32 %v5789, %v5777
    %v5794 = vmax.f32 %v5790, %v5780
    %v5795 = vmax.f32 %v5791, %v5792
    %v5796 = vmax.f32 %v5793, %v5794
    %v5797 = vmax.f32 %v5795, %v5796
    %v5798 = vrot.slane %v5797, 4
    %v5799 = vmax.f32 %v5797, %v5798
    %v5800 = vrot.slane %v5799, 2
    %v5801 = vmax.f32 %v5799, %v5800
    %v5802 = vrot.slane %v5801, 1
    %v5803 = vmax.f32 %v5801, %v5802
    %v5804 = vsub.f32 %v5721, %v5803
    %v5805 = vsub.f32 %v5724, %v5803
    %v5806 = vsub.f32 %v5729, %v5803
    %v5807 = vsub.f32 %v5732, %v5803
    %v5808 = vsub.f32 %v5737, %v5803
    %v5809 = vsub.f32 %v5740, %v5803
    %v5810 = vsub.f32 %v5745, %v5803
    %v5811 = vsub.f32 %v5748, %v5803
    %v5812 = vsub.f32 %v5753, %v5803
    %v5813 = vsub.f32 %v5756, %v5803
    %v5814 = vsub.f32 %v5761, %v5803
    %v5815 = vsub.f32 %v5764, %v5803
    %v5816 = vsub.f32 %v5769, %v5803
    %v5817 = vsub.f32 %v5772, %v5803
    %v5818 = vsub.f32 %v5777, %v5803
    %v5819 = vsub.f32 %v5780, %v5803
    %v5820 = vmul.f32 %v5804, 1.442695
    %v5821 = vpow.pop %v5820
    %v5822 = vmul.f32 %v5805, 1.442695
    %v5823 = vpow.pop %v5822
    %v5824 = vmul.f32 %v5806, 1.442695
    %v5825 = vpow.pop %v5824
    %v5826 = vmul.f32 %v5807, 1.442695
    %v5827 = vpow.pop %v5826
    %v5828 = vmul.f32 %v5808, 1.442695
    %v5829 = vpow.pop %v5828
    %v5830 = vmul.f32 %v5809, 1.442695
    %v5831 = vpow.pop %v5830
    %v5832 = vmul.f32 %v5810, 1.442695
    %v5833 = vpow.pop %v5832
    %v5834 = vmul.f32 %v5811, 1.442695
    %v5835 = vpow.pop %v5834
    %v5836 = vmul.f32 %v5812, 1.442695
    %v5837 = vpow.pop %v5836
    %v5838 = vmul.f32 %v5813, 1.442695
    %v5839 = vpow.pop %v5838
    %v5840 = vmul.f32 %v5814, 1.442695
    %v5841 = vpow.pop %v5840
    %v5842 = vmul.f32 %v5815, 1.442695
    %v5843 = vpow.pop %v5842
    %v5844 = vmul.f32 %v5816, 1.442695
    %v5845 = vpow.pop %v5844
    %v5846 = vmul.f32 %v5817, 1.442695
    %v5847 = vpow.pop %v5846
    %v5848 = vmul.f32 %v5818, 1.442695
    %v5849 = vpow.pop %v5848
    %v5850 = vmul.f32 %v5819, 1.442695
    %v5851 = vpow.pop %v5850
    %v5852 = vadd.f32 %v5821, %v5823
    %v5853 = vadd.f32 %v5852, %v5825
    %v5854 = vadd.f32 %v5853, %v5827
    %v5855 = vadd.f32 %v5854, %v5829
    %v5856 = vadd.f32 %v5855, %v5831
    %v5857 = vadd.f32 %v5856, %v5833
    %v5858 = vadd.f32 %v5857, %v5835
    %v5859 = vadd.f32 %v5858, %v5837
    %v5860 = vadd.f32 %v5859, %v5839
    %v5861 = vadd.f32 %v5860, %v5841
    %v5862 = vadd.f32 %v5861, %v5843
    %v5863 = vadd.f32 %v5862, %v5845
    %v5864 = vadd.f32 %v5863, %v5847
    %v5865 = vadd.f32 %v5864, %v5849
    %v5866 = vadd.f32 %v5865, %v5851
    %v5867 = vrot.slane %v5866, 4
    %v5868 = vadd.f32 %v5866, %v5867
    %v5869 = vrot.slane %v5868, 2
    %v5870 = vadd.f32 %v5868, %v5869
    %v5871 = vrot.slane %v5870, 1
    %v5872 = vadd.f32 %v5870, %v5871
    %v5873 = vrcp.pop %v5872
    %v5874 = vpack.c.bf16 %v5823, %v5821
    %v5875 = vpack.c.bf16 %v5827, %v5825
    %v5876 = vpack.c.bf16 %v5831, %v5829
    %v5877 = vpack.c.bf16 %v5835, %v5833
    %v5878 = vpack.c.bf16 %v5839, %v5837
    %v5879 = vpack.c.bf16 %v5843, %v5841
    %v5880 = vpack.c.bf16 %v5847, %v5845
    %v5881 = vpack.c.bf16 %v5851, %v5849
    %5882 = vmatprep.subr.bf16.mxu0 0
    %5883 = vmatpush1.bf16.msra.mxu0 %v5874
    %5884 = vmatprep.subr.bf16.mxu0 0
    %5885 = vmatpush1.bf16.msra.mxu0 %v5875
    %5886 = vmatprep.subr.bf16.mxu0 0
    %5887 = vmatpush1.bf16.msra.mxu0 %v5876
    %5888 = vmatprep.subr.bf16.mxu0 0
    %5889 = vmatpush1.bf16.msra.mxu0 %v5877
    %5890 = vmatprep.subr.bf16.mxu0 0
    %5891 = vmatpush1.bf16.msra.mxu0 %v5878
    %5892 = vmatprep.subr.bf16.mxu0 0
    %5893 = vmatpush1.bf16.msra.mxu0 %v5879
    %5894 = vmatprep.subr.bf16.mxu0 0
    %5895 = vmatpush1.bf16.msra.mxu0 %v5880
    %5896 = vmatprep.subr.bf16.mxu0 0
    %5897 = vmatpush1.bf16.msra.mxu0 %v5881
    %5898 = vmatprep.subr.bf16.mxu0 0
    %5899 = vmatpush1.bf16.msra.mxu0 0
    %5900 = vmatprep.subr.bf16.mxu0 0
    %5901 = vmatpush1.bf16.msra.mxu0 0
    %5902 = vmatprep.subr.bf16.mxu0 0
    %5903 = vmatpush1.bf16.msra.mxu0 0
    %5904 = vmatprep.subr.bf16.mxu0 0
    %5905 = vmatpush1.bf16.msra.mxu0 0
    %5906 = vmatprep.subr.bf16.mxu0 0
    %5907 = vmatpush1.bf16.msra.mxu0 0
    %5908 = vmatprep.subr.bf16.mxu0 0
    %5909 = vmatpush1.bf16.msra.mxu0 0
    %5910 = vmatprep.subr.bf16.mxu0 0
    %5911 = vmatpush1.bf16.msra.mxu0 0
    %5912 = vmatprep.subr.bf16.mxu0 0
    %5913 = vmatpush1.bf16.msra.mxu0 0
    %5914 = vmatprep.mubr.bf16.mxu0 0
    %5915 = vmatmul.mubr.bf16.gmra.mrb[0].mxu0 %v5642
    %v5916 = vpop.f32.mrb[0].mxu0
    %v5917 = vadd.f32 0.0, %v5916
    %v5918 = vpop.f32.mrb[0].mxu0
    %v5919 = vpop.f32.mrb[0].mxu0
    %v5920 = vpop.f32.mrb[0].mxu0
    %5921 = vdwg.mxu0
    %v5922 = vmul.f32 %v5917, %v5873
    %v5923 = vpack.c.bf16 %v4456, %v4456
    %v5924 = vpack.c.bf16 %v4476, %v4476
    %v5925 = vpack.c.bf16 %v4496, %v4496
    %5926 = vxpose.xlu0.c.b16.start [1/8] %v5924, 128
    %5927 = vxpose.xlu0.c.b16.cont [2/8] 0, 128
    %5928 = vxpose.xlu0.c.b16.cont [3/8] 0, 128
    %5929 = vxpose.xlu0.c.b16.cont [4/8] 0, 128
    %5930 = vxpose.xlu0.c.b16.cont [5/8] 0, 128
    %5931 = vxpose.xlu0.c.b16.cont [6/8] 0, 128
    %5932 = vxpose.xlu0.c.b16.cont [7/8] 0, 128
    %5933 = vxpose.xlu0.c.b16.end [8/8] 0, 128
    %v5934 = vpop.trf.xlu0
    %v5935 = vpop.trf.xlu0
    %v5936 = vpop.trf.xlu0
    %v5937 = vpop.trf.xlu0
    %v5938 = vpop.trf.xlu0
    %v5939 = vpop.trf.xlu0
    %v5940 = vpop.trf.xlu0
    %v5941 = vpop.trf.xlu0
    %v5943 = vsel %vm982, %v5934, 0
    %v5946 = vsel %vm982, %v5935, 0
    %v5949 = vsel %vm982, %v5936, 0
    %v5952 = vsel %vm982, %v5937, 0
    %v5955 = vsel %vm982, %v5938, 0
    %v5958 = vsel %vm982, %v5939, 0
    %v5961 = vsel %vm982, %v5940, 0
    %v5964 = vsel %vm982, %v5941, 0
    %v5967 = vsel %vm1007, %v5923, 0
    %5969 = vmatprep.subr.bf16.mxu0 0
    %5970 = vmatpush1.bf16.msra.mxu0 %v5967
    %5971 = vmatprep.subr.bf16.mxu0 0
    %5972 = vmatpush1.bf16.msra.mxu0 0
    %5973 = vmatprep.subr.bf16.mxu0 0
    %5974 = vmatpush1.bf16.msra.mxu0 0
    %5975 = vmatprep.subr.bf16.mxu0 0
    %5976 = vmatpush1.bf16.msra.mxu0 0
    %5977 = vmatprep.subr.bf16.mxu0 0
    %5978 = vmatpush1.bf16.msra.mxu0 0
    %5979 = vmatprep.subr.bf16.mxu0 0
    %5980 = vmatpush1.bf16.msra.mxu0 0
    %5981 = vmatprep.subr.bf16.mxu0 0
    %5982 = vmatpush1.bf16.msra.mxu0 0
    %5983 = vmatprep.subr.bf16.mxu0 0
    %5984 = vmatpush1.bf16.msra.mxu0 0
    %5985 = vmatprep.subr.bf16.mxu0 0
    %5986 = vmatpush1.bf16.msra.mxu0 0
    %5987 = vmatprep.subr.bf16.mxu0 0
    %5988 = vmatpush1.bf16.msra.mxu0 0
    %5989 = vmatprep.subr.bf16.mxu0 0
    %5990 = vmatpush1.bf16.msra.mxu0 0
    %5991 = vmatprep.subr.bf16.mxu0 0
    %5992 = vmatpush1.bf16.msra.mxu0 0
    %5993 = vmatprep.subr.bf16.mxu0 0
    %5994 = vmatpush1.bf16.msra.mxu0 0
    %5995 = vmatprep.subr.bf16.mxu0 0
    %5996 = vmatpush1.bf16.msra.mxu0 0
    %5997 = vmatprep.subr.bf16.mxu0 0
    %5998 = vmatpush1.bf16.msra.mxu0 0
    %5999 = vmatprep.subr.bf16.mxu0 0
    %6000 = vmatpush1.bf16.msra.mxu0 0
    %6001 = vmatprep.mubr.bf16.mxu0 0
    %6002 = vmatmul.mubr.bf16.gmra.mrb[0].mxu0 %v5943
    %v6003 = vpop.f32.mrb[0].mxu0
    %v6004 = vadd.f32 0.0, %v6003
    %v6005 = vpop.f32.mrb[0].mxu0
    %v6006 = vpop.f32.mrb[0].mxu0
    %v6007 = vadd.f32 0.0, %v6006
    %v6008 = vpop.f32.mrb[0].mxu0
    %6009 = vmatprep.mubr.bf16.mxu0 0
    %6010 = vmatmul.mubr.bf16.gmra.mrb[0].mxu0 %v5946
    %v6011 = vpop.f32.mrb[0].mxu0
    %v6012 = vadd.f32 0.0, %v6011
    %v6013 = vpop.f32.mrb[0].mxu0
    %v6014 = vpop.f32.mrb[0].mxu0
    %v6015 = vadd.f32 0.0, %v6014
    %v6016 = vpop.f32.mrb[0].mxu0
    %6017 = vmatprep.mubr.bf16.mxu0 0
    %6018 = vmatmul.mubr.bf16.gmra.mrb[0].mxu0 %v5949
    %v6019 = vpop.f32.mrb[0].mxu0
    %v6020 = vadd.f32 0.0, %v6019
    %v6021 = vpop.f32.mrb[0].mxu0
    %v6022 = vpop.f32.mrb[0].mxu0
    %v6023 = vadd.f32 0.0, %v6022
    %v6024 = vpop.f32.mrb[0].mxu0
    %6025 = vmatprep.mubr.bf16.mxu0 0
    %6026 = vmatmul.mubr.bf16.gmra.mrb[0].mxu0 %v5952
    %v6027 = vpop.f32.mrb[0].mxu0
    %v6028 = vadd.f32 0.0, %v6027
    %v6029 = vpop.f32.mrb[0].mxu0
    %v6030 = vpop.f32.mrb[0].mxu0
    %v6031 = vadd.f32 0.0, %v6030
    %v6032 = vpop.f32.mrb[0].mxu0
    %6033 = vmatprep.mubr.bf16.mxu0 0
    %6034 = vmatmul.mubr.bf16.gmra.mrb[0].mxu0 %v5955
    %v6035 = vpop.f32.mrb[0].mxu0
    %v6036 = vadd.f32 0.0, %v6035
    %v6037 = vpop.f32.mrb[0].mxu0
    %v6038 = vpop.f32.mrb[0].mxu0
    %v6039 = vadd.f32 0.0, %v6038
    %v6040 = vpop.f32.mrb[0].mxu0
    %6041 = vmatprep.mubr.bf16.mxu0 0
    %6042 = vmatmul.mubr.bf16.gmra.mrb[0].mxu0 %v5958
    %v6043 = vpop.f32.mrb[0].mxu0
    %v6044 = vadd.f32 0.0, %v6043
    %v6045 = vpop.f32.mrb[0].mxu0
    %v6046 = vpop.f32.mrb[0].mxu0
    %v6047 = vadd.f32 0.0, %v6046
    %v6048 = vpop.f32.mrb[0].mxu0
    %6049 = vmatprep.mubr.bf16.mxu0 0
    %6050 = vmatmul.mubr.bf16.gmra.mrb[0].mxu0 %v5961
    %v6051 = vpop.f32.mrb[0].mxu0
    %v6052 = vadd.f32 0.0, %v6051
    %v6053 = vpop.f32.mrb[0].mxu0
    %v6054 = vpop.f32.mrb[0].mxu0
    %v6055 = vadd.f32 0.0, %v6054
    %v6056 = vpop.f32.mrb[0].mxu0
    %6057 = vmatprep.mubr.bf16.mxu0 0
    %6058 = vmatmul.mubr.bf16.gmra.mrb[0].mxu0 %v5964
    %v6059 = vpop.f32.mrb[0].mxu0
    %v6060 = vadd.f32 0.0, %v6059
    %v6061 = vpop.f32.mrb[0].mxu0
    %v6062 = vpop.f32.mrb[0].mxu0
    %v6063 = vadd.f32 0.0, %v6062
    %v6064 = vpop.f32.mrb[0].mxu0
    %6065 = vdwg.mxu0
    %v6066 = vmax.f32 %v6004, %v6020
    %v6067 = vmax.f32 %v6007, %v6023
    %v6068 = vmax.f32 %v6012, %v6028
    %v6069 = vmax.f32 %v6015, %v6031
    %v6070 = vmax.f32 %v6066, %v6036
    %v6071 = vmax.f32 %v6067, %v6039
    %v6072 = vmax.f32 %v6068, %v6044
    %v6073 = vmax.f32 %v6069, %v6047
    %v6074 = vmax.f32 %v6070, %v6052
    %v6075 = vmax.f32 %v6071, %v6055
    %v6076 = vmax.f32 %v6072, %v6060
    %v6077 = vmax.f32 %v6073, %v6063
    %v6078 = vmax.f32 %v6074, %v6075
    %v6079 = vmax.f32 %v6076, %v6077
    %v6080 = vmax.f32 %v6078, %v6079
    %v6081 = vrot.slane %v6080, 4
    %v6082 = vmax.f32 %v6080, %v6081
    %v6083 = vrot.slane %v6082, 2
    %v6084 = vmax.f32 %v6082, %v6083
    %v6085 = vrot.slane %v6084, 1
    %v6086 = vmax.f32 %v6084, %v6085
    %v6087 = vsub.f32 %v6004, %v6086
    %v6088 = vsub.f32 %v6007, %v6086
    %v6089 = vsub.f32 %v6012, %v6086
    %v6090 = vsub.f32 %v6015, %v6086
    %v6091 = vsub.f32 %v6020, %v6086
    %v6092 = vsub.f32 %v6023, %v6086
    %v6093 = vsub.f32 %v6028, %v6086
    %v6094 = vsub.f32 %v6031, %v6086
    %v6095 = vsub.f32 %v6036, %v6086
    %v6096 = vsub.f32 %v6039, %v6086
    %v6097 = vsub.f32 %v6044, %v6086
    %v6098 = vsub.f32 %v6047, %v6086
    %v6099 = vsub.f32 %v6052, %v6086
    %v6100 = vsub.f32 %v6055, %v6086
    %v6101 = vsub.f32 %v6060, %v6086
    %v6102 = vsub.f32 %v6063, %v6086
    %v6103 = vmul.f32 %v6087, 1.442695
    %v6104 = vpow.pop %v6103
    %v6105 = vmul.f32 %v6088, 1.442695
    %v6106 = vpow.pop %v6105
    %v6107 = vmul.f32 %v6089, 1.442695
    %v6108 = vpow.pop %v6107
    %v6109 = vmul.f32 %v6090, 1.442695
    %v6110 = vpow.pop %v6109
    %v6111 = vmul.f32 %v6091, 1.442695
    %v6112 = vpow.pop %v6111
    %v6113 = vmul.f32 %v6092, 1.442695
    %v6114 = vpow.pop %v6113
    %v6115 = vmul.f32 %v6093, 1.442695
    %v6116 = vpow.pop %v6115
    %v6117 = vmul.f32 %v6094, 1.442695
    %v6118 = vpow.pop %v6117
    %v6119 = vmul.f32 %v6095, 1.442695
    %v6120 = vpow.pop %v6119
    %v6121 = vmul.f32 %v6096, 1.442695
    %v6122 = vpow.pop %v6121
    %v6123 = vmul.f32 %v6097, 1.442695
    %v6124 = vpow.pop %v6123
    %v6125 = vmul.f32 %v6098, 1.442695
    %v6126 = vpow.pop %v6125
    %v6127 = vmul.f32 %v6099, 1.442695
    %v6128 = vpow.pop %v6127
    %v6129 = vmul.f32 %v6100, 1.442695
    %v6130 = vpow.pop %v6129
    %v6131 = vmul.f32 %v6101, 1.442695
    %v6132 = vpow.pop %v6131
    %v6133 = vmul.f32 %v6102, 1.442695
    %v6134 = vpow.pop %v6133
    %v6135 = vadd.f32 %v6104, %v6106
    %v6136 = vadd.f32 %v6135, %v6108
    %v6137 = vadd.f32 %v6136, %v6110
    %v6138 = vadd.f32 %v6137, %v6112
    %v6139 = vadd.f32 %v6138, %v6114
    %v6140 = vadd.f32 %v6139, %v6116
    %v6141 = vadd.f32 %v6140, %v6118
    %v6142 = vadd.f32 %v6141, %v6120
    %v6143 = vadd.f32 %v6142, %v6122
    %v6144 = vadd.f32 %v6143, %v6124
    %v6145 = vadd.f32 %v6144, %v6126
    %v6146 = vadd.f32 %v6145, %v6128
    %v6147 = vadd.f32 %v6146, %v6130
    %v6148 = vadd.f32 %v6147, %v6132
    %v6149 = vadd.f32 %v6148, %v6134
    %v6150 = vrot.slane %v6149, 4
    %v6151 = vadd.f32 %v6149, %v6150
    %v6152 = vrot.slane %v6151, 2
    %v6153 = vadd.f32 %v6151, %v6152
    %v6154 = vrot.slane %v6153, 1
    %v6155 = vadd.f32 %v6153, %v6154
    %v6156 = vrcp.pop %v6155
    %v6157 = vpack.c.bf16 %v6106, %v6104
    %v6158 = vpack.c.bf16 %v6110, %v6108
    %v6159 = vpack.c.bf16 %v6114, %v6112
    %v6160 = vpack.c.bf16 %v6118, %v6116
    %v6161 = vpack.c.bf16 %v6122, %v6120
    %v6162 = vpack.c.bf16 %v6126, %v6124
    %v6163 = vpack.c.bf16 %v6130, %v6128
    %v6164 = vpack.c.bf16 %v6134, %v6132
    %6165 = vmatprep.subr.bf16.mxu0 0
    %6166 = vmatpush1.bf16.msra.mxu0 %v6157
    %6167 = vmatprep.subr.bf16.mxu0 0
    %6168 = vmatpush1.bf16.msra.mxu0 %v6158
    %6169 = vmatprep.subr.bf16.mxu0 0
    %6170 = vmatpush1.bf16.msra.mxu0 %v6159
    %6171 = vmatprep.subr.bf16.mxu0 0
    %6172 = vmatpush1.bf16.msra.mxu0 %v6160
    %6173 = vmatprep.subr.bf16.mxu0 0
    %6174 = vmatpush1.bf16.msra.mxu0 %v6161
    %6175 = vmatprep.subr.bf16.mxu0 0
    %6176 = vmatpush1.bf16.msra.mxu0 %v6162
    %6177 = vmatprep.subr.bf16.mxu0 0
    %6178 = vmatpush1.bf16.msra.mxu0 %v6163
    %6179 = vmatprep.subr.bf16.mxu0 0
    %6180 = vmatpush1.bf16.msra.mxu0 %v6164
    %6181 = vmatprep.subr.bf16.mxu0 0
    %6182 = vmatpush1.bf16.msra.mxu0 0
    %6183 = vmatprep.subr.bf16.mxu0 0
    %6184 = vmatpush1.bf16.msra.mxu0 0
    %6185 = vmatprep.subr.bf16.mxu0 0
    %6186 = vmatpush1.bf16.msra.mxu0 0
    %6187 = vmatprep.subr.bf16.mxu0 0
    %6188 = vmatpush1.bf16.msra.mxu0 0
    %6189 = vmatprep.subr.bf16.mxu0 0
    %6190 = vmatpush1.bf16.msra.mxu0 0
    %6191 = vmatprep.subr.bf16.mxu0 0
    %6192 = vmatpush1.bf16.msra.mxu0 0
    %6193 = vmatprep.subr.bf16.mxu0 0
    %6194 = vmatpush1.bf16.msra.mxu0 0
    %6195 = vmatprep.subr.bf16.mxu0 0
    %6196 = vmatpush1.bf16.msra.mxu0 0
    %6197 = vmatprep.mubr.bf16.mxu0 0
    %6198 = vmatmul.mubr.bf16.gmra.mrb[0].mxu0 %v5925
    %v6199 = vpop.f32.mrb[0].mxu0
    %v6200 = vadd.f32 0.0, %v6199
    %v6201 = vpop.f32.mrb[0].mxu0
    %v6202 = vpop.f32.mrb[0].mxu0
    %v6203 = vpop.f32.mrb[0].mxu0
    %6204 = vdwg.mxu0
    %v6205 = vmul.f32 %v6200, %v6156
    %v6206 = vpack.c.bf16 %v4462, %v4462
    %v6207 = vpack.c.bf16 %v4482, %v4482
    %v6208 = vpack.c.bf16 %v4502, %v4502
    %6209 = vxpose.xlu0.c.b16.start [1/8] %v6207, 128
    %6210 = vxpose.xlu0.c.b16.cont [2/8] 0, 128
    %6211 = vxpose.xlu0.c.b16.cont [3/8] 0, 128
    %6212 = vxpose.xlu0.c.b16.cont [4/8] 0, 128
    %6213 = vxpose.xlu0.c.b16.cont [5/8] 0, 128
    %6214 = vxpose.xlu0.c.b16.cont [6/8] 0, 128
    %6215 = vxpose.xlu0.c.b16.cont [7/8] 0, 128
    %6216 = vxpose.xlu0.c.b16.end [8/8] 0, 128
    %v6217 = vpop.trf.xlu0
    %v6218 = vpop.trf.xlu0
    %v6219 = vpop.trf.xlu0
    %v6220 = vpop.trf.xlu0
    %v6221 = vpop.trf.xlu0
    %v6222 = vpop.trf.xlu0
    %v6223 = vpop.trf.xlu0
    %v6224 = vpop.trf.xlu0
    %v6226 = vsel %vm982, %v6217, 0
    %v6229 = vsel %vm982, %v6218, 0
    %v6232 = vsel %vm982, %v6219, 0
    %v6235 = vsel %vm982, %v6220, 0
    %v6238 = vsel %vm982, %v6221, 0
    %v6241 = vsel %vm982, %v6222, 0
    %v6244 = vsel %vm982, %v6223, 0
    %v6247 = vsel %vm982, %v6224, 0
    %v6250 = vsel %vm1007, %v6206, 0
    %6252 = vmatprep.subr.bf16.mxu0 0
    %6253 = vmatpush1.bf16.msra.mxu0 %v6250
    %6254 = vmatprep.subr.bf16.mxu0 0
    %6255 = vmatpush1.bf16.msra.mxu0 0
    %6256 = vmatprep.subr.bf16.mxu0 0
    %6257 = vmatpush1.bf16.msra.mxu0 0
    %6258 = vmatprep.subr.bf16.mxu0 0
    %6259 = vmatpush1.bf16.msra.mxu0 0
    %6260 = vmatprep.subr.bf16.mxu0 0
    %6261 = vmatpush1.bf16.msra.mxu0 0
    %6262 = vmatprep.subr.bf16.mxu0 0
    %6263 = vmatpush1.bf16.msra.mxu0 0
    %6264 = vmatprep.subr.bf16.mxu0 0
    %6265 = vmatpush1.bf16.msra.mxu0 0
    %6266 = vmatprep.subr.bf16.mxu0 0
    %6267 = vmatpush1.bf16.msra.mxu0 0
    %6268 = vmatprep.subr.bf16.mxu0 0
    %6269 = vmatpush1.bf16.msra.mxu0 0
    %6270 = vmatprep.subr.bf16.mxu0 0
    %6271 = vmatpush1.bf16.msra.mxu0 0
    %6272 = vmatprep.subr.bf16.mxu0 0
    %6273 = vmatpush1.bf16.msra.mxu0 0
    %6274 = vmatprep.subr.bf16.mxu0 0
    %6275 = vmatpush1.bf16.msra.mxu0 0
    %6276 = vmatprep.subr.bf16.mxu0 0
    %6277 = vmatpush1.bf16.msra.mxu0 0
    %6278 = vmatprep.subr.bf16.mxu0 0
    %6279 = vmatpush1.bf16.msra.mxu0 0
    %6280 = vmatprep.subr.bf16.mxu0 0
    %6281 = vmatpush1.bf16.msra.mxu0 0
    %6282 = vmatprep.subr.bf16.mxu0 0
    %6283 = vmatpush1.bf16.msra.mxu0 0
    %6284 = vmatprep.mubr.bf16.mxu0 0
    %6285 = vmatmul.mubr.bf16.gmra.mrb[0].mxu0 %v6226
    %v6286 = vpop.f32.mrb[0].mxu0
    %v6287 = vadd.f32 0.0, %v6286
    %v6288 = vpop.f32.mrb[0].mxu0
    %v6289 = vpop.f32.mrb[0].mxu0
    %v6290 = vadd.f32 0.0, %v6289
    %v6291 = vpop.f32.mrb[0].mxu0
    %6292 = vmatprep.mubr.bf16.mxu0 0
    %6293 = vmatmul.mubr.bf16.gmra.mrb[0].mxu0 %v6229
    %v6294 = vpop.f32.mrb[0].mxu0
    %v6295 = vadd.f32 0.0, %v6294
    %v6296 = vpop.f32.mrb[0].mxu0
    %v6297 = vpop.f32.mrb[0].mxu0
    %v6298 = vadd.f32 0.0, %v6297
    %v6299 = vpop.f32.mrb[0].mxu0
    %6300 = vmatprep.mubr.bf16.mxu0 0
    %6301 = vmatmul.mubr.bf16.gmra.mrb[0].mxu0 %v6232
    %v6302 = vpop.f32.mrb[0].mxu0
    %v6303 = vadd.f32 0.0, %v6302
    %v6304 = vpop.f32.mrb[0].mxu0
    %v6305 = vpop.f32.mrb[0].mxu0
    %v6306 = vadd.f32 0.0, %v6305
    %v6307 = vpop.f32.mrb[0].mxu0
    %6308 = vmatprep.mubr.bf16.mxu0 0
    %6309 = vmatmul.mubr.bf16.gmra.mrb[0].mxu0 %v6235
    %v6310 = vpop.f32.mrb[0].mxu0
    %v6311 = vadd.f32 0.0, %v6310
    %v6312 = vpop.f32.mrb[0].mxu0
    %v6313 = vpop.f32.mrb[0].mxu0
    %v6314 = vadd.f32 0.0, %v6313
    %v6315 = vpop.f32.mrb[0].mxu0
    %6316 = vmatprep.mubr.bf16.mxu0 0
    %6317 = vmatmul.mubr.bf16.gmra.mrb[0].mxu0 %v6238
    %v6318 = vpop.f32.mrb[0].mxu0
    %v6319 = vadd.f32 0.0, %v6318
    %v6320 = vpop.f32.mrb[0].mxu0
    %v6321 = vpop.f32.mrb[0].mxu0
    %v6322 = vadd.f32 0.0, %v6321
    %v6323 = vpop.f32.mrb[0].mxu0
    %6324 = vmatprep.mubr.bf16.mxu0 0
    %6325 = vmatmul.mubr.bf16.gmra.mrb[0].mxu0 %v6241
    %v6326 = vpop.f32.mrb[0].mxu0
    %v6327 = vadd.f32 0.0, %v6326
    %v6328 = vpop.f32.mrb[0].mxu0
    %v6329 = vpop.f32.mrb[0].mxu0
    %v6330 = vadd.f32 0.0, %v6329
    %v6331 = vpop.f32.mrb[0].mxu0
    %6332 = vmatprep.mubr.bf16.mxu0 0
    %6333 = vmatmul.mubr.bf16.gmra.mrb[0].mxu0 %v6244
    %v6334 = vpop.f32.mrb[0].mxu0
    %v6335 = vadd.f32 0.0, %v6334
    %v6336 = vpop.f32.mrb[0].mxu0
    %v6337 = vpop.f32.mrb[0].mxu0
    %v6338 = vadd.f32 0.0, %v6337
    %v6339 = vpop.f32.mrb[0].mxu0
    %6340 = vmatprep.mubr.bf16.mxu0 0
    %6341 = vmatmul.mubr.bf16.gmra.mrb[0].mxu0 %v6247
    %v6342 = vpop.f32.mrb[0].mxu0
    %v6343 = vadd.f32 0.0, %v6342
    %v6344 = vpop.f32.mrb[0].mxu0
    %v6345 = vpop.f32.mrb[0].mxu0
    %v6346 = vadd.f32 0.0, %v6345
    %v6347 = vpop.f32.mrb[0].mxu0
    %6348 = vdwg.mxu0
    %v6349 = vmax.f32 %v6287, %v6303
    %v6350 = vmax.f32 %v6290, %v6306
    %v6351 = vmax.f32 %v6295, %v6311
    %v6352 = vmax.f32 %v6298, %v6314
    %v6353 = vmax.f32 %v6349, %v6319
    %v6354 = vmax.f32 %v6350, %v6322
    %v6355 = vmax.f32 %v6351, %v6327
    %v6356 = vmax.f32 %v6352, %v6330
    %v6357 = vmax.f32 %v6353, %v6335
    %v6358 = vmax.f32 %v6354, %v6338
    %v6359 = vmax.f32 %v6355, %v6343
    %v6360 = vmax.f32 %v6356, %v6346
    %v6361 = vmax.f32 %v6357, %v6358
    %v6362 = vmax.f32 %v6359, %v6360
    %v6363 = vmax.f32 %v6361, %v6362
    %v6364 = vrot.slane %v6363, 4
    %v6365 = vmax.f32 %v6363, %v6364
    %v6366 = vrot.slane %v6365, 2
    %v6367 = vmax.f32 %v6365, %v6366
    %v6368 = vrot.slane %v6367, 1
    %v6369 = vmax.f32 %v6367, %v6368
    %v6370 = vsub.f32 %v6287, %v6369
    %v6371 = vsub.f32 %v6290, %v6369
    %v6372 = vsub.f32 %v6295, %v6369
    %v6373 = vsub.f32 %v6298, %v6369
    %v6374 = vsub.f32 %v6303, %v6369
    %v6375 = vsub.f32 %v6306, %v6369
    %v6376 = vsub.f32 %v6311, %v6369
    %v6377 = vsub.f32 %v6314, %v6369
    %v6378 = vsub.f32 %v6319, %v6369
    %v6379 = vsub.f32 %v6322, %v6369
    %v6380 = vsub.f32 %v6327, %v6369
    %v6381 = vsub.f32 %v6330, %v6369
    %v6382 = vsub.f32 %v6335, %v6369
    %v6383 = vsub.f32 %v6338, %v6369
    %v6384 = vsub.f32 %v6343, %v6369
    %v6385 = vsub.f32 %v6346, %v6369
    %v6386 = vmul.f32 %v6370, 1.442695
    %v6387 = vpow.pop %v6386
    %v6388 = vmul.f32 %v6371, 1.442695
    %v6389 = vpow.pop %v6388
    %v6390 = vmul.f32 %v6372, 1.442695
    %v6391 = vpow.pop %v6390
    %v6392 = vmul.f32 %v6373, 1.442695
    %v6393 = vpow.pop %v6392
    %v6394 = vmul.f32 %v6374, 1.442695
    %v6395 = vpow.pop %v6394
    %v6396 = vmul.f32 %v6375, 1.442695
    %v6397 = vpow.pop %v6396
    %v6398 = vmul.f32 %v6376, 1.442695
    %v6399 = vpow.pop %v6398
    %v6400 = vmul.f32 %v6377, 1.442695
    %v6401 = vpow.pop %v6400
    %v6402 = vmul.f32 %v6378, 1.442695
    %v6403 = vpow.pop %v6402
    %v6404 = vmul.f32 %v6379, 1.442695
    %v6405 = vpow.pop %v6404
    %v6406 = vmul.f32 %v6380, 1.442695
    %v6407 = vpow.pop %v6406
    %v6408 = vmul.f32 %v6381, 1.442695
    %v6409 = vpow.pop %v6408
    %v6410 = vmul.f32 %v6382, 1.442695
    %v6411 = vpow.pop %v6410
    %v6412 = vmul.f32 %v6383, 1.442695
    %v6413 = vpow.pop %v6412
    %v6414 = vmul.f32 %v6384, 1.442695
    %v6415 = vpow.pop %v6414
    %v6416 = vmul.f32 %v6385, 1.442695
    %v6417 = vpow.pop %v6416
    %v6418 = vadd.f32 %v6387, %v6389
    %v6419 = vadd.f32 %v6418, %v6391
    %v6420 = vadd.f32 %v6419, %v6393
    %v6421 = vadd.f32 %v6420, %v6395
    %v6422 = vadd.f32 %v6421, %v6397
    %v6423 = vadd.f32 %v6422, %v6399
    %v6424 = vadd.f32 %v6423, %v6401
    %v6425 = vadd.f32 %v6424, %v6403
    %v6426 = vadd.f32 %v6425, %v6405
    %v6427 = vadd.f32 %v6426, %v6407
    %v6428 = vadd.f32 %v6427, %v6409
    %v6429 = vadd.f32 %v6428, %v6411
    %v6430 = vadd.f32 %v6429, %v6413
    %v6431 = vadd.f32 %v6430, %v6415
    %v6432 = vadd.f32 %v6431, %v6417
    %v6433 = vrot.slane %v6432, 4
    %v6434 = vadd.f32 %v6432, %v6433
    %v6435 = vrot.slane %v6434, 2
    %v6436 = vadd.f32 %v6434, %v6435
    %v6437 = vrot.slane %v6436, 1
    %v6438 = vadd.f32 %v6436, %v6437
    %v6439 = vrcp.pop %v6438
    %v6440 = vpack.c.bf16 %v6389, %v6387
    %v6441 = vpack.c.bf16 %v6393, %v6391
    %v6442 = vpack.c.bf16 %v6397, %v6395
    %v6443 = vpack.c.bf16 %v6401, %v6399
    %v6444 = vpack.c.bf16 %v6405, %v6403
    %v6445 = vpack.c.bf16 %v6409, %v6407
    %v6446 = vpack.c.bf16 %v6413, %v6411
    %v6447 = vpack.c.bf16 %v6417, %v6415
    %6448 = vmatprep.subr.bf16.mxu0 0
    %6449 = vmatpush1.bf16.msra.mxu0 %v6440
    %6450 = vmatprep.subr.bf16.mxu0 0
    %6451 = vmatpush1.bf16.msra.mxu0 %v6441
    %6452 = vmatprep.subr.bf16.mxu0 0
    %6453 = vmatpush1.bf16.msra.mxu0 %v6442
    %6454 = vmatprep.subr.bf16.mxu0 0
    %6455 = vmatpush1.bf16.msra.mxu0 %v6443
    %6456 = vmatprep.subr.bf16.mxu0 0
    %6457 = vmatpush1.bf16.msra.mxu0 %v6444
    %6458 = vmatprep.subr.bf16.mxu0 0
    %6459 = vmatpush1.bf16.msra.mxu0 %v6445
    %6460 = vmatprep.subr.bf16.mxu0 0
    %6461 = vmatpush1.bf16.msra.mxu0 %v6446
    %6462 = vmatprep.subr.bf16.mxu0 0
    %6463 = vmatpush1.bf16.msra.mxu0 %v6447
    %6464 = vmatprep.subr.bf16.mxu0 0
    %6465 = vmatpush1.bf16.msra.mxu0 0
    %6466 = vmatprep.subr.bf16.mxu0 0
    %6467 = vmatpush1.bf16.msra.mxu0 0
    %6468 = vmatprep.subr.bf16.mxu0 0
    %6469 = vmatpush1.bf16.msra.mxu0 0
    %6470 = vmatprep.subr.bf16.mxu0 0
    %6471 = vmatpush1.bf16.msra.mxu0 0
    %6472 = vmatprep.subr.bf16.mxu0 0
    %6473 = vmatpush1.bf16.msra.mxu0 0
    %6474 = vmatprep.subr.bf16.mxu0 0
    %6475 = vmatpush1.bf16.msra.mxu0 0
    %6476 = vmatprep.subr.bf16.mxu0 0
    %6477 = vmatpush1.bf16.msra.mxu0 0
    %6478 = vmatprep.subr.bf16.mxu0 0
    %6479 = vmatpush1.bf16.msra.mxu0 0
    %6480 = vmatprep.mubr.bf16.mxu0 0
    %6481 = vmatmul.mubr.bf16.gmra.mrb[0].mxu0 %v6208
    %v6482 = vpop.f32.mrb[0].mxu0
    %v6483 = vadd.f32 0.0, %v6482
    %v6484 = vpop.f32.mrb[0].mxu0
    %v6485 = vpop.f32.mrb[0].mxu0
    %v6486 = vpop.f32.mrb[0].mxu0
    %6487 = vdwg.mxu0
    %v6488 = vmul.f32 %v6483, %v6439
    %v6489 = vpack.c.bf16 %v4466, %v4466
    %v6490 = vpack.c.bf16 %v4486, %v4486
    %v6491 = vpack.c.bf16 %v4506, %v4506
    %6492 = vxpose.xlu0.c.b16.start [1/8] %v6490, 128
    %6493 = vxpose.xlu0.c.b16.cont [2/8] 0, 128
    %6494 = vxpose.xlu0.c.b16.cont [3/8] 0, 128
    %6495 = vxpose.xlu0.c.b16.cont [4/8] 0, 128
    %6496 = vxpose.xlu0.c.b16.cont [5/8] 0, 128
    %6497 = vxpose.xlu0.c.b16.cont [6/8] 0, 128
    %6498 = vxpose.xlu0.c.b16.cont [7/8] 0, 128
    %6499 = vxpose.xlu0.c.b16.end [8/8] 0, 128
    %v6500 = vpop.trf.xlu0
    %v6501 = vpop.trf.xlu0
    %v6502 = vpop.trf.xlu0
    %v6503 = vpop.trf.xlu0
    %v6504 = vpop.trf.xlu0
    %v6505 = vpop.trf.xlu0
    %v6506 = vpop.trf.xlu0
    %v6507 = vpop.trf.xlu0
    %v6509 = vsel %vm982, %v6500, 0
    %v6512 = vsel %vm982, %v6501, 0
    %v6515 = vsel %vm982, %v6502, 0
    %v6518 = vsel %vm982, %v6503, 0
    %v6521 = vsel %vm982, %v6504, 0
    %v6524 = vsel %vm982, %v6505, 0
    %v6527 = vsel %vm982, %v6506, 0
    %v6530 = vsel %vm982, %v6507, 0
    %v6533 = vsel %vm1007, %v6489, 0
    %6535 = vmatprep.subr.bf16.mxu0 0
    %6536 = vmatpush1.bf16.msra.mxu0 %v6533
    %6537 = vmatprep.subr.bf16.mxu0 0
    %6538 = vmatpush1.bf16.msra.mxu0 0
    %6539 = vmatprep.subr.bf16.mxu0 0
    %6540 = vmatpush1.bf16.msra.mxu0 0
    %6541 = vmatprep.subr.bf16.mxu0 0
    %6542 = vmatpush1.bf16.msra.mxu0 0
    %6543 = vmatprep.subr.bf16.mxu0 0
    %6544 = vmatpush1.bf16.msra.mxu0 0
    %6545 = vmatprep.subr.bf16.mxu0 0
    %6546 = vmatpush1.bf16.msra.mxu0 0
    %6547 = vmatprep.subr.bf16.mxu0 0
    %6548 = vmatpush1.bf16.msra.mxu0 0
    %6549 = vmatprep.subr.bf16.mxu0 0
    %6550 = vmatpush1.bf16.msra.mxu0 0
    %6551 = vmatprep.subr.bf16.mxu0 0
    %6552 = vmatpush1.bf16.msra.mxu0 0
    %6553 = vmatprep.subr.bf16.mxu0 0
    %6554 = vmatpush1.bf16.msra.mxu0 0
    %6555 = vmatprep.subr.bf16.mxu0 0
    %6556 = vmatpush1.bf16.msra.mxu0 0
    %6557 = vmatprep.subr.bf16.mxu0 0
    %6558 = vmatpush1.bf16.msra.mxu0 0
    %6559 = vmatprep.subr.bf16.mxu0 0
    %6560 = vmatpush1.bf16.msra.mxu0 0
    %6561 = vmatprep.subr.bf16.mxu0 0
    %6562 = vmatpush1.bf16.msra.mxu0 0
    %6563 = vmatprep.subr.bf16.mxu0 0
    %6564 = vmatpush1.bf16.msra.mxu0 0
    %6565 = vmatprep.subr.bf16.mxu0 0
    %6566 = vmatpush1.bf16.msra.mxu0 0
    %6567 = vmatprep.mubr.bf16.mxu0 0
    %6568 = vmatmul.mubr.bf16.gmra.mrb[0].mxu0 %v6509
    %v6569 = vpop.f32.mrb[0].mxu0
    %v6570 = vadd.f32 0.0, %v6569
    %v6571 = vpop.f32.mrb[0].mxu0
    %v6572 = vpop.f32.mrb[0].mxu0
    %v6573 = vadd.f32 0.0, %v6572
    %v6574 = vpop.f32.mrb[0].mxu0
    %6575 = vmatprep.mubr.bf16.mxu0 0
    %6576 = vmatmul.mubr.bf16.gmra.mrb[0].mxu0 %v6512
    %v6577 = vpop.f32.mrb[0].mxu0
    %v6578 = vadd.f32 0.0, %v6577
    %v6579 = vpop.f32.mrb[0].mxu0
    %v6580 = vpop.f32.mrb[0].mxu0
    %v6581 = vadd.f32 0.0, %v6580
    %v6582 = vpop.f32.mrb[0].mxu0
    %6583 = vmatprep.mubr.bf16.mxu0 0
    %6584 = vmatmul.mubr.bf16.gmra.mrb[0].mxu0 %v6515
    %v6585 = vpop.f32.mrb[0].mxu0
    %v6586 = vadd.f32 0.0, %v6585
    %v6587 = vpop.f32.mrb[0].mxu0
    %v6588 = vpop.f32.mrb[0].mxu0
    %v6589 = vadd.f32 0.0, %v6588
    %v6590 = vpop.f32.mrb[0].mxu0
    %6591 = vmatprep.mubr.bf16.mxu0 0
    %6592 = vmatmul.mubr.bf16.gmra.mrb[0].mxu0 %v6518
    %v6593 = vpop.f32.mrb[0].mxu0
    %v6594 = vadd.f32 0.0, %v6593
    %v6595 = vpop.f32.mrb[0].mxu0
    %v6596 = vpop.f32.mrb[0].mxu0
    %v6597 = vadd.f32 0.0, %v6596
    %v6598 = vpop.f32.mrb[0].mxu0
    %6599 = vmatprep.mubr.bf16.mxu0 0
    %6600 = vmatmul.mubr.bf16.gmra.mrb[0].mxu0 %v6521
    %v6601 = vpop.f32.mrb[0].mxu0
    %v6602 = vadd.f32 0.0, %v6601
    %v6603 = vpop.f32.mrb[0].mxu0
    %v6604 = vpop.f32.mrb[0].mxu0
    %v6605 = vadd.f32 0.0, %v6604
    %v6606 = vpop.f32.mrb[0].mxu0
    %6607 = vmatprep.mubr.bf16.mxu0 0
    %6608 = vmatmul.mubr.bf16.gmra.mrb[0].mxu0 %v6524
    %v6609 = vpop.f32.mrb[0].mxu0
    %v6610 = vadd.f32 0.0, %v6609
    %v6611 = vpop.f32.mrb[0].mxu0
    %v6612 = vpop.f32.mrb[0].mxu0
    %v6613 = vadd.f32 0.0, %v6612
    %v6614 = vpop.f32.mrb[0].mxu0
    %6615 = vmatprep.mubr.bf16.mxu0 0
    %6616 = vmatmul.mubr.bf16.gmra.mrb[0].mxu0 %v6527
    %v6617 = vpop.f32.mrb[0].mxu0
    %v6618 = vadd.f32 0.0, %v6617
    %v6619 = vpop.f32.mrb[0].mxu0
    %v6620 = vpop.f32.mrb[0].mxu0
    %v6621 = vadd.f32 0.0, %v6620
    %v6622 = vpop.f32.mrb[0].mxu0
    %6623 = vmatprep.mubr.bf16.mxu0 0
    %6624 = vmatmul.mubr.bf16.gmra.mrb[0].mxu0 %v6530
    %v6625 = vpop.f32.mrb[0].mxu0
    %v6626 = vadd.f32 0.0, %v6625
    %v6627 = vpop.f32.mrb[0].mxu0
    %v6628 = vpop.f32.mrb[0].mxu0
    %v6629 = vadd.f32 0.0, %v6628
    %v6630 = vpop.f32.mrb[0].mxu0
    %6631 = vdwg.mxu0
    %v6632 = vmax.f32 %v6570, %v6586
    %v6633 = vmax.f32 %v6573, %v6589
    %v6634 = vmax.f32 %v6578, %v6594
    %v6635 = vmax.f32 %v6581, %v6597
    %v6636 = vmax.f32 %v6632, %v6602
    %v6637 = vmax.f32 %v6633, %v6605
    %v6638 = vmax.f32 %v6634, %v6610
    %v6639 = vmax.f32 %v6635, %v6613
    %v6640 = vmax.f32 %v6636, %v6618
    %v6641 = vmax.f32 %v6637, %v6621
    %v6642 = vmax.f32 %v6638, %v6626
    %v6643 = vmax.f32 %v6639, %v6629
    %v6644 = vmax.f32 %v6640, %v6641
    %v6645 = vmax.f32 %v6642, %v6643
    %v6646 = vmax.f32 %v6644, %v6645
    %v6647 = vrot.slane %v6646, 4
    %v6648 = vmax.f32 %v6646, %v6647
    %v6649 = vrot.slane %v6648, 2
    %v6650 = vmax.f32 %v6648, %v6649
    %v6651 = vrot.slane %v6650, 1
    %v6652 = vmax.f32 %v6650, %v6651
    %v6653 = vsub.f32 %v6570, %v6652
    %v6654 = vsub.f32 %v6573, %v6652
    %v6655 = vsub.f32 %v6578, %v6652
    %v6656 = vsub.f32 %v6581, %v6652
    %v6657 = vsub.f32 %v6586, %v6652
    %v6658 = vsub.f32 %v6589, %v6652
    %v6659 = vsub.f32 %v6594, %v6652
    %v6660 = vsub.f32 %v6597, %v6652
    %v6661 = vsub.f32 %v6602, %v6652
    %v6662 = vsub.f32 %v6605, %v6652
    %v6663 = vsub.f32 %v6610, %v6652
    %v6664 = vsub.f32 %v6613, %v6652
    %v6665 = vsub.f32 %v6618, %v6652
    %v6666 = vsub.f32 %v6621, %v6652
    %v6667 = vsub.f32 %v6626, %v6652
    %v6668 = vsub.f32 %v6629, %v6652
    %v6669 = vmul.f32 %v6653, 1.442695
    %v6670 = vpow.pop %v6669
    %v6671 = vmul.f32 %v6654, 1.442695
    %v6672 = vpow.pop %v6671
    %v6673 = vmul.f32 %v6655, 1.442695
    %v6674 = vpow.pop %v6673
    %v6675 = vmul.f32 %v6656, 1.442695
    %v6676 = vpow.pop %v6675
    %v6677 = vmul.f32 %v6657, 1.442695
    %v6678 = vpow.pop %v6677
    %v6679 = vmul.f32 %v6658, 1.442695
    %v6680 = vpow.pop %v6679
    %v6681 = vmul.f32 %v6659, 1.442695
    %v6682 = vpow.pop %v6681
    %v6683 = vmul.f32 %v6660, 1.442695
    %v6684 = vpow.pop %v6683
    %v6685 = vmul.f32 %v6661, 1.442695
    %v6686 = vpow.pop %v6685
    %v6687 = vmul.f32 %v6662, 1.442695
    %v6688 = vpow.pop %v6687
    %v6689 = vmul.f32 %v6663, 1.442695
    %v6690 = vpow.pop %v6689
    %v6691 = vmul.f32 %v6664, 1.442695
    %v6692 = vpow.pop %v6691
    %v6693 = vmul.f32 %v6665, 1.442695
    %v6694 = vpow.pop %v6693
    %v6695 = vmul.f32 %v6666, 1.442695
    %v6696 = vpow.pop %v6695
    %v6697 = vmul.f32 %v6667, 1.442695
    %v6698 = vpow.pop %v6697
    %v6699 = vmul.f32 %v6668, 1.442695
    %v6700 = vpow.pop %v6699
    %v6701 = vadd.f32 %v6670, %v6672
    %v6702 = vadd.f32 %v6701, %v6674
    %v6703 = vadd.f32 %v6702, %v6676
    %v6704 = vadd.f32 %v6703, %v6678
    %v6705 = vadd.f32 %v6704, %v6680
    %v6706 = vadd.f32 %v6705, %v6682
    %v6707 = vadd.f32 %v6706, %v6684
    %v6708 = vadd.f32 %v6707, %v6686
    %v6709 = vadd.f32 %v6708, %v6688
    %v6710 = vadd.f32 %v6709, %v6690
    %v6711 = vadd.f32 %v6710, %v6692
    %v6712 = vadd.f32 %v6711, %v6694
    %v6713 = vadd.f32 %v6712, %v6696
    %v6714 = vadd.f32 %v6713, %v6698
    %v6715 = vadd.f32 %v6714, %v6700
    %v6716 = vrot.slane %v6715, 4
    %v6717 = vadd.f32 %v6715, %v6716
    %v6718 = vrot.slane %v6717, 2
    %v6719 = vadd.f32 %v6717, %v6718
    %v6720 = vrot.slane %v6719, 1
    %v6721 = vadd.f32 %v6719, %v6720
    %v6722 = vrcp.pop %v6721
    %v6723 = vpack.c.bf16 %v6672, %v6670
    %v6724 = vpack.c.bf16 %v6676, %v6674
    %v6725 = vpack.c.bf16 %v6680, %v6678
    %v6726 = vpack.c.bf16 %v6684, %v6682
    %v6727 = vpack.c.bf16 %v6688, %v6686
    %v6728 = vpack.c.bf16 %v6692, %v6690
    %v6729 = vpack.c.bf16 %v6696, %v6694
    %v6730 = vpack.c.bf16 %v6700, %v6698
    %6731 = vmatprep.subr.bf16.mxu0 0
    %6732 = vmatpush1.bf16.msra.mxu0 %v6723
    %6733 = vmatprep.subr.bf16.mxu0 0
    %6734 = vmatpush1.bf16.msra.mxu0 %v6724
    %6735 = vmatprep.subr.bf16.mxu0 0
    %6736 = vmatpush1.bf16.msra.mxu0 %v6725
    %6737 = vmatprep.subr.bf16.mxu0 0
    %6738 = vmatpush1.bf16.msra.mxu0 %v6726
    %6739 = vmatprep.subr.bf16.mxu0 0
    %6740 = vmatpush1.bf16.msra.mxu0 %v6727
    %6741 = vmatprep.subr.bf16.mxu0 0
    %6742 = vmatpush1.bf16.msra.mxu0 %v6728
    %6743 = vmatprep.subr.bf16.mxu0 0
    %6744 = vmatpush1.bf16.msra.mxu0 %v6729
    %6745 = vmatprep.subr.bf16.mxu0 0
    %6746 = vmatpush1.bf16.msra.mxu0 %v6730
    %6747 = vmatprep.subr.bf16.mxu0 0
    %6748 = vmatpush1.bf16.msra.mxu0 0
    %6749 = vmatprep.subr.bf16.mxu0 0
    %6750 = vmatpush1.bf16.msra.mxu0 0
    %6751 = vmatprep.subr.bf16.mxu0 0
    %6752 = vmatpush1.bf16.msra.mxu0 0
    %6753 = vmatprep.subr.bf16.mxu0 0
    %6754 = vmatpush1.bf16.msra.mxu0 0
    %6755 = vmatprep.subr.bf16.mxu0 0
    %6756 = vmatpush1.bf16.msra.mxu0 0
    %6757 = vmatprep.subr.bf16.mxu0 0
    %6758 = vmatpush1.bf16.msra.mxu0 0
    %6759 = vmatprep.subr.bf16.mxu0 0
    %6760 = vmatpush1.bf16.msra.mxu0 0
    %6761 = vmatprep.subr.bf16.mxu0 0
    %6762 = vmatpush1.bf16.msra.mxu0 0
    %6763 = vmatprep.mubr.bf16.mxu0 0
    %6764 = vmatmul.mubr.bf16.gmra.mrb[0].mxu0 %v6491
    %v6765 = vpop.f32.mrb[0].mxu0
    %v6766 = vadd.f32 0.0, %v6765
    %v6767 = vpop.f32.mrb[0].mxu0
    %v6768 = vpop.f32.mrb[0].mxu0
    %v6769 = vpop.f32.mrb[0].mxu0
    %6770 = vdwg.mxu0
    %v6771 = vmul.f32 %v6766, %v6722
    %v6772 = vpack.c.bf16 %v5073, %v4790
    %v6773 = vpack.c.bf16 %v6205, %v5922
    %v6774 = vpack.c.bf16 %v5639, %v5356
    %v6775 = vpack.c.bf16 %v6771, %v6488
    %s6776 = scalar_lea.vmem %s6, 16
    %v6777 = vld [vmem:[%s6776] sm:$0xf]
    %v6778 = vld [vmem:[%s6776 + $0x4] sm:$0xf]
    %v6779 = vld [vmem:[%s6776 + $0x8] sm:$0xf]
    %v6780 = vld [vmem:[%s6776 + $0xc] sm:$0xf]
    %v6785 = vunpack.c.l.b16 %v6777
    %v6786 = vunpack.c.l.b16 %v6778
    %v6787 = vunpack.c.l.b16 %v6779
    %v6788 = vunpack.c.l.b16 %v6780
    %v6789 = vpack.c.b16 %v6786, %v6785
    %v6790 = vpack.c.b16 %v6788, %v6787
    %v6792 = vsel %vm851, %v6789, 0
    %v6795 = vsel %vm851, %v6790, 0
    %6797 = vmatprep.subr.bf16.mxu0 %v6773
    %6798 = vmatpush1.bf16.msra.mxu0 %v6772
    %6799 = vmatprep.subr.bf16.mxu0 %v6775
    %6800 = vmatpush1.bf16.msra.mxu0 %v6774
    %6801 = vmatprep.subr.bf16.mxu0 0
    %6802 = vmatpush1.bf16.msra.mxu0 0
    %6803 = vmatprep.subr.bf16.mxu0 0
    %6804 = vmatpush1.bf16.msra.mxu0 0
    %6805 = vmatprep.subr.bf16.mxu0 0
    %6806 = vmatpush1.bf16.msra.mxu0 0
    %6807 = vmatprep.subr.bf16.mxu0 0
    %6808 = vmatpush1.bf16.msra.mxu0 0
    %6809 = vmatprep.subr.bf16.mxu0 0
    %6810 = vmatpush1.bf16.msra.mxu0 0
    %6811 = vmatprep.subr.bf16.mxu0 0
    %6812 = vmatpush1.bf16.msra.mxu0 0
    %6813 = vmatprep.subr.bf16.mxu0 0
    %6814 = vmatpush1.bf16.msra.mxu0 0
    %6815 = vmatprep.subr.bf16.mxu0 0
    %6816 = vmatpush1.bf16.msra.mxu0 0
    %6817 = vmatprep.subr.bf16.mxu0 0
    %6818 = vmatpush1.bf16.msra.mxu0 0
    %6819 = vmatprep.subr.bf16.mxu0 0
    %6820 = vmatpush1.bf16.msra.mxu0 0
    %6821 = vmatprep.subr.bf16.mxu0 0
    %6822 = vmatpush1.bf16.msra.mxu0 0
    %6823 = vmatprep.subr.bf16.mxu0 0
    %6824 = vmatpush1.bf16.msra.mxu0 0
    %6825 = vmatprep.subr.bf16.mxu0 0
    %6826 = vmatpush1.bf16.msra.mxu0 0
    %6827 = vmatprep.subr.bf16.mxu0 0
    %6828 = vmatpush1.bf16.msra.mxu0 0
    %6829 = vmatprep.mubr.bf16.mxu0 0
    %6830 = vmatmul.mubr.bf16.gmra.mrb[0].mxu0 %v6792
    %v6831 = vpop.f32.mrb[0].mxu0
    %v6832 = vadd.f32 0.0, %v6831
    %v6833 = vpop.f32.mrb[0].mxu0
    %v6834 = vadd.f32 0.0, %v6833
    %v6835 = vpop.f32.mrb[0].mxu0
    %v6836 = vadd.f32 0.0, %v6835
    %v6837 = vpop.f32.mrb[0].mxu0
    %v6838 = vadd.f32 0.0, %v6837
    %6839 = vmatprep.mubr.bf16.mxu0 0
    %6840 = vmatmul.mubr.bf16.gmra.mrb[0].mxu0 %v6795
    %v6841 = vpop.f32.mrb[0].mxu0
    %v6842 = vadd.f32 0.0, %v6841
    %v6843 = vpop.f32.mrb[0].mxu0
    %v6844 = vadd.f32 0.0, %v6843
    %v6845 = vpop.f32.mrb[0].mxu0
    %v6846 = vadd.f32 0.0, %v6845
    %v6847 = vpop.f32.mrb[0].mxu0
    %v6848 = vadd.f32 0.0, %v6847
    %6849 = vdwg.mxu0
    %v6850 = vadd.f32 %v4144, %v6832
    %v6851 = vadd.f32 %v4145, %v6834
    %v6852 = vadd.f32 %v4146, %v6836
    %v6853 = vadd.f32 %v4147, %v6838
    %v6854 = vadd.f32 %v4148, %v6842
    %v6855 = vadd.f32 %v4149, %v6844
    %v6856 = vadd.f32 %v4150, %v6846
    %v6857 = vadd.f32 %v4151, %v6848
    %6858 = vset.pattern.permute.xlu0 4
    %6859 = vperm.xlu0 %6858, %v4153
    %v6860 = vpop.permute.xlu0 %6859
    %6862 = vset.pattern.permute.xlu0 4
    %6863 = vperm.xlu0 %6862, %v4154
    %v6864 = vpop.permute.xlu0 %6863
    %6866 = vset.pattern.permute.xlu0 4
    %6867 = vperm.xlu0 %6866, %v4155
    %v6868 = vpop.permute.xlu0 %6867
    %6870 = vset.pattern.permute.xlu0 4
    %6871 = vperm.xlu0 %6870, %v4156
    %v6872 = vpop.permute.xlu0 %6871
    %v6874 = vadd.f32 %v6850, %v6860
    %v6875 = vadd.f32 %v6851, %v6860
    %v6876 = vadd.f32 %v6852, %v6864
    %v6877 = vadd.f32 %v6853, %v6864
    %v6878 = vadd.f32 %v6854, %v6868
    %v6879 = vadd.f32 %v6855, %v6868
    %v6880 = vadd.f32 %v6856, %v6872
    %v6881 = vadd.f32 %v6857, %v6872
    %v6882 = vadd.f32 %v6874, %v6876
    %v6883 = vadd.f32 %v6882, %v6878
    %v6884 = vadd.f32 %v6883, %v6880
    %v6885 = vrot.slane %v6884, 4
    %v6886 = vadd.f32 %v6884, %v6885
    %v6887 = vrot.slane %v6886, 2
    %v6888 = vadd.f32 %v6886, %v6887
    %v6889 = vrot.slane %v6888, 1
    %v6890 = vadd.f32 %v6888, %v6889
    %v6891 = vadd.f32 %v6875, %v6877
    %v6892 = vadd.f32 %v6891, %v6879
    %v6893 = vadd.f32 %v6892, %v6881
    %v6894 = vrot.slane %v6893, 4
    %v6895 = vadd.f32 %v6893, %v6894
    %v6896 = vrot.slane %v6895, 2
    %v6897 = vadd.f32 %v6895, %v6896
    %v6898 = vrot.slane %v6897, 1
    %v6899 = vadd.f32 %v6897, %v6898
    %v6900 = vmul.f32 %v6890, %v630
    %v6901 = vmul.f32 %v6899, %v630
    %v6902 = vsub.f32 %v6874, %v6900
    %v6903 = vsub.f32 %v6875, %v6901
    %v6904 = vsub.f32 %v6876, %v6900
    %v6905 = vsub.f32 %v6877, %v6901
    %v6906 = vsub.f32 %v6878, %v6900
    %v6907 = vsub.f32 %v6879, %v6901
    %v6908 = vsub.f32 %v6880, %v6900
    %v6909 = vsub.f32 %v6881, %v6901
    %v6910 = vmul.f32 %v6902, %v6902
    %v6911 = vmul.f32 %v6903, %v6903
    %v6912 = vmul.f32 %v6904, %v6904
    %v6913 = vmul.f32 %v6905, %v6905
    %v6914 = vmul.f32 %v6906, %v6906
    %v6915 = vmul.f32 %v6907, %v6907
    %v6916 = vmul.f32 %v6908, %v6908
    %v6917 = vmul.f32 %v6909, %v6909
    %v6918 = vadd.f32 %v6910, %v6912
    %v6919 = vadd.f32 %v6918, %v6914
    %v6920 = vadd.f32 %v6919, %v6916
    %v6921 = vrot.slane %v6920, 4
    %v6922 = vadd.f32 %v6920, %v6921
    %v6923 = vrot.slane %v6922, 2
    %v6924 = vadd.f32 %v6922, %v6923
    %v6925 = vrot.slane %v6924, 1
    %v6926 = vadd.f32 %v6924, %v6925
    %v6927 = vadd.f32 %v6911, %v6913
    %v6928 = vadd.f32 %v6927, %v6915
    %v6929 = vadd.f32 %v6928, %v6917
    %v6930 = vrot.slane %v6929, 4
    %v6931 = vadd.f32 %v6929, %v6930
    %v6932 = vrot.slane %v6931, 2
    %v6933 = vadd.f32 %v6931, %v6932
    %v6934 = vrot.slane %v6933, 1
    %v6935 = vadd.f32 %v6933, %v6934
    %v6936 = vmul.f32 %v6926, %v630
    %v6937 = vmul.f32 %v6935, %v630
    %v6938 = vadd.f32 %v6936, 1e-05
    %v6939 = vadd.f32 %v6937, 1e-05
    %v6940 = vrsqrt.pop %v6938
    %v6941 = vrsqrt.pop %v6939
    %v6942 = vmul.f32 %v6902, %v6940
    %v6943 = vmul.f32 %v6903, %v6941
    %v6944 = vmul.f32 %v6904, %v6940
    %v6945 = vmul.f32 %v6905, %v6941
    %v6946 = vmul.f32 %v6906, %v6940
    %v6947 = vmul.f32 %v6907, %v6941
    %v6948 = vmul.f32 %v6908, %v6940
    %v6949 = vmul.f32 %v6909, %v6941
    %6950 = vset.pattern.permute.xlu0 2
    %6951 = vperm.xlu0 %6950, %v4153
    %v6952 = vpop.permute.xlu0 %6951
    %6954 = vset.pattern.permute.xlu0 2
    %6955 = vperm.xlu0 %6954, %v4154
    %v6956 = vpop.permute.xlu0 %6955
    %6958 = vset.pattern.permute.xlu0 2
    %6959 = vperm.xlu0 %6958, %v4155
    %v6960 = vpop.permute.xlu0 %6959
    %6962 = vset.pattern.permute.xlu0 2
    %6963 = vperm.xlu0 %6962, %v4156
    %v6964 = vpop.permute.xlu0 %6963
    %v6966 = vmul.f32 %v6942, %v6952
    %v6967 = vmul.f32 %v6943, %v6952
    %v6968 = vmul.f32 %v6944, %v6956
    %v6969 = vmul.f32 %v6945, %v6956
    %v6970 = vmul.f32 %v6946, %v6960
    %v6971 = vmul.f32 %v6947, %v6960
    %v6972 = vmul.f32 %v6948, %v6964
    %v6973 = vmul.f32 %v6949, %v6964
    %6974 = vset.pattern.permute.xlu0 3
    %6975 = vperm.xlu0 %6974, %v4153
    %v6976 = vpop.permute.xlu0 %6975
    %6978 = vset.pattern.permute.xlu0 3
    %6979 = vperm.xlu0 %6978, %v4154
    %v6980 = vpop.permute.xlu0 %6979
    %6982 = vset.pattern.permute.xlu0 3
    %6983 = vperm.xlu0 %6982, %v4155
    %v6984 = vpop.permute.xlu0 %6983
    %6986 = vset.pattern.permute.xlu0 3
    %6987 = vperm.xlu0 %6986, %v4156
    %v6988 = vpop.permute.xlu0 %6987
    %v6990 = vadd.f32 %v6966, %v6976
    %v6991 = vadd.f32 %v6967, %v6976
    %v6992 = vadd.f32 %v6968, %v6980
    %v6993 = vadd.f32 %v6969, %v6980
    %v6994 = vadd.f32 %v6970, %v6984
    %v6995 = vadd.f32 %v6971, %v6984
    %v6996 = vadd.f32 %v6972, %v6988
    %v6997 = vadd.f32 %v6973, %v6988
    %v6998 = vpack.c.bf16 %v6992, %v6990
    %v6999 = vpack.c.bf16 %v6993, %v6991
    %v7000 = vpack.c.bf16 %v6996, %v6994
    %v7001 = vpack.c.bf16 %v6997, %v6995
    %s7002 = scalar_lea.vmem %s7, 64
    %v7003 = vld [vmem:[%s7002] sm:$0xf]
    %v7004 = vld [vmem:[%s7002 + $0x4] sm:$0xf]
    %v7005 = vld [vmem:[%s7002 + $0x8] sm:$0xf]
    %v7006 = vld [vmem:[%s7002 + $0xc] sm:$0xf]
    %v7007 = vld [vmem:[%s7002 + $0x10] sm:$0xf]
    %v7008 = vld [vmem:[%s7002 + $0x14] sm:$0xf]
    %v7009 = vld [vmem:[%s7002 + $0x18] sm:$0xf]
    %v7010 = vld [vmem:[%s7002 + $0x1c] sm:$0xf]
    %v7011 = vld [vmem:[%s7002 + $0x20] sm:$0xf]
    %v7012 = vld [vmem:[%s7002 + $0x24] sm:$0xf]
    %v7013 = vld [vmem:[%s7002 + $0x28] sm:$0xf]
    %v7014 = vld [vmem:[%s7002 + $0x2c] sm:$0xf]
    %v7015 = vld [vmem:[%s7002 + $0x30] sm:$0xf]
    %v7016 = vld [vmem:[%s7002 + $0x34] sm:$0xf]
    %v7017 = vld [vmem:[%s7002 + $0x38] sm:$0xf]
    %v7018 = vld [vmem:[%s7002 + $0x3c] sm:$0xf]
    %s7019 = scalar_lea.vmem %s8, 128
    %v7020 = vld [vmem:[%s7019] sm:$0xff]
    %v7021 = vld [vmem:[%s7019 + $0x8] sm:$0xff]
    %v7022 = vld [vmem:[%s7019 + $0x10] sm:$0xff]
    %v7023 = vld [vmem:[%s7019 + $0x18] sm:$0xff]
    %v7024 = vld [vmem:[%s7019 + $0x20] sm:$0xff]
    %v7025 = vld [vmem:[%s7019 + $0x28] sm:$0xff]
    %v7026 = vld [vmem:[%s7019 + $0x30] sm:$0xff]
    %v7027 = vld [vmem:[%s7019 + $0x38] sm:$0xff]
    %v7028 = vld [vmem:[%s7019 + $0x40] sm:$0xff]
    %v7029 = vld [vmem:[%s7019 + $0x48] sm:$0xff]
    %v7030 = vld [vmem:[%s7019 + $0x50] sm:$0xff]
    %v7031 = vld [vmem:[%s7019 + $0x58] sm:$0xff]
    %v7032 = vld [vmem:[%s7019 + $0x60] sm:$0xff]
    %v7033 = vld [vmem:[%s7019 + $0x68] sm:$0xff]
    %v7034 = vld [vmem:[%s7019 + $0x70] sm:$0xff]
    %v7035 = vld [vmem:[%s7019 + $0x78] sm:$0xff]
    %7037 = vset.pattern.permute.xlu0 0
    %7038 = vperm.xlu0 %7037, %v7020
    %v7039 = vpop.permute.xlu0 %7038
    %7042 = vset.pattern.permute.xlu0 0
    %7043 = vperm.xlu0 %7042, %v7021
    %v7044 = vpop.permute.xlu0 %7043
    %7047 = vset.pattern.permute.xlu0 0
    %7048 = vperm.xlu0 %7047, %v7022
    %v7049 = vpop.permute.xlu0 %7048
    %7052 = vset.pattern.permute.xlu0 0
    %7053 = vperm.xlu0 %7052, %v7023
    %v7054 = vpop.permute.xlu0 %7053
    %7057 = vset.pattern.permute.xlu0 0
    %7058 = vperm.xlu0 %7057, %v7024
    %v7059 = vpop.permute.xlu0 %7058
    %7062 = vset.pattern.permute.xlu0 0
    %7063 = vperm.xlu0 %7062, %v7025
    %v7064 = vpop.permute.xlu0 %7063
    %7067 = vset.pattern.permute.xlu0 0
    %7068 = vperm.xlu0 %7067, %v7026
    %v7069 = vpop.permute.xlu0 %7068
    %7072 = vset.pattern.permute.xlu0 0
    %7073 = vperm.xlu0 %7072, %v7027
    %v7074 = vpop.permute.xlu0 %7073
    %7077 = vset.pattern.permute.xlu0 0
    %7078 = vperm.xlu0 %7077, %v7028
    %v7079 = vpop.permute.xlu0 %7078
    %7082 = vset.pattern.permute.xlu0 0
    %7083 = vperm.xlu0 %7082, %v7029
    %v7084 = vpop.permute.xlu0 %7083
    %7087 = vset.pattern.permute.xlu0 0
    %7088 = vperm.xlu0 %7087, %v7030
    %v7089 = vpop.permute.xlu0 %7088
    %7092 = vset.pattern.permute.xlu0 0
    %7093 = vperm.xlu0 %7092, %v7031
    %v7094 = vpop.permute.xlu0 %7093
    %7097 = vset.pattern.permute.xlu0 0
    %7098 = vperm.xlu0 %7097, %v7032
    %v7099 = vpop.permute.xlu0 %7098
    %7102 = vset.pattern.permute.xlu0 0
    %7103 = vperm.xlu0 %7102, %v7033
    %v7104 = vpop.permute.xlu0 %7103
    %7107 = vset.pattern.permute.xlu0 0
    %7108 = vperm.xlu0 %7107, %v7034
    %v7109 = vpop.permute.xlu0 %7108
    %7112 = vset.pattern.permute.xlu0 0
    %7113 = vperm.xlu0 %7112, %v7035
    %v7114 = vpop.permute.xlu0 %7113
    %v7132 = vunpack.c.l.b16 %v7003
    %v7133 = vunpack.c.l.b16 %v7004
    %v7134 = vunpack.c.l.b16 %v7005
    %v7135 = vunpack.c.l.b16 %v7006
    %v7136 = vunpack.c.l.b16 %v7007
    %v7137 = vunpack.c.l.b16 %v7008
    %v7138 = vunpack.c.l.b16 %v7009
    %v7139 = vunpack.c.l.b16 %v7010
    %v7140 = vunpack.c.l.b16 %v7011
    %v7141 = vunpack.c.l.b16 %v7012
    %v7142 = vunpack.c.l.b16 %v7013
    %v7143 = vunpack.c.l.b16 %v7014
    %v7144 = vunpack.c.l.b16 %v7015
    %v7145 = vunpack.c.l.b16 %v7016
    %v7146 = vunpack.c.l.b16 %v7017
    %v7147 = vunpack.c.l.b16 %v7018
    %v7148 = vpack.c.b16 %v7133, %v7132
    %v7149 = vpack.c.b16 %v7135, %v7134
    %v7150 = vpack.c.b16 %v7137, %v7136
    %v7151 = vpack.c.b16 %v7139, %v7138
    %v7152 = vpack.c.b16 %v7141, %v7140
    %v7153 = vpack.c.b16 %v7143, %v7142
    %v7154 = vpack.c.b16 %v7145, %v7144
    %v7155 = vpack.c.b16 %v7147, %v7146
    %v7157 = vsel %vm851, %v7148, 0
    %v7160 = vsel %vm851, %v7149, 0
    %v7163 = vsel %vm851, %v7150, 0
    %v7166 = vsel %vm851, %v7151, 0
    %v7169 = vsel %vm851, %v7152, 0
    %v7172 = vsel %vm851, %v7153, 0
    %v7175 = vsel %vm851, %v7154, 0
    %v7178 = vsel %vm851, %v7155, 0
    %7180 = vmatprep.subr.bf16.mxu0 %v6999
    %7181 = vmatpush1.bf16.msra.mxu0 %v6998
    %7182 = vmatprep.subr.bf16.mxu0 %v7001
    %7183 = vmatpush1.bf16.msra.mxu0 %v7000
    %7184 = vmatprep.subr.bf16.mxu0 0
    %7185 = vmatpush1.bf16.msra.mxu0 0
    %7186 = vmatprep.subr.bf16.mxu0 0
    %7187 = vmatpush1.bf16.msra.mxu0 0
    %7188 = vmatprep.subr.bf16.mxu0 0
    %7189 = vmatpush1.bf16.msra.mxu0 0
    %7190 = vmatprep.subr.bf16.mxu0 0
    %7191 = vmatpush1.bf16.msra.mxu0 0
    %7192 = vmatprep.subr.bf16.mxu0 0
    %7193 = vmatpush1.bf16.msra.mxu0 0
    %7194 = vmatprep.subr.bf16.mxu0 0
    %7195 = vmatpush1.bf16.msra.mxu0 0
    %7196 = vmatprep.subr.bf16.mxu0 0
    %7197 = vmatpush1.bf16.msra.mxu0 0
    %7198 = vmatprep.subr.bf16.mxu0 0
    %7199 = vmatpush1.bf16.msra.mxu0 0
    %7200 = vmatprep.subr.bf16.mxu0 0
    %7201 = vmatpush1.bf16.msra.mxu0 0
    %7202 = vmatprep.subr.bf16.mxu0 0
    %7203 = vmatpush1.bf16.msra.mxu0 0
    %7204 = vmatprep.subr.bf16.mxu0 0
    %7205 = vmatpush1.bf16.msra.mxu0 0
    %7206 = vmatprep.subr.bf16.mxu0 0
    %7207 = vmatpush1.bf16.msra.mxu0 0
    %7208 = vmatprep.subr.bf16.mxu0 0
    %7209 = vmatpush1.bf16.msra.mxu0 0
    %7210 = vmatprep.subr.bf16.mxu0 0
    %7211 = vmatpush1.bf16.msra.mxu0 0
    %7212 = vmatprep.mubr.bf16.mxu0 0
    %7213 = vmatmul.mubr.bf16.gmra.mrb[0].mxu0 %v7157
    %v7214 = vpop.f32.mrb[0].mxu0
    %v7215 = vadd.f32 %v7039, %v7214
    %v7216 = vpop.f32.mrb[0].mxu0
    %v7217 = vadd.f32 %v7039, %v7216
    %v7218 = vpop.f32.mrb[0].mxu0
    %v7219 = vadd.f32 %v7044, %v7218
    %v7220 = vpop.f32.mrb[0].mxu0
    %v7221 = vadd.f32 %v7044, %v7220
    %7222 = vmatprep.mubr.bf16.mxu0 0
    %7223 = vmatmul.mubr.bf16.gmra.mrb[0].mxu0 %v7160
    %v7224 = vpop.f32.mrb[0].mxu0
    %v7225 = vadd.f32 %v7049, %v7224
    %v7226 = vpop.f32.mrb[0].mxu0
    %v7227 = vadd.f32 %v7049, %v7226
    %v7228 = vpop.f32.mrb[0].mxu0
    %v7229 = vadd.f32 %v7054, %v7228
    %v7230 = vpop.f32.mrb[0].mxu0
    %v7231 = vadd.f32 %v7054, %v7230
    %7232 = vmatprep.mubr.bf16.mxu0 0
    %7233 = vmatmul.mubr.bf16.gmra.mrb[0].mxu0 %v7163
    %v7234 = vpop.f32.mrb[0].mxu0
    %v7235 = vadd.f32 %v7059, %v7234
    %v7236 = vpop.f32.mrb[0].mxu0
    %v7237 = vadd.f32 %v7059, %v7236
    %v7238 = vpop.f32.mrb[0].mxu0
    %v7239 = vadd.f32 %v7064, %v7238
    %v7240 = vpop.f32.mrb[0].mxu0
    %v7241 = vadd.f32 %v7064, %v7240
    %7242 = vmatprep.mubr.bf16.mxu0 0
    %7243 = vmatmul.mubr.bf16.gmra.mrb[0].mxu0 %v7166
    %v7244 = vpop.f32.mrb[0].mxu0
    %v7245 = vadd.f32 %v7069, %v7244
    %v7246 = vpop.f32.mrb[0].mxu0
    %v7247 = vadd.f32 %v7069, %v7246
    %v7248 = vpop.f32.mrb[0].mxu0
    %v7249 = vadd.f32 %v7074, %v7248
    %v7250 = vpop.f32.mrb[0].mxu0
    %v7251 = vadd.f32 %v7074, %v7250
    %7252 = vmatprep.mubr.bf16.mxu0 0
    %7253 = vmatmul.mubr.bf16.gmra.mrb[0].mxu0 %v7169
    %v7254 = vpop.f32.mrb[0].mxu0
    %v7255 = vadd.f32 %v7079, %v7254
    %v7256 = vpop.f32.mrb[0].mxu0
    %v7257 = vadd.f32 %v7079, %v7256
    %v7258 = vpop.f32.mrb[0].mxu0
    %v7259 = vadd.f32 %v7084, %v7258
    %v7260 = vpop.f32.mrb[0].mxu0
    %v7261 = vadd.f32 %v7084, %v7260
    %7262 = vmatprep.mubr.bf16.mxu0 0
    %7263 = vmatmul.mubr.bf16.gmra.mrb[0].mxu0 %v7172
    %v7264 = vpop.f32.mrb[0].mxu0
    %v7265 = vadd.f32 %v7089, %v7264
    %v7266 = vpop.f32.mrb[0].mxu0
    %v7267 = vadd.f32 %v7089, %v7266
    %v7268 = vpop.f32.mrb[0].mxu0
    %v7269 = vadd.f32 %v7094, %v7268
    %v7270 = vpop.f32.mrb[0].mxu0
    %v7271 = vadd.f32 %v7094, %v7270
    %7272 = vmatprep.mubr.bf16.mxu0 0
    %7273 = vmatmul.mubr.bf16.gmra.mrb[0].mxu0 %v7175
    %v7274 = vpop.f32.mrb[0].mxu0
    %v7275 = vadd.f32 %v7099, %v7274
    %v7276 = vpop.f32.mrb[0].mxu0
    %v7277 = vadd.f32 %v7099, %v7276
    %v7278 = vpop.f32.mrb[0].mxu0
    %v7279 = vadd.f32 %v7104, %v7278
    %v7280 = vpop.f32.mrb[0].mxu0
    %v7281 = vadd.f32 %v7104, %v7280
    %7282 = vmatprep.mubr.bf16.mxu0 0
    %7283 = vmatmul.mubr.bf16.gmra.mrb[0].mxu0 %v7178
    %v7284 = vpop.f32.mrb[0].mxu0
    %v7285 = vadd.f32 %v7109, %v7284
    %v7286 = vpop.f32.mrb[0].mxu0
    %v7287 = vadd.f32 %v7109, %v7286
    %v7288 = vpop.f32.mrb[0].mxu0
    %v7289 = vadd.f32 %v7114, %v7288
    %v7290 = vpop.f32.mrb[0].mxu0
    %v7291 = vadd.f32 %v7114, %v7290
    %7292 = vdwg.mxu0
    %v7293 = vmul.f32 %v7215, 0.5
    %v7294 = vmul.f32 %v7217, 0.5
    %v7295 = vmul.f32 %v7219, 0.5
    %v7296 = vmul.f32 %v7221, 0.5
    %v7297 = vmul.f32 %v7225, 0.5
    %v7298 = vmul.f32 %v7227, 0.5
    %v7299 = vmul.f32 %v7229, 0.5
    %v7300 = vmul.f32 %v7231, 0.5
    %v7301 = vmul.f32 %v7235, 0.5
    %v7302 = vmul.f32 %v7237, 0.5
    %v7303 = vmul.f32 %v7239, 0.5
    %v7304 = vmul.f32 %v7241, 0.5
    %v7305 = vmul.f32 %v7245, 0.5
    %v7306 = vmul.f32 %v7247, 0.5
    %v7307 = vmul.f32 %v7249, 0.5
    %v7308 = vmul.f32 %v7251, 0.5
    %v7309 = vmul.f32 %v7255, 0.5
    %v7310 = vmul.f32 %v7257, 0.5
    %v7311 = vmul.f32 %v7259, 0.5
    %v7312 = vmul.f32 %v7261, 0.5
    %v7313 = vmul.f32 %v7265, 0.5
    %v7314 = vmul.f32 %v7267, 0.5
    %v7315 = vmul.f32 %v7269, 0.5
    %v7316 = vmul.f32 %v7271, 0.5
    %v7317 = vmul.f32 %v7275, 0.5
    %v7318 = vmul.f32 %v7277, 0.5
    %v7319 = vmul.f32 %v7279, 0.5
    %v7320 = vmul.f32 %v7281, 0.5
    %v7321 = vmul.f32 %v7285, 0.5
    %v7322 = vmul.f32 %v7287, 0.5
    %v7323 = vmul.f32 %v7289, 0.5
    %v7324 = vmul.f32 %v7291, 0.5
    %v7325 = vmul.f32 %v7215, 0.044715
    %v7326 = vmul.f32 %v7217, 0.044715
    %v7327 = vmul.f32 %v7219, 0.044715
    %v7328 = vmul.f32 %v7221, 0.044715
    %v7329 = vmul.f32 %v7225, 0.044715
    %v7330 = vmul.f32 %v7227, 0.044715
    %v7331 = vmul.f32 %v7229, 0.044715
    %v7332 = vmul.f32 %v7231, 0.044715
    %v7333 = vmul.f32 %v7235, 0.044715
    %v7334 = vmul.f32 %v7237, 0.044715
    %v7335 = vmul.f32 %v7239, 0.044715
    %v7336 = vmul.f32 %v7241, 0.044715
    %v7337 = vmul.f32 %v7245, 0.044715
    %v7338 = vmul.f32 %v7247, 0.044715
    %v7339 = vmul.f32 %v7249, 0.044715
    %v7340 = vmul.f32 %v7251, 0.044715
    %v7341 = vmul.f32 %v7255, 0.044715
    %v7342 = vmul.f32 %v7257, 0.044715
    %v7343 = vmul.f32 %v7259, 0.044715
    %v7344 = vmul.f32 %v7261, 0.044715
    %v7345 = vmul.f32 %v7265, 0.044715
    %v7346 = vmul.f32 %v7267, 0.044715
    %v7347 = vmul.f32 %v7269, 0.044715
    %v7348 = vmul.f32 %v7271, 0.044715
    %v7349 = vmul.f32 %v7275, 0.044715
    %v7350 = vmul.f32 %v7277, 0.044715
    %v7351 = vmul.f32 %v7279, 0.044715
    %v7352 = vmul.f32 %v7281, 0.044715
    %v7353 = vmul.f32 %v7285, 0.044715
    %v7354 = vmul.f32 %v7287, 0.044715
    %v7355 = vmul.f32 %v7289, 0.044715
    %v7356 = vmul.f32 %v7291, 0.044715
    %v7357 = vmul.f32 %v7325, %v7215
    %v7358 = vmul.f32 %v7326, %v7217
    %v7359 = vmul.f32 %v7327, %v7219
    %v7360 = vmul.f32 %v7328, %v7221
    %v7361 = vmul.f32 %v7329, %v7225
    %v7362 = vmul.f32 %v7330, %v7227
    %v7363 = vmul.f32 %v7331, %v7229
    %v7364 = vmul.f32 %v7332, %v7231
    %v7365 = vmul.f32 %v7333, %v7235
    %v7366 = vmul.f32 %v7334, %v7237
    %v7367 = vmul.f32 %v7335, %v7239
    %v7368 = vmul.f32 %v7336, %v7241
    %v7369 = vmul.f32 %v7337, %v7245
    %v7370 = vmul.f32 %v7338, %v7247
    %v7371 = vmul.f32 %v7339, %v7249
    %v7372 = vmul.f32 %v7340, %v7251
    %v7373 = vmul.f32 %v7341, %v7255
    %v7374 = vmul.f32 %v7342, %v7257
    %v7375 = vmul.f32 %v7343, %v7259
    %v7376 = vmul.f32 %v7344, %v7261
    %v7377 = vmul.f32 %v7345, %v7265
    %v7378 = vmul.f32 %v7346, %v7267
    %v7379 = vmul.f32 %v7347, %v7269
    %v7380 = vmul.f32 %v7348, %v7271
    %v7381 = vmul.f32 %v7349, %v7275
    %v7382 = vmul.f32 %v7350, %v7277
    %v7383 = vmul.f32 %v7351, %v7279
    %v7384 = vmul.f32 %v7352, %v7281
    %v7385 = vmul.f32 %v7353, %v7285
    %v7386 = vmul.f32 %v7354, %v7287
    %v7387 = vmul.f32 %v7355, %v7289
    %v7388 = vmul.f32 %v7356, %v7291
    %v7389 = vmul.f32 %v7357, %v7215
    %v7390 = vmul.f32 %v7358, %v7217
    %v7391 = vmul.f32 %v7359, %v7219
    %v7392 = vmul.f32 %v7360, %v7221
    %v7393 = vmul.f32 %v7361, %v7225
    %v7394 = vmul.f32 %v7362, %v7227
    %v7395 = vmul.f32 %v7363, %v7229
    %v7396 = vmul.f32 %v7364, %v7231
    %v7397 = vmul.f32 %v7365, %v7235
    %v7398 = vmul.f32 %v7366, %v7237
    %v7399 = vmul.f32 %v7367, %v7239
    %v7400 = vmul.f32 %v7368, %v7241
    %v7401 = vmul.f32 %v7369, %v7245
    %v7402 = vmul.f32 %v7370, %v7247
    %v7403 = vmul.f32 %v7371, %v7249
    %v7404 = vmul.f32 %v7372, %v7251
    %v7405 = vmul.f32 %v7373, %v7255
    %v7406 = vmul.f32 %v7374, %v7257
    %v7407 = vmul.f32 %v7375, %v7259
    %v7408 = vmul.f32 %v7376, %v7261
    %v7409 = vmul.f32 %v7377, %v7265
    %v7410 = vmul.f32 %v7378, %v7267
    %v7411 = vmul.f32 %v7379, %v7269
    %v7412 = vmul.f32 %v7380, %v7271
    %v7413 = vmul.f32 %v7381, %v7275
    %v7414 = vmul.f32 %v7382, %v7277
    %v7415 = vmul.f32 %v7383, %v7279
    %v7416 = vmul.f32 %v7384, %v7281
    %v7417 = vmul.f32 %v7385, %v7285
    %v7418 = vmul.f32 %v7386, %v7287
    %v7419 = vmul.f32 %v7387, %v7289
    %v7420 = vmul.f32 %v7388, %v7291
    %v7421 = vadd.f32 %v7215, %v7389
    %v7422 = vadd.f32 %v7217, %v7390
    %v7423 = vadd.f32 %v7219, %v7391
    %v7424 = vadd.f32 %v7221, %v7392
    %v7425 = vadd.f32 %v7225, %v7393
    %v7426 = vadd.f32 %v7227, %v7394
    %v7427 = vadd.f32 %v7229, %v7395
    %v7428 = vadd.f32 %v7231, %v7396
    %v7429 = vadd.f32 %v7235, %v7397
    %v7430 = vadd.f32 %v7237, %v7398
    %v7431 = vadd.f32 %v7239, %v7399
    %v7432 = vadd.f32 %v7241, %v7400
    %v7433 = vadd.f32 %v7245, %v7401
    %v7434 = vadd.f32 %v7247, %v7402
    %v7435 = vadd.f32 %v7249, %v7403
    %v7436 = vadd.f32 %v7251, %v7404
    %v7437 = vadd.f32 %v7255, %v7405
    %v7438 = vadd.f32 %v7257, %v7406
    %v7439 = vadd.f32 %v7259, %v7407
    %v7440 = vadd.f32 %v7261, %v7408
    %v7441 = vadd.f32 %v7265, %v7409
    %v7442 = vadd.f32 %v7267, %v7410
    %v7443 = vadd.f32 %v7269, %v7411
    %v7444 = vadd.f32 %v7271, %v7412
    %v7445 = vadd.f32 %v7275, %v7413
    %v7446 = vadd.f32 %v7277, %v7414
    %v7447 = vadd.f32 %v7279, %v7415
    %v7448 = vadd.f32 %v7281, %v7416
    %v7449 = vadd.f32 %v7285, %v7417
    %v7450 = vadd.f32 %v7287, %v7418
    %v7451 = vadd.f32 %v7289, %v7419
    %v7452 = vadd.f32 %v7291, %v7420
    %v7453 = vmul.f32 %v7421, 0.7978846
    %v7454 = vmul.f32 %v7422, 0.7978846
    %v7455 = vmul.f32 %v7423, 0.7978846
    %v7456 = vmul.f32 %v7424, 0.7978846
    %v7457 = vmul.f32 %v7425, 0.7978846
    %v7458 = vmul.f32 %v7426, 0.7978846
    %v7459 = vmul.f32 %v7427, 0.7978846
    %v7460 = vmul.f32 %v7428, 0.7978846
    %v7461 = vmul.f32 %v7429, 0.7978846
    %v7462 = vmul.f32 %v7430, 0.7978846
    %v7463 = vmul.f32 %v7431, 0.7978846
    %v7464 = vmul.f32 %v7432, 0.7978846
    %v7465 = vmul.f32 %v7433, 0.7978846
    %v7466 = vmul.f32 %v7434, 0.7978846
    %v7467 = vmul.f32 %v7435, 0.7978846
    %v7468 = vmul.f32 %v7436, 0.7978846
    %v7469 = vmul.f32 %v7437, 0.7978846
    %v7470 = vmul.f32 %v7438, 0.7978846
    %v7471 = vmul.f32 %v7439, 0.7978846
    %v7472 = vmul.f32 %v7440, 0.7978846
    %v7473 = vmul.f32 %v7441, 0.7978846
    %v7474 = vmul.f32 %v7442, 0.7978846
    %v7475 = vmul.f32 %v7443, 0.7978846
    %v7476 = vmul.f32 %v7444, 0.7978846
    %v7477 = vmul.f32 %v7445, 0.7978846
    %v7478 = vmul.f32 %v7446, 0.7978846
    %v7479 = vmul.f32 %v7447, 0.7978846
    %v7480 = vmul.f32 %v7448, 0.7978846
    %v7481 = vmul.f32 %v7449, 0.7978846
    %v7482 = vmul.f32 %v7450, 0.7978846
    %v7483 = vmul.f32 %v7451, 0.7978846
    %v7484 = vmul.f32 %v7452, 0.7978846
    %v7485 = vtanh.pop %v7453
    %v7486 = vtanh.pop %v7454
    %v7487 = vtanh.pop %v7455
    %v7488 = vtanh.pop %v7456
    %v7489 = vtanh.pop %v7457
    %v7490 = vtanh.pop %v7458
    %v7491 = vtanh.pop %v7459
    %v7492 = vtanh.pop %v7460
    %v7493 = vtanh.pop %v7461
    %v7494 = vtanh.pop %v7462
    %v7495 = vtanh.pop %v7463
    %v7496 = vtanh.pop %v7464
    %v7497 = vtanh.pop %v7465
    %v7498 = vtanh.pop %v7466
    %v7499 = vtanh.pop %v7467
    %v7500 = vtanh.pop %v7468
    %v7501 = vtanh.pop %v7469
    %v7502 = vtanh.pop %v7470
    %v7503 = vtanh.pop %v7471
    %v7504 = vtanh.pop %v7472
    %v7505 = vtanh.pop %v7473
    %v7506 = vtanh.pop %v7474
    %v7507 = vtanh.pop %v7475
    %v7508 = vtanh.pop %v7476
    %v7509 = vtanh.pop %v7477
    %v7510 = vtanh.pop %v7478
    %v7511 = vtanh.pop %v7479
    %v7512 = vtanh.pop %v7480
    %v7513 = vtanh.pop %v7481
    %v7514 = vtanh.pop %v7482
    %v7515 = vtanh.pop %v7483
    %v7516 = vtanh.pop %v7484
    %v7517 = vadd.f32 %v7485, 1.0
    %v7518 = vadd.f32 %v7486, 1.0
    %v7519 = vadd.f32 %v7487, 1.0
    %v7520 = vadd.f32 %v7488, 1.0
    %v7521 = vadd.f32 %v7489, 1.0
    %v7522 = vadd.f32 %v7490, 1.0
    %v7523 = vadd.f32 %v7491, 1.0
    %v7524 = vadd.f32 %v7492, 1.0
    %v7525 = vadd.f32 %v7493, 1.0
    %v7526 = vadd.f32 %v7494, 1.0
    %v7527 = vadd.f32 %v7495, 1.0
    %v7528 = vadd.f32 %v7496, 1.0
    %v7529 = vadd.f32 %v7497, 1.0
    %v7530 = vadd.f32 %v7498, 1.0
    %v7531 = vadd.f32 %v7499, 1.0
    %v7532 = vadd.f32 %v7500, 1.0
    %v7533 = vadd.f32 %v7501, 1.0
    %v7534 = vadd.f32 %v7502, 1.0
    %v7535 = vadd.f32 %v7503, 1.0
    %v7536 = vadd.f32 %v7504, 1.0
    %v7537 = vadd.f32 %v7505, 1.0
    %v7538 = vadd.f32 %v7506, 1.0
    %v7539 = vadd.f32 %v7507, 1.0
    %v7540 = vadd.f32 %v7508, 1.0
    %v7541 = vadd.f32 %v7509, 1.0
    %v7542 = vadd.f32 %v7510, 1.0
    %v7543 = vadd.f32 %v7511, 1.0
    %v7544 = vadd.f32 %v7512, 1.0
    %v7545 = vadd.f32 %v7513, 1.0
    %v7546 = vadd.f32 %v7514, 1.0
    %v7547 = vadd.f32 %v7515, 1.0
    %v7548 = vadd.f32 %v7516, 1.0
    %v7549 = vmul.f32 %v7293, %v7517
    %v7550 = vmul.f32 %v7294, %v7518
    %v7551 = vmul.f32 %v7295, %v7519
    %v7552 = vmul.f32 %v7296, %v7520
    %v7553 = vmul.f32 %v7297, %v7521
    %v7554 = vmul.f32 %v7298, %v7522
    %v7555 = vmul.f32 %v7299, %v7523
    %v7556 = vmul.f32 %v7300, %v7524
    %v7557 = vmul.f32 %v7301, %v7525
    %v7558 = vmul.f32 %v7302, %v7526
    %v7559 = vmul.f32 %v7303, %v7527
    %v7560 = vmul.f32 %v7304, %v7528
    %v7561 = vmul.f32 %v7305, %v7529
    %v7562 = vmul.f32 %v7306, %v7530
    %v7563 = vmul.f32 %v7307, %v7531
    %v7564 = vmul.f32 %v7308, %v7532
    %v7565 = vmul.f32 %v7309, %v7533
    %v7566 = vmul.f32 %v7310, %v7534
    %v7567 = vmul.f32 %v7311, %v7535
    %v7568 = vmul.f32 %v7312, %v7536
    %v7569 = vmul.f32 %v7313, %v7537
    %v7570 = vmul.f32 %v7314, %v7538
    %v7571 = vmul.f32 %v7315, %v7539
    %v7572 = vmul.f32 %v7316, %v7540
    %v7573 = vmul.f32 %v7317, %v7541
    %v7574 = vmul.f32 %v7318, %v7542
    %v7575 = vmul.f32 %v7319, %v7543
    %v7576 = vmul.f32 %v7320, %v7544
    %v7577 = vmul.f32 %v7321, %v7545
    %v7578 = vmul.f32 %v7322, %v7546
    %v7579 = vmul.f32 %v7323, %v7547
    %v7580 = vmul.f32 %v7324, %v7548
    %v7581 = vpack.c.bf16 %v7551, %v7549
    %v7582 = vpack.c.bf16 %v7552, %v7550
    %v7583 = vpack.c.bf16 %v7555, %v7553
    %v7584 = vpack.c.bf16 %v7556, %v7554
    %v7585 = vpack.c.bf16 %v7559, %v7557
    %v7586 = vpack.c.bf16 %v7560, %v7558
    %v7587 = vpack.c.bf16 %v7563, %v7561
    %v7588 = vpack.c.bf16 %v7564, %v7562
    %v7589 = vpack.c.bf16 %v7567, %v7565
    %v7590 = vpack.c.bf16 %v7568, %v7566
    %v7591 = vpack.c.bf16 %v7571, %v7569
    %v7592 = vpack.c.bf16 %v7572, %v7570
    %v7593 = vpack.c.bf16 %v7575, %v7573
    %v7594 = vpack.c.bf16 %v7576, %v7574
    %v7595 = vpack.c.bf16 %v7579, %v7577
    %v7596 = vpack.c.bf16 %v7580, %v7578
    %s7597 = scalar_lea.vmem %s9, 16
    %v7598 = vld [vmem:[%s7597] sm:$0xf]
    %v7599 = vld [vmem:[%s7597 + $0x4] sm:$0xf]
    %v7600 = vld [vmem:[%s7597 + $0x8] sm:$0xf]
    %v7601 = vld [vmem:[%s7597 + $0xc] sm:$0xf]
    %v7606 = vunpack.c.l.b16 %v7598
    %v7607 = vunpack.c.l.b16 %v7599
    %v7608 = vunpack.c.l.b16 %v7600
    %v7609 = vunpack.c.l.b16 %v7601
    %v7610 = vpack.c.b16 %v7607, %v7606
    %v7611 = vpack.c.b16 %v7609, %v7608
    %7614 = vmatprep.subr.bf16.mxu0 %v7582
    %7615 = vmatpush1.bf16.msra.mxu0 %v7581
    %7616 = vmatprep.subr.bf16.mxu0 %v7584
    %7617 = vmatpush1.bf16.msra.mxu0 %v7583
    %7618 = vmatprep.subr.bf16.mxu0 %v7586
    %7619 = vmatpush1.bf16.msra.mxu0 %v7585
    %7620 = vmatprep.subr.bf16.mxu0 %v7588
    %7621 = vmatpush1.bf16.msra.mxu0 %v7587
    %7622 = vmatprep.subr.bf16.mxu0 %v7590
    %7623 = vmatpush1.bf16.msra.mxu0 %v7589
    %7624 = vmatprep.subr.bf16.mxu0 %v7592
    %7625 = vmatpush1.bf16.msra.mxu0 %v7591
    %7626 = vmatprep.subr.bf16.mxu0 %v7594
    %7627 = vmatpush1.bf16.msra.mxu0 %v7593
    %7628 = vmatprep.subr.bf16.mxu0 %v7596
    %7629 = vmatpush1.bf16.msra.mxu0 %v7595
    %7630 = vmatprep.subr.bf16.mxu0 0
    %7631 = vmatpush1.bf16.msra.mxu0 0
    %7632 = vmatprep.subr.bf16.mxu0 0
    %7633 = vmatpush1.bf16.msra.mxu0 0
    %7634 = vmatprep.subr.bf16.mxu0 0
    %7635 = vmatpush1.bf16.msra.mxu0 0
    %7636 = vmatprep.subr.bf16.mxu0 0
    %7637 = vmatpush1.bf16.msra.mxu0 0
    %7638 = vmatprep.subr.bf16.mxu0 0
    %7639 = vmatpush1.bf16.msra.mxu0 0
    %7640 = vmatprep.subr.bf16.mxu0 0
    %7641 = vmatpush1.bf16.msra.mxu0 0
    %7642 = vmatprep.subr.bf16.mxu0 0
    %7643 = vmatpush1.bf16.msra.mxu0 0
    %7644 = vmatprep.subr.bf16.mxu0 0
    %7645 = vmatpush1.bf16.msra.mxu0 0
    %7646 = vmatprep.mubr.bf16.mxu0 0
    %7647 = vmatmul.mubr.bf16.gmra.mrb[0].mxu0 %v7610
    %v7648 = vpop.f32.mrb[0].mxu0
    %v7649 = vadd.f32 0.0, %v7648
    %v7650 = vpop.f32.mrb[0].mxu0
    %v7651 = vadd.f32 0.0, %v7650
    %v7652 = vpop.f32.mrb[0].mxu0
    %v7653 = vadd.f32 0.0, %v7652
    %v7654 = vpop.f32.mrb[0].mxu0
    %v7655 = vadd.f32 0.0, %v7654
    %7656 = vmatprep.mubr.bf16.mxu0 0
    %7657 = vmatmul.mubr.bf16.gmra.mrb[0].mxu0 %v7611
    %v7658 = vpop.f32.mrb[0].mxu0
    %v7659 = vadd.f32 0.0, %v7658
    %v7660 = vpop.f32.mrb[0].mxu0
    %v7661 = vadd.f32 0.0, %v7660
    %v7662 = vpop.f32.mrb[0].mxu0
    %v7663 = vadd.f32 0.0, %v7662
    %v7664 = vpop.f32.mrb[0].mxu0
    %v7665 = vadd.f32 0.0, %v7664
    %7666 = vdwg.mxu0
    %v7667 = vadd.f32 %v6874, %v7649
    %v7668 = vadd.f32 %v6875, %v7651
    %v7669 = vadd.f32 %v6876, %v7653
    %v7670 = vadd.f32 %v6877, %v7655
    %v7671 = vadd.f32 %v6878, %v7659
    %v7672 = vadd.f32 %v6879, %v7661
    %v7673 = vadd.f32 %v6880, %v7663
    %v7674 = vadd.f32 %v6881, %v7665
    %7675 = vset.pattern.permute.xlu0 5
    %7676 = vperm.xlu0 %7675, %v4153
    %v7677 = vpop.permute.xlu0 %7676
    %7679 = vset.pattern.permute.xlu0 5
    %7680 = vperm.xlu0 %7679, %v4154
    %v7681 = vpop.permute.xlu0 %7680
    %7683 = vset.pattern.permute.xlu0 5
    %7684 = vperm.xlu0 %7683, %v4155
    %v7685 = vpop.permute.xlu0 %7684
    %7687 = vset.pattern.permute.xlu0 5
    %7688 = vperm.xlu0 %7687, %v4156
    %v7689 = vpop.permute.xlu0 %7688
    %v7691 = vadd.f32 %v7667, %v7677
    %v7692 = vadd.f32 %v7668, %v7677
    %v7693 = vadd.f32 %v7669, %v7681
    %v7694 = vadd.f32 %v7670, %v7681
    %v7695 = vadd.f32 %v7671, %v7685
    %v7696 = vadd.f32 %v7672, %v7685
    %v7697 = vadd.f32 %v7673, %v7689
    %v7698 = vadd.f32 %v7674, %v7689
    %v7699 = vld [vmem:[%s11] sm:$0xff]
    %v7700 = vld [vmem:[%s11 + $0x8] sm:$0xff]
    %v7701 = vld [vmem:[%s11 + $0x10] sm:$0xff]
    %v7702 = vld [vmem:[%s11 + $0x18] sm:$0xff]
    %v7703 = vadd.f32 %v7691, %v7693
    %v7704 = vadd.f32 %v7703, %v7695
    %v7705 = vadd.f32 %v7704, %v7697
    %v7706 = vrot.slane %v7705, 4
    %v7707 = vadd.f32 %v7705, %v7706
    %v7708 = vrot.slane %v7707, 2
    %v7709 = vadd.f32 %v7707, %v7708
    %v7710 = vrot.slane %v7709, 1
    %v7711 = vadd.f32 %v7709, %v7710
    %v7712 = vadd.f32 %v7692, %v7694
    %v7713 = vadd.f32 %v7712, %v7696
    %v7714 = vadd.f32 %v7713, %v7698
    %v7715 = vrot.slane %v7714, 4
    %v7716 = vadd.f32 %v7714, %v7715
    %v7717 = vrot.slane %v7716, 2
    %v7718 = vadd.f32 %v7716, %v7717
    %v7719 = vrot.slane %v7718, 1
    %v7720 = vadd.f32 %v7718, %v7719
    %v7721 = vmul.f32 %v7711, %v630
    %v7722 = vmul.f32 %v7720, %v630
    %v7723 = vsub.f32 %v7691, %v7721
    %v7724 = vsub.f32 %v7692, %v7722
    %v7725 = vsub.f32 %v7693, %v7721
    %v7726 = vsub.f32 %v7694, %v7722
    %v7727 = vsub.f32 %v7695, %v7721
    %v7728 = vsub.f32 %v7696, %v7722
    %v7729 = vsub.f32 %v7697, %v7721
    %v7730 = vsub.f32 %v7698, %v7722
    %v7731 = vmul.f32 %v7723, %v7723
    %v7732 = vmul.f32 %v7724, %v7724
    %v7733 = vmul.f32 %v7725, %v7725
    %v7734 = vmul.f32 %v7726, %v7726
    %v7735 = vmul.f32 %v7727, %v7727
    %v7736 = vmul.f32 %v7728, %v7728
    %v7737 = vmul.f32 %v7729, %v7729
    %v7738 = vmul.f32 %v7730, %v7730
    %v7739 = vadd.f32 %v7731, %v7733
    %v7740 = vadd.f32 %v7739, %v7735
    %v7741 = vadd.f32 %v7740, %v7737
    %v7742 = vrot.slane %v7741, 4
    %v7743 = vadd.f32 %v7741, %v7742
    %v7744 = vrot.slane %v7743, 2
    %v7745 = vadd.f32 %v7743, %v7744
    %v7746 = vrot.slane %v7745, 1
    %v7747 = vadd.f32 %v7745, %v7746
    %v7748 = vadd.f32 %v7732, %v7734
    %v7749 = vadd.f32 %v7748, %v7736
    %v7750 = vadd.f32 %v7749, %v7738
    %v7751 = vrot.slane %v7750, 4
    %v7752 = vadd.f32 %v7750, %v7751
    %v7753 = vrot.slane %v7752, 2
    %v7754 = vadd.f32 %v7752, %v7753
    %v7755 = vrot.slane %v7754, 1
    %v7756 = vadd.f32 %v7754, %v7755
    %v7757 = vmul.f32 %v7747, %v630
    %v7758 = vmul.f32 %v7756, %v630
    %v7759 = vadd.f32 %v7757, 1e-05
    %v7760 = vadd.f32 %v7758, 1e-05
    %v7761 = vrsqrt.pop %v7759
    %v7762 = vrsqrt.pop %v7760
    %v7763 = vmul.f32 %v7723, %v7761
    %v7764 = vmul.f32 %v7724, %v7762
    %v7765 = vmul.f32 %v7725, %v7761
    %v7766 = vmul.f32 %v7726, %v7762
    %v7767 = vmul.f32 %v7727, %v7761
    %v7768 = vmul.f32 %v7728, %v7762
    %v7769 = vmul.f32 %v7729, %v7761
    %v7770 = vmul.f32 %v7730, %v7762
    %7772 = vset.pattern.permute.xlu0 0
    %7773 = vperm.xlu0 %7772, %v7699
    %v7774 = vpop.permute.xlu0 %7773
    %7777 = vset.pattern.permute.xlu0 0
    %7778 = vperm.xlu0 %7777, %v7700
    %v7779 = vpop.permute.xlu0 %7778
    %7782 = vset.pattern.permute.xlu0 0
    %7783 = vperm.xlu0 %7782, %v7701
    %v7784 = vpop.permute.xlu0 %7783
    %7787 = vset.pattern.permute.xlu0 0
    %7788 = vperm.xlu0 %7787, %v7702
    %v7789 = vpop.permute.xlu0 %7788
    %v7791 = vmul.f32 %v7763, %v7774
    %v7792 = vmul.f32 %v7764, %v7774
    %v7793 = vmul.f32 %v7765, %v7779
    %v7794 = vmul.f32 %v7766, %v7779
    %v7795 = vmul.f32 %v7767, %v7784
    %v7796 = vmul.f32 %v7768, %v7784
    %v7797 = vmul.f32 %v7769, %v7789
    %v7798 = vmul.f32 %v7770, %v7789
    %7799 = vset.pattern.permute.xlu0 1
    %7800 = vperm.xlu0 %7799, %v7699
    %v7801 = vpop.permute.xlu0 %7800
    %7803 = vset.pattern.permute.xlu0 1
    %7804 = vperm.xlu0 %7803, %v7700
    %v7805 = vpop.permute.xlu0 %7804
    %7807 = vset.pattern.permute.xlu0 1
    %7808 = vperm.xlu0 %7807, %v7701
    %v7809 = vpop.permute.xlu0 %7808
    %7811 = vset.pattern.permute.xlu0 1
    %7812 = vperm.xlu0 %7811, %v7702
    %v7813 = vpop.permute.xlu0 %7812
    %v7815 = vadd.f32 %v7791, %v7801
    %v7816 = vadd.f32 %v7792, %v7801
    %v7817 = vadd.f32 %v7793, %v7805
    %v7818 = vadd.f32 %v7794, %v7805
    %v7819 = vadd.f32 %v7795, %v7809
    %v7820 = vadd.f32 %v7796, %v7809
    %v7821 = vadd.f32 %v7797, %v7813
    %v7822 = vadd.f32 %v7798, %v7813
    %v7823 = vpack.c.bf16 %v7817, %v7815
    %v7824 = vpack.c.bf16 %v7818, %v7816
    %v7825 = vpack.c.bf16 %v7821, %v7819
    %v7826 = vpack.c.bf16 %v7822, %v7820
    %v7827 = vld [vmem:[%s3] sm:$0xff]
    %v7828 = vld [vmem:[%s3 + $0x8] sm:$0xff]
    %v7829 = vld [vmem:[%s3 + $0x10] sm:$0xff]
    %v7830 = vld [vmem:[%s3 + $0x18] sm:$0xff]
    %v7831 = vld [vmem:[%s3 + $0x20] sm:$0xff]
    %v7832 = vld [vmem:[%s3 + $0x28] sm:$0xff]
    %v7833 = vld [vmem:[%s3 + $0x30] sm:$0xff]
    %v7834 = vld [vmem:[%s3 + $0x38] sm:$0xff]
    %v7835 = vld [vmem:[%s3 + $0x40] sm:$0xff]
    %v7836 = vld [vmem:[%s3 + $0x48] sm:$0xff]
    %v7837 = vld [vmem:[%s3 + $0x50] sm:$0xff]
    %v7838 = vld [vmem:[%s3 + $0x58] sm:$0xff]
    %v7839 = vld [vmem:[%s3 + $0x60] sm:$0xff]
    %v7840 = vld [vmem:[%s3 + $0x68] sm:$0xff]
    %v7841 = vld [vmem:[%s3 + $0x70] sm:$0xff]
    %v7842 = vld [vmem:[%s3 + $0x78] sm:$0xff]
    %v7843 = vld [vmem:[%s3 + $0x80] sm:$0xff]
    %v7844 = vld [vmem:[%s3 + $0x88] sm:$0xff]
    %v7845 = vld [vmem:[%s3 + $0x90] sm:$0xff]
    %v7846 = vld [vmem:[%s3 + $0x98] sm:$0xff]
    %v7847 = vld [vmem:[%s3 + $0xa0] sm:$0xff]
    %v7848 = vld [vmem:[%s3 + $0xa8] sm:$0xff]
    %v7849 = vld [vmem:[%s3 + $0xb0] sm:$0xff]
    %v7850 = vld [vmem:[%s3 + $0xb8] sm:$0xff]
    %v7851 = vld [vmem:[%s3 + $0xc0] sm:$0xff]
    %v7852 = vld [vmem:[%s3 + $0xc8] sm:$0xff]
    %v7853 = vld [vmem:[%s3 + $0xd0] sm:$0xff]
    %v7854 = vld [vmem:[%s3 + $0xd8] sm:$0xff]
    %v7855 = vld [vmem:[%s3 + $0xe0] sm:$0xff]
    %v7856 = vld [vmem:[%s3 + $0xe8] sm:$0xff]
    %v7857 = vld [vmem:[%s3 + $0xf0] sm:$0xff]
    %v7858 = vld [vmem:[%s3 + $0xf8] sm:$0xff]
    %v7891 = vunpack.c.l.b16 %v7827
    %v7892 = vunpack.c.h.b16 %v7827
    %v7893 = vunpack.c.l.b16 %v7828
    %v7894 = vunpack.c.h.b16 %v7828
    %v7895 = vunpack.c.l.b16 %v7829
    %v7896 = vunpack.c.h.b16 %v7829
    %v7897 = vunpack.c.l.b16 %v7830
    %v7898 = vunpack.c.h.b16 %v7830
    %v7899 = vunpack.c.l.b16 %v7831
    %v7900 = vunpack.c.h.b16 %v7831
    %v7901 = vunpack.c.l.b16 %v7832
    %v7902 = vunpack.c.h.b16 %v7832
    %v7903 = vunpack.c.l.b16 %v7833
    %v7904 = vunpack.c.h.b16 %v7833
    %v7905 = vunpack.c.l.b16 %v7834
    %v7906 = vunpack.c.h.b16 %v7834
    %v7907 = vunpack.c.l.b16 %v7835
    %v7908 = vunpack.c.h.b16 %v7835
    %v7909 = vunpack.c.l.b16 %v7836
    %v7910 = vunpack.c.h.b16 %v7836
    %v7911 = vunpack.c.l.b16 %v7837
    %v7912 = vunpack.c.h.b16 %v7837
    %v7913 = vunpack.c.l.b16 %v7838
    %v7914 = vunpack.c.h.b16 %v7838
    %v7915 = vunpack.c.l.b16 %v7839
    %v7916 = vunpack.c.h.b16 %v7839
    %v7917 = vunpack.c.l.b16 %v7840
    %v7918 = vunpack.c.h.b16 %v7840
    %v7919 = vunpack.c.l.b16 %v7841
    %v7920 = vunpack.c.h.b16 %v7841
    %v7921 = vunpack.c.l.b16 %v7842
    %v7922 = vunpack.c.h.b16 %v7842
    %v7923 = vunpack.c.l.b16 %v7843
    %v7924 = vunpack.c.h.b16 %v7843
    %v7925 = vunpack.c.l.b16 %v7844
    %v7926 = vunpack.c.h.b16 %v7844
    %v7927 = vunpack.c.l.b16 %v7845
    %v7928 = vunpack.c.h.b16 %v7845
    %v7929 = vunpack.c.l.b16 %v7846
    %v7930 = vunpack.c.h.b16 %v7846
    %v7931 = vunpack.c.l.b16 %v7847
    %v7932 = vunpack.c.h.b16 %v7847
    %v7933 = vunpack.c.l.b16 %v7848
    %v7934 = vunpack.c.h.b16 %v7848
    %v7935 = vunpack.c.l.b16 %v7849
    %v7936 = vunpack.c.h.b16 %v7849
    %v7937 = vunpack.c.l.b16 %v7850
    %v7938 = vunpack.c.h.b16 %v7850
    %v7939 = vunpack.c.l.b16 %v7851
    %v7940 = vunpack.c.h.b16 %v7851
    %v7941 = vunpack.c.l.b16 %v7852
    %v7942 = vunpack.c.h.b16 %v7852
    %v7943 = vunpack.c.l.b16 %v7853
    %v7944 = vunpack.c.h.b16 %v7853
    %v7945 = vunpack.c.l.b16 %v7854
    %v7946 = vunpack.c.h.b16 %v7854
    %v7947 = vunpack.c.l.b16 %v7855
    %v7948 = vunpack.c.h.b16 %v7855
    %v7949 = vunpack.c.l.b16 %v7856
    %v7950 = vunpack.c.h.b16 %v7856
    %v7951 = vunpack.c.l.b16 %v7857
    %v7952 = vunpack.c.h.b16 %v7857
    %v7953 = vunpack.c.l.b16 %v7858
    %v7954 = vunpack.c.h.b16 %v7858
    %v7955 = vpack.c.b16 %v7895, %v7891
    %v7956 = vpack.c.b16 %v7896, %v7892
    %v7957 = vpack.c.b16 %v7897, %v7893
    %v7958 = vpack.c.b16 %v7898, %v7894
    %v7959 = vpack.c.b16 %v7903, %v7899
    %v7960 = vpack.c.b16 %v7904, %v7900
    %v7961 = vpack.c.b16 %v7905, %v7901
    %v7962 = vpack.c.b16 %v7906, %v7902
    %v7963 = vpack.c.b16 %v7911, %v7907
    %v7964 = vpack.c.b16 %v7912, %v7908
    %v7965 = vpack.c.b16 %v7913, %v7909
    %v7966 = vpack.c.b16 %v7914, %v7910
    %v7967 = vpack.c.b16 %v7919, %v7915
    %v7968 = vpack.c.b16 %v7920, %v7916
    %v7969 = vpack.c.b16 %v7921, %v7917
    %v7970 = vpack.c.b16 %v7922, %v7918
    %v7971 = vpack.c.b16 %v7927, %v7923
    %v7972 = vpack.c.b16 %v7928, %v7924
    %v7973 = vpack.c.b16 %v7929, %v7925
    %v7974 = vpack.c.b16 %v7930, %v7926
    %v7975 = vpack.c.b16 %v7935, %v7931
    %v7976 = vpack.c.b16 %v7936, %v7932
    %v7977 = vpack.c.b16 %v7937, %v7933
    %v7978 = vpack.c.b16 %v7938, %v7934
    %v7979 = vpack.c.b16 %v7943, %v7939
    %v7980 = vpack.c.b16 %v7944, %v7940
    %v7981 = vpack.c.b16 %v7945, %v7941
    %v7982 = vpack.c.b16 %v7946, %v7942
    %v7983 = vpack.c.b16 %v7951, %v7947
    %v7984 = vpack.c.b16 %v7952, %v7948
    %v7985 = vpack.c.b16 %v7953, %v7949
    %v7986 = vpack.c.b16 %v7954, %v7950
    %8019 = vmatprep.subr.bf16.mxu0 %v7956
    %8020 = vmatpush1.bf16.msra.mxu0 %v7955
    %8021 = vmatprep.subr.bf16.mxu0 %v7960
    %8022 = vmatpush1.bf16.msra.mxu0 %v7959
    %8023 = vmatprep.subr.bf16.mxu0 %v7964
    %8024 = vmatpush1.bf16.msra.mxu0 %v7963
    %8025 = vmatprep.subr.bf16.mxu0 %v7968
    %8026 = vmatpush1.bf16.msra.mxu0 %v7967
    %8027 = vmatprep.subr.bf16.mxu0 %v7972
    %8028 = vmatpush1.bf16.msra.mxu0 %v7971
    %8029 = vmatprep.subr.bf16.mxu0 %v7976
    %8030 = vmatpush1.bf16.msra.mxu0 %v7975
    %8031 = vmatprep.subr.bf16.mxu0 %v7980
    %8032 = vmatpush1.bf16.msra.mxu0 %v7979
    %8033 = vmatprep.subr.bf16.mxu0 %v7984
    %8034 = vmatpush1.bf16.msra.mxu0 %v7983
    %8035 = vmatprep.subr.bf16.mxu0 0
    %8036 = vmatpush1.bf16.msra.mxu0 0
    %8037 = vmatprep.subr.bf16.mxu0 0
    %8038 = vmatpush1.bf16.msra.mxu0 0
    %8039 = vmatprep.subr.bf16.mxu0 0
    %8040 = vmatpush1.bf16.msra.mxu0 0
    %8041 = vmatprep.subr.bf16.mxu0 0
    %8042 = vmatpush1.bf16.msra.mxu0 0
    %8043 = vmatprep.subr.bf16.mxu0 0
    %8044 = vmatpush1.bf16.msra.mxu0 0
    %8045 = vmatprep.subr.bf16.mxu0 0
    %8046 = vmatpush1.bf16.msra.mxu0 0
    %8047 = vmatprep.subr.bf16.mxu0 0
    %8048 = vmatpush1.bf16.msra.mxu0 0
    %8049 = vmatprep.subr.bf16.mxu0 0
    %8050 = vmatpush1.bf16.msra.mxu0 0
    %8051 = vmatprep.mubr.bf16.mxu0 0
    %8052 = vmatmul.mubr.bf16.gmra.mrb[0].mxu0 %v7823
    %v8053 = vpop.f32.mrb[0].mxu0
    %v8054 = vadd.f32 0.0, %v8053
    %v8055 = vpop.f32.mrb[0].mxu0
    %v8056 = vadd.f32 0.0, %v8055
    %v8057 = vpop.f32.mrb[0].mxu0
    %v8058 = vadd.f32 0.0, %v8057
    %v8059 = vpop.f32.mrb[0].mxu0
    %v8060 = vadd.f32 0.0, %v8059
    %8061 = vmatprep.mubr.bf16.mxu0 0
    %8062 = vmatmul.mubr.bf16.gmra.mrb[0].mxu0 %v7825
    %v8063 = vpop.f32.mrb[0].mxu0
    %v8064 = vadd.f32 0.0, %v8063
    %v8065 = vpop.f32.mrb[0].mxu0
    %v8066 = vadd.f32 0.0, %v8065
    %v8067 = vpop.f32.mrb[0].mxu0
    %v8068 = vadd.f32 0.0, %v8067
    %v8069 = vpop.f32.mrb[0].mxu0
    %v8070 = vadd.f32 0.0, %v8069
    %8071 = vdwg.mxu0
    %8072 = vmatprep.subr.bf16.mxu0 %v7958
    %8073 = vmatpush1.bf16.msra.mxu0 %v7957
    %8074 = vmatprep.subr.bf16.mxu0 %v7962
    %8075 = vmatpush1.bf16.msra.mxu0 %v7961
    %8076 = vmatprep.subr.bf16.mxu0 %v7966
    %8077 = vmatpush1.bf16.msra.mxu0 %v7965
    %8078 = vmatprep.subr.bf16.mxu0 %v7970
    %8079 = vmatpush1.bf16.msra.mxu0 %v7969
    %8080 = vmatprep.subr.bf16.mxu0 %v7974
    %8081 = vmatpush1.bf16.msra.mxu0 %v7973
    %8082 = vmatprep.subr.bf16.mxu0 %v7978
    %8083 = vmatpush1.bf16.msra.mxu0 %v7977
    %8084 = vmatprep.subr.bf16.mxu0 %v7982
    %8085 = vmatpush1.bf16.msra.mxu0 %v7981
    %8086 = vmatprep.subr.bf16.mxu0 %v7986
    %8087 = vmatpush1.bf16.msra.mxu0 %v7985
    %8088 = vmatprep.subr.bf16.mxu0 0
    %8089 = vmatpush1.bf16.msra.mxu0 0
    %8090 = vmatprep.subr.bf16.mxu0 0
    %8091 = vmatpush1.bf16.msra.mxu0 0
    %8092 = vmatprep.subr.bf16.mxu0 0
    %8093 = vmatpush1.bf16.msra.mxu0 0
    %8094 = vmatprep.subr.bf16.mxu0 0
    %8095 = vmatpush1.bf16.msra.mxu0 0
    %8096 = vmatprep.subr.bf16.mxu0 0
    %8097 = vmatpush1.bf16.msra.mxu0 0
    %8098 = vmatprep.subr.bf16.mxu0 0
    %8099 = vmatpush1.bf16.msra.mxu0 0
    %8100 = vmatprep.subr.bf16.mxu0 0
    %8101 = vmatpush1.bf16.msra.mxu0 0
    %8102 = vmatprep.subr.bf16.mxu0 0
    %8103 = vmatpush1.bf16.msra.mxu0 0
    %8104 = vmatprep.mubr.bf16.mxu0 0
    %8105 = vmatmul.mubr.bf16.gmra.mrb[0].mxu0 %v7823
    %v8106 = vpop.f32.mrb[0].mxu0
    %v8107 = vadd.f32 0.0, %v8106
    %v8108 = vpop.f32.mrb[0].mxu0
    %v8109 = vadd.f32 0.0, %v8108
    %v8110 = vpop.f32.mrb[0].mxu0
    %v8111 = vadd.f32 0.0, %v8110
    %v8112 = vpop.f32.mrb[0].mxu0
    %v8113 = vadd.f32 0.0, %v8112
    %8114 = vmatprep.mubr.bf16.mxu0 0
    %8115 = vmatmul.mubr.bf16.gmra.mrb[0].mxu0 %v7825
    %v8116 = vpop.f32.mrb[0].mxu0
    %v8117 = vadd.f32 0.0, %v8116
    %v8118 = vpop.f32.mrb[0].mxu0
    %v8119 = vadd.f32 0.0, %v8118
    %v8120 = vpop.f32.mrb[0].mxu0
    %v8121 = vadd.f32 0.0, %v8120
    %v8122 = vpop.f32.mrb[0].mxu0
    %v8123 = vadd.f32 0.0, %v8122
    %8124 = vdwg.mxu0
    %8125 = vst [vmem:[#allocation2] sm:$0xff] %v8054
    %8126 = vst [vmem:[#allocation2 + $0x8] sm:$0xff] %v8056
    %8127 = vst [vmem:[#allocation2 + $0x10] sm:$0xff] %v8107
    %8128 = vst [vmem:[#allocation2 + $0x18] sm:$0xff] %v8109
    %8129 = vst [vmem:[#allocation2 + $0x20] sm:$0xff] %v8058
    %8130 = vst [vmem:[#allocation2 + $0x28] sm:$0xff] %v8060
    %8131 = vst [vmem:[#allocation2 + $0x30] sm:$0xff] %v8111
    %8132 = vst [vmem:[#allocation2 + $0x38] sm:$0xff] %v8113
    %8133 = vst [vmem:[#allocation2 + $0x40] sm:$0xff] %v8064
    %8134 = vst [vmem:[#allocation2 + $0x48] sm:$0xff] %v8066
    %8135 = vst [vmem:[#allocation2 + $0x50] sm:$0xff] %v8117
    %8136 = vst [vmem:[#allocation2 + $0x58] sm:$0xff] %v8119
    %8137 = vst [vmem:[#allocation2 + $0x60] sm:$0xff] %v8068
    %8138 = vst [vmem:[#allocation2 + $0x68] sm:$0xff] %v8070
    %8139 = vst [vmem:[#allocation2 + $0x70] sm:$0xff] %v8121
    %8140 = vst [vmem:[#allocation2 + $0x78] sm:$0xff] %v8123
    %v8141 = vld [vmem:[%s3] sm:$0xff]
    %v8142 = vld [vmem:[%s3 + $0x8] sm:$0xff]
    %v8143 = vld [vmem:[%s3 + $0x10] sm:$0xff]
    %v8144 = vld [vmem:[%s3 + $0x18] sm:$0xff]
    %v8145 = vld [vmem:[%s3 + $0x20] sm:$0xff]
    %v8146 = vld [vmem:[%s3 + $0x28] sm:$0xff]
    %v8147 = vld [vmem:[%s3 + $0x30] sm:$0xff]
    %v8148 = vld [vmem:[%s3 + $0x38] sm:$0xff]
    %v8149 = vld [vmem:[%s3 + $0x40] sm:$0xff]
    %v8150 = vld [vmem:[%s3 + $0x48] sm:$0xff]
    %v8151 = vld [vmem:[%s3 + $0x50] sm:$0xff]
    %v8152 = vld [vmem:[%s3 + $0x58] sm:$0xff]
    %v8153 = vld [vmem:[%s3 + $0x60] sm:$0xff]
    %v8154 = vld [vmem:[%s3 + $0x68] sm:$0xff]
    %v8155 = vld [vmem:[%s3 + $0x70] sm:$0xff]
    %v8156 = vld [vmem:[%s3 + $0x78] sm:$0xff]
    %v8157 = vld [vmem:[%s3 + $0x80] sm:$0xff]
    %v8158 = vld [vmem:[%s3 + $0x88] sm:$0xff]
    %v8159 = vld [vmem:[%s3 + $0x90] sm:$0xff]
    %v8160 = vld [vmem:[%s3 + $0x98] sm:$0xff]
    %v8161 = vld [vmem:[%s3 + $0xa0] sm:$0xff]
    %v8162 = vld [vmem:[%s3 + $0xa8] sm:$0xff]
    %v8163 = vld [vmem:[%s3 + $0xb0] sm:$0xff]
    %v8164 = vld [vmem:[%s3 + $0xb8] sm:$0xff]
    %v8165 = vld [vmem:[%s3 + $0xc0] sm:$0xff]
    %v8166 = vld [vmem:[%s3 + $0xc8] sm:$0xff]
    %v8167 = vld [vmem:[%s3 + $0xd0] sm:$0xff]
    %v8168 = vld [vmem:[%s3 + $0xd8] sm:$0xff]
    %v8169 = vld [vmem:[%s3 + $0xe0] sm:$0xff]
    %v8170 = vld [vmem:[%s3 + $0xe8] sm:$0xff]
    %v8171 = vld [vmem:[%s3 + $0xf0] sm:$0xff]
    %v8172 = vld [vmem:[%s3 + $0xf8] sm:$0xff]
    %v8205 = vunpack.c.l.b16 %v8141
    %v8206 = vunpack.c.h.b16 %v8141
    %v8207 = vunpack.c.l.b16 %v8142
    %v8208 = vunpack.c.h.b16 %v8142
    %v8209 = vunpack.c.l.b16 %v8143
    %v8210 = vunpack.c.h.b16 %v8143
    %v8211 = vunpack.c.l.b16 %v8144
    %v8212 = vunpack.c.h.b16 %v8144
    %v8213 = vunpack.c.l.b16 %v8145
    %v8214 = vunpack.c.h.b16 %v8145
    %v8215 = vunpack.c.l.b16 %v8146
    %v8216 = vunpack.c.h.b16 %v8146
    %v8217 = vunpack.c.l.b16 %v8147
    %v8218 = vunpack.c.h.b16 %v8147
    %v8219 = vunpack.c.l.b16 %v8148
    %v8220 = vunpack.c.h.b16 %v8148
    %v8221 = vunpack.c.l.b16 %v8149
    %v8222 = vunpack.c.h.b16 %v8149
    %v8223 = vunpack.c.l.b16 %v8150
    %v8224 = vunpack.c.h.b16 %v8150
    %v8225 = vunpack.c.l.b16 %v8151
    %v8226 = vunpack.c.h.b16 %v8151
    %v8227 = vunpack.c.l.b16 %v8152
    %v8228 = vunpack.c.h.b16 %v8152
    %v8229 = vunpack.c.l.b16 %v8153
    %v8230 = vunpack.c.h.b16 %v8153
    %v8231 = vunpack.c.l.b16 %v8154
    %v8232 = vunpack.c.h.b16 %v8154
    %v8233 = vunpack.c.l.b16 %v8155
    %v8234 = vunpack.c.h.b16 %v8155
    %v8235 = vunpack.c.l.b16 %v8156
    %v8236 = vunpack.c.h.b16 %v8156
    %v8237 = vunpack.c.l.b16 %v8157
    %v8238 = vunpack.c.h.b16 %v8157
    %v8239 = vunpack.c.l.b16 %v8158
    %v8240 = vunpack.c.h.b16 %v8158
    %v8241 = vunpack.c.l.b16 %v8159
    %v8242 = vunpack.c.h.b16 %v8159
    %v8243 = vunpack.c.l.b16 %v8160
    %v8244 = vunpack.c.h.b16 %v8160
    %v8245 = vunpack.c.l.b16 %v8161
    %v8246 = vunpack.c.h.b16 %v8161
    %v8247 = vunpack.c.l.b16 %v8162
    %v8248 = vunpack.c.h.b16 %v8162
    %v8249 = vunpack.c.l.b16 %v8163
    %v8250 = vunpack.c.h.b16 %v8163
    %v8251 = vunpack.c.l.b16 %v8164
    %v8252 = vunpack.c.h.b16 %v8164
    %v8253 = vunpack.c.l.b16 %v8165
    %v8254 = vunpack.c.h.b16 %v8165
    %v8255 = vunpack.c.l.b16 %v8166
    %v8256 = vunpack.c.h.b16 %v8166
    %v8257 = vunpack.c.l.b16 %v8167
    %v8258 = vunpack.c.h.b16 %v8167
    %v8259 = vunpack.c.l.b16 %v8168
    %v8260 = vunpack.c.h.b16 %v8168
    %v8261 = vunpack.c.l.b16 %v8169
    %v8262 = vunpack.c.h.b16 %v8169
    %v8263 = vunpack.c.l.b16 %v8170
    %v8264 = vunpack.c.h.b16 %v8170
    %v8265 = vunpack.c.l.b16 %v8171
    %v8266 = vunpack.c.h.b16 %v8171
    %v8267 = vunpack.c.l.b16 %v8172
    %v8268 = vunpack.c.h.b16 %v8172
    %v8269 = vpack.c.b16 %v8209, %v8205
    %v8270 = vpack.c.b16 %v8210, %v8206
    %v8271 = vpack.c.b16 %v8211, %v8207
    %v8272 = vpack.c.b16 %v8212, %v8208
    %v8273 = vpack.c.b16 %v8217, %v8213
    %v8274 = vpack.c.b16 %v8218, %v8214
    %v8275 = vpack.c.b16 %v8219, %v8215
    %v8276 = vpack.c.b16 %v8220, %v8216
    %v8277 = vpack.c.b16 %v8225, %v8221
    %v8278 = vpack.c.b16 %v8226, %v8222
    %v8279 = vpack.c.b16 %v8227, %v8223
    %v8280 = vpack.c.b16 %v8228, %v8224
    %v8281 = vpack.c.b16 %v8233, %v8229
    %v8282 = vpack.c.b16 %v8234, %v8230
    %v8283 = vpack.c.b16 %v8235, %v8231
    %v8284 = vpack.c.b16 %v8236, %v8232
    %v8285 = vpack.c.b16 %v8241, %v8237
    %v8286 = vpack.c.b16 %v8242, %v8238
    %v8287 = vpack.c.b16 %v8243, %v8239
    %v8288 = vpack.c.b16 %v8244, %v8240
    %v8289 = vpack.c.b16 %v8249, %v8245
    %v8290 = vpack.c.b16 %v8250, %v8246
    %v8291 = vpack.c.b16 %v8251, %v8247
    %v8292 = vpack.c.b16 %v8252, %v8248
    %v8293 = vpack.c.b16 %v8257, %v8253
    %v8294 = vpack.c.b16 %v8258, %v8254
    %v8295 = vpack.c.b16 %v8259, %v8255
    %v8296 = vpack.c.b16 %v8260, %v8256
    %v8297 = vpack.c.b16 %v8265, %v8261
    %v8298 = vpack.c.b16 %v8266, %v8262
    %v8299 = vpack.c.b16 %v8267, %v8263
    %v8300 = vpack.c.b16 %v8268, %v8264
    %8333 = vmatprep.subr.bf16.mxu0 %v8270
    %8334 = vmatpush1.bf16.msra.mxu0 %v8269
    %8335 = vmatprep.subr.bf16.mxu0 %v8274
    %8336 = vmatpush1.bf16.msra.mxu0 %v8273
    %8337 = vmatprep.subr.bf16.mxu0 %v8278
    %8338 = vmatpush1.bf16.msra.mxu0 %v8277
    %8339 = vmatprep.subr.bf16.mxu0 %v8282
    %8340 = vmatpush1.bf16.msra.mxu0 %v8281
    %8341 = vmatprep.subr.bf16.mxu0 %v8286
    %8342 = vmatpush1.bf16.msra.mxu0 %v8285
    %8343 = vmatprep.subr.bf16.mxu0 %v8290
    %8344 = vmatpush1.bf16.msra.mxu0 %v8289
    %8345 = vmatprep.subr.bf16.mxu0 %v8294
    %8346 = vmatpush1.bf16.msra.mxu0 %v8293
    %8347 = vmatprep.subr.bf16.mxu0 %v8298
    %8348 = vmatpush1.bf16.msra.mxu0 %v8297
    %8349 = vmatprep.subr.bf16.mxu0 0
    %8350 = vmatpush1.bf16.msra.mxu0 0
    %8351 = vmatprep.subr.bf16.mxu0 0
    %8352 = vmatpush1.bf16.msra.mxu0 0
    %8353 = vmatprep.subr.bf16.mxu0 0
    %8354 = vmatpush1.bf16.msra.mxu0 0
    %8355 = vmatprep.subr.bf16.mxu0 0
    %8356 = vmatpush1.bf16.msra.mxu0 0
    %8357 = vmatprep.subr.bf16.mxu0 0
    %8358 = vmatpush1.bf16.msra.mxu0 0
    %8359 = vmatprep.subr.bf16.mxu0 0
    %8360 = vmatpush1.bf16.msra.mxu0 0
    %8361 = vmatprep.subr.bf16.mxu0 0
    %8362 = vmatpush1.bf16.msra.mxu0 0
    %8363 = vmatprep.subr.bf16.mxu0 0
    %8364 = vmatpush1.bf16.msra.mxu0 0
    %8365 = vmatprep.mubr.bf16.mxu0 0
    %8366 = vmatmul.mubr.bf16.gmra.mrb[0].mxu0 %v7824
    %v8367 = vpop.f32.mrb[0].mxu0
    %v8368 = vadd.f32 0.0, %v8367
    %v8369 = vpop.f32.mrb[0].mxu0
    %v8370 = vadd.f32 0.0, %v8369
    %v8371 = vpop.f32.mrb[0].mxu0
    %v8372 = vadd.f32 0.0, %v8371
    %v8373 = vpop.f32.mrb[0].mxu0
    %v8374 = vadd.f32 0.0, %v8373
    %8375 = vmatprep.mubr.bf16.mxu0 0
    %8376 = vmatmul.mubr.bf16.gmra.mrb[0].mxu0 %v7826
    %v8377 = vpop.f32.mrb[0].mxu0
    %v8378 = vadd.f32 0.0, %v8377
    %v8379 = vpop.f32.mrb[0].mxu0
    %v8380 = vadd.f32 0.0, %v8379
    %v8381 = vpop.f32.mrb[0].mxu0
    %v8382 = vadd.f32 0.0, %v8381
    %v8383 = vpop.f32.mrb[0].mxu0
    %v8384 = vadd.f32 0.0, %v8383
    %8385 = vdwg.mxu0
    %8386 = vmatprep.subr.bf16.mxu0 %v8272
    %8387 = vmatpush1.bf16.msra.mxu0 %v8271
    %8388 = vmatprep.subr.bf16.mxu0 %v8276
    %8389 = vmatpush1.bf16.msra.mxu0 %v8275
    %8390 = vmatprep.subr.bf16.mxu0 %v8280
    %8391 = vmatpush1.bf16.msra.mxu0 %v8279
    %8392 = vmatprep.subr.bf16.mxu0 %v8284
    %8393 = vmatpush1.bf16.msra.mxu0 %v8283
    %8394 = vmatprep.subr.bf16.mxu0 %v8288
    %8395 = vmatpush1.bf16.msra.mxu0 %v8287
    %8396 = vmatprep.subr.bf16.mxu0 %v8292
    %8397 = vmatpush1.bf16.msra.mxu0 %v8291
    %8398 = vmatprep.subr.bf16.mxu0 %v8296
    %8399 = vmatpush1.bf16.msra.mxu0 %v8295
    %8400 = vmatprep.subr.bf16.mxu0 %v8300
    %8401 = vmatpush1.bf16.msra.mxu0 %v8299
    %8402 = vmatprep.subr.bf16.mxu0 0
    %8403 = vmatpush1.bf16.msra.mxu0 0
    %8404 = vmatprep.subr.bf16.mxu0 0
    %8405 = vmatpush1.bf16.msra.mxu0 0
    %8406 = vmatprep.subr.bf16.mxu0 0
    %8407 = vmatpush1.bf16.msra.mxu0 0
    %8408 = vmatprep.subr.bf16.mxu0 0
    %8409 = vmatpush1.bf16.msra.mxu0 0
    %8410 = vmatprep.subr.bf16.mxu0 0
    %8411 = vmatpush1.bf16.msra.mxu0 0
    %8412 = vmatprep.subr.bf16.mxu0 0
    %8413 = vmatpush1.bf16.msra.mxu0 0
    %8414 = vmatprep.subr.bf16.mxu0 0
    %8415 = vmatpush1.bf16.msra.mxu0 0
    %8416 = vmatprep.subr.bf16.mxu0 0
    %8417 = vmatpush1.bf16.msra.mxu0 0
    %8418 = vmatprep.mubr.bf16.mxu0 0
    %8419 = vmatmul.mubr.bf16.gmra.mrb[0].mxu0 %v7824
    %v8420 = vpop.f32.mrb[0].mxu0
    %v8421 = vadd.f32 0.0, %v8420
    %v8422 = vpop.f32.mrb[0].mxu0
    %v8423 = vadd.f32 0.0, %v8422
    %v8424 = vpop.f32.mrb[0].mxu0
    %v8425 = vadd.f32 0.0, %v8424
    %v8426 = vpop.f32.mrb[0].mxu0
    %v8427 = vadd.f32 0.0, %v8426
    %8428 = vmatprep.mubr.bf16.mxu0 0
    %8429 = vmatmul.mubr.bf16.gmra.mrb[0].mxu0 %v7826
    %v8430 = vpop.f32.mrb[0].mxu0
    %v8431 = vadd.f32 0.0, %v8430
    %v8432 = vpop.f32.mrb[0].mxu0
    %v8433 = vadd.f32 0.0, %v8432
    %v8434 = vpop.f32.mrb[0].mxu0
    %v8435 = vadd.f32 0.0, %v8434
    %v8436 = vpop.f32.mrb[0].mxu0
    %v8437 = vadd.f32 0.0, %v8436
    %8438 = vdwg.mxu0
    %s8439 = scalar_lea.vmem [#allocation2], 128
    %8440 = vst [vmem:[%s8439] sm:$0xff] %v8368
    %8441 = vst [vmem:[%s8439 + $0x8] sm:$0xff] %v8370
    %8442 = vst [vmem:[%s8439 + $0x10] sm:$0xff] %v8421
    %8443 = vst [vmem:[%s8439 + $0x18] sm:$0xff] %v8423
    %8444 = vst [vmem:[%s8439 + $0x20] sm:$0xff] %v8372
    %8445 = vst [vmem:[%s8439 + $0x28] sm:$0xff] %v8374
    %8446 = vst [vmem:[%s8439 + $0x30] sm:$0xff] %v8425
    %8447 = vst [vmem:[%s8439 + $0x38] sm:$0xff] %v8427
    %8448 = vst [vmem:[%s8439 + $0x40] sm:$0xff] %v8378
    %8449 = vst [vmem:[%s8439 + $0x48] sm:$0xff] %v8380
    %8450 = vst [vmem:[%s8439 + $0x50] sm:$0xff] %v8431
    %8451 = vst [vmem:[%s8439 + $0x58] sm:$0xff] %v8433
    %8452 = vst [vmem:[%s8439 + $0x60] sm:$0xff] %v8382
    %8453 = vst [vmem:[%s8439 + $0x68] sm:$0xff] %v8384
    %8454 = vst [vmem:[%s8439 + $0x70] sm:$0xff] %v8435
    %8455 = vst [vmem:[%s8439 + $0x78] sm:$0xff] %v8437
    // Predicated region
    $region50: #{tpu_custom_call.1} parent=1 // pred_check
      _
    $region51: #{tpu_custom_call.1} parent=1 // pred_check_branch
      %8457 = sbr.rel (0) target = $region53
    $region52: #{tpu_custom_call.1} parent=1 // pred_region
      %s8459 = ssub.s32 4096, 4096
      %8460 = vsyncadd [#allocation3], %s8459
      %s8461 = sshll.u32 [#allocation2], 4
      %s8462 = int_to_ptr.vmem [resolvable:$true] %s8461
      %8467 = dma.vmem_to_hbm [thread:$0]  %s8462, 4096, %s12, [#allocation3], 512, 512, 32
    $region53: #{tpu_custom_call.1} parent=1 // pred_fallthru
      _
    // Predicated region
    $region54: #{tpu_custom_call.1} parent=1 // pred_check
      _
    $region55: #{tpu_custom_call.1} parent=1 // pred_check_branch
      %8469 = sbr.rel (0) target = $region57
    $region56: #{tpu_custom_call.1} parent=1 // pred_region
      %8470 = dma.done [#allocation3], 4096
    $region57: #{tpu_custom_call.1} parent=1 // pred_fallthru
      _
    %8471 = vsyncpa [#allocation3], 1

</llo_original>
